<compile_context>
chip_gen: v7x
topology: tpu7x:2x2x1
jax: 0.10.0
libtpu: 0.0.40
codegen_flags: <defaults>
</compile_context>

<pallas_src>
import jax
import jax.numpy as jnp
from jax.experimental import pallas as pl
from jax.experimental.pallas import tpu as pltpu

F32 = jnp.float32
HIGH = jax.lax.Precision.HIGHEST

# (name, kind, has_bn_relu, has_pool) -- kinds: conv | convT (stride 1) | convT2
LAYER_DEFS = (
    ('enc1', 'conv',   True,  True),
    ('enc2', 'conv',   True,  True),
    ('enc3', 'conv',   True,  True),
    ('enc4', 'conv',   False, False),
    ('dec1', 'convT',  True,  False),
    ('dec2', 'convT2', True,  False),
    ('dec3', 'convT2', True,  False),
    ('dec4', 'convT2', False, False),
)


# ------------------------------ fused kernel ------------------------------

def make_kernel(cfg):
    """cfg: per-layer static dicts (bn, relu, pool, wfirst, n=B*lout)."""

    def kernel(*refs):
        xb_ref, wf_ref, bf_ref = refs[:3]
        out_ref = refs[-1]
        lrefs = refs[3:-1]

        def mm(a, b):
            return jnp.dot(a, b, preferred_element_type=F32)

        # --- per-sensor SparseAutoencoder encoders: ONE block-diag matmul ---
        # x_big (C, C*B*L) @ W_full (C*B*L, B*H) -> (C, B*H), then bias + ReLU
        a = jnp.maximum(mm(xb_ref[...], wf_ref[...]) + bf_ref[...], 0.0)

        # --- fusion encoder / decoder: 8 conv layers, batch folded on lanes ---
        ri = 0
        for lyr in cfg:
            w0, w1, w2 = lrefs[ri][...], lrefs[ri + 1][...], lrefs[ri + 2][...]
            bias = lrefs[ri + 3][...]
            s0, s1, s2 = lrefs[ri + 4][...], lrefs[ri + 5][...], lrefs[ri + 6][...]
            ri += 7
            if lyr['bn']:
                gamma, beta = lrefs[ri][...], lrefs[ri + 1][...]
                ri += 2
            if lyr['pool']:
                se, so = lrefs[ri][...], lrefs[ri + 1][...]
                ri += 2

            # conv / convT as 3 independent tap matmuls; shift matrices are
            # pad∘shift (or dilate∘shift), block-diagonal over batch.
            if lyr['wfirst']:      # channel count shrinks: contract channels first
                y = (mm(mm(w0, a), s0) + mm(mm(w1, a), s1)
                     + mm(mm(w2, a), s2)) + bias
            else:                  # channel count grows: shift first
                y = (mm(w0, mm(a, s0)) + mm(w1, mm(a, s1))
                     + mm(w2, mm(a, s2))) + bias

            if lyr['bn']:          # train-mode BatchNorm1d, one-pass stats (f32)
                inv_n = 1.0 / float(lyr['n'])
                s = jnp.sum(y, axis=1, keepdims=True)
                ss = jnp.sum(y * y, axis=1, keepdims=True)
                mean = s * inv_n
                var = ss * inv_n - mean * mean
                y = (y - mean) * (jax.lax.rsqrt(var + 1e-5) * gamma) + beta
            if lyr['relu']:
                y = jnp.maximum(y, 0.0)
            if lyr['pool']:        # MaxPool1d(2,2) via two 0/1 selection matmuls
                y = jnp.maximum(mm(y, se), mm(y, so))
            a = y

        out_ref[...] = a           # single (C, B*H) lane-dense store

    return kernel


def make_forward(cfg, B, C, L, H):
    kernel = make_kernel(cfg)
    eyeC = jnp.eye(C, dtype=F32)

    def fwd(x, *arrays):
        # wrapper-side layout plumbing (XLA): (B,C,L) -> sensor-block-diag slab
        x_cbl = jnp.transpose(x, (1, 0, 2)).reshape(C, B * L)          # (C, B*L)
        x_big = (eyeC[:, :, None] * x_cbl[:, None, :]).reshape(C, C * B * L)
        n_in = 1 + len(arrays)
        out = pl.pallas_call(
            kernel,
            in_specs=[pl.BlockSpec(memory_space=pltpu.MemorySpace.VMEM)
                      for _ in range(n_in)],
            out_specs=pl.BlockSpec(memory_space=pltpu.MemorySpace.VMEM),
            out_shape=jax.ShapeDtypeStruct((C, B * H), F32),
        )(x_big, *arrays)
        # (C, B*H) -> (B, C, H): the module's output layout
        return jnp.transpose(out.reshape(C, B, H), (1, 0, 2))

    return jax.jit(fwd)


# ------------------- one-time (hoisted) parameter prep -------------------

def _shift_mat(lin, lout, kind, k):
    """0/1 matrix mapping input position -> window-k of the (padded/dilated) signal."""
    l = jnp.arange(lin)[:, None]
    j = jnp.arange(lout)[None, :]
    if kind == 'convT2':                   # zero-dilate(x2) + pad-1, window k
        return (j == 2 * l + 1 - k).astype(F32)
    return (l == j + k - 1).astype(F32)    # pad-1, window k (conv / convT stride 1)


def _block_diag_batch(m, B):
    """Replicate a (lin, lout) matrix block-diagonally over the batch lanes."""
    lin, lout = m.shape
    return (jnp.eye(B, dtype=F32)[:, None, :, None]
            * m[None, :, None, :]).reshape(B * lin, B * lout)


def prepare_params(P, B, C, L, H):
    """Precompute kernel-ready weights + pad/dilate/shift/pool matrices (once)."""
    # per-sensor Linear folded into ONE block-diagonal matmul producing (C, B*H)
    lwT = jnp.transpose(P['lin_w'], (0, 2, 1))                         # (C, L, H)
    eyeB = jnp.eye(B, dtype=F32)
    W_full = jnp.einsum('clh,bd->cbldh', lwT, eyeB).reshape(C * B * L, B * H)
    b_full = jnp.broadcast_to(P['lin_b'][:, None, :], (C, B, H)).reshape(C, B * H)
    arrays = [W_full, b_full]

    cfg = []
    cur = H
    for name, kind, bn, pool in LAYER_DEFS:
        p = P[name]
        if kind == 'conv':                 # PyTorch Conv1d weight (Cout, Cin, 3)
            cout, cin = p['w'].shape[0], p['w'].shape[1]
            taps = [p['w'][:, :, k] for k in range(3)]                 # (Cout, Cin)
        else:                              # ConvTranspose1d weight (Cin, Cout, 3): flip
            cin, cout = p['w'].shape[0], p['w'].shape[1]
            taps = [jnp.transpose(p['w'][:, :, 2 - k]) for k in range(3)]
        lin = cur
        lout = 2 * lin if kind == 'convT2' else lin
        shifts = [_block_diag_batch(_shift_mat(lin, lout, kind, k), B)
                  for k in range(3)]                                    # (B*lin, B*lout)
        arrays += taps + [p['b'].reshape(cout, 1)] + shifts
        if bn:
            arrays += [p['g'].reshape(cout, 1), p['beta'].reshape(cout, 1)]
        if pool:
            half = lout // 2
            t = jnp.arange(half)
            se = jnp.zeros((lout, half), F32).at[2 * t, t].set(1.0)
            so = jnp.zeros((lout, half), F32).at[2 * t + 1, t].set(1.0)
            arrays += [_block_diag_batch(se, B), _block_diag_batch(so, B)]
        cfg.append(dict(bn=bn, relu=bn, pool=pool, wfirst=cout < cin, n=B * lout))
        cur = lout // 2 if pool else lout
    return cfg, arrays


# --------------------- deterministic parameter creation ---------------------

def init_params(key, C, L, H, latent):
    ks = iter(jax.random.split(key, 64))

    def conv_p(cin, cout):     # PyTorch Conv1d layout (Cout, Cin, 3)
        return {'w': 0.1 * jax.random.normal(next(ks), (cout, cin, 3), F32),
                'b': 0.1 * jax.random.normal(next(ks), (cout,), F32),
                'g': 1.0 + 0.1 * jax.random.normal(next(ks), (cout,), F32),
                'beta': 0.1 * jax.random.normal(next(ks), (cout,), F32)}

    def convT_p(cin, cout):    # PyTorch ConvTranspose1d layout (Cin, Cout, 3)
        return {'w': 0.1 * jax.random.normal(next(ks), (cin, cout, 3), F32),
                'b': 0.1 * jax.random.normal(next(ks), (cout,), F32),
                'g': 1.0 + 0.1 * jax.random.normal(next(ks), (cout,), F32),
                'beta': 0.1 * jax.random.normal(next(ks), (cout,), F32)}

    return {
        'lin_w': 0.1 * jax.random.normal(next(ks), (C, H, L), F32),   # per-sensor Linear
        'lin_b': 0.1 * jax.random.normal(next(ks), (C, H), F32),
        'enc1': conv_p(C, 32), 'enc2': conv_p(32, 64), 'enc3': conv_p(64, 128),
        'enc4': conv_p(128, latent),
        'dec1': convT_p(latent, 128), 'dec2': convT_p(128, 64),
        'dec3': convT_p(64, 32), 'dec4': convT_p(32, C),
    }


# --------------------------- pure-JAX reference ----------------------------

def ref_forward(x_ncl, P):
    B, C, L = x_ncl.shape

    def conv1d(y, p):
        Bb, Cin, Lc = y.shape
        cout = p['w'].shape[0]
        yp = jnp.pad(y, ((0, 0), (0, 0), (1, 1)))
        out = jnp.zeros((Bb, cout, Lc), F32)
        for k in range(3):
            out = out + jnp.einsum('bil,oi->bol', yp[:, :, k:k + Lc], p['w'][:, :, k],
                                   precision=HIGH)
        return out + p['b'][None, :, None]

    def convT1d(y, p, stride):      # direct PyTorch scatter formula
        Bb, Cin, Lc = y.shape
        cout = p['w'].shape[1]
        lout = (Lc - 1) * stride - 2 + 3 + (stride - 1)
        out = jnp.zeros((Bb, cout, lout), F32)
        for lp in range(Lc):
            for k in range(3):
                l = lp * stride - 1 + k
                if 0 <= l < lout:
                    out = out.at[:, :, l].add(
                        jnp.einsum('bi,io->bo', y[:, :, lp], p['w'][:, :, k],
                                   precision=HIGH))
        return out + p['b'][None, :, None]

    def bn_relu(y, p):
        mean = jnp.mean(y, axis=(0, 2), keepdims=True)
        var = jnp.mean(jnp.square(y - mean), axis=(0, 2), keepdims=True)
        y = (y - mean) * jax.lax.rsqrt(var + 1e-5) * p['g'][None, :, None] \
            + p['beta'][None, :, None]
        return jnp.maximum(y, 0.0)

    def maxpool(y):
        Bb, Cc, Lc = y.shape
        return jnp.max(y.reshape(Bb, Cc, Lc // 2, 2), axis=-1)

    enc = []
    for i in range(C):
        h = jnp.einsum('bl,hl->bh', x_ncl[:, i, :], P['lin_w'][i], precision=HIGH) \
            + P['lin_b'][i]
        enc.append(jnp.maximum(h, 0.0)[:, None, :])
    y = jnp.concatenate(enc, axis=1)                   # (B, C, H)

    y = maxpool(bn_relu(conv1d(y, P['enc1']), P['enc1']))
    y = maxpool(bn_relu(conv1d(y, P['enc2']), P['enc2']))
    y = maxpool(bn_relu(conv1d(y, P['enc3']), P['enc3']))
    y = conv1d(y, P['enc4'])

    y = bn_relu(convT1d(y, P['dec1'], 1), P['dec1'])
    y = bn_relu(convT1d(y, P['dec2'], 2), P['dec2'])
    y = bn_relu(convT1d(y, P['dec3'], 2), P['dec3'])
    y = convT1d(y, P['dec4'], 2)
    return y


# ----------------------------------- main -----------------------------------

if __name__ == "__main__":
    B, C, L, HIDDEN, LATENT = 2, 4, 16, 32, 16        # hidden_dim > input_dim
    key = jax.random.PRNGKey(0)
    kx, kp = jax.random.split(key)
    x = jax.random.normal(kx, (B, C, L), F32)          # NCL, like PyTorch
    P = init_params(kp, C, L, HIDDEN, LATENT)

    cfg, arrays = prepare_params(P, B, C, L, HIDDEN)   # hoisted, runs once
    forward = make_forward(cfg, B, C, L, HIDDEN)

    out = jax.block_until_ready(forward(x, *arrays))
    ref = jax.block_until_ready(ref_forward(x, P))

    assert out.shape == (B, C, HIDDEN), out.shape
    assert bool(jnp.all(jnp.isfinite(out)))
    max_diff = float(jnp.max(jnp.abs(out - ref)))
    assert bool(jnp.allclose(out, ref, atol=2e-3, rtol=2e-3)), max_diff
    print("KERNEL_OK")
</pallas_src>

<mosaic_0001>
module attributes {stable_mosaic.version = 11 : i64} {
  func.func @kernel(%arg0: memref<4x128xf32, #tpu.memory_space<vmem>>, %arg1: memref<128x64xf32, #tpu.memory_space<vmem>>, %arg2: memref<4x64xf32, #tpu.memory_space<vmem>>, %arg3: memref<32x4xf32, #tpu.memory_space<vmem>>, %arg4: memref<32x4xf32, #tpu.memory_space<vmem>>, %arg5: memref<32x4xf32, #tpu.memory_space<vmem>>, %arg6: memref<32x1xf32, #tpu.memory_space<vmem>>, %arg7: memref<64x64xf32, #tpu.memory_space<vmem>>, %arg8: memref<64x64xf32, #tpu.memory_space<vmem>>, %arg9: memref<64x64xf32, #tpu.memory_space<vmem>>, %arg10: memref<32x1xf32, #tpu.memory_space<vmem>>, %arg11: memref<32x1xf32, #tpu.memory_space<vmem>>, %arg12: memref<64x32xf32, #tpu.memory_space<vmem>>, %arg13: memref<64x32xf32, #tpu.memory_space<vmem>>, %arg14: memref<64x32xf32, #tpu.memory_space<vmem>>, %arg15: memref<64x32xf32, #tpu.memory_space<vmem>>, %arg16: memref<64x32xf32, #tpu.memory_space<vmem>>, %arg17: memref<64x1xf32, #tpu.memory_space<vmem>>, %arg18: memref<32x32xf32, #tpu.memory_space<vmem>>, %arg19: memref<32x32xf32, #tpu.memory_space<vmem>>, %arg20: memref<32x32xf32, #tpu.memory_space<vmem>>, %arg21: memref<64x1xf32, #tpu.memory_space<vmem>>, %arg22: memref<64x1xf32, #tpu.memory_space<vmem>>, %arg23: memref<32x16xf32, #tpu.memory_space<vmem>>, %arg24: memref<32x16xf32, #tpu.memory_space<vmem>>, %arg25: memref<128x64xf32, #tpu.memory_space<vmem>>, %arg26: memref<128x64xf32, #tpu.memory_space<vmem>>, %arg27: memref<128x64xf32, #tpu.memory_space<vmem>>, %arg28: memref<128x1xf32, #tpu.memory_space<vmem>>, %arg29: memref<16x16xf32, #tpu.memory_space<vmem>>, %arg30: memref<16x16xf32, #tpu.memory_space<vmem>>, %arg31: memref<16x16xf32, #tpu.memory_space<vmem>>, %arg32: memref<128x1xf32, #tpu.memory_space<vmem>>, %arg33: memref<128x1xf32, #tpu.memory_space<vmem>>, %arg34: memref<16x8xf32, #tpu.memory_space<vmem>>, %arg35: memref<16x8xf32, #tpu.memory_space<vmem>>, %arg36: memref<16x128xf32, #tpu.memory_space<vmem>>, %arg37: memref<16x128xf32, #tpu.memory_space<vmem>>, %arg38: memref<16x128xf32, #tpu.memory_space<vmem>>, %arg39: memref<16x1xf32, #tpu.memory_space<vmem>>, %arg40: memref<8x8xf32, #tpu.memory_space<vmem>>, %arg41: memref<8x8xf32, #tpu.memory_space<vmem>>, %arg42: memref<8x8xf32, #tpu.memory_space<vmem>>, %arg43: memref<128x16xf32, #tpu.memory_space<vmem>>, %arg44: memref<128x16xf32, #tpu.memory_space<vmem>>, %arg45: memref<128x16xf32, #tpu.memory_space<vmem>>, %arg46: memref<128x1xf32, #tpu.memory_space<vmem>>, %arg47: memref<8x8xf32, #tpu.memory_space<vmem>>, %arg48: memref<8x8xf32, #tpu.memory_space<vmem>>, %arg49: memref<8x8xf32, #tpu.memory_space<vmem>>, %arg50: memref<128x1xf32, #tpu.memory_space<vmem>>, %arg51: memref<128x1xf32, #tpu.memory_space<vmem>>, %arg52: memref<64x128xf32, #tpu.memory_space<vmem>>, %arg53: memref<64x128xf32, #tpu.memory_space<vmem>>, %arg54: memref<64x128xf32, #tpu.memory_space<vmem>>, %arg55: memref<64x1xf32, #tpu.memory_space<vmem>>, %arg56: memref<8x16xf32, #tpu.memory_space<vmem>>, %arg57: memref<8x16xf32, #tpu.memory_space<vmem>>, %arg58: memref<8x16xf32, #tpu.memory_space<vmem>>, %arg59: memref<64x1xf32, #tpu.memory_space<vmem>>, %arg60: memref<64x1xf32, #tpu.memory_space<vmem>>, %arg61: memref<32x64xf32, #tpu.memory_space<vmem>>, %arg62: memref<32x64xf32, #tpu.memory_space<vmem>>, %arg63: memref<32x64xf32, #tpu.memory_space<vmem>>, %arg64: memref<32x1xf32, #tpu.memory_space<vmem>>, %arg65: memref<16x32xf32, #tpu.memory_space<vmem>>, %arg66: memref<16x32xf32, #tpu.memory_space<vmem>>, %arg67: memref<16x32xf32, #tpu.memory_space<vmem>>, %arg68: memref<32x1xf32, #tpu.memory_space<vmem>>, %arg69: memref<32x1xf32, #tpu.memory_space<vmem>>, %arg70: memref<4x32xf32, #tpu.memory_space<vmem>>, %arg71: memref<4x32xf32, #tpu.memory_space<vmem>>, %arg72: memref<4x32xf32, #tpu.memory_space<vmem>>, %arg73: memref<4x1xf32, #tpu.memory_space<vmem>>, %arg74: memref<32x64xf32, #tpu.memory_space<vmem>>, %arg75: memref<32x64xf32, #tpu.memory_space<vmem>>, %arg76: memref<32x64xf32, #tpu.memory_space<vmem>>, %arg77: memref<4x64xf32, #tpu.memory_space<vmem>>) attributes {dimension_semantics = [], scalar_prefetch = 0 : i64, scratch_operands = 0 : i64, tpu.core_type = #tpu.core_type<tc>} {
    %c0 = arith.constant 0 : index
    %c0_0 = arith.constant 0 : index
    %0 = vector.load %arg0[%c0, %c0_0] : memref<4x128xf32, #tpu.memory_space<vmem>>, vector<4x128xf32>
    %c0_1 = arith.constant 0 : index
    %c0_2 = arith.constant 0 : index
    %1 = vector.load %arg1[%c0_1, %c0_2] : memref<128x64xf32, #tpu.memory_space<vmem>>, vector<128x64xf32>
    %cst = arith.constant dense<0.000000e+00> : vector<4x64xf32>
    %2 = tpu.matmul %0, %1, %cst {dimension_numbers = #tpu.dot_dimension_numbers<[1], [0], [0], [1], [0, 0, 1, 1], [], []>} : vector<4x128xf32>, vector<128x64xf32>, vector<4x64xf32> -> vector<4x64xf32>
    %c0_3 = arith.constant 0 : index
    %c0_4 = arith.constant 0 : index
    %3 = vector.load %arg2[%c0_3, %c0_4] : memref<4x64xf32, #tpu.memory_space<vmem>>, vector<4x64xf32>
    %4 = arith.addf %2, %3 : vector<4x64xf32>
    %cst_5 = arith.constant 0.000000e+00 : f32
    %5 = vector.broadcast %cst_5 : f32 to vector<4x64xf32>
    %6 = arith.maximumf %4, %5 : vector<4x64xf32>
    %c0_6 = arith.constant 0 : index
    %c0_7 = arith.constant 0 : index
    %7 = vector.load %arg3[%c0_6, %c0_7] : memref<32x4xf32, #tpu.memory_space<vmem>>, vector<32x4xf32>
    %c0_8 = arith.constant 0 : index
    %c0_9 = arith.constant 0 : index
    %8 = vector.load %arg4[%c0_8, %c0_9] : memref<32x4xf32, #tpu.memory_space<vmem>>, vector<32x4xf32>
    %c0_10 = arith.constant 0 : index
    %c0_11 = arith.constant 0 : index
    %9 = vector.load %arg5[%c0_10, %c0_11] : memref<32x4xf32, #tpu.memory_space<vmem>>, vector<32x4xf32>
    %c0_12 = arith.constant 0 : index
    %c0_13 = arith.constant 0 : index
    %10 = vector.load %arg6[%c0_12, %c0_13] : memref<32x1xf32, #tpu.memory_space<vmem>>, vector<32x1xf32>
    %c0_14 = arith.constant 0 : index
    %c0_15 = arith.constant 0 : index
    %11 = vector.load %arg7[%c0_14, %c0_15] : memref<64x64xf32, #tpu.memory_space<vmem>>, vector<64x64xf32>
    %c0_16 = arith.constant 0 : index
    %c0_17 = arith.constant 0 : index
    %12 = vector.load %arg8[%c0_16, %c0_17] : memref<64x64xf32, #tpu.memory_space<vmem>>, vector<64x64xf32>
    %c0_18 = arith.constant 0 : index
    %c0_19 = arith.constant 0 : index
    %13 = vector.load %arg9[%c0_18, %c0_19] : memref<64x64xf32, #tpu.memory_space<vmem>>, vector<64x64xf32>
    %c0_20 = arith.constant 0 : index
    %c0_21 = arith.constant 0 : index
    %14 = vector.load %arg10[%c0_20, %c0_21] : memref<32x1xf32, #tpu.memory_space<vmem>>, vector<32x1xf32>
    %c0_22 = arith.constant 0 : index
    %c0_23 = arith.constant 0 : index
    %15 = vector.load %arg11[%c0_22, %c0_23] : memref<32x1xf32, #tpu.memory_space<vmem>>, vector<32x1xf32>
    %c0_24 = arith.constant 0 : index
    %c0_25 = arith.constant 0 : index
    %16 = vector.load %arg12[%c0_24, %c0_25] : memref<64x32xf32, #tpu.memory_space<vmem>>, vector<64x32xf32>
    %c0_26 = arith.constant 0 : index
    %c0_27 = arith.constant 0 : index
    %17 = vector.load %arg13[%c0_26, %c0_27] : memref<64x32xf32, #tpu.memory_space<vmem>>, vector<64x32xf32>
    %cst_28 = arith.constant dense<0.000000e+00> : vector<4x64xf32>
    %18 = tpu.matmul %6, %11, %cst_28 {dimension_numbers = #tpu.dot_dimension_numbers<[1], [0], [0], [1], [0, 0, 1, 1], [], []>} : vector<4x64xf32>, vector<64x64xf32>, vector<4x64xf32> -> vector<4x64xf32>
    %cst_29 = arith.constant dense<0.000000e+00> : vector<32x64xf32>
    %19 = tpu.matmul %7, %18, %cst_29 {dimension_numbers = #tpu.dot_dimension_numbers<[1], [0], [0], [1], [0, 0, 1, 1], [], []>} : vector<32x4xf32>, vector<4x64xf32>, vector<32x64xf32> -> vector<32x64xf32>
    %cst_30 = arith.constant dense<0.000000e+00> : vector<4x64xf32>
    %20 = tpu.matmul %6, %12, %cst_30 {dimension_numbers = #tpu.dot_dimension_numbers<[1], [0], [0], [1], [0, 0, 1, 1], [], []>} : vector<4x64xf32>, vector<64x64xf32>, vector<4x64xf32> -> vector<4x64xf32>
    %cst_31 = arith.constant dense<0.000000e+00> : vector<32x64xf32>
    %21 = tpu.matmul %8, %20, %cst_31 {dimension_numbers = #tpu.dot_dimension_numbers<[1], [0], [0], [1], [0, 0, 1, 1], [], []>} : vector<32x4xf32>, vector<4x64xf32>, vector<32x64xf32> -> vector<32x64xf32>
    %22 = arith.addf %19, %21 : vector<32x64xf32>
    %cst_32 = arith.constant dense<0.000000e+00> : vector<4x64xf32>
    %23 = tpu.matmul %6, %13, %cst_32 {dimension_numbers = #tpu.dot_dimension_numbers<[1], [0], [0], [1], [0, 0, 1, 1], [], []>} : vector<4x64xf32>, vector<64x64xf32>, vector<4x64xf32> -> vector<4x64xf32>
    %cst_33 = arith.constant dense<0.000000e+00> : vector<32x64xf32>
    %24 = tpu.matmul %9, %23, %cst_33 {dimension_numbers = #tpu.dot_dimension_numbers<[1], [0], [0], [1], [0, 0, 1, 1], [], []>} : vector<32x4xf32>, vector<4x64xf32>, vector<32x64xf32> -> vector<32x64xf32>
    %25 = arith.addf %22, %24 : vector<32x64xf32>
    %26 = vector.broadcast %10 : vector<32x1xf32> to vector<32x64xf32>
    %27 = arith.addf %25, %26 : vector<32x64xf32>
    %cst_34 = arith.constant dense<0.000000e+00> : vector<32xf32>
    %28 = vector.multi_reduction <add>, %27, %cst_34 [1] : vector<32x64xf32> to vector<32xf32>
    %29 = vector.shape_cast %28 : vector<32xf32> to vector<32x1xf32>
    %30 = arith.mulf %27, %27 : vector<32x64xf32>
    %cst_35 = arith.constant dense<0.000000e+00> : vector<32xf32>
    %31 = vector.multi_reduction <add>, %30, %cst_35 [1] : vector<32x64xf32> to vector<32xf32>
    %32 = vector.shape_cast %31 : vector<32xf32> to vector<32x1xf32>
    %cst_36 = arith.constant 1.562500e-02 : f32
    %33 = vector.broadcast %cst_36 : f32 to vector<32x1xf32>
    %34 = arith.mulf %29, %33 : vector<32x1xf32>
    %cst_37 = arith.constant 1.562500e-02 : f32
    %35 = vector.broadcast %cst_37 : f32 to vector<32x1xf32>
    %36 = arith.mulf %32, %35 : vector<32x1xf32>
    %37 = arith.mulf %34, %34 : vector<32x1xf32>
    %38 = arith.subf %36, %37 : vector<32x1xf32>
    %39 = vector.broadcast %34 : vector<32x1xf32> to vector<32x64xf32>
    %40 = arith.subf %27, %39 : vector<32x64xf32>
    %cst_38 = arith.constant 9.99999974E-6 : f32
    %41 = vector.broadcast %cst_38 : f32 to vector<32x1xf32>
    %42 = arith.addf %38, %41 : vector<32x1xf32>
    %43 = math.rsqrt %42 : vector<32x1xf32>
    %44 = arith.mulf %43, %14 : vector<32x1xf32>
    %45 = vector.broadcast %44 : vector<32x1xf32> to vector<32x64xf32>
    %46 = arith.mulf %40, %45 : vector<32x64xf32>
    %47 = vector.broadcast %15 : vector<32x1xf32> to vector<32x64xf32>
    %48 = arith.addf %46, %47 : vector<32x64xf32>
    %cst_39 = arith.constant 0.000000e+00 : f32
    %49 = vector.broadcast %cst_39 : f32 to vector<32x64xf32>
    %50 = arith.maximumf %48, %49 : vector<32x64xf32>
    %cst_40 = arith.constant dense<0.000000e+00> : vector<32x32xf32>
    %51 = tpu.matmul %50, %16, %cst_40 {dimension_numbers = #tpu.dot_dimension_numbers<[1], [0], [0], [1], [0, 0, 1, 1], [], []>} : vector<32x64xf32>, vector<64x32xf32>, vector<32x32xf32> -> vector<32x32xf32>
    %cst_41 = arith.constant dense<0.000000e+00> : vector<32x32xf32>
    %52 = tpu.matmul %50, %17, %cst_41 {dimension_numbers = #tpu.dot_dimension_numbers<[1], [0], [0], [1], [0, 0, 1, 1], [], []>} : vector<32x64xf32>, vector<64x32xf32>, vector<32x32xf32> -> vector<32x32xf32>
    %53 = arith.maximumf %51, %52 : vector<32x32xf32>
    %c0_42 = arith.constant 0 : index
    %c0_43 = arith.constant 0 : index
    %54 = vector.load %arg14[%c0_42, %c0_43] : memref<64x32xf32, #tpu.memory_space<vmem>>, vector<64x32xf32>
    %c0_44 = arith.constant 0 : index
    %c0_45 = arith.constant 0 : index
    %55 = vector.load %arg15[%c0_44, %c0_45] : memref<64x32xf32, #tpu.memory_space<vmem>>, vector<64x32xf32>
    %c0_46 = arith.constant 0 : index
    %c0_47 = arith.constant 0 : index
    %56 = vector.load %arg16[%c0_46, %c0_47] : memref<64x32xf32, #tpu.memory_space<vmem>>, vector<64x32xf32>
    %c0_48 = arith.constant 0 : index
    %c0_49 = arith.constant 0 : index
    %57 = vector.load %arg17[%c0_48, %c0_49] : memref<64x1xf32, #tpu.memory_space<vmem>>, vector<64x1xf32>
    %c0_50 = arith.constant 0 : index
    %c0_51 = arith.constant 0 : index
    %58 = vector.load %arg18[%c0_50, %c0_51] : memref<32x32xf32, #tpu.memory_space<vmem>>, vector<32x32xf32>
    %c0_52 = arith.constant 0 : index
    %c0_53 = arith.constant 0 : index
    %59 = vector.load %arg19[%c0_52, %c0_53] : memref<32x32xf32, #tpu.memory_space<vmem>>, vector<32x32xf32>
    %c0_54 = arith.constant 0 : index
    %c0_55 = arith.constant 0 : index
    %60 = vector.load %arg20[%c0_54, %c0_55] : memref<32x32xf32, #tpu.memory_space<vmem>>, vector<32x32xf32>
    %c0_56 = arith.constant 0 : index
    %c0_57 = arith.constant 0 : index
    %61 = vector.load %arg21[%c0_56, %c0_57] : memref<64x1xf32, #tpu.memory_space<vmem>>, vector<64x1xf32>
    %c0_58 = arith.constant 0 : index
    %c0_59 = arith.constant 0 : index
    %62 = vector.load %arg22[%c0_58, %c0_59] : memref<64x1xf32, #tpu.memory_space<vmem>>, vector<64x1xf32>
    %c0_60 = arith.constant 0 : index
    %c0_61 = arith.constant 0 : index
    %63 = vector.load %arg23[%c0_60, %c0_61] : memref<32x16xf32, #tpu.memory_space<vmem>>, vector<32x16xf32>
    %c0_62 = arith.constant 0 : index
    %c0_63 = arith.constant 0 : index
    %64 = vector.load %arg24[%c0_62, %c0_63] : memref<32x16xf32, #tpu.memory_space<vmem>>, vector<32x16xf32>
    %cst_64 = arith.constant dense<0.000000e+00> : vector<32x32xf32>
    %65 = tpu.matmul %53, %58, %cst_64 {dimension_numbers = #tpu.dot_dimension_numbers<[1], [0], [0], [1], [0, 0, 1, 1], [], []>} : vector<32x32xf32>, vector<32x32xf32>, vector<32x32xf32> -> vector<32x32xf32>
    %cst_65 = arith.constant dense<0.000000e+00> : vector<64x32xf32>
    %66 = tpu.matmul %54, %65, %cst_65 {dimension_numbers = #tpu.dot_dimension_numbers<[1], [0], [0], [1], [0, 0, 1, 1], [], []>} : vector<64x32xf32>, vector<32x32xf32>, vector<64x32xf32> -> vector<64x32xf32>
    %cst_66 = arith.constant dense<0.000000e+00> : vector<32x32xf32>
    %67 = tpu.matmul %53, %59, %cst_66 {dimension_numbers = #tpu.dot_dimension_numbers<[1], [0], [0], [1], [0, 0, 1, 1], [], []>} : vector<32x32xf32>, vector<32x32xf32>, vector<32x32xf32> -> vector<32x32xf32>
    %cst_67 = arith.constant dense<0.000000e+00> : vector<64x32xf32>
    %68 = tpu.matmul %55, %67, %cst_67 {dimension_numbers = #tpu.dot_dimension_numbers<[1], [0], [0], [1], [0, 0, 1, 1], [], []>} : vector<64x32xf32>, vector<32x32xf32>, vector<64x32xf32> -> vector<64x32xf32>
    %69 = arith.addf %66, %68 : vector<64x32xf32>
    %cst_68 = arith.constant dense<0.000000e+00> : vector<32x32xf32>
    %70 = tpu.matmul %53, %60, %cst_68 {dimension_numbers = #tpu.dot_dimension_numbers<[1], [0], [0], [1], [0, 0, 1, 1], [], []>} : vector<32x32xf32>, vector<32x32xf32>, vector<32x32xf32> -> vector<32x32xf32>
    %cst_69 = arith.constant dense<0.000000e+00> : vector<64x32xf32>
    %71 = tpu.matmul %56, %70, %cst_69 {dimension_numbers = #tpu.dot_dimension_numbers<[1], [0], [0], [1], [0, 0, 1, 1], [], []>} : vector<64x32xf32>, vector<32x32xf32>, vector<64x32xf32> -> vector<64x32xf32>
    %72 = arith.addf %69, %71 : vector<64x32xf32>
    %73 = vector.broadcast %57 : vector<64x1xf32> to vector<64x32xf32>
    %74 = arith.addf %72, %73 : vector<64x32xf32>
    %cst_70 = arith.constant dense<0.000000e+00> : vector<64xf32>
    %75 = vector.multi_reduction <add>, %74, %cst_70 [1] : vector<64x32xf32> to vector<64xf32>
    %76 = vector.shape_cast %75 : vector<64xf32> to vector<64x1xf32>
    %77 = arith.mulf %74, %74 : vector<64x32xf32>
    %cst_71 = arith.constant dense<0.000000e+00> : vector<64xf32>
    %78 = vector.multi_reduction <add>, %77, %cst_71 [1] : vector<64x32xf32> to vector<64xf32>
    %79 = vector.shape_cast %78 : vector<64xf32> to vector<64x1xf32>
    %cst_72 = arith.constant 3.125000e-02 : f32
    %80 = vector.broadcast %cst_72 : f32 to vector<64x1xf32>
    %81 = arith.mulf %76, %80 : vector<64x1xf32>
    %cst_73 = arith.constant 3.125000e-02 : f32
    %82 = vector.broadcast %cst_73 : f32 to vector<64x1xf32>
    %83 = arith.mulf %79, %82 : vector<64x1xf32>
    %84 = arith.mulf %81, %81 : vector<64x1xf32>
    %85 = arith.subf %83, %84 : vector<64x1xf32>
    %86 = vector.broadcast %81 : vector<64x1xf32> to vector<64x32xf32>
    %87 = arith.subf %74, %86 : vector<64x32xf32>
    %cst_74 = arith.constant 9.99999974E-6 : f32
    %88 = vector.broadcast %cst_74 : f32 to vector<64x1xf32>
    %89 = arith.addf %85, %88 : vector<64x1xf32>
    %90 = math.rsqrt %89 : vector<64x1xf32>
    %91 = arith.mulf %90, %61 : vector<64x1xf32>
    %92 = vector.broadcast %91 : vector<64x1xf32> to vector<64x32xf32>
    %93 = arith.mulf %87, %92 : vector<64x32xf32>
    %94 = vector.broadcast %62 : vector<64x1xf32> to vector<64x32xf32>
    %95 = arith.addf %93, %94 : vector<64x32xf32>
    %cst_75 = arith.constant 0.000000e+00 : f32
    %96 = vector.broadcast %cst_75 : f32 to vector<64x32xf32>
    %97 = arith.maximumf %95, %96 : vector<64x32xf32>
    %cst_76 = arith.constant dense<0.000000e+00> : vector<64x16xf32>
    %98 = tpu.matmul %97, %63, %cst_76 {dimension_numbers = #tpu.dot_dimension_numbers<[1], [0], [0], [1], [0, 0, 1, 1], [], []>} : vector<64x32xf32>, vector<32x16xf32>, vector<64x16xf32> -> vector<64x16xf32>
    %cst_77 = arith.constant dense<0.000000e+00> : vector<64x16xf32>
    %99 = tpu.matmul %97, %64, %cst_77 {dimension_numbers = #tpu.dot_dimension_numbers<[1], [0], [0], [1], [0, 0, 1, 1], [], []>} : vector<64x32xf32>, vector<32x16xf32>, vector<64x16xf32> -> vector<64x16xf32>
    %100 = arith.maximumf %98, %99 : vector<64x16xf32>
    %c0_78 = arith.constant 0 : index
    %c0_79 = arith.constant 0 : index
    %101 = vector.load %arg25[%c0_78, %c0_79] : memref<128x64xf32, #tpu.memory_space<vmem>>, vector<128x64xf32>
    %c0_80 = arith.constant 0 : index
    %c0_81 = arith.constant 0 : index
    %102 = vector.load %arg26[%c0_80, %c0_81] : memref<128x64xf32, #tpu.memory_space<vmem>>, vector<128x64xf32>
    %c0_82 = arith.constant 0 : index
    %c0_83 = arith.constant 0 : index
    %103 = vector.load %arg27[%c0_82, %c0_83] : memref<128x64xf32, #tpu.memory_space<vmem>>, vector<128x64xf32>
    %c0_84 = arith.constant 0 : index
    %c0_85 = arith.constant 0 : index
    %104 = vector.load %arg28[%c0_84, %c0_85] : memref<128x1xf32, #tpu.memory_space<vmem>>, vector<128x1xf32>
    %c0_86 = arith.constant 0 : index
    %c0_87 = arith.constant 0 : index
    %105 = vector.load %arg29[%c0_86, %c0_87] : memref<16x16xf32, #tpu.memory_space<vmem>>, vector<16x16xf32>
    %c0_88 = arith.constant 0 : index
    %c0_89 = arith.constant 0 : index
    %106 = vector.load %arg30[%c0_88, %c0_89] : memref<16x16xf32, #tpu.memory_space<vmem>>, vector<16x16xf32>
    %c0_90 = arith.constant 0 : index
    %c0_91 = arith.constant 0 : index
    %107 = vector.load %arg31[%c0_90, %c0_91] : memref<16x16xf32, #tpu.memory_space<vmem>>, vector<16x16xf32>
    %c0_92 = arith.constant 0 : index
    %c0_93 = arith.constant 0 : index
    %108 = vector.load %arg32[%c0_92, %c0_93] : memref<128x1xf32, #tpu.memory_space<vmem>>, vector<128x1xf32>
    %c0_94 = arith.constant 0 : index
    %c0_95 = arith.constant 0 : index
    %109 = vector.load %arg33[%c0_94, %c0_95] : memref<128x1xf32, #tpu.memory_space<vmem>>, vector<128x1xf32>
    %c0_96 = arith.constant 0 : index
    %c0_97 = arith.constant 0 : index
    %110 = vector.load %arg34[%c0_96, %c0_97] : memref<16x8xf32, #tpu.memory_space<vmem>>, vector<16x8xf32>
    %c0_98 = arith.constant 0 : index
    %c0_99 = arith.constant 0 : index
    %111 = vector.load %arg35[%c0_98, %c0_99] : memref<16x8xf32, #tpu.memory_space<vmem>>, vector<16x8xf32>
    %cst_100 = arith.constant dense<0.000000e+00> : vector<64x16xf32>
    %112 = tpu.matmul %100, %105, %cst_100 {dimension_numbers = #tpu.dot_dimension_numbers<[1], [0], [0], [1], [0, 0, 1, 1], [], []>} : vector<64x16xf32>, vector<16x16xf32>, vector<64x16xf32> -> vector<64x16xf32>
    %cst_101 = arith.constant dense<0.000000e+00> : vector<128x16xf32>
    %113 = tpu.matmul %101, %112, %cst_101 {dimension_numbers = #tpu.dot_dimension_numbers<[1], [0], [0], [1], [0, 0, 1, 1], [], []>} : vector<128x64xf32>, vector<64x16xf32>, vector<128x16xf32> -> vector<128x16xf32>
    %cst_102 = arith.constant dense<0.000000e+00> : vector<64x16xf32>
    %114 = tpu.matmul %100, %106, %cst_102 {dimension_numbers = #tpu.dot_dimension_numbers<[1], [0], [0], [1], [0, 0, 1, 1], [], []>} : vector<64x16xf32>, vector<16x16xf32>, vector<64x16xf32> -> vector<64x16xf32>
    %cst_103 = arith.constant dense<0.000000e+00> : vector<128x16xf32>
    %115 = tpu.matmul %102, %114, %cst_103 {dimension_numbers = #tpu.dot_dimension_numbers<[1], [0], [0], [1], [0, 0, 1, 1], [], []>} : vector<128x64xf32>, vector<64x16xf32>, vector<128x16xf32> -> vector<128x16xf32>
    %116 = arith.addf %113, %115 : vector<128x16xf32>
    %cst_104 = arith.constant dense<0.000000e+00> : vector<64x16xf32>
    %117 = tpu.matmul %100, %107, %cst_104 {dimension_numbers = #tpu.dot_dimension_numbers<[1], [0], [0], [1], [0, 0, 1, 1], [], []>} : vector<64x16xf32>, vector<16x16xf32>, vector<64x16xf32> -> vector<64x16xf32>
    %cst_105 = arith.constant dense<0.000000e+00> : vector<128x16xf32>
    %118 = tpu.matmul %103, %117, %cst_105 {dimension_numbers = #tpu.dot_dimension_numbers<[1], [0], [0], [1], [0, 0, 1, 1], [], []>} : vector<128x64xf32>, vector<64x16xf32>, vector<128x16xf32> -> vector<128x16xf32>
    %119 = arith.addf %116, %118 : vector<128x16xf32>
    %120 = vector.broadcast %104 : vector<128x1xf32> to vector<128x16xf32>
    %121 = arith.addf %119, %120 : vector<128x16xf32>
    %cst_106 = arith.constant dense<0.000000e+00> : vector<128xf32>
    %122 = vector.multi_reduction <add>, %121, %cst_106 [1] : vector<128x16xf32> to vector<128xf32>
    %123 = vector.shape_cast %122 : vector<128xf32> to vector<128x1xf32>
    %124 = arith.mulf %121, %121 : vector<128x16xf32>
    %cst_107 = arith.constant dense<0.000000e+00> : vector<128xf32>
    %125 = vector.multi_reduction <add>, %124, %cst_107 [1] : vector<128x16xf32> to vector<128xf32>
    %126 = vector.shape_cast %125 : vector<128xf32> to vector<128x1xf32>
    %cst_108 = arith.constant 6.250000e-02 : f32
    %127 = vector.broadcast %cst_108 : f32 to vector<128x1xf32>
    %128 = arith.mulf %123, %127 : vector<128x1xf32>
    %cst_109 = arith.constant 6.250000e-02 : f32
    %129 = vector.broadcast %cst_109 : f32 to vector<128x1xf32>
    %130 = arith.mulf %126, %129 : vector<128x1xf32>
    %131 = arith.mulf %128, %128 : vector<128x1xf32>
    %132 = arith.subf %130, %131 : vector<128x1xf32>
    %133 = vector.broadcast %128 : vector<128x1xf32> to vector<128x16xf32>
    %134 = arith.subf %121, %133 : vector<128x16xf32>
    %cst_110 = arith.constant 9.99999974E-6 : f32
    %135 = vector.broadcast %cst_110 : f32 to vector<128x1xf32>
    %136 = arith.addf %132, %135 : vector<128x1xf32>
    %137 = math.rsqrt %136 : vector<128x1xf32>
    %138 = arith.mulf %137, %108 : vector<128x1xf32>
    %139 = vector.broadcast %138 : vector<128x1xf32> to vector<128x16xf32>
    %140 = arith.mulf %134, %139 : vector<128x16xf32>
    %141 = vector.broadcast %109 : vector<128x1xf32> to vector<128x16xf32>
    %142 = arith.addf %140, %141 : vector<128x16xf32>
    %cst_111 = arith.constant 0.000000e+00 : f32
    %143 = vector.broadcast %cst_111 : f32 to vector<128x16xf32>
    %144 = arith.maximumf %142, %143 : vector<128x16xf32>
    %cst_112 = arith.constant dense<0.000000e+00> : vector<128x8xf32>
    %145 = tpu.matmul %144, %110, %cst_112 {dimension_numbers = #tpu.dot_dimension_numbers<[1], [0], [0], [1], [0, 0, 1, 1], [], []>} : vector<128x16xf32>, vector<16x8xf32>, vector<128x8xf32> -> vector<128x8xf32>
    %cst_113 = arith.constant dense<0.000000e+00> : vector<128x8xf32>
    %146 = tpu.matmul %144, %111, %cst_113 {dimension_numbers = #tpu.dot_dimension_numbers<[1], [0], [0], [1], [0, 0, 1, 1], [], []>} : vector<128x16xf32>, vector<16x8xf32>, vector<128x8xf32> -> vector<128x8xf32>
    %147 = arith.maximumf %145, %146 : vector<128x8xf32>
    %c0_114 = arith.constant 0 : index
    %c0_115 = arith.constant 0 : index
    %148 = vector.load %arg36[%c0_114, %c0_115] : memref<16x128xf32, #tpu.memory_space<vmem>>, vector<16x128xf32>
    %c0_116 = arith.constant 0 : index
    %c0_117 = arith.constant 0 : index
    %149 = vector.load %arg37[%c0_116, %c0_117] : memref<16x128xf32, #tpu.memory_space<vmem>>, vector<16x128xf32>
    %c0_118 = arith.constant 0 : index
    %c0_119 = arith.constant 0 : index
    %150 = vector.load %arg38[%c0_118, %c0_119] : memref<16x128xf32, #tpu.memory_space<vmem>>, vector<16x128xf32>
    %c0_120 = arith.constant 0 : index
    %c0_121 = arith.constant 0 : index
    %151 = vector.load %arg39[%c0_120, %c0_121] : memref<16x1xf32, #tpu.memory_space<vmem>>, vector<16x1xf32>
    %c0_122 = arith.constant 0 : index
    %c0_123 = arith.constant 0 : index
    %152 = vector.load %arg40[%c0_122, %c0_123] : memref<8x8xf32, #tpu.memory_space<vmem>>, vector<8x8xf32>
    %c0_124 = arith.constant 0 : index
    %c0_125 = arith.constant 0 : index
    %153 = vector.load %arg41[%c0_124, %c0_125] : memref<8x8xf32, #tpu.memory_space<vmem>>, vector<8x8xf32>
    %c0_126 = arith.constant 0 : index
    %c0_127 = arith.constant 0 : index
    %154 = vector.load %arg42[%c0_126, %c0_127] : memref<8x8xf32, #tpu.memory_space<vmem>>, vector<8x8xf32>
    %cst_128 = arith.constant dense<0.000000e+00> : vector<16x8xf32>
    %155 = tpu.matmul %148, %147, %cst_128 {dimension_numbers = #tpu.dot_dimension_numbers<[1], [0], [0], [1], [0, 0, 1, 1], [], []>} : vector<16x128xf32>, vector<128x8xf32>, vector<16x8xf32> -> vector<16x8xf32>
    %cst_129 = arith.constant dense<0.000000e+00> : vector<16x8xf32>
    %156 = tpu.matmul %155, %152, %cst_129 {dimension_numbers = #tpu.dot_dimension_numbers<[1], [0], [0], [1], [0, 0, 1, 1], [], []>} : vector<16x8xf32>, vector<8x8xf32>, vector<16x8xf32> -> vector<16x8xf32>
    %cst_130 = arith.constant dense<0.000000e+00> : vector<16x8xf32>
    %157 = tpu.matmul %149, %147, %cst_130 {dimension_numbers = #tpu.dot_dimension_numbers<[1], [0], [0], [1], [0, 0, 1, 1], [], []>} : vector<16x128xf32>, vector<128x8xf32>, vector<16x8xf32> -> vector<16x8xf32>
    %cst_131 = arith.constant dense<0.000000e+00> : vector<16x8xf32>
    %158 = tpu.matmul %157, %153, %cst_131 {dimension_numbers = #tpu.dot_dimension_numbers<[1], [0], [0], [1], [0, 0, 1, 1], [], []>} : vector<16x8xf32>, vector<8x8xf32>, vector<16x8xf32> -> vector<16x8xf32>
    %159 = arith.addf %156, %158 : vector<16x8xf32>
    %cst_132 = arith.constant dense<0.000000e+00> : vector<16x8xf32>
    %160 = tpu.matmul %150, %147, %cst_132 {dimension_numbers = #tpu.dot_dimension_numbers<[1], [0], [0], [1], [0, 0, 1, 1], [], []>} : vector<16x128xf32>, vector<128x8xf32>, vector<16x8xf32> -> vector<16x8xf32>
    %cst_133 = arith.constant dense<0.000000e+00> : vector<16x8xf32>
    %161 = tpu.matmul %160, %154, %cst_133 {dimension_numbers = #tpu.dot_dimension_numbers<[1], [0], [0], [1], [0, 0, 1, 1], [], []>} : vector<16x8xf32>, vector<8x8xf32>, vector<16x8xf32> -> vector<16x8xf32>
    %162 = arith.addf %159, %161 : vector<16x8xf32>
    %163 = vector.broadcast %151 : vector<16x1xf32> to vector<16x8xf32>
    %164 = arith.addf %162, %163 : vector<16x8xf32>
    %c0_134 = arith.constant 0 : index
    %c0_135 = arith.constant 0 : index
    %165 = vector.load %arg43[%c0_134, %c0_135] : memref<128x16xf32, #tpu.memory_space<vmem>>, vector<128x16xf32>
    %c0_136 = arith.constant 0 : index
    %c0_137 = arith.constant 0 : index
    %166 = vector.load %arg44[%c0_136, %c0_137] : memref<128x16xf32, #tpu.memory_space<vmem>>, vector<128x16xf32>
    %c0_138 = arith.constant 0 : index
    %c0_139 = arith.constant 0 : index
    %167 = vector.load %arg45[%c0_138, %c0_139] : memref<128x16xf32, #tpu.memory_space<vmem>>, vector<128x16xf32>
    %c0_140 = arith.constant 0 : index
    %c0_141 = arith.constant 0 : index
    %168 = vector.load %arg46[%c0_140, %c0_141] : memref<128x1xf32, #tpu.memory_space<vmem>>, vector<128x1xf32>
    %c0_142 = arith.constant 0 : index
    %c0_143 = arith.constant 0 : index
    %169 = vector.load %arg47[%c0_142, %c0_143] : memref<8x8xf32, #tpu.memory_space<vmem>>, vector<8x8xf32>
    %c0_144 = arith.constant 0 : index
    %c0_145 = arith.constant 0 : index
    %170 = vector.load %arg48[%c0_144, %c0_145] : memref<8x8xf32, #tpu.memory_space<vmem>>, vector<8x8xf32>
    %c0_146 = arith.constant 0 : index
    %c0_147 = arith.constant 0 : index
    %171 = vector.load %arg49[%c0_146, %c0_147] : memref<8x8xf32, #tpu.memory_space<vmem>>, vector<8x8xf32>
    %c0_148 = arith.constant 0 : index
    %c0_149 = arith.constant 0 : index
    %172 = vector.load %arg50[%c0_148, %c0_149] : memref<128x1xf32, #tpu.memory_space<vmem>>, vector<128x1xf32>
    %c0_150 = arith.constant 0 : index
    %c0_151 = arith.constant 0 : index
    %173 = vector.load %arg51[%c0_150, %c0_151] : memref<128x1xf32, #tpu.memory_space<vmem>>, vector<128x1xf32>
    %cst_152 = arith.constant dense<0.000000e+00> : vector<16x8xf32>
    %174 = tpu.matmul %164, %169, %cst_152 {dimension_numbers = #tpu.dot_dimension_numbers<[1], [0], [0], [1], [0, 0, 1, 1], [], []>} : vector<16x8xf32>, vector<8x8xf32>, vector<16x8xf32> -> vector<16x8xf32>
    %cst_153 = arith.constant dense<0.000000e+00> : vector<128x8xf32>
    %175 = tpu.matmul %165, %174, %cst_153 {dimension_numbers = #tpu.dot_dimension_numbers<[1], [0], [0], [1], [0, 0, 1, 1], [], []>} : vector<128x16xf32>, vector<16x8xf32>, vector<128x8xf32> -> vector<128x8xf32>
    %cst_154 = arith.constant dense<0.000000e+00> : vector<16x8xf32>
    %176 = tpu.matmul %164, %170, %cst_154 {dimension_numbers = #tpu.dot_dimension_numbers<[1], [0], [0], [1], [0, 0, 1, 1], [], []>} : vector<16x8xf32>, vector<8x8xf32>, vector<16x8xf32> -> vector<16x8xf32>
    %cst_155 = arith.constant dense<0.000000e+00> : vector<128x8xf32>
    %177 = tpu.matmul %166, %176, %cst_155 {dimension_numbers = #tpu.dot_dimension_numbers<[1], [0], [0], [1], [0, 0, 1, 1], [], []>} : vector<128x16xf32>, vector<16x8xf32>, vector<128x8xf32> -> vector<128x8xf32>
    %178 = arith.addf %175, %177 : vector<128x8xf32>
    %cst_156 = arith.constant dense<0.000000e+00> : vector<16x8xf32>
    %179 = tpu.matmul %164, %171, %cst_156 {dimension_numbers = #tpu.dot_dimension_numbers<[1], [0], [0], [1], [0, 0, 1, 1], [], []>} : vector<16x8xf32>, vector<8x8xf32>, vector<16x8xf32> -> vector<16x8xf32>
    %cst_157 = arith.constant dense<0.000000e+00> : vector<128x8xf32>
    %180 = tpu.matmul %167, %179, %cst_157 {dimension_numbers = #tpu.dot_dimension_numbers<[1], [0], [0], [1], [0, 0, 1, 1], [], []>} : vector<128x16xf32>, vector<16x8xf32>, vector<128x8xf32> -> vector<128x8xf32>
    %181 = arith.addf %178, %180 : vector<128x8xf32>
    %182 = vector.broadcast %168 : vector<128x1xf32> to vector<128x8xf32>
    %183 = arith.addf %181, %182 : vector<128x8xf32>
    %cst_158 = arith.constant dense<0.000000e+00> : vector<128xf32>
    %184 = vector.multi_reduction <add>, %183, %cst_158 [1] : vector<128x8xf32> to vector<128xf32>
    %185 = vector.shape_cast %184 : vector<128xf32> to vector<128x1xf32>
    %186 = arith.mulf %183, %183 : vector<128x8xf32>
    %cst_159 = arith.constant dense<0.000000e+00> : vector<128xf32>
    %187 = vector.multi_reduction <add>, %186, %cst_159 [1] : vector<128x8xf32> to vector<128xf32>
    %188 = vector.shape_cast %187 : vector<128xf32> to vector<128x1xf32>
    %cst_160 = arith.constant 1.250000e-01 : f32
    %189 = vector.broadcast %cst_160 : f32 to vector<128x1xf32>
    %190 = arith.mulf %185, %189 : vector<128x1xf32>
    %cst_161 = arith.constant 1.250000e-01 : f32
    %191 = vector.broadcast %cst_161 : f32 to vector<128x1xf32>
    %192 = arith.mulf %188, %191 : vector<128x1xf32>
    %193 = arith.mulf %190, %190 : vector<128x1xf32>
    %194 = arith.subf %192, %193 : vector<128x1xf32>
    %195 = vector.broadcast %190 : vector<128x1xf32> to vector<128x8xf32>
    %196 = arith.subf %183, %195 : vector<128x8xf32>
    %cst_162 = arith.constant 9.99999974E-6 : f32
    %197 = vector.broadcast %cst_162 : f32 to vector<128x1xf32>
    %198 = arith.addf %194, %197 : vector<128x1xf32>
    %199 = math.rsqrt %198 : vector<128x1xf32>
    %200 = arith.mulf %199, %172 : vector<128x1xf32>
    %201 = vector.broadcast %200 : vector<128x1xf32> to vector<128x8xf32>
    %202 = arith.mulf %196, %201 : vector<128x8xf32>
    %203 = vector.broadcast %173 : vector<128x1xf32> to vector<128x8xf32>
    %204 = arith.addf %202, %203 : vector<128x8xf32>
    %cst_163 = arith.constant 0.000000e+00 : f32
    %205 = vector.broadcast %cst_163 : f32 to vector<128x8xf32>
    %206 = arith.maximumf %204, %205 : vector<128x8xf32>
    %c0_164 = arith.constant 0 : index
    %c0_165 = arith.constant 0 : index
    %207 = vector.load %arg52[%c0_164, %c0_165] : memref<64x128xf32, #tpu.memory_space<vmem>>, vector<64x128xf32>
    %c0_166 = arith.constant 0 : index
    %c0_167 = arith.constant 0 : index
    %208 = vector.load %arg53[%c0_166, %c0_167] : memref<64x128xf32, #tpu.memory_space<vmem>>, vector<64x128xf32>
    %c0_168 = arith.constant 0 : index
    %c0_169 = arith.constant 0 : index
    %209 = vector.load %arg54[%c0_168, %c0_169] : memref<64x128xf32, #tpu.memory_space<vmem>>, vector<64x128xf32>
    %c0_170 = arith.constant 0 : index
    %c0_171 = arith.constant 0 : index
    %210 = vector.load %arg55[%c0_170, %c0_171] : memref<64x1xf32, #tpu.memory_space<vmem>>, vector<64x1xf32>
    %c0_172 = arith.constant 0 : index
    %c0_173 = arith.constant 0 : index
    %211 = vector.load %arg56[%c0_172, %c0_173] : memref<8x16xf32, #tpu.memory_space<vmem>>, vector<8x16xf32>
    %c0_174 = arith.constant 0 : index
    %c0_175 = arith.constant 0 : index
    %212 = vector.load %arg57[%c0_174, %c0_175] : memref<8x16xf32, #tpu.memory_space<vmem>>, vector<8x16xf32>
    %c0_176 = arith.constant 0 : index
    %c0_177 = arith.constant 0 : index
    %213 = vector.load %arg58[%c0_176, %c0_177] : memref<8x16xf32, #tpu.memory_space<vmem>>, vector<8x16xf32>
    %c0_178 = arith.constant 0 : index
    %c0_179 = arith.constant 0 : index
    %214 = vector.load %arg59[%c0_178, %c0_179] : memref<64x1xf32, #tpu.memory_space<vmem>>, vector<64x1xf32>
    %c0_180 = arith.constant 0 : index
    %c0_181 = arith.constant 0 : index
    %215 = vector.load %arg60[%c0_180, %c0_181] : memref<64x1xf32, #tpu.memory_space<vmem>>, vector<64x1xf32>
    %cst_182 = arith.constant dense<0.000000e+00> : vector<64x8xf32>
    %216 = tpu.matmul %207, %206, %cst_182 {dimension_numbers = #tpu.dot_dimension_numbers<[1], [0], [0], [1], [0, 0, 1, 1], [], []>} : vector<64x128xf32>, vector<128x8xf32>, vector<64x8xf32> -> vector<64x8xf32>
    %cst_183 = arith.constant dense<0.000000e+00> : vector<64x16xf32>
    %217 = tpu.matmul %216, %211, %cst_183 {dimension_numbers = #tpu.dot_dimension_numbers<[1], [0], [0], [1], [0, 0, 1, 1], [], []>} : vector<64x8xf32>, vector<8x16xf32>, vector<64x16xf32> -> vector<64x16xf32>
    %cst_184 = arith.constant dense<0.000000e+00> : vector<64x8xf32>
    %218 = tpu.matmul %208, %206, %cst_184 {dimension_numbers = #tpu.dot_dimension_numbers<[1], [0], [0], [1], [0, 0, 1, 1], [], []>} : vector<64x128xf32>, vector<128x8xf32>, vector<64x8xf32> -> vector<64x8xf32>
    %cst_185 = arith.constant dense<0.000000e+00> : vector<64x16xf32>
    %219 = tpu.matmul %218, %212, %cst_185 {dimension_numbers = #tpu.dot_dimension_numbers<[1], [0], [0], [1], [0, 0, 1, 1], [], []>} : vector<64x8xf32>, vector<8x16xf32>, vector<64x16xf32> -> vector<64x16xf32>
    %220 = arith.addf %217, %219 : vector<64x16xf32>
    %cst_186 = arith.constant dense<0.000000e+00> : vector<64x8xf32>
    %221 = tpu.matmul %209, %206, %cst_186 {dimension_numbers = #tpu.dot_dimension_numbers<[1], [0], [0], [1], [0, 0, 1, 1], [], []>} : vector<64x128xf32>, vector<128x8xf32>, vector<64x8xf32> -> vector<64x8xf32>
    %cst_187 = arith.constant dense<0.000000e+00> : vector<64x16xf32>
    %222 = tpu.matmul %221, %213, %cst_187 {dimension_numbers = #tpu.dot_dimension_numbers<[1], [0], [0], [1], [0, 0, 1, 1], [], []>} : vector<64x8xf32>, vector<8x16xf32>, vector<64x16xf32> -> vector<64x16xf32>
    %223 = arith.addf %220, %222 : vector<64x16xf32>
    %224 = vector.broadcast %210 : vector<64x1xf32> to vector<64x16xf32>
    %225 = arith.addf %223, %224 : vector<64x16xf32>
    %cst_188 = arith.constant dense<0.000000e+00> : vector<64xf32>
    %226 = vector.multi_reduction <add>, %225, %cst_188 [1] : vector<64x16xf32> to vector<64xf32>
    %227 = vector.shape_cast %226 : vector<64xf32> to vector<64x1xf32>
    %228 = arith.mulf %225, %225 : vector<64x16xf32>
    %cst_189 = arith.constant dense<0.000000e+00> : vector<64xf32>
    %229 = vector.multi_reduction <add>, %228, %cst_189 [1] : vector<64x16xf32> to vector<64xf32>
    %230 = vector.shape_cast %229 : vector<64xf32> to vector<64x1xf32>
    %cst_190 = arith.constant 6.250000e-02 : f32
    %231 = vector.broadcast %cst_190 : f32 to vector<64x1xf32>
    %232 = arith.mulf %227, %231 : vector<64x1xf32>
    %cst_191 = arith.constant 6.250000e-02 : f32
    %233 = vector.broadcast %cst_191 : f32 to vector<64x1xf32>
    %234 = arith.mulf %230, %233 : vector<64x1xf32>
    %235 = arith.mulf %232, %232 : vector<64x1xf32>
    %236 = arith.subf %234, %235 : vector<64x1xf32>
    %237 = vector.broadcast %232 : vector<64x1xf32> to vector<64x16xf32>
    %238 = arith.subf %225, %237 : vector<64x16xf32>
    %cst_192 = arith.constant 9.99999974E-6 : f32
    %239 = vector.broadcast %cst_192 : f32 to vector<64x1xf32>
    %240 = arith.addf %236, %239 : vector<64x1xf32>
    %241 = math.rsqrt %240 : vector<64x1xf32>
    %242 = arith.mulf %241, %214 : vector<64x1xf32>
    %243 = vector.broadcast %242 : vector<64x1xf32> to vector<64x16xf32>
    %244 = arith.mulf %238, %243 : vector<64x16xf32>
    %245 = vector.broadcast %215 : vector<64x1xf32> to vector<64x16xf32>
    %246 = arith.addf %244, %245 : vector<64x16xf32>
    %cst_193 = arith.constant 0.000000e+00 : f32
    %247 = vector.broadcast %cst_193 : f32 to vector<64x16xf32>
    %248 = arith.maximumf %246, %247 : vector<64x16xf32>
    %c0_194 = arith.constant 0 : index
    %c0_195 = arith.constant 0 : index
    %249 = vector.load %arg61[%c0_194, %c0_195] : memref<32x64xf32, #tpu.memory_space<vmem>>, vector<32x64xf32>
    %c0_196 = arith.constant 0 : index
    %c0_197 = arith.constant 0 : index
    %250 = vector.load %arg62[%c0_196, %c0_197] : memref<32x64xf32, #tpu.memory_space<vmem>>, vector<32x64xf32>
    %c0_198 = arith.constant 0 : index
    %c0_199 = arith.constant 0 : index
    %251 = vector.load %arg63[%c0_198, %c0_199] : memref<32x64xf32, #tpu.memory_space<vmem>>, vector<32x64xf32>
    %c0_200 = arith.constant 0 : index
    %c0_201 = arith.constant 0 : index
    %252 = vector.load %arg64[%c0_200, %c0_201] : memref<32x1xf32, #tpu.memory_space<vmem>>, vector<32x1xf32>
    %c0_202 = arith.constant 0 : index
    %c0_203 = arith.constant 0 : index
    %253 = vector.load %arg65[%c0_202, %c0_203] : memref<16x32xf32, #tpu.memory_space<vmem>>, vector<16x32xf32>
    %c0_204 = arith.constant 0 : index
    %c0_205 = arith.constant 0 : index
    %254 = vector.load %arg66[%c0_204, %c0_205] : memref<16x32xf32, #tpu.memory_space<vmem>>, vector<16x32xf32>
    %c0_206 = arith.constant 0 : index
    %c0_207 = arith.constant 0 : index
    %255 = vector.load %arg67[%c0_206, %c0_207] : memref<16x32xf32, #tpu.memory_space<vmem>>, vector<16x32xf32>
    %c0_208 = arith.constant 0 : index
    %c0_209 = arith.constant 0 : index
    %256 = vector.load %arg68[%c0_208, %c0_209] : memref<32x1xf32, #tpu.memory_space<vmem>>, vector<32x1xf32>
    %c0_210 = arith.constant 0 : index
    %c0_211 = arith.constant 0 : index
    %257 = vector.load %arg69[%c0_210, %c0_211] : memref<32x1xf32, #tpu.memory_space<vmem>>, vector<32x1xf32>
    %cst_212 = arith.constant dense<0.000000e+00> : vector<32x16xf32>
    %258 = tpu.matmul %249, %248, %cst_212 {dimension_numbers = #tpu.dot_dimension_numbers<[1], [0], [0], [1], [0, 0, 1, 1], [], []>} : vector<32x64xf32>, vector<64x16xf32>, vector<32x16xf32> -> vector<32x16xf32>
    %cst_213 = arith.constant dense<0.000000e+00> : vector<32x32xf32>
    %259 = tpu.matmul %258, %253, %cst_213 {dimension_numbers = #tpu.dot_dimension_numbers<[1], [0], [0], [1], [0, 0, 1, 1], [], []>} : vector<32x16xf32>, vector<16x32xf32>, vector<32x32xf32> -> vector<32x32xf32>
    %cst_214 = arith.constant dense<0.000000e+00> : vector<32x16xf32>
    %260 = tpu.matmul %250, %248, %cst_214 {dimension_numbers = #tpu.dot_dimension_numbers<[1], [0], [0], [1], [0, 0, 1, 1], [], []>} : vector<32x64xf32>, vector<64x16xf32>, vector<32x16xf32> -> vector<32x16xf32>
    %cst_215 = arith.constant dense<0.000000e+00> : vector<32x32xf32>
    %261 = tpu.matmul %260, %254, %cst_215 {dimension_numbers = #tpu.dot_dimension_numbers<[1], [0], [0], [1], [0, 0, 1, 1], [], []>} : vector<32x16xf32>, vector<16x32xf32>, vector<32x32xf32> -> vector<32x32xf32>
    %262 = arith.addf %259, %261 : vector<32x32xf32>
    %cst_216 = arith.constant dense<0.000000e+00> : vector<32x16xf32>
    %263 = tpu.matmul %251, %248, %cst_216 {dimension_numbers = #tpu.dot_dimension_numbers<[1], [0], [0], [1], [0, 0, 1, 1], [], []>} : vector<32x64xf32>, vector<64x16xf32>, vector<32x16xf32> -> vector<32x16xf32>
    %cst_217 = arith.constant dense<0.000000e+00> : vector<32x32xf32>
    %264 = tpu.matmul %263, %255, %cst_217 {dimension_numbers = #tpu.dot_dimension_numbers<[1], [0], [0], [1], [0, 0, 1, 1], [], []>} : vector<32x16xf32>, vector<16x32xf32>, vector<32x32xf32> -> vector<32x32xf32>
    %265 = arith.addf %262, %264 : vector<32x32xf32>
    %266 = vector.broadcast %252 : vector<32x1xf32> to vector<32x32xf32>
    %267 = arith.addf %265, %266 : vector<32x32xf32>
    %cst_218 = arith.constant dense<0.000000e+00> : vector<32xf32>
    %268 = vector.multi_reduction <add>, %267, %cst_218 [1] : vector<32x32xf32> to vector<32xf32>
    %269 = vector.shape_cast %268 : vector<32xf32> to vector<32x1xf32>
    %270 = arith.mulf %267, %267 : vector<32x32xf32>
    %cst_219 = arith.constant dense<0.000000e+00> : vector<32xf32>
    %271 = vector.multi_reduction <add>, %270, %cst_219 [1] : vector<32x32xf32> to vector<32xf32>
    %272 = vector.shape_cast %271 : vector<32xf32> to vector<32x1xf32>
    %cst_220 = arith.constant 3.125000e-02 : f32
    %273 = vector.broadcast %cst_220 : f32 to vector<32x1xf32>
    %274 = arith.mulf %269, %273 : vector<32x1xf32>
    %cst_221 = arith.constant 3.125000e-02 : f32
    %275 = vector.broadcast %cst_221 : f32 to vector<32x1xf32>
    %276 = arith.mulf %272, %275 : vector<32x1xf32>
    %277 = arith.mulf %274, %274 : vector<32x1xf32>
    %278 = arith.subf %276, %277 : vector<32x1xf32>
    %279 = vector.broadcast %274 : vector<32x1xf32> to vector<32x32xf32>
    %280 = arith.subf %267, %279 : vector<32x32xf32>
    %cst_222 = arith.constant 9.99999974E-6 : f32
    %281 = vector.broadcast %cst_222 : f32 to vector<32x1xf32>
    %282 = arith.addf %278, %281 : vector<32x1xf32>
    %283 = math.rsqrt %282 : vector<32x1xf32>
    %284 = arith.mulf %283, %256 : vector<32x1xf32>
    %285 = vector.broadcast %284 : vector<32x1xf32> to vector<32x32xf32>
    %286 = arith.mulf %280, %285 : vector<32x32xf32>
    %287 = vector.broadcast %257 : vector<32x1xf32> to vector<32x32xf32>
    %288 = arith.addf %286, %287 : vector<32x32xf32>
    %cst_223 = arith.constant 0.000000e+00 : f32
    %289 = vector.broadcast %cst_223 : f32 to vector<32x32xf32>
    %290 = arith.maximumf %288, %289 : vector<32x32xf32>
    %c0_224 = arith.constant 0 : index
    %c0_225 = arith.constant 0 : index
    %291 = vector.load %arg70[%c0_224, %c0_225] : memref<4x32xf32, #tpu.memory_space<vmem>>, vector<4x32xf32>
    %c0_226 = arith.constant 0 : index
    %c0_227 = arith.constant 0 : index
    %292 = vector.load %arg71[%c0_226, %c0_227] : memref<4x32xf32, #tpu.memory_space<vmem>>, vector<4x32xf32>
    %c0_228 = arith.constant 0 : index
    %c0_229 = arith.constant 0 : index
    %293 = vector.load %arg72[%c0_228, %c0_229] : memref<4x32xf32, #tpu.memory_space<vmem>>, vector<4x32xf32>
    %c0_230 = arith.constant 0 : index
    %c0_231 = arith.constant 0 : index
    %294 = vector.load %arg73[%c0_230, %c0_231] : memref<4x1xf32, #tpu.memory_space<vmem>>, vector<4x1xf32>
    %c0_232 = arith.constant 0 : index
    %c0_233 = arith.constant 0 : index
    %295 = vector.load %arg74[%c0_232, %c0_233] : memref<32x64xf32, #tpu.memory_space<vmem>>, vector<32x64xf32>
    %c0_234 = arith.constant 0 : index
    %c0_235 = arith.constant 0 : index
    %296 = vector.load %arg75[%c0_234, %c0_235] : memref<32x64xf32, #tpu.memory_space<vmem>>, vector<32x64xf32>
    %c0_236 = arith.constant 0 : index
    %c0_237 = arith.constant 0 : index
    %297 = vector.load %arg76[%c0_236, %c0_237] : memref<32x64xf32, #tpu.memory_space<vmem>>, vector<32x64xf32>
    %cst_238 = arith.constant dense<0.000000e+00> : vector<4x32xf32>
    %298 = tpu.matmul %291, %290, %cst_238 {dimension_numbers = #tpu.dot_dimension_numbers<[1], [0], [0], [1], [0, 0, 1, 1], [], []>} : vector<4x32xf32>, vector<32x32xf32>, vector<4x32xf32> -> vector<4x32xf32>
    %cst_239 = arith.constant dense<0.000000e+00> : vector<4x64xf32>
    %299 = tpu.matmul %298, %295, %cst_239 {dimension_numbers = #tpu.dot_dimension_numbers<[1], [0], [0], [1], [0, 0, 1, 1], [], []>} : vector<4x32xf32>, vector<32x64xf32>, vector<4x64xf32> -> vector<4x64xf32>
    %cst_240 = arith.constant dense<0.000000e+00> : vector<4x32xf32>
    %300 = tpu.matmul %292, %290, %cst_240 {dimension_numbers = #tpu.dot_dimension_numbers<[1], [0], [0], [1], [0, 0, 1, 1], [], []>} : vector<4x32xf32>, vector<32x32xf32>, vector<4x32xf32> -> vector<4x32xf32>
    %cst_241 = arith.constant dense<0.000000e+00> : vector<4x64xf32>
    %301 = tpu.matmul %300, %296, %cst_241 {dimension_numbers = #tpu.dot_dimension_numbers<[1], [0], [0], [1], [0, 0, 1, 1], [], []>} : vector<4x32xf32>, vector<32x64xf32>, vector<4x64xf32> -> vector<4x64xf32>
    %302 = arith.addf %299, %301 : vector<4x64xf32>
    %cst_242 = arith.constant dense<0.000000e+00> : vector<4x32xf32>
    %303 = tpu.matmul %293, %290, %cst_242 {dimension_numbers = #tpu.dot_dimension_numbers<[1], [0], [0], [1], [0, 0, 1, 1], [], []>} : vector<4x32xf32>, vector<32x32xf32>, vector<4x32xf32> -> vector<4x32xf32>
    %cst_243 = arith.constant dense<0.000000e+00> : vector<4x64xf32>
    %304 = tpu.matmul %303, %297, %cst_243 {dimension_numbers = #tpu.dot_dimension_numbers<[1], [0], [0], [1], [0, 0, 1, 1], [], []>} : vector<4x32xf32>, vector<32x64xf32>, vector<4x64xf32> -> vector<4x64xf32>
    %305 = arith.addf %302, %304 : vector<4x64xf32>
    %306 = vector.broadcast %294 : vector<4x1xf32> to vector<4x64xf32>
    %307 = arith.addf %305, %306 : vector<4x64xf32>
    %c0_244 = arith.constant 0 : index
    %c0_245 = arith.constant 0 : index
    %308 = vector.load %arg77[%c0_244, %c0_245] : memref<4x64xf32, #tpu.memory_space<vmem>>, vector<4x64xf32>
    tpu.vector_store %arg77[%c0_244, %c0_245], %307 {strides = array<i32>} : memref<4x64xf32, #tpu.memory_space<vmem>>, vector<4x64xf32>,
    return
  }
}

</mosaic_0001>

<llo_original>
// kernel: mul.11
$region0: #{mul.11}
  %s0 = inlined_call_operand.vmem [shape: f32[4,2,16], index: 0, kind: input, shape index: {}]
  %s1 = inlined_call_operand.vmem [shape: f32[4,32], index: 1, kind: output, shape index: {}]
  $region1: #{mul.11} parent=0
    #allocation0 [shape = 'u8[4096]{0}', space=vmem, size = 0x1000, scoped, tag = 'scoped mem for output reshape']
    #allocation1 [shape = 'u8[16384]{0}', space=vmem, size = 0x4000, scoped, tag = 'scoped mem for input reshape']
    %s3 = sshllo.u32 0, 2
    %s4 = smul.addr 2, 3
    %s5 = scalar_lea.vmem %s0, %s4
    %v6 = vld [vmem:[%s5] sm:%s3]
    %s7 = scalar_lea.vmem [#allocation1], 24
    %8 = vst [vmem:[%s7] sm:%s3] %v6
    %s9 = smul.addr 2, 2
    %s10 = scalar_lea.vmem %s0, %s9
    %v11 = vld [vmem:[%s10] sm:%s3]
    %s12 = scalar_lea.vmem [#allocation1], 16
    %13 = vst [vmem:[%s12] sm:%s3] %v11
    %s14 = scalar_lea.vmem %s0, 2
    %v15 = vld [vmem:[%s14] sm:%s3]
    %s16 = scalar_lea.vmem [#allocation1], 8
    %17 = vst [vmem:[%s16] sm:%s3] %v15
    %v18 = vld [vmem:[%s0] sm:%s3]
    %19 = vst [vmem:[#allocation1] sm:%s3] %v18
    %v20 = vld [vmem:[#allocation1] ss:$8 sm:$0xf]
    %vm21 = vcmask 130048
    %22 = vst.msk [vmem:[#allocation0] sm:$0xf] %vm21, %v20
    %s23 = scalar_lea.vmem [#allocation1], 1
    %v24 = vld [vmem:[%s23] ss:$8 sm:$0xf]
    %25 = vrot.lane.b32.xlu0 %v24, 16
    %v26 = vpop.permute.xlu0 %25
    %vm27 = vcmask 261248
    %28 = vst.msk [vmem:[#allocation0] sm:$0xf] %vm27, %v26
    %s30 = sshllo.u32 0, 4
    %v32 = vld [vmem:[#allocation0] sm:%s30]
    %s33 = sshllo.u32 0, 4
    %34 = vst [vmem:[%s1] sm:%s33] %v32

// kernel: fwd.1
$region0: #{fwd.1}
  #allocation0 [shape = 'u32[]', space=smem, size = 0x4, offset = 0x4, fixed_abs, tag = 'smem constant byte address 0x4 - core index']
  #allocation1 [shape = 'u32[144,128]{1,0:T(1,128)}', space=vmem, size = 0x12000, scoped, tag = 'internal scratch']
  %s0 = inlined_call_operand.smem [shape: u32[78], index: -1, kind: input, shape index: {}]
  %s1 = sld [smem:[%s0]]
  %s2 = scalar_lea.smem %s0, 1
  %s3 = sld [smem:[%s2]]
  %s4 = scalar_lea.smem %s0, 2
  %s5 = sld [smem:[%s4]]
  %s6 = scalar_lea.smem %s0, 3
  %s7 = sld [smem:[%s6]]
  %s8 = scalar_lea.smem %s0, 4
  %s9 = sld [smem:[%s8]]
  %s10 = scalar_lea.smem %s0, 5
  %s11 = sld [smem:[%s10]]
  %s12 = scalar_lea.smem %s0, 6
  %s13 = sld [smem:[%s12]]
  %s14 = scalar_lea.smem %s0, 7
  %s15 = sld [smem:[%s14]]
  %s16 = scalar_lea.smem %s0, 8
  %s17 = sld [smem:[%s16]]
  %s18 = scalar_lea.smem %s0, 9
  %s19 = sld [smem:[%s18]]
  %s20 = scalar_lea.smem %s0, 10
  %s21 = sld [smem:[%s20]]
  %s22 = scalar_lea.smem %s0, 11
  %s23 = sld [smem:[%s22]]
  %s24 = scalar_lea.smem %s0, 12
  %s25 = sld [smem:[%s24]]
  %s26 = scalar_lea.smem %s0, 13
  %s27 = sld [smem:[%s26]]
  %s28 = scalar_lea.smem %s0, 14
  %s29 = sld [smem:[%s28]]
  %s30 = scalar_lea.smem %s0, 15
  %s31 = sld [smem:[%s30]]
  %s32 = scalar_lea.smem %s0, 16
  %s33 = sld [smem:[%s32]]
  %s34 = scalar_lea.smem %s0, 17
  %s35 = sld [smem:[%s34]]
  %s36 = scalar_lea.smem %s0, 18
  %s37 = sld [smem:[%s36]]
  %s38 = scalar_lea.smem %s0, 19
  %s39 = sld [smem:[%s38]]
  %s40 = scalar_lea.smem %s0, 20
  %s41 = sld [smem:[%s40]]
  %s42 = scalar_lea.smem %s0, 21
  %s43 = sld [smem:[%s42]]
  %s44 = scalar_lea.smem %s0, 22
  %s45 = sld [smem:[%s44]]
  %s46 = scalar_lea.smem %s0, 23
  %s47 = sld [smem:[%s46]]
  %s48 = scalar_lea.smem %s0, 24
  %s49 = sld [smem:[%s48]]
  %s50 = scalar_lea.smem %s0, 25
  %s51 = sld [smem:[%s50]]
  %s52 = scalar_lea.smem %s0, 26
  %s53 = sld [smem:[%s52]]
  %s54 = scalar_lea.smem %s0, 27
  %s55 = sld [smem:[%s54]]
  %s56 = scalar_lea.smem %s0, 28
  %s57 = sld [smem:[%s56]]
  %s58 = scalar_lea.smem %s0, 29
  %s59 = sld [smem:[%s58]]
  %s60 = scalar_lea.smem %s0, 30
  %s61 = sld [smem:[%s60]]
  %s62 = scalar_lea.smem %s0, 31
  %s63 = sld [smem:[%s62]]
  %s64 = scalar_lea.smem %s0, 32
  %s65 = sld [smem:[%s64]]
  %s66 = scalar_lea.smem %s0, 33
  %s67 = sld [smem:[%s66]]
  %s68 = scalar_lea.smem %s0, 34
  %s69 = sld [smem:[%s68]]
  %s70 = scalar_lea.smem %s0, 35
  %s71 = sld [smem:[%s70]]
  %s72 = scalar_lea.smem %s0, 36
  %s73 = sld [smem:[%s72]]
  %s74 = scalar_lea.smem %s0, 37
  %s75 = sld [smem:[%s74]]
  %s76 = scalar_lea.smem %s0, 38
  %s77 = sld [smem:[%s76]]
  %s78 = scalar_lea.smem %s0, 39
  %s79 = sld [smem:[%s78]]
  %s80 = scalar_lea.smem %s0, 40
  %s81 = sld [smem:[%s80]]
  %s82 = scalar_lea.smem %s0, 41
  %s83 = sld [smem:[%s82]]
  %s84 = scalar_lea.smem %s0, 42
  %s85 = sld [smem:[%s84]]
  %s86 = scalar_lea.smem %s0, 43
  %s87 = sld [smem:[%s86]]
  %s88 = scalar_lea.smem %s0, 44
  %s89 = sld [smem:[%s88]]
  %s90 = scalar_lea.smem %s0, 45
  %s91 = sld [smem:[%s90]]
  %s92 = scalar_lea.smem %s0, 46
  %s93 = sld [smem:[%s92]]
  %s94 = scalar_lea.smem %s0, 47
  %s95 = sld [smem:[%s94]]
  %s96 = scalar_lea.smem %s0, 48
  %s97 = sld [smem:[%s96]]
  %s98 = scalar_lea.smem %s0, 49
  %s99 = sld [smem:[%s98]]
  %s100 = scalar_lea.smem %s0, 50
  %s101 = sld [smem:[%s100]]
  %s102 = scalar_lea.smem %s0, 51
  %s103 = sld [smem:[%s102]]
  %s104 = scalar_lea.smem %s0, 52
  %s105 = sld [smem:[%s104]]
  %s106 = scalar_lea.smem %s0, 53
  %s107 = sld [smem:[%s106]]
  %s108 = scalar_lea.smem %s0, 54
  %s109 = sld [smem:[%s108]]
  %s110 = scalar_lea.smem %s0, 55
  %s111 = sld [smem:[%s110]]
  %s112 = scalar_lea.smem %s0, 56
  %s113 = sld [smem:[%s112]]
  %s114 = scalar_lea.smem %s0, 57
  %s115 = sld [smem:[%s114]]
  %s116 = scalar_lea.smem %s0, 58
  %s117 = sld [smem:[%s116]]
  %s118 = scalar_lea.smem %s0, 59
  %s119 = sld [smem:[%s118]]
  %s120 = scalar_lea.smem %s0, 60
  %s121 = sld [smem:[%s120]]
  %s122 = scalar_lea.smem %s0, 61
  %s123 = sld [smem:[%s122]]
  %s124 = scalar_lea.smem %s0, 62
  %s125 = sld [smem:[%s124]]
  %s126 = scalar_lea.smem %s0, 63
  %s127 = sld [smem:[%s126]]
  %s128 = scalar_lea.smem %s0, 64
  %s129 = sld [smem:[%s128]]
  %s130 = scalar_lea.smem %s0, 65
  %s131 = sld [smem:[%s130]]
  %s132 = scalar_lea.smem %s0, 66
  %s133 = sld [smem:[%s132]]
  %s134 = scalar_lea.smem %s0, 67
  %s135 = sld [smem:[%s134]]
  %s136 = scalar_lea.smem %s0, 68
  %s137 = sld [smem:[%s136]]
  %s138 = scalar_lea.smem %s0, 69
  %s139 = sld [smem:[%s138]]
  %s140 = scalar_lea.smem %s0, 70
  %s141 = sld [smem:[%s140]]
  %s142 = scalar_lea.smem %s0, 71
  %s143 = sld [smem:[%s142]]
  %s144 = scalar_lea.smem %s0, 72
  %s145 = sld [smem:[%s144]]
  %s146 = scalar_lea.smem %s0, 73
  %s147 = sld [smem:[%s146]]
  %s148 = scalar_lea.smem %s0, 74
  %s149 = sld [smem:[%s148]]
  %s150 = scalar_lea.smem %s0, 75
  %s151 = sld [smem:[%s150]]
  %s152 = scalar_lea.smem %s0, 76
  %s153 = sld [smem:[%s152]]
  %s154 = scalar_lea.smem %s0, 77
  %s155 = sld [smem:[%s154]]
  %s156 = sld [smem:[#allocation0]]
  $region318: #{fwd.1} parent=0
    _
  %s158 = ssub.s32 1, %s156
  %s159 = scalar_select 0, %s158, %s156
  // Predicated region
  $region2: #{fwd.1} parent=0 // pred_check
    _
  $region3: #{fwd.1} parent=0 // pred_check_branch
    %161 = sbr.rel (0) target = $region5
  $region4: #{fwd.1} parent=0 // pred_region
    _
  $region5: #{fwd.1} parent=0 // pred_fallthru
    _
  // Predicated region
  $region6: #{fwd.1} parent=0 // pred_check
    _
  $region7: #{fwd.1} parent=0 // pred_check_branch
    %163 = sbr.rel (0) target = $region9
  $region8: #{fwd.1} parent=0 // pred_region
    _
  $region9: #{fwd.1} parent=0 // pred_fallthru
    _
  // Predicated region
  $region10: #{fwd.1} parent=0 // pred_check
    _
  $region11: #{fwd.1} parent=0 // pred_check_branch
    %165 = sbr.rel (0) target = $region13
  $region12: #{fwd.1} parent=0 // pred_region
    _
  $region13: #{fwd.1} parent=0 // pred_fallthru
    _
  // Predicated region
  $region14: #{fwd.1} parent=0 // pred_check
    _
  $region15: #{fwd.1} parent=0 // pred_check_branch
    %167 = sbr.rel (0) target = $region17
  $region16: #{fwd.1} parent=0 // pred_region
    _
  $region17: #{fwd.1} parent=0 // pred_fallthru
    _
  // Predicated region
  $region18: #{fwd.1} parent=0 // pred_check
    _
  $region19: #{fwd.1} parent=0 // pred_check_branch
    %169 = sbr.rel (0) target = $region21
  $region20: #{fwd.1} parent=0 // pred_region
    _
  $region21: #{fwd.1} parent=0 // pred_fallthru
    _
  // Predicated region
  $region22: #{fwd.1} parent=0 // pred_check
    _
  $region23: #{fwd.1} parent=0 // pred_check_branch
    %171 = sbr.rel (0) target = $region25
  $region24: #{fwd.1} parent=0 // pred_region
    _
  $region25: #{fwd.1} parent=0 // pred_fallthru
    _
  // Predicated region
  $region26: #{fwd.1} parent=0 // pred_check
    _
  $region27: #{fwd.1} parent=0 // pred_check_branch
    %173 = sbr.rel (0) target = $region29
  $region28: #{fwd.1} parent=0 // pred_region
    _
  $region29: #{fwd.1} parent=0 // pred_fallthru
    _
  // Predicated region
  $region30: #{fwd.1} parent=0 // pred_check
    _
  $region31: #{fwd.1} parent=0 // pred_check_branch
    %175 = sbr.rel (0) target = $region33
  $region32: #{fwd.1} parent=0 // pred_region
    _
  $region33: #{fwd.1} parent=0 // pred_fallthru
    _
  // Predicated region
  $region34: #{fwd.1} parent=0 // pred_check
    _
  $region35: #{fwd.1} parent=0 // pred_check_branch
    %177 = sbr.rel (0) target = $region37
  $region36: #{fwd.1} parent=0 // pred_region
    _
  $region37: #{fwd.1} parent=0 // pred_fallthru
    _
  // Predicated region
  $region38: #{fwd.1} parent=0 // pred_check
    _
  $region39: #{fwd.1} parent=0 // pred_check_branch
    %179 = sbr.rel (0) target = $region41
  $region40: #{fwd.1} parent=0 // pred_region
    _
  $region41: #{fwd.1} parent=0 // pred_fallthru
    _
  // Predicated region
  $region42: #{fwd.1} parent=0 // pred_check
    _
  $region43: #{fwd.1} parent=0 // pred_check_branch
    %181 = sbr.rel (0) target = $region45
  $region44: #{fwd.1} parent=0 // pred_region
    _
  $region45: #{fwd.1} parent=0 // pred_fallthru
    _
  // Predicated region
  $region46: #{fwd.1} parent=0 // pred_check
    _
  $region47: #{fwd.1} parent=0 // pred_check_branch
    %183 = sbr.rel (0) target = $region49
  $region48: #{fwd.1} parent=0 // pred_region
    _
  $region49: #{fwd.1} parent=0 // pred_fallthru
    _
  // Predicated region
  $region50: #{fwd.1} parent=0 // pred_check
    _
  $region51: #{fwd.1} parent=0 // pred_check_branch
    %185 = sbr.rel (0) target = $region53
  $region52: #{fwd.1} parent=0 // pred_region
    _
  $region53: #{fwd.1} parent=0 // pred_fallthru
    _
  // Predicated region
  $region54: #{fwd.1} parent=0 // pred_check
    _
  $region55: #{fwd.1} parent=0 // pred_check_branch
    %187 = sbr.rel (0) target = $region57
  $region56: #{fwd.1} parent=0 // pred_region
    _
  $region57: #{fwd.1} parent=0 // pred_fallthru
    _
  // Predicated region
  $region58: #{fwd.1} parent=0 // pred_check
    _
  $region59: #{fwd.1} parent=0 // pred_check_branch
    %189 = sbr.rel (0) target = $region61
  $region60: #{fwd.1} parent=0 // pred_region
    _
  $region61: #{fwd.1} parent=0 // pred_fallthru
    _
  // Predicated region
  $region62: #{fwd.1} parent=0 // pred_check
    _
  $region63: #{fwd.1} parent=0 // pred_check_branch
    %191 = sbr.rel (0) target = $region65
  $region64: #{fwd.1} parent=0 // pred_region
    _
  $region65: #{fwd.1} parent=0 // pred_fallthru
    _
  // Predicated region
  $region66: #{fwd.1} parent=0 // pred_check
    _
  $region67: #{fwd.1} parent=0 // pred_check_branch
    %193 = sbr.rel (0) target = $region69
  $region68: #{fwd.1} parent=0 // pred_region
    _
  $region69: #{fwd.1} parent=0 // pred_fallthru
    _
  // Predicated region
  $region70: #{fwd.1} parent=0 // pred_check
    _
  $region71: #{fwd.1} parent=0 // pred_check_branch
    %195 = sbr.rel (0) target = $region73
  $region72: #{fwd.1} parent=0 // pred_region
    _
  $region73: #{fwd.1} parent=0 // pred_fallthru
    _
  // Predicated region
  $region74: #{fwd.1} parent=0 // pred_check
    _
  $region75: #{fwd.1} parent=0 // pred_check_branch
    %197 = sbr.rel (0) target = $region77
  $region76: #{fwd.1} parent=0 // pred_region
    _
  $region77: #{fwd.1} parent=0 // pred_fallthru
    _
  // Predicated region
  $region78: #{fwd.1} parent=0 // pred_check
    _
  $region79: #{fwd.1} parent=0 // pred_check_branch
    %199 = sbr.rel (0) target = $region81
  $region80: #{fwd.1} parent=0 // pred_region
    _
  $region81: #{fwd.1} parent=0 // pred_fallthru
    _
  // Predicated region
  $region82: #{fwd.1} parent=0 // pred_check
    _
  $region83: #{fwd.1} parent=0 // pred_check_branch
    %201 = sbr.rel (0) target = $region85
  $region84: #{fwd.1} parent=0 // pred_region
    _
  $region85: #{fwd.1} parent=0 // pred_fallthru
    _
  // Predicated region
  $region86: #{fwd.1} parent=0 // pred_check
    _
  $region87: #{fwd.1} parent=0 // pred_check_branch
    %203 = sbr.rel (0) target = $region89
  $region88: #{fwd.1} parent=0 // pred_region
    _
  $region89: #{fwd.1} parent=0 // pred_fallthru
    _
  // Predicated region
  $region90: #{fwd.1} parent=0 // pred_check
    _
  $region91: #{fwd.1} parent=0 // pred_check_branch
    %205 = sbr.rel (0) target = $region93
  $region92: #{fwd.1} parent=0 // pred_region
    _
  $region93: #{fwd.1} parent=0 // pred_fallthru
    _
  // Predicated region
  $region94: #{fwd.1} parent=0 // pred_check
    _
  $region95: #{fwd.1} parent=0 // pred_check_branch
    %207 = sbr.rel (0) target = $region97
  $region96: #{fwd.1} parent=0 // pred_region
    _
  $region97: #{fwd.1} parent=0 // pred_fallthru
    _
  // Predicated region
  $region98: #{fwd.1} parent=0 // pred_check
    _
  $region99: #{fwd.1} parent=0 // pred_check_branch
    %209 = sbr.rel (0) target = $region101
  $region100: #{fwd.1} parent=0 // pred_region
    _
  $region101: #{fwd.1} parent=0 // pred_fallthru
    _
  // Predicated region
  $region102: #{fwd.1} parent=0 // pred_check
    _
  $region103: #{fwd.1} parent=0 // pred_check_branch
    %211 = sbr.rel (0) target = $region105
  $region104: #{fwd.1} parent=0 // pred_region
    _
  $region105: #{fwd.1} parent=0 // pred_fallthru
    _
  // Predicated region
  $region106: #{fwd.1} parent=0 // pred_check
    _
  $region107: #{fwd.1} parent=0 // pred_check_branch
    %213 = sbr.rel (0) target = $region109
  $region108: #{fwd.1} parent=0 // pred_region
    _
  $region109: #{fwd.1} parent=0 // pred_fallthru
    _
  // Predicated region
  $region110: #{fwd.1} parent=0 // pred_check
    _
  $region111: #{fwd.1} parent=0 // pred_check_branch
    %215 = sbr.rel (0) target = $region113
  $region112: #{fwd.1} parent=0 // pred_region
    _
  $region113: #{fwd.1} parent=0 // pred_fallthru
    _
  // Predicated region
  $region114: #{fwd.1} parent=0 // pred_check
    _
  $region115: #{fwd.1} parent=0 // pred_check_branch
    %217 = sbr.rel (0) target = $region117
  $region116: #{fwd.1} parent=0 // pred_region
    _
  $region117: #{fwd.1} parent=0 // pred_fallthru
    _
  // Predicated region
  $region118: #{fwd.1} parent=0 // pred_check
    _
  $region119: #{fwd.1} parent=0 // pred_check_branch
    %219 = sbr.rel (0) target = $region121
  $region120: #{fwd.1} parent=0 // pred_region
    _
  $region121: #{fwd.1} parent=0 // pred_fallthru
    _
  // Predicated region
  $region122: #{fwd.1} parent=0 // pred_check
    _
  $region123: #{fwd.1} parent=0 // pred_check_branch
    %221 = sbr.rel (0) target = $region125
  $region124: #{fwd.1} parent=0 // pred_region
    _
  $region125: #{fwd.1} parent=0 // pred_fallthru
    _
  // Predicated region
  $region126: #{fwd.1} parent=0 // pred_check
    _
  $region127: #{fwd.1} parent=0 // pred_check_branch
    %223 = sbr.rel (0) target = $region129
  $region128: #{fwd.1} parent=0 // pred_region
    _
  $region129: #{fwd.1} parent=0 // pred_fallthru
    _
  // Predicated region
  $region130: #{fwd.1} parent=0 // pred_check
    _
  $region131: #{fwd.1} parent=0 // pred_check_branch
    %225 = sbr.rel (0) target = $region133
  $region132: #{fwd.1} parent=0 // pred_region
    _
  $region133: #{fwd.1} parent=0 // pred_fallthru
    _
  // Predicated region
  $region134: #{fwd.1} parent=0 // pred_check
    _
  $region135: #{fwd.1} parent=0 // pred_check_branch
    %227 = sbr.rel (0) target = $region137
  $region136: #{fwd.1} parent=0 // pred_region
    _
  $region137: #{fwd.1} parent=0 // pred_fallthru
    _
  // Predicated region
  $region138: #{fwd.1} parent=0 // pred_check
    _
  $region139: #{fwd.1} parent=0 // pred_check_branch
    %229 = sbr.rel (0) target = $region141
  $region140: #{fwd.1} parent=0 // pred_region
    _
  $region141: #{fwd.1} parent=0 // pred_fallthru
    _
  // Predicated region
  $region142: #{fwd.1} parent=0 // pred_check
    _
  $region143: #{fwd.1} parent=0 // pred_check_branch
    %231 = sbr.rel (0) target = $region145
  $region144: #{fwd.1} parent=0 // pred_region
    _
  $region145: #{fwd.1} parent=0 // pred_fallthru
    _
  // Predicated region
  $region146: #{fwd.1} parent=0 // pred_check
    _
  $region147: #{fwd.1} parent=0 // pred_check_branch
    %233 = sbr.rel (0) target = $region149
  $region148: #{fwd.1} parent=0 // pred_region
    _
  $region149: #{fwd.1} parent=0 // pred_fallthru
    _
  // Predicated region
  $region150: #{fwd.1} parent=0 // pred_check
    _
  $region151: #{fwd.1} parent=0 // pred_check_branch
    %235 = sbr.rel (0) target = $region153
  $region152: #{fwd.1} parent=0 // pred_region
    _
  $region153: #{fwd.1} parent=0 // pred_fallthru
    _
  // Predicated region
  $region154: #{fwd.1} parent=0 // pred_check
    _
  $region155: #{fwd.1} parent=0 // pred_check_branch
    %237 = sbr.rel (0) target = $region157
  $region156: #{fwd.1} parent=0 // pred_region
    _
  $region157: #{fwd.1} parent=0 // pred_fallthru
    _
  // Predicated region
  $region158: #{fwd.1} parent=0 // pred_check
    _
  $region159: #{fwd.1} parent=0 // pred_check_branch
    %239 = sbr.rel (0) target = $region161
  $region160: #{fwd.1} parent=0 // pred_region
    _
  $region161: #{fwd.1} parent=0 // pred_fallthru
    _
  // Predicated region
  $region162: #{fwd.1} parent=0 // pred_check
    _
  $region163: #{fwd.1} parent=0 // pred_check_branch
    %241 = sbr.rel (0) target = $region165
  $region164: #{fwd.1} parent=0 // pred_region
    _
  $region165: #{fwd.1} parent=0 // pred_fallthru
    _
  // Predicated region
  $region166: #{fwd.1} parent=0 // pred_check
    _
  $region167: #{fwd.1} parent=0 // pred_check_branch
    %243 = sbr.rel (0) target = $region169
  $region168: #{fwd.1} parent=0 // pred_region
    _
  $region169: #{fwd.1} parent=0 // pred_fallthru
    _
  // Predicated region
  $region170: #{fwd.1} parent=0 // pred_check
    _
  $region171: #{fwd.1} parent=0 // pred_check_branch
    %245 = sbr.rel (0) target = $region173
  $region172: #{fwd.1} parent=0 // pred_region
    _
  $region173: #{fwd.1} parent=0 // pred_fallthru
    _
  // Predicated region
  $region174: #{fwd.1} parent=0 // pred_check
    _
  $region175: #{fwd.1} parent=0 // pred_check_branch
    %247 = sbr.rel (0) target = $region177
  $region176: #{fwd.1} parent=0 // pred_region
    _
  $region177: #{fwd.1} parent=0 // pred_fallthru
    _
  // Predicated region
  $region178: #{fwd.1} parent=0 // pred_check
    _
  $region179: #{fwd.1} parent=0 // pred_check_branch
    %249 = sbr.rel (0) target = $region181
  $region180: #{fwd.1} parent=0 // pred_region
    _
  $region181: #{fwd.1} parent=0 // pred_fallthru
    _
  // Predicated region
  $region182: #{fwd.1} parent=0 // pred_check
    _
  $region183: #{fwd.1} parent=0 // pred_check_branch
    %251 = sbr.rel (0) target = $region185
  $region184: #{fwd.1} parent=0 // pred_region
    _
  $region185: #{fwd.1} parent=0 // pred_fallthru
    _
  // Predicated region
  $region186: #{fwd.1} parent=0 // pred_check
    _
  $region187: #{fwd.1} parent=0 // pred_check_branch
    %253 = sbr.rel (0) target = $region189
  $region188: #{fwd.1} parent=0 // pred_region
    _
  $region189: #{fwd.1} parent=0 // pred_fallthru
    _
  // Predicated region
  $region190: #{fwd.1} parent=0 // pred_check
    _
  $region191: #{fwd.1} parent=0 // pred_check_branch
    %255 = sbr.rel (0) target = $region193
  $region192: #{fwd.1} parent=0 // pred_region
    _
  $region193: #{fwd.1} parent=0 // pred_fallthru
    _
  // Predicated region
  $region194: #{fwd.1} parent=0 // pred_check
    _
  $region195: #{fwd.1} parent=0 // pred_check_branch
    %257 = sbr.rel (0) target = $region197
  $region196: #{fwd.1} parent=0 // pred_region
    _
  $region197: #{fwd.1} parent=0 // pred_fallthru
    _
  // Predicated region
  $region198: #{fwd.1} parent=0 // pred_check
    _
  $region199: #{fwd.1} parent=0 // pred_check_branch
    %259 = sbr.rel (0) target = $region201
  $region200: #{fwd.1} parent=0 // pred_region
    _
  $region201: #{fwd.1} parent=0 // pred_fallthru
    _
  // Predicated region
  $region202: #{fwd.1} parent=0 // pred_check
    _
  $region203: #{fwd.1} parent=0 // pred_check_branch
    %261 = sbr.rel (0) target = $region205
  $region204: #{fwd.1} parent=0 // pred_region
    _
  $region205: #{fwd.1} parent=0 // pred_fallthru
    _
  // Predicated region
  $region206: #{fwd.1} parent=0 // pred_check
    _
  $region207: #{fwd.1} parent=0 // pred_check_branch
    %263 = sbr.rel (0) target = $region209
  $region208: #{fwd.1} parent=0 // pred_region
    _
  $region209: #{fwd.1} parent=0 // pred_fallthru
    _
  // Predicated region
  $region210: #{fwd.1} parent=0 // pred_check
    _
  $region211: #{fwd.1} parent=0 // pred_check_branch
    %265 = sbr.rel (0) target = $region213
  $region212: #{fwd.1} parent=0 // pred_region
    _
  $region213: #{fwd.1} parent=0 // pred_fallthru
    _
  // Predicated region
  $region214: #{fwd.1} parent=0 // pred_check
    _
  $region215: #{fwd.1} parent=0 // pred_check_branch
    %267 = sbr.rel (0) target = $region217
  $region216: #{fwd.1} parent=0 // pred_region
    _
  $region217: #{fwd.1} parent=0 // pred_fallthru
    _
  // Predicated region
  $region218: #{fwd.1} parent=0 // pred_check
    _
  $region219: #{fwd.1} parent=0 // pred_check_branch
    %269 = sbr.rel (0) target = $region221
  $region220: #{fwd.1} parent=0 // pred_region
    _
  $region221: #{fwd.1} parent=0 // pred_fallthru
    _
  // Predicated region
  $region222: #{fwd.1} parent=0 // pred_check
    _
  $region223: #{fwd.1} parent=0 // pred_check_branch
    %271 = sbr.rel (0) target = $region225
  $region224: #{fwd.1} parent=0 // pred_region
    _
  $region225: #{fwd.1} parent=0 // pred_fallthru
    _
  // Predicated region
  $region226: #{fwd.1} parent=0 // pred_check
    _
  $region227: #{fwd.1} parent=0 // pred_check_branch
    %273 = sbr.rel (0) target = $region229
  $region228: #{fwd.1} parent=0 // pred_region
    _
  $region229: #{fwd.1} parent=0 // pred_fallthru
    _
  // Predicated region
  $region230: #{fwd.1} parent=0 // pred_check
    _
  $region231: #{fwd.1} parent=0 // pred_check_branch
    %275 = sbr.rel (0) target = $region233
  $region232: #{fwd.1} parent=0 // pred_region
    _
  $region233: #{fwd.1} parent=0 // pred_fallthru
    _
  // Predicated region
  $region234: #{fwd.1} parent=0 // pred_check
    _
  $region235: #{fwd.1} parent=0 // pred_check_branch
    %277 = sbr.rel (0) target = $region237
  $region236: #{fwd.1} parent=0 // pred_region
    _
  $region237: #{fwd.1} parent=0 // pred_fallthru
    _
  // Predicated region
  $region238: #{fwd.1} parent=0 // pred_check
    _
  $region239: #{fwd.1} parent=0 // pred_check_branch
    %279 = sbr.rel (0) target = $region241
  $region240: #{fwd.1} parent=0 // pred_region
    _
  $region241: #{fwd.1} parent=0 // pred_fallthru
    _
  // Predicated region
  $region242: #{fwd.1} parent=0 // pred_check
    _
  $region243: #{fwd.1} parent=0 // pred_check_branch
    %281 = sbr.rel (0) target = $region245
  $region244: #{fwd.1} parent=0 // pred_region
    _
  $region245: #{fwd.1} parent=0 // pred_fallthru
    _
  // Predicated region
  $region246: #{fwd.1} parent=0 // pred_check
    _
  $region247: #{fwd.1} parent=0 // pred_check_branch
    %283 = sbr.rel (0) target = $region249
  $region248: #{fwd.1} parent=0 // pred_region
    _
  $region249: #{fwd.1} parent=0 // pred_fallthru
    _
  // Predicated region
  $region250: #{fwd.1} parent=0 // pred_check
    _
  $region251: #{fwd.1} parent=0 // pred_check_branch
    %285 = sbr.rel (0) target = $region253
  $region252: #{fwd.1} parent=0 // pred_region
    _
  $region253: #{fwd.1} parent=0 // pred_fallthru
    _
  // Predicated region
  $region254: #{fwd.1} parent=0 // pred_check
    _
  $region255: #{fwd.1} parent=0 // pred_check_branch
    %287 = sbr.rel (0) target = $region257
  $region256: #{fwd.1} parent=0 // pred_region
    _
  $region257: #{fwd.1} parent=0 // pred_fallthru
    _
  // Predicated region
  $region258: #{fwd.1} parent=0 // pred_check
    _
  $region259: #{fwd.1} parent=0 // pred_check_branch
    %289 = sbr.rel (0) target = $region261
  $region260: #{fwd.1} parent=0 // pred_region
    _
  $region261: #{fwd.1} parent=0 // pred_fallthru
    _
  // Predicated region
  $region262: #{fwd.1} parent=0 // pred_check
    _
  $region263: #{fwd.1} parent=0 // pred_check_branch
    %291 = sbr.rel (0) target = $region265
  $region264: #{fwd.1} parent=0 // pred_region
    _
  $region265: #{fwd.1} parent=0 // pred_fallthru
    _
  // Predicated region
  $region266: #{fwd.1} parent=0 // pred_check
    _
  $region267: #{fwd.1} parent=0 // pred_check_branch
    %293 = sbr.rel (0) target = $region269
  $region268: #{fwd.1} parent=0 // pred_region
    _
  $region269: #{fwd.1} parent=0 // pred_fallthru
    _
  // Predicated region
  $region270: #{fwd.1} parent=0 // pred_check
    _
  $region271: #{fwd.1} parent=0 // pred_check_branch
    %295 = sbr.rel (0) target = $region273
  $region272: #{fwd.1} parent=0 // pred_region
    _
  $region273: #{fwd.1} parent=0 // pred_fallthru
    _
  // Predicated region
  $region274: #{fwd.1} parent=0 // pred_check
    _
  $region275: #{fwd.1} parent=0 // pred_check_branch
    %297 = sbr.rel (0) target = $region277
  $region276: #{fwd.1} parent=0 // pred_region
    _
  $region277: #{fwd.1} parent=0 // pred_fallthru
    _
  // Predicated region
  $region278: #{fwd.1} parent=0 // pred_check
    _
  $region279: #{fwd.1} parent=0 // pred_check_branch
    %299 = sbr.rel (0) target = $region281
  $region280: #{fwd.1} parent=0 // pred_region
    _
  $region281: #{fwd.1} parent=0 // pred_fallthru
    _
  // Predicated region
  $region282: #{fwd.1} parent=0 // pred_check
    _
  $region283: #{fwd.1} parent=0 // pred_check_branch
    %301 = sbr.rel (0) target = $region285
  $region284: #{fwd.1} parent=0 // pred_region
    _
  $region285: #{fwd.1} parent=0 // pred_fallthru
    _
  // Predicated region
  $region286: #{fwd.1} parent=0 // pred_check
    _
  $region287: #{fwd.1} parent=0 // pred_check_branch
    %303 = sbr.rel (0) target = $region289
  $region288: #{fwd.1} parent=0 // pred_region
    _
  $region289: #{fwd.1} parent=0 // pred_fallthru
    _
  // Predicated region
  $region290: #{fwd.1} parent=0 // pred_check
    _
  $region291: #{fwd.1} parent=0 // pred_check_branch
    %305 = sbr.rel (0) target = $region293
  $region292: #{fwd.1} parent=0 // pred_region
    _
  $region293: #{fwd.1} parent=0 // pred_fallthru
    _
  // Predicated region
  $region294: #{fwd.1} parent=0 // pred_check
    _
  $region295: #{fwd.1} parent=0 // pred_check_branch
    %307 = sbr.rel (0) target = $region297
  $region296: #{fwd.1} parent=0 // pred_region
    _
  $region297: #{fwd.1} parent=0 // pred_fallthru
    _
  // Predicated region
  $region298: #{fwd.1} parent=0 // pred_check
    _
  $region299: #{fwd.1} parent=0 // pred_check_branch
    %309 = sbr.rel (0) target = $region301
  $region300: #{fwd.1} parent=0 // pred_region
    _
  $region301: #{fwd.1} parent=0 // pred_fallthru
    _
  // Predicated region
  $region302: #{fwd.1} parent=0 // pred_check
    _
  $region303: #{fwd.1} parent=0 // pred_check_branch
    %311 = sbr.rel (0) target = $region305
  $region304: #{fwd.1} parent=0 // pred_region
    _
  $region305: #{fwd.1} parent=0 // pred_fallthru
    _
  // Predicated region
  $region306: #{fwd.1} parent=0 // pred_check
    _
  $region307: #{fwd.1} parent=0 // pred_check_branch
    %313 = sbr.rel (0) target = $region309
  $region308: #{fwd.1} parent=0 // pred_region
    _
  $region309: #{fwd.1} parent=0 // pred_fallthru
    _
  %v314 = vld [vmem:[%s1] sm:$0xf]
  %v315 = vld [vmem:[%s3] sm:$0xff]
  %v316 = vld [vmem:[%s3 + $0x8] sm:$0xff]
  %v317 = vld [vmem:[%s3 + $0x10] sm:$0xff]
  %v318 = vld [vmem:[%s3 + $0x18] sm:$0xff]
  %v319 = vld [vmem:[%s3 + $0x20] sm:$0xff]
  %v320 = vld [vmem:[%s3 + $0x28] sm:$0xff]
  %v321 = vld [vmem:[%s3 + $0x30] sm:$0xff]
  %v322 = vld [vmem:[%s3 + $0x38] sm:$0xff]
  %v323 = vld [vmem:[%s3 + $0x40] sm:$0xff]
  %v324 = vld [vmem:[%s3 + $0x48] sm:$0xff]
  %v325 = vld [vmem:[%s3 + $0x50] sm:$0xff]
  %v326 = vld [vmem:[%s3 + $0x58] sm:$0xff]
  %v327 = vld [vmem:[%s3 + $0x60] sm:$0xff]
  %v328 = vld [vmem:[%s3 + $0x68] sm:$0xff]
  %v329 = vld [vmem:[%s3 + $0x70] sm:$0xff]
  %v330 = vld [vmem:[%s3 + $0x78] sm:$0xff]
  %v331 = vld [vmem:[%s5] sm:$0xf]
  %332 = vmatprep.subr.mxu0 0.0
  %333 = vmatpush1.msra.mxu0 %v315
  %334 = vmatprep.subr.mxu0 0.0
  %335 = vmatpush1.msra.mxu0 %v316
  %336 = vmatprep.subr.mxu0 0.0
  %337 = vmatpush1.msra.mxu0 %v317
  %338 = vmatprep.subr.mxu0 0.0
  %339 = vmatpush1.msra.mxu0 %v318
  %340 = vmatprep.subr.mxu0 0.0
  %341 = vmatpush1.msra.mxu0 %v319
  %342 = vmatprep.subr.mxu0 0.0
  %343 = vmatpush1.msra.mxu0 %v320
  %344 = vmatprep.subr.mxu0 0.0
  %345 = vmatpush1.msra.mxu0 %v321
  %346 = vmatprep.subr.mxu0 0.0
  %347 = vmatpush1.msra.mxu0 %v322
  %348 = vmatprep.subr.mxu0 0.0
  %349 = vmatpush1.msra.mxu0 %v323
  %350 = vmatprep.subr.mxu0 0.0
  %351 = vmatpush1.msra.mxu0 %v324
  %352 = vmatprep.subr.mxu0 0.0
  %353 = vmatpush1.msra.mxu0 %v325
  %354 = vmatprep.subr.mxu0 0.0
  %355 = vmatpush1.msra.mxu0 %v326
  %356 = vmatprep.subr.mxu0 0.0
  %357 = vmatpush1.msra.mxu0 %v327
  %358 = vmatprep.subr.mxu0 0.0
  %359 = vmatpush1.msra.mxu0 %v328
  %360 = vmatprep.subr.mxu0 0.0
  %361 = vmatpush1.msra.mxu0 %v329
  %362 = vmatprep.subr.mxu0 0.0
  %363 = vmatpush1.msra.mxu0 %v330
  %364 = vmatprep.subr.mxu0 0.0
  %365 = vmatpush1.msra.mxu0 0.0
  %366 = vmatprep.subr.mxu0 0.0
  %367 = vmatpush1.msra.mxu0 0.0
  %368 = vmatprep.subr.mxu0 0.0
  %369 = vmatpush1.msra.mxu0 0.0
  %370 = vmatprep.subr.mxu0 0.0
  %371 = vmatpush1.msra.mxu0 0.0
  %372 = vmatprep.subr.mxu0 0.0
  %373 = vmatpush1.msra.mxu0 0.0
  %374 = vmatprep.subr.mxu0 0.0
  %375 = vmatpush1.msra.mxu0 0.0
  %376 = vmatprep.subr.mxu0 0.0
  %377 = vmatpush1.msra.mxu0 0.0
  %378 = vmatprep.subr.mxu0 0.0
  %379 = vmatpush1.msra.mxu0 0.0
  %380 = vmatprep.subr.mxu0 0.0
  %381 = vmatpush1.msra.mxu0 0.0
  %382 = vmatprep.subr.mxu0 0.0
  %383 = vmatpush1.msra.mxu0 0.0
  %384 = vmatprep.subr.mxu0 0.0
  %385 = vmatpush1.msra.mxu0 0.0
  %386 = vmatprep.subr.mxu0 0.0
  %387 = vmatpush1.msra.mxu0 0.0
  %388 = vmatprep.subr.mxu0 0.0
  %389 = vmatpush1.msra.mxu0 0.0
  %390 = vmatprep.subr.mxu0 0.0
  %391 = vmatpush1.msra.mxu0 0.0
  %392 = vmatprep.subr.mxu0 0.0
  %393 = vmatpush1.msra.mxu0 0.0
  %394 = vmatprep.subr.mxu0 0.0
  %395 = vmatpush1.msra.mxu0 0.0
  %396 = vmatprep.mubr.f32.mxu0 0.0
  %397 = vmatmul.mubr.f32.gmra.mrb[0].mxu0 %v314
  %v398 = vpop.f32.mrb[0].mxu0
  %v399 = vadd.f32 %v331, %v398
  %v400 = vpop.f32.mrb[0].mxu0
  %401 = vdwg.mxu0
  %v402 = vmax.f32 %v399, 0.0
  %v403 = vld [vmem:[%s7] sm:$0xff]
  %v404 = vld [vmem:[%s7 + $0x8] sm:$0xff]
  %v405 = vld [vmem:[%s7 + $0x10] sm:$0xff]
  %v406 = vld [vmem:[%s7 + $0x18] sm:$0xff]
  %v407 = vld [vmem:[%s9] sm:$0xff]
  %v408 = vld [vmem:[%s9 + $0x8] sm:$0xff]
  %v409 = vld [vmem:[%s9 + $0x10] sm:$0xff]
  %v410 = vld [vmem:[%s9 + $0x18] sm:$0xff]
  %v411 = vld [vmem:[%s11] sm:$0xff]
  %v412 = vld [vmem:[%s11 + $0x8] sm:$0xff]
  %v413 = vld [vmem:[%s11 + $0x10] sm:$0xff]
  %v414 = vld [vmem:[%s11 + $0x18] sm:$0xff]
  %v415 = vld [vmem:[%s13] sm:$0xff]
  %v416 = vld [vmem:[%s13 + $0x8] sm:$0xff]
  %v417 = vld [vmem:[%s13 + $0x10] sm:$0xff]
  %v418 = vld [vmem:[%s13 + $0x18] sm:$0xff]
  %v419 = vld [vmem:[%s15] sm:$0xff]
  %v420 = vld [vmem:[%s15 + $0x8] sm:$0xff]
  %v421 = vld [vmem:[%s15 + $0x10] sm:$0xff]
  %v422 = vld [vmem:[%s15 + $0x18] sm:$0xff]
  %v423 = vld [vmem:[%s15 + $0x20] sm:$0xff]
  %v424 = vld [vmem:[%s15 + $0x28] sm:$0xff]
  %v425 = vld [vmem:[%s15 + $0x30] sm:$0xff]
  %v426 = vld [vmem:[%s15 + $0x38] sm:$0xff]
  %v427 = vld [vmem:[%s17] sm:$0xff]
  %v428 = vld [vmem:[%s17 + $0x8] sm:$0xff]
  %v429 = vld [vmem:[%s17 + $0x10] sm:$0xff]
  %v430 = vld [vmem:[%s17 + $0x18] sm:$0xff]
  %v431 = vld [vmem:[%s17 + $0x20] sm:$0xff]
  %v432 = vld [vmem:[%s17 + $0x28] sm:$0xff]
  %v433 = vld [vmem:[%s17 + $0x30] sm:$0xff]
  %v434 = vld [vmem:[%s17 + $0x38] sm:$0xff]
  %v435 = vld [vmem:[%s19] sm:$0xff]
  %v436 = vld [vmem:[%s19 + $0x8] sm:$0xff]
  %v437 = vld [vmem:[%s19 + $0x10] sm:$0xff]
  %v438 = vld [vmem:[%s19 + $0x18] sm:$0xff]
  %v439 = vld [vmem:[%s19 + $0x20] sm:$0xff]
  %v440 = vld [vmem:[%s19 + $0x28] sm:$0xff]
  %v441 = vld [vmem:[%s19 + $0x30] sm:$0xff]
  %v442 = vld [vmem:[%s19 + $0x38] sm:$0xff]
  %v443 = vld [vmem:[%s21] sm:$0xff]
  %v444 = vld [vmem:[%s21 + $0x8] sm:$0xff]
  %v445 = vld [vmem:[%s21 + $0x10] sm:$0xff]
  %v446 = vld [vmem:[%s21 + $0x18] sm:$0xff]
  %v447 = vld [vmem:[%s23] sm:$0xff]
  %v448 = vld [vmem:[%s23 + $0x8] sm:$0xff]
  %v449 = vld [vmem:[%s23 + $0x10] sm:$0xff]
  %v450 = vld [vmem:[%s23 + $0x18] sm:$0xff]
  %v451 = vld [vmem:[%s25] sm:$0xff]
  %v452 = vld [vmem:[%s25 + $0x8] sm:$0xff]
  %v453 = vld [vmem:[%s25 + $0x10] sm:$0xff]
  %v454 = vld [vmem:[%s25 + $0x18] sm:$0xff]
  %v455 = vld [vmem:[%s25 + $0x20] sm:$0xff]
  %v456 = vld [vmem:[%s25 + $0x28] sm:$0xff]
  %v457 = vld [vmem:[%s25 + $0x30] sm:$0xff]
  %v458 = vld [vmem:[%s25 + $0x38] sm:$0xff]
  %v459 = vld [vmem:[%s27] sm:$0xff]
  %v460 = vld [vmem:[%s27 + $0x8] sm:$0xff]
  %v461 = vld [vmem:[%s27 + $0x10] sm:$0xff]
  %v462 = vld [vmem:[%s27 + $0x18] sm:$0xff]
  %v463 = vld [vmem:[%s27 + $0x20] sm:$0xff]
  %v464 = vld [vmem:[%s27 + $0x28] sm:$0xff]
  %v465 = vld [vmem:[%s27 + $0x30] sm:$0xff]
  %v466 = vld [vmem:[%s27 + $0x38] sm:$0xff]
  %vm467 = vcmask 523264
  %v469 = vsel %vm467, %v402, 0
  %471 = vmatprep.subr.mxu0 0.0
  %472 = vmatpush1.msra.mxu0 %v419
  %473 = vmatprep.subr.mxu0 0.0
  %474 = vmatpush1.msra.mxu0 %v420
  %475 = vmatprep.subr.mxu0 0.0
  %476 = vmatpush1.msra.mxu0 %v421
  %477 = vmatprep.subr.mxu0 0.0
  %478 = vmatpush1.msra.mxu0 %v422
  %479 = vmatprep.subr.mxu0 0.0
  %480 = vmatpush1.msra.mxu0 %v423
  %481 = vmatprep.subr.mxu0 0.0
  %482 = vmatpush1.msra.mxu0 %v424
  %483 = vmatprep.subr.mxu0 0.0
  %484 = vmatpush1.msra.mxu0 %v425
  %485 = vmatprep.subr.mxu0 0.0
  %486 = vmatpush1.msra.mxu0 %v426
  %487 = vmatprep.subr.mxu0 0.0
  %488 = vmatpush1.msra.mxu0 0.0
  %489 = vmatprep.subr.mxu0 0.0
  %490 = vmatpush1.msra.mxu0 0.0
  %491 = vmatprep.subr.mxu0 0.0
  %492 = vmatpush1.msra.mxu0 0.0
  %493 = vmatprep.subr.mxu0 0.0
  %494 = vmatpush1.msra.mxu0 0.0
  %495 = vmatprep.subr.mxu0 0.0
  %496 = vmatpush1.msra.mxu0 0.0
  %497 = vmatprep.subr.mxu0 0.0
  %498 = vmatpush1.msra.mxu0 0.0
  %499 = vmatprep.subr.mxu0 0.0
  %500 = vmatpush1.msra.mxu0 0.0
  %501 = vmatprep.subr.mxu0 0.0
  %502 = vmatpush1.msra.mxu0 0.0
  %503 = vmatprep.subr.mxu0 0.0
  %504 = vmatpush1.msra.mxu0 0.0
  %505 = vmatprep.subr.mxu0 0.0
  %506 = vmatpush1.msra.mxu0 0.0
  %507 = vmatprep.subr.mxu0 0.0
  %508 = vmatpush1.msra.mxu0 0.0
  %509 = vmatprep.subr.mxu0 0.0
  %510 = vmatpush1.msra.mxu0 0.0
  %511 = vmatprep.subr.mxu0 0.0
  %512 = vmatpush1.msra.mxu0 0.0
  %513 = vmatprep.subr.mxu0 0.0
  %514 = vmatpush1.msra.mxu0 0.0
  %515 = vmatprep.subr.mxu0 0.0
  %516 = vmatpush1.msra.mxu0 0.0
  %517 = vmatprep.subr.mxu0 0.0
  %518 = vmatpush1.msra.mxu0 0.0
  %519 = vmatprep.subr.mxu0 0.0
  %520 = vmatpush1.msra.mxu0 0.0
  %521 = vmatprep.subr.mxu0 0.0
  %522 = vmatpush1.msra.mxu0 0.0
  %523 = vmatprep.subr.mxu0 0.0
  %524 = vmatpush1.msra.mxu0 0.0
  %525 = vmatprep.subr.mxu0 0.0
  %526 = vmatpush1.msra.mxu0 0.0
  %527 = vmatprep.subr.mxu0 0.0
  %528 = vmatpush1.msra.mxu0 0.0
  %529 = vmatprep.subr.mxu0 0.0
  %530 = vmatpush1.msra.mxu0 0.0
  %531 = vmatprep.subr.mxu0 0.0
  %532 = vmatpush1.msra.mxu0 0.0
  %533 = vmatprep.subr.mxu0 0.0
  %534 = vmatpush1.msra.mxu0 0.0
  %535 = vmatprep.mubr.f32.mxu0 0.0
  %536 = vmatmul.mubr.f32.gmra.mrb[0].mxu0 %v469
  %v537 = vpop.f32.mrb[0].mxu0
  %v538 = vadd.f32 0.0, %v537
  %v539 = vpop.f32.mrb[0].mxu0
  %540 = vdwg.mxu0
  %541 = vmatprep.subr.mxu0 0.0
  %542 = vmatpush1.msra.mxu0 %v427
  %543 = vmatprep.subr.mxu0 0.0
  %544 = vmatpush1.msra.mxu0 %v428
  %545 = vmatprep.subr.mxu0 0.0
  %546 = vmatpush1.msra.mxu0 %v429
  %547 = vmatprep.subr.mxu0 0.0
  %548 = vmatpush1.msra.mxu0 %v430
  %549 = vmatprep.subr.mxu0 0.0
  %550 = vmatpush1.msra.mxu0 %v431
  %551 = vmatprep.subr.mxu0 0.0
  %552 = vmatpush1.msra.mxu0 %v432
  %553 = vmatprep.subr.mxu0 0.0
  %554 = vmatpush1.msra.mxu0 %v433
  %555 = vmatprep.subr.mxu0 0.0
  %556 = vmatpush1.msra.mxu0 %v434
  %557 = vmatprep.subr.mxu0 0.0
  %558 = vmatpush1.msra.mxu0 0.0
  %559 = vmatprep.subr.mxu0 0.0
  %560 = vmatpush1.msra.mxu0 0.0
  %561 = vmatprep.subr.mxu0 0.0
  %562 = vmatpush1.msra.mxu0 0.0
  %563 = vmatprep.subr.mxu0 0.0
  %564 = vmatpush1.msra.mxu0 0.0
  %565 = vmatprep.subr.mxu0 0.0
  %566 = vmatpush1.msra.mxu0 0.0
  %567 = vmatprep.subr.mxu0 0.0
  %568 = vmatpush1.msra.mxu0 0.0
  %569 = vmatprep.subr.mxu0 0.0
  %570 = vmatpush1.msra.mxu0 0.0
  %571 = vmatprep.subr.mxu0 0.0
  %572 = vmatpush1.msra.mxu0 0.0
  %573 = vmatprep.subr.mxu0 0.0
  %574 = vmatpush1.msra.mxu0 0.0
  %575 = vmatprep.subr.mxu0 0.0
  %576 = vmatpush1.msra.mxu0 0.0
  %577 = vmatprep.subr.mxu0 0.0
  %578 = vmatpush1.msra.mxu0 0.0
  %579 = vmatprep.subr.mxu0 0.0
  %580 = vmatpush1.msra.mxu0 0.0
  %581 = vmatprep.subr.mxu0 0.0
  %582 = vmatpush1.msra.mxu0 0.0
  %583 = vmatprep.subr.mxu0 0.0
  %584 = vmatpush1.msra.mxu0 0.0
  %585 = vmatprep.subr.mxu0 0.0
  %586 = vmatpush1.msra.mxu0 0.0
  %587 = vmatprep.subr.mxu0 0.0
  %588 = vmatpush1.msra.mxu0 0.0
  %589 = vmatprep.subr.mxu0 0.0
  %590 = vmatpush1.msra.mxu0 0.0
  %591 = vmatprep.subr.mxu0 0.0
  %592 = vmatpush1.msra.mxu0 0.0
  %593 = vmatprep.subr.mxu0 0.0
  %594 = vmatpush1.msra.mxu0 0.0
  %595 = vmatprep.subr.mxu0 0.0
  %596 = vmatpush1.msra.mxu0 0.0
  %597 = vmatprep.subr.mxu0 0.0
  %598 = vmatpush1.msra.mxu0 0.0
  %599 = vmatprep.subr.mxu0 0.0
  %600 = vmatpush1.msra.mxu0 0.0
  %601 = vmatprep.subr.mxu0 0.0
  %602 = vmatpush1.msra.mxu0 0.0
  %603 = vmatprep.subr.mxu0 0.0
  %604 = vmatpush1.msra.mxu0 0.0
  %605 = vmatprep.mubr.f32.mxu0 0.0
  %606 = vmatmul.mubr.f32.gmra.mrb[0].mxu0 %v469
  %v607 = vpop.f32.mrb[0].mxu0
  %v608 = vadd.f32 0.0, %v607
  %v609 = vpop.f32.mrb[0].mxu0
  %610 = vdwg.mxu0
  %vm611 = vcmask 31744
  %v613 = vsel %vm611, %v407, 0
  %v616 = vsel %vm611, %v408, 0
  %v619 = vsel %vm611, %v409, 0
  %v622 = vsel %vm611, %v410, 0
  %vm624 = vcmask 1043456
  %v626 = vsel %vm624, %v608, 0
  %628 = vmatprep.subr.mxu0 0.0
  %629 = vmatpush1.msra.mxu0 %v626
  %630 = vmatprep.subr.mxu0 0.0
  %631 = vmatpush1.msra.mxu0 0.0
  %632 = vmatprep.subr.mxu0 0.0
  %633 = vmatpush1.msra.mxu0 0.0
  %634 = vmatprep.subr.mxu0 0.0
  %635 = vmatpush1.msra.mxu0 0.0
  %636 = vmatprep.subr.mxu0 0.0
  %637 = vmatpush1.msra.mxu0 0.0
  %638 = vmatprep.subr.mxu0 0.0
  %639 = vmatpush1.msra.mxu0 0.0
  %640 = vmatprep.subr.mxu0 0.0
  %641 = vmatpush1.msra.mxu0 0.0
  %642 = vmatprep.subr.mxu0 0.0
  %643 = vmatpush1.msra.mxu0 0.0
  %644 = vmatprep.subr.mxu0 0.0
  %645 = vmatpush1.msra.mxu0 0.0
  %646 = vmatprep.subr.mxu0 0.0
  %647 = vmatpush1.msra.mxu0 0.0
  %648 = vmatprep.subr.mxu0 0.0
  %649 = vmatpush1.msra.mxu0 0.0
  %650 = vmatprep.subr.mxu0 0.0
  %651 = vmatpush1.msra.mxu0 0.0
  %652 = vmatprep.subr.mxu0 0.0
  %653 = vmatpush1.msra.mxu0 0.0
  %654 = vmatprep.subr.mxu0 0.0
  %655 = vmatpush1.msra.mxu0 0.0
  %656 = vmatprep.subr.mxu0 0.0
  %657 = vmatpush1.msra.mxu0 0.0
  %658 = vmatprep.subr.mxu0 0.0
  %659 = vmatpush1.msra.mxu0 0.0
  %660 = vmatprep.subr.mxu0 0.0
  %661 = vmatpush1.msra.mxu0 0.0
  %662 = vmatprep.subr.mxu0 0.0
  %663 = vmatpush1.msra.mxu0 0.0
  %664 = vmatprep.subr.mxu0 0.0
  %665 = vmatpush1.msra.mxu0 0.0
  %666 = vmatprep.subr.mxu0 0.0
  %667 = vmatpush1.msra.mxu0 0.0
  %668 = vmatprep.subr.mxu0 0.0
  %669 = vmatpush1.msra.mxu0 0.0
  %670 = vmatprep.subr.mxu0 0.0
  %671 = vmatpush1.msra.mxu0 0.0
  %672 = vmatprep.subr.mxu0 0.0
  %673 = vmatpush1.msra.mxu0 0.0
  %674 = vmatprep.subr.mxu0 0.0
  %675 = vmatpush1.msra.mxu0 0.0
  %676 = vmatprep.subr.mxu0 0.0
  %677 = vmatpush1.msra.mxu0 0.0
  %678 = vmatprep.subr.mxu0 0.0
  %679 = vmatpush1.msra.mxu0 0.0
  %680 = vmatprep.subr.mxu0 0.0
  %681 = vmatpush1.msra.mxu0 0.0
  %682 = vmatprep.subr.mxu0 0.0
  %683 = vmatpush1.msra.mxu0 0.0
  %684 = vmatprep.subr.mxu0 0.0
  %685 = vmatpush1.msra.mxu0 0.0
  %686 = vmatprep.subr.mxu0 0.0
  %687 = vmatpush1.msra.mxu0 0.0
  %688 = vmatprep.subr.mxu0 0.0
  %689 = vmatpush1.msra.mxu0 0.0
  %690 = vmatprep.subr.mxu0 0.0
  %691 = vmatpush1.msra.mxu0 0.0
  %692 = vmatprep.mubr.f32.mxu0 0.0
  %693 = vmatmul.mubr.f32.gmra.mrb[0].mxu0 %v613
  %v694 = vpop.f32.mrb[0].mxu0
  %v695 = vadd.f32 0.0, %v694
  %v696 = vpop.f32.mrb[0].mxu0
  %697 = vmatprep.mubr.f32.mxu0 0.0
  %698 = vmatmul.mubr.f32.gmra.mrb[0].mxu0 %v616
  %v699 = vpop.f32.mrb[0].mxu0
  %v700 = vadd.f32 0.0, %v699
  %v701 = vpop.f32.mrb[0].mxu0
  %702 = vmatprep.mubr.f32.mxu0 0.0
  %703 = vmatmul.mubr.f32.gmra.mrb[0].mxu0 %v619
  %v704 = vpop.f32.mrb[0].mxu0
  %v705 = vadd.f32 0.0, %v704
  %v706 = vpop.f32.mrb[0].mxu0
  %707 = vmatprep.mubr.f32.mxu0 0.0
  %708 = vmatmul.mubr.f32.gmra.mrb[0].mxu0 %v622
  %v709 = vpop.f32.mrb[0].mxu0
  %v710 = vadd.f32 0.0, %v709
  %v711 = vpop.f32.mrb[0].mxu0
  %712 = vdwg.mxu0
  %v714 = vsel %vm611, %v403, 0
  %v717 = vsel %vm611, %v404, 0
  %v720 = vsel %vm611, %v405, 0
  %v723 = vsel %vm611, %v406, 0
  %v726 = vsel %vm624, %v538, 0
  %728 = vmatprep.subr.mxu0 0.0
  %729 = vmatpush1.msra.mxu0 %v726
  %730 = vmatprep.subr.mxu0 0.0
  %731 = vmatpush1.msra.mxu0 0.0
  %732 = vmatprep.subr.mxu0 0.0
  %733 = vmatpush1.msra.mxu0 0.0
  %734 = vmatprep.subr.mxu0 0.0
  %735 = vmatpush1.msra.mxu0 0.0
  %736 = vmatprep.subr.mxu0 0.0
  %737 = vmatpush1.msra.mxu0 0.0
  %738 = vmatprep.subr.mxu0 0.0
  %739 = vmatpush1.msra.mxu0 0.0
  %740 = vmatprep.subr.mxu0 0.0
  %741 = vmatpush1.msra.mxu0 0.0
  %742 = vmatprep.subr.mxu0 0.0
  %743 = vmatpush1.msra.mxu0 0.0
  %744 = vmatprep.subr.mxu0 0.0
  %745 = vmatpush1.msra.mxu0 0.0
  %746 = vmatprep.subr.mxu0 0.0
  %747 = vmatpush1.msra.mxu0 0.0
  %748 = vmatprep.subr.mxu0 0.0
  %749 = vmatpush1.msra.mxu0 0.0
  %750 = vmatprep.subr.mxu0 0.0
  %751 = vmatpush1.msra.mxu0 0.0
  %752 = vmatprep.subr.mxu0 0.0
  %753 = vmatpush1.msra.mxu0 0.0
  %754 = vmatprep.subr.mxu0 0.0
  %755 = vmatpush1.msra.mxu0 0.0
  %756 = vmatprep.subr.mxu0 0.0
  %757 = vmatpush1.msra.mxu0 0.0
  %758 = vmatprep.subr.mxu0 0.0
  %759 = vmatpush1.msra.mxu0 0.0
  %760 = vmatprep.subr.mxu0 0.0
  %761 = vmatpush1.msra.mxu0 0.0
  %762 = vmatprep.subr.mxu0 0.0
  %763 = vmatpush1.msra.mxu0 0.0
  %764 = vmatprep.subr.mxu0 0.0
  %765 = vmatpush1.msra.mxu0 0.0
  %766 = vmatprep.subr.mxu0 0.0
  %767 = vmatpush1.msra.mxu0 0.0
  %768 = vmatprep.subr.mxu0 0.0
  %769 = vmatpush1.msra.mxu0 0.0
  %770 = vmatprep.subr.mxu0 0.0
  %771 = vmatpush1.msra.mxu0 0.0
  %772 = vmatprep.subr.mxu0 0.0
  %773 = vmatpush1.msra.mxu0 0.0
  %774 = vmatprep.subr.mxu0 0.0
  %775 = vmatpush1.msra.mxu0 0.0
  %776 = vmatprep.subr.mxu0 0.0
  %777 = vmatpush1.msra.mxu0 0.0
  %778 = vmatprep.subr.mxu0 0.0
  %779 = vmatpush1.msra.mxu0 0.0
  %780 = vmatprep.subr.mxu0 0.0
  %781 = vmatpush1.msra.mxu0 0.0
  %782 = vmatprep.subr.mxu0 0.0
  %783 = vmatpush1.msra.mxu0 0.0
  %784 = vmatprep.subr.mxu0 0.0
  %785 = vmatpush1.msra.mxu0 0.0
  %786 = vmatprep.subr.mxu0 0.0
  %787 = vmatpush1.msra.mxu0 0.0
  %788 = vmatprep.subr.mxu0 0.0
  %789 = vmatpush1.msra.mxu0 0.0
  %790 = vmatprep.subr.mxu0 0.0
  %791 = vmatpush1.msra.mxu0 0.0
  %792 = vmatprep.mubr.f32.mxu0 0.0
  %793 = vmatmul.mubr.f32.gmra.mrb[0].mxu0 %v714
  %v794 = vpop.f32.mrb[0].mxu0
  %v795 = vadd.f32 %v695, %v794
  %v796 = vpop.f32.mrb[0].mxu0
  %797 = vmatprep.mubr.f32.mxu0 0.0
  %798 = vmatmul.mubr.f32.gmra.mrb[0].mxu0 %v717
  %v799 = vpop.f32.mrb[0].mxu0
  %v800 = vadd.f32 %v700, %v799
  %v801 = vpop.f32.mrb[0].mxu0
  %802 = vmatprep.mubr.f32.mxu0 0.0
  %803 = vmatmul.mubr.f32.gmra.mrb[0].mxu0 %v720
  %v804 = vpop.f32.mrb[0].mxu0
  %v805 = vadd.f32 %v705, %v804
  %v806 = vpop.f32.mrb[0].mxu0
  %807 = vmatprep.mubr.f32.mxu0 0.0
  %808 = vmatmul.mubr.f32.gmra.mrb[0].mxu0 %v723
  %v809 = vpop.f32.mrb[0].mxu0
  %v810 = vadd.f32 %v710, %v809
  %v811 = vpop.f32.mrb[0].mxu0
  %812 = vdwg.mxu0
  %813 = vmatprep.subr.mxu0 0.0
  %814 = vmatpush1.msra.mxu0 %v435
  %815 = vmatprep.subr.mxu0 0.0
  %816 = vmatpush1.msra.mxu0 %v436
  %817 = vmatprep.subr.mxu0 0.0
  %818 = vmatpush1.msra.mxu0 %v437
  %819 = vmatprep.subr.mxu0 0.0
  %820 = vmatpush1.msra.mxu0 %v438
  %821 = vmatprep.subr.mxu0 0.0
  %822 = vmatpush1.msra.mxu0 %v439
  %823 = vmatprep.subr.mxu0 0.0
  %824 = vmatpush1.msra.mxu0 %v440
  %825 = vmatprep.subr.mxu0 0.0
  %826 = vmatpush1.msra.mxu0 %v441
  %827 = vmatprep.subr.mxu0 0.0
  %828 = vmatpush1.msra.mxu0 %v442
  %829 = vmatprep.subr.mxu0 0.0
  %830 = vmatpush1.msra.mxu0 0.0
  %831 = vmatprep.subr.mxu0 0.0
  %832 = vmatpush1.msra.mxu0 0.0
  %833 = vmatprep.subr.mxu0 0.0
  %834 = vmatpush1.msra.mxu0 0.0
  %835 = vmatprep.subr.mxu0 0.0
  %836 = vmatpush1.msra.mxu0 0.0
  %837 = vmatprep.subr.mxu0 0.0
  %838 = vmatpush1.msra.mxu0 0.0
  %839 = vmatprep.subr.mxu0 0.0
  %840 = vmatpush1.msra.mxu0 0.0
  %841 = vmatprep.subr.mxu0 0.0
  %842 = vmatpush1.msra.mxu0 0.0
  %843 = vmatprep.subr.mxu0 0.0
  %844 = vmatpush1.msra.mxu0 0.0
  %845 = vmatprep.subr.mxu0 0.0
  %846 = vmatpush1.msra.mxu0 0.0
  %847 = vmatprep.subr.mxu0 0.0
  %848 = vmatpush1.msra.mxu0 0.0
  %849 = vmatprep.subr.mxu0 0.0
  %850 = vmatpush1.msra.mxu0 0.0
  %851 = vmatprep.subr.mxu0 0.0
  %852 = vmatpush1.msra.mxu0 0.0
  %853 = vmatprep.subr.mxu0 0.0
  %854 = vmatpush1.msra.mxu0 0.0
  %855 = vmatprep.subr.mxu0 0.0
  %856 = vmatpush1.msra.mxu0 0.0
  %857 = vmatprep.subr.mxu0 0.0
  %858 = vmatpush1.msra.mxu0 0.0
  %859 = vmatprep.subr.mxu0 0.0
  %860 = vmatpush1.msra.mxu0 0.0
  %861 = vmatprep.subr.mxu0 0.0
  %862 = vmatpush1.msra.mxu0 0.0
  %863 = vmatprep.subr.mxu0 0.0
  %864 = vmatpush1.msra.mxu0 0.0
  %865 = vmatprep.subr.mxu0 0.0
  %866 = vmatpush1.msra.mxu0 0.0
  %867 = vmatprep.subr.mxu0 0.0
  %868 = vmatpush1.msra.mxu0 0.0
  %869 = vmatprep.subr.mxu0 0.0
  %870 = vmatpush1.msra.mxu0 0.0
  %871 = vmatprep.subr.mxu0 0.0
  %872 = vmatpush1.msra.mxu0 0.0
  %873 = vmatprep.subr.mxu0 0.0
  %874 = vmatpush1.msra.mxu0 0.0
  %875 = vmatprep.subr.mxu0 0.0
  %876 = vmatpush1.msra.mxu0 0.0
  %877 = vmatprep.mubr.f32.mxu0 0.0
  %878 = vmatmul.mubr.f32.gmra.mrb[0].mxu0 %v469
  %v879 = vpop.f32.mrb[0].mxu0
  %v880 = vadd.f32 0.0, %v879
  %v881 = vpop.f32.mrb[0].mxu0
  %882 = vdwg.mxu0
  %v884 = vsel %vm611, %v411, 0
  %v887 = vsel %vm611, %v412, 0
  %v890 = vsel %vm611, %v413, 0
  %v893 = vsel %vm611, %v414, 0
  %v896 = vsel %vm624, %v880, 0
  %898 = vmatprep.subr.mxu0 0.0
  %899 = vmatpush1.msra.mxu0 %v896
  %900 = vmatprep.subr.mxu0 0.0
  %901 = vmatpush1.msra.mxu0 0.0
  %902 = vmatprep.subr.mxu0 0.0
  %903 = vmatpush1.msra.mxu0 0.0
  %904 = vmatprep.subr.mxu0 0.0
  %905 = vmatpush1.msra.mxu0 0.0
  %906 = vmatprep.subr.mxu0 0.0
  %907 = vmatpush1.msra.mxu0 0.0
  %908 = vmatprep.subr.mxu0 0.0
  %909 = vmatpush1.msra.mxu0 0.0
  %910 = vmatprep.subr.mxu0 0.0
  %911 = vmatpush1.msra.mxu0 0.0
  %912 = vmatprep.subr.mxu0 0.0
  %913 = vmatpush1.msra.mxu0 0.0
  %914 = vmatprep.subr.mxu0 0.0
  %915 = vmatpush1.msra.mxu0 0.0
  %916 = vmatprep.subr.mxu0 0.0
  %917 = vmatpush1.msra.mxu0 0.0
  %918 = vmatprep.subr.mxu0 0.0
  %919 = vmatpush1.msra.mxu0 0.0
  %920 = vmatprep.subr.mxu0 0.0
  %921 = vmatpush1.msra.mxu0 0.0
  %922 = vmatprep.subr.mxu0 0.0
  %923 = vmatpush1.msra.mxu0 0.0
  %924 = vmatprep.subr.mxu0 0.0
  %925 = vmatpush1.msra.mxu0 0.0
  %926 = vmatprep.subr.mxu0 0.0
  %927 = vmatpush1.msra.mxu0 0.0
  %928 = vmatprep.subr.mxu0 0.0
  %929 = vmatpush1.msra.mxu0 0.0
  %930 = vmatprep.subr.mxu0 0.0
  %931 = vmatpush1.msra.mxu0 0.0
  %932 = vmatprep.subr.mxu0 0.0
  %933 = vmatpush1.msra.mxu0 0.0
  %934 = vmatprep.subr.mxu0 0.0
  %935 = vmatpush1.msra.mxu0 0.0
  %936 = vmatprep.subr.mxu0 0.0
  %937 = vmatpush1.msra.mxu0 0.0
  %938 = vmatprep.subr.mxu0 0.0
  %939 = vmatpush1.msra.mxu0 0.0
  %940 = vmatprep.subr.mxu0 0.0
  %941 = vmatpush1.msra.mxu0 0.0
  %942 = vmatprep.subr.mxu0 0.0
  %943 = vmatpush1.msra.mxu0 0.0
  %944 = vmatprep.subr.mxu0 0.0
  %945 = vmatpush1.msra.mxu0 0.0
  %946 = vmatprep.subr.mxu0 0.0
  %947 = vmatpush1.msra.mxu0 0.0
  %948 = vmatprep.subr.mxu0 0.0
  %949 = vmatpush1.msra.mxu0 0.0
  %950 = vmatprep.subr.mxu0 0.0
  %951 = vmatpush1.msra.mxu0 0.0
  %952 = vmatprep.subr.mxu0 0.0
  %953 = vmatpush1.msra.mxu0 0.0
  %954 = vmatprep.subr.mxu0 0.0
  %955 = vmatpush1.msra.mxu0 0.0
  %956 = vmatprep.subr.mxu0 0.0
  %957 = vmatpush1.msra.mxu0 0.0
  %958 = vmatprep.subr.mxu0 0.0
  %959 = vmatpush1.msra.mxu0 0.0
  %960 = vmatprep.subr.mxu0 0.0
  %961 = vmatpush1.msra.mxu0 0.0
  %962 = vmatprep.mubr.f32.mxu0 0.0
  %963 = vmatmul.mubr.f32.gmra.mrb[0].mxu0 %v884
  %v964 = vpop.f32.mrb[0].mxu0
  %v965 = vadd.f32 0.0, %v964
  %v966 = vpop.f32.mrb[0].mxu0
  %967 = vmatprep.mubr.f32.mxu0 0.0
  %968 = vmatmul.mubr.f32.gmra.mrb[0].mxu0 %v887
  %v969 = vpop.f32.mrb[0].mxu0
  %v970 = vadd.f32 0.0, %v969
  %v971 = vpop.f32.mrb[0].mxu0
  %972 = vmatprep.mubr.f32.mxu0 0.0
  %973 = vmatmul.mubr.f32.gmra.mrb[0].mxu0 %v890
  %v974 = vpop.f32.mrb[0].mxu0
  %v975 = vadd.f32 0.0, %v974
  %v976 = vpop.f32.mrb[0].mxu0
  %977 = vmatprep.mubr.f32.mxu0 0.0
  %978 = vmatmul.mubr.f32.gmra.mrb[0].mxu0 %v893
  %v979 = vpop.f32.mrb[0].mxu0
  %v980 = vadd.f32 0.0, %v979
  %v981 = vpop.f32.mrb[0].mxu0
  %982 = vdwg.mxu0
  %v983 = vadd.f32 %v795, %v965
  %v984 = vadd.f32 %v800, %v970
  %v985 = vadd.f32 %v805, %v975
  %v986 = vadd.f32 %v810, %v980
  %988 = vset.pattern.permute.xlu0 0
  %989 = vperm.xlu0 %988, %v415
  %v990 = vpop.permute.xlu0 %989
  %993 = vset.pattern.permute.xlu0 0
  %994 = vperm.xlu0 %993, %v416
  %v995 = vpop.permute.xlu0 %994
  %998 = vset.pattern.permute.xlu0 0
  %999 = vperm.xlu0 %998, %v417
  %v1000 = vpop.permute.xlu0 %999
  %1003 = vset.pattern.permute.xlu0 0
  %1004 = vperm.xlu0 %1003, %v418
  %v1005 = vpop.permute.xlu0 %1004
  %v1007 = vadd.f32 %v983, %v990
  %v1008 = vadd.f32 %v984, %v995
  %v1009 = vadd.f32 %v985, %v1000
  %v1010 = vadd.f32 %v986, %v1005
  %v1011 = vsel %vm467, %v1007, 0.0
  %1012 = vadd.xlane.f32.xlu0 %v1011
  %v1013 = vpop.xlane.xlu0 %1012
  %v1014 = vsel %vm467, %v1008, 0.0
  %1015 = vadd.xlane.f32.xlu0 %v1014
  %v1016 = vpop.xlane.xlu0 %1015
  %v1017 = vsel %vm467, %v1009, 0.0
  %1018 = vadd.xlane.f32.xlu0 %v1017
  %v1019 = vpop.xlane.xlu0 %1018
  %v1020 = vsel %vm467, %v1010, 0.0
  %1021 = vadd.xlane.f32.xlu0 %v1020
  %v1022 = vpop.xlane.xlu0 %1021
  %v1023 = vmul.f32 %v1007, %v1007
  %v1024 = vmul.f32 %v1008, %v1008
  %v1025 = vmul.f32 %v1009, %v1009
  %v1026 = vmul.f32 %v1010, %v1010
  %v1027 = vsel %vm467, %v1023, 0.0
  %1028 = vadd.xlane.f32.xlu0 %v1027
  %v1029 = vpop.xlane.xlu0 %1028
  %v1030 = vsel %vm467, %v1024, 0.0
  %1031 = vadd.xlane.f32.xlu0 %v1030
  %v1032 = vpop.xlane.xlu0 %1031
  %v1033 = vsel %vm467, %v1025, 0.0
  %1034 = vadd.xlane.f32.xlu0 %v1033
  %v1035 = vpop.xlane.xlu0 %1034
  %v1036 = vsel %vm467, %v1026, 0.0
  %1037 = vadd.xlane.f32.xlu0 %v1036
  %v1038 = vpop.xlane.xlu0 %1037
  %v1039 = vmul.f32 %v1013, 0.015625
  %v1040 = vmul.f32 %v1016, 0.015625
  %v1041 = vmul.f32 %v1019, 0.015625
  %v1042 = vmul.f32 %v1022, 0.015625
  %v1043 = vmul.f32 %v1029, 0.015625
  %v1044 = vmul.f32 %v1032, 0.015625
  %v1045 = vmul.f32 %v1035, 0.015625
  %v1046 = vmul.f32 %v1038, 0.015625
  %v1047 = vmul.f32 %v1039, %v1039
  %v1048 = vmul.f32 %v1040, %v1040
  %v1049 = vmul.f32 %v1041, %v1041
  %v1050 = vmul.f32 %v1042, %v1042
  %v1051 = vsub.f32 %v1043, %v1047
  %v1052 = vsub.f32 %v1044, %v1048
  %v1053 = vsub.f32 %v1045, %v1049
  %v1054 = vsub.f32 %v1046, %v1050
  %v1055 = vsub.f32 %v1007, %v1039
  %v1056 = vsub.f32 %v1008, %v1040
  %v1057 = vsub.f32 %v1009, %v1041
  %v1058 = vsub.f32 %v1010, %v1042
  %v1059 = vadd.f32 %v1051, 1e-05
  %v1060 = vadd.f32 %v1052, 1e-05
  %v1061 = vadd.f32 %v1053, 1e-05
  %v1062 = vadd.f32 %v1054, 1e-05
  %v1063 = vrsqrt.pop %v1059
  %v1064 = vrsqrt.pop %v1060
  %v1065 = vrsqrt.pop %v1061
  %v1066 = vrsqrt.pop %v1062
  %v1067 = vmul.f32 %v1063, %v443
  %v1068 = vmul.f32 %v1064, %v444
  %v1069 = vmul.f32 %v1065, %v445
  %v1070 = vmul.f32 %v1066, %v446
  %1072 = vset.pattern.permute.xlu0 0
  %1073 = vperm.xlu0 %1072, %v1067
  %v1074 = vpop.permute.xlu0 %1073
  %1077 = vset.pattern.permute.xlu0 0
  %1078 = vperm.xlu0 %1077, %v1068
  %v1079 = vpop.permute.xlu0 %1078
  %1082 = vset.pattern.permute.xlu0 0
  %1083 = vperm.xlu0 %1082, %v1069
  %v1084 = vpop.permute.xlu0 %1083
  %1087 = vset.pattern.permute.xlu0 0
  %1088 = vperm.xlu0 %1087, %v1070
  %v1089 = vpop.permute.xlu0 %1088
  %v1091 = vmul.f32 %v1055, %v1074
  %v1092 = vmul.f32 %v1056, %v1079
  %v1093 = vmul.f32 %v1057, %v1084
  %v1094 = vmul.f32 %v1058, %v1089
  %1096 = vset.pattern.permute.xlu0 0
  %1097 = vperm.xlu0 %1096, %v447
  %v1098 = vpop.permute.xlu0 %1097
  %1101 = vset.pattern.permute.xlu0 0
  %1102 = vperm.xlu0 %1101, %v448
  %v1103 = vpop.permute.xlu0 %1102
  %1106 = vset.pattern.permute.xlu0 0
  %1107 = vperm.xlu0 %1106, %v449
  %v1108 = vpop.permute.xlu0 %1107
  %1111 = vset.pattern.permute.xlu0 0
  %1112 = vperm.xlu0 %1111, %v450
  %v1113 = vpop.permute.xlu0 %1112
  %v1115 = vadd.f32 %v1091, %v1098
  %v1116 = vadd.f32 %v1092, %v1103
  %v1117 = vadd.f32 %v1093, %v1108
  %v1118 = vadd.f32 %v1094, %v1113
  %v1119 = vmax.f32 %v1115, 0.0
  %v1120 = vmax.f32 %v1116, 0.0
  %v1121 = vmax.f32 %v1117, 0.0
  %v1122 = vmax.f32 %v1118, 0.0
  %v1124 = vsel %vm467, %v1119, 0
  %v1127 = vsel %vm467, %v1120, 0
  %v1130 = vsel %vm467, %v1121, 0
  %v1133 = vsel %vm467, %v1122, 0
  %1135 = vmatprep.subr.mxu0 0.0
  %1136 = vmatpush1.msra.mxu0 %v451
  %1137 = vmatprep.subr.mxu0 0.0
  %1138 = vmatpush1.msra.mxu0 %v452
  %1139 = vmatprep.subr.mxu0 0.0
  %1140 = vmatpush1.msra.mxu0 %v453
  %1141 = vmatprep.subr.mxu0 0.0
  %1142 = vmatpush1.msra.mxu0 %v454
  %1143 = vmatprep.subr.mxu0 0.0
  %1144 = vmatpush1.msra.mxu0 %v455
  %1145 = vmatprep.subr.mxu0 0.0
  %1146 = vmatpush1.msra.mxu0 %v456
  %1147 = vmatprep.subr.mxu0 0.0
  %1148 = vmatpush1.msra.mxu0 %v457
  %1149 = vmatprep.subr.mxu0 0.0
  %1150 = vmatpush1.msra.mxu0 %v458
  %1151 = vmatprep.subr.mxu0 0.0
  %1152 = vmatpush1.msra.mxu0 0.0
  %1153 = vmatprep.subr.mxu0 0.0
  %1154 = vmatpush1.msra.mxu0 0.0
  %1155 = vmatprep.subr.mxu0 0.0
  %1156 = vmatpush1.msra.mxu0 0.0
  %1157 = vmatprep.subr.mxu0 0.0
  %1158 = vmatpush1.msra.mxu0 0.0
  %1159 = vmatprep.subr.mxu0 0.0
  %1160 = vmatpush1.msra.mxu0 0.0
  %1161 = vmatprep.subr.mxu0 0.0
  %1162 = vmatpush1.msra.mxu0 0.0
  %1163 = vmatprep.subr.mxu0 0.0
  %1164 = vmatpush1.msra.mxu0 0.0
  %1165 = vmatprep.subr.mxu0 0.0
  %1166 = vmatpush1.msra.mxu0 0.0
  %1167 = vmatprep.subr.mxu0 0.0
  %1168 = vmatpush1.msra.mxu0 0.0
  %1169 = vmatprep.subr.mxu0 0.0
  %1170 = vmatpush1.msra.mxu0 0.0
  %1171 = vmatprep.subr.mxu0 0.0
  %1172 = vmatpush1.msra.mxu0 0.0
  %1173 = vmatprep.subr.mxu0 0.0
  %1174 = vmatpush1.msra.mxu0 0.0
  %1175 = vmatprep.subr.mxu0 0.0
  %1176 = vmatpush1.msra.mxu0 0.0
  %1177 = vmatprep.subr.mxu0 0.0
  %1178 = vmatpush1.msra.mxu0 0.0
  %1179 = vmatprep.subr.mxu0 0.0
  %1180 = vmatpush1.msra.mxu0 0.0
  %1181 = vmatprep.subr.mxu0 0.0
  %1182 = vmatpush1.msra.mxu0 0.0
  %1183 = vmatprep.subr.mxu0 0.0
  %1184 = vmatpush1.msra.mxu0 0.0
  %1185 = vmatprep.subr.mxu0 0.0
  %1186 = vmatpush1.msra.mxu0 0.0
  %1187 = vmatprep.subr.mxu0 0.0
  %1188 = vmatpush1.msra.mxu0 0.0
  %1189 = vmatprep.subr.mxu0 0.0
  %1190 = vmatpush1.msra.mxu0 0.0
  %1191 = vmatprep.subr.mxu0 0.0
  %1192 = vmatpush1.msra.mxu0 0.0
  %1193 = vmatprep.subr.mxu0 0.0
  %1194 = vmatpush1.msra.mxu0 0.0
  %1195 = vmatprep.subr.mxu0 0.0
  %1196 = vmatpush1.msra.mxu0 0.0
  %1197 = vmatprep.subr.mxu0 0.0
  %1198 = vmatpush1.msra.mxu0 0.0
  %1199 = vmatprep.mubr.f32.mxu0 0.0
  %1200 = vmatmul.mubr.f32.gmra.mrb[0].mxu0 %v1124
  %v1201 = vpop.f32.mrb[0].mxu0
  %v1202 = vadd.f32 0.0, %v1201
  %v1203 = vpop.f32.mrb[0].mxu0
  %1204 = vmatprep.mubr.f32.mxu0 0.0
  %1205 = vmatmul.mubr.f32.gmra.mrb[0].mxu0 %v1127
  %v1206 = vpop.f32.mrb[0].mxu0
  %v1207 = vadd.f32 0.0, %v1206
  %v1208 = vpop.f32.mrb[0].mxu0
  %1209 = vmatprep.mubr.f32.mxu0 0.0
  %1210 = vmatmul.mubr.f32.gmra.mrb[0].mxu0 %v1130
  %v1211 = vpop.f32.mrb[0].mxu0
  %v1212 = vadd.f32 0.0, %v1211
  %v1213 = vpop.f32.mrb[0].mxu0
  %1214 = vmatprep.mubr.f32.mxu0 0.0
  %1215 = vmatmul.mubr.f32.gmra.mrb[0].mxu0 %v1133
  %v1216 = vpop.f32.mrb[0].mxu0
  %v1217 = vadd.f32 0.0, %v1216
  %v1218 = vpop.f32.mrb[0].mxu0
  %1219 = vdwg.mxu0
  %1220 = vmatprep.subr.mxu0 0.0
  %1221 = vmatpush1.msra.mxu0 %v459
  %1222 = vmatprep.subr.mxu0 0.0
  %1223 = vmatpush1.msra.mxu0 %v460
  %1224 = vmatprep.subr.mxu0 0.0
  %1225 = vmatpush1.msra.mxu0 %v461
  %1226 = vmatprep.subr.mxu0 0.0
  %1227 = vmatpush1.msra.mxu0 %v462
  %1228 = vmatprep.subr.mxu0 0.0
  %1229 = vmatpush1.msra.mxu0 %v463
  %1230 = vmatprep.subr.mxu0 0.0
  %1231 = vmatpush1.msra.mxu0 %v464
  %1232 = vmatprep.subr.mxu0 0.0
  %1233 = vmatpush1.msra.mxu0 %v465
  %1234 = vmatprep.subr.mxu0 0.0
  %1235 = vmatpush1.msra.mxu0 %v466
  %1236 = vmatprep.subr.mxu0 0.0
  %1237 = vmatpush1.msra.mxu0 0.0
  %1238 = vmatprep.subr.mxu0 0.0
  %1239 = vmatpush1.msra.mxu0 0.0
  %1240 = vmatprep.subr.mxu0 0.0
  %1241 = vmatpush1.msra.mxu0 0.0
  %1242 = vmatprep.subr.mxu0 0.0
  %1243 = vmatpush1.msra.mxu0 0.0
  %1244 = vmatprep.subr.mxu0 0.0
  %1245 = vmatpush1.msra.mxu0 0.0
  %1246 = vmatprep.subr.mxu0 0.0
  %1247 = vmatpush1.msra.mxu0 0.0
  %1248 = vmatprep.subr.mxu0 0.0
  %1249 = vmatpush1.msra.mxu0 0.0
  %1250 = vmatprep.subr.mxu0 0.0
  %1251 = vmatpush1.msra.mxu0 0.0
  %1252 = vmatprep.subr.mxu0 0.0
  %1253 = vmatpush1.msra.mxu0 0.0
  %1254 = vmatprep.subr.mxu0 0.0
  %1255 = vmatpush1.msra.mxu0 0.0
  %1256 = vmatprep.subr.mxu0 0.0
  %1257 = vmatpush1.msra.mxu0 0.0
  %1258 = vmatprep.subr.mxu0 0.0
  %1259 = vmatpush1.msra.mxu0 0.0
  %1260 = vmatprep.subr.mxu0 0.0
  %1261 = vmatpush1.msra.mxu0 0.0
  %1262 = vmatprep.subr.mxu0 0.0
  %1263 = vmatpush1.msra.mxu0 0.0
  %1264 = vmatprep.subr.mxu0 0.0
  %1265 = vmatpush1.msra.mxu0 0.0
  %1266 = vmatprep.subr.mxu0 0.0
  %1267 = vmatpush1.msra.mxu0 0.0
  %1268 = vmatprep.subr.mxu0 0.0
  %1269 = vmatpush1.msra.mxu0 0.0
  %1270 = vmatprep.subr.mxu0 0.0
  %1271 = vmatpush1.msra.mxu0 0.0
  %1272 = vmatprep.subr.mxu0 0.0
  %1273 = vmatpush1.msra.mxu0 0.0
  %1274 = vmatprep.subr.mxu0 0.0
  %1275 = vmatpush1.msra.mxu0 0.0
  %1276 = vmatprep.subr.mxu0 0.0
  %1277 = vmatpush1.msra.mxu0 0.0
  %1278 = vmatprep.subr.mxu0 0.0
  %1279 = vmatpush1.msra.mxu0 0.0
  %1280 = vmatprep.subr.mxu0 0.0
  %1281 = vmatpush1.msra.mxu0 0.0
  %1282 = vmatprep.subr.mxu0 0.0
  %1283 = vmatpush1.msra.mxu0 0.0
  %1284 = vmatprep.mubr.f32.mxu0 0.0
  %1285 = vmatmul.mubr.f32.gmra.mrb[0].mxu0 %v1124
  %v1286 = vpop.f32.mrb[0].mxu0
  %v1287 = vadd.f32 0.0, %v1286
  %v1288 = vpop.f32.mrb[0].mxu0
  %1289 = vmatprep.mubr.f32.mxu0 0.0
  %1290 = vmatmul.mubr.f32.gmra.mrb[0].mxu0 %v1127
  %v1291 = vpop.f32.mrb[0].mxu0
  %v1292 = vadd.f32 0.0, %v1291
  %v1293 = vpop.f32.mrb[0].mxu0
  %1294 = vmatprep.mubr.f32.mxu0 0.0
  %1295 = vmatmul.mubr.f32.gmra.mrb[0].mxu0 %v1130
  %v1296 = vpop.f32.mrb[0].mxu0
  %v1297 = vadd.f32 0.0, %v1296
  %v1298 = vpop.f32.mrb[0].mxu0
  %1299 = vmatprep.mubr.f32.mxu0 0.0
  %1300 = vmatmul.mubr.f32.gmra.mrb[0].mxu0 %v1133
  %v1301 = vpop.f32.mrb[0].mxu0
  %v1302 = vadd.f32 0.0, %v1301
  %v1303 = vpop.f32.mrb[0].mxu0
  %1304 = vdwg.mxu0
  %v1305 = vmax.f32 %v1202, %v1287
  %v1306 = vmax.f32 %v1207, %v1292
  %v1307 = vmax.f32 %v1212, %v1297
  %v1308 = vmax.f32 %v1217, %v1302
  %v1309 = vld [vmem:[%s29] sm:$0xff]
  %v1310 = vld [vmem:[%s29 + $0x8] sm:$0xff]
  %v1311 = vld [vmem:[%s29 + $0x10] sm:$0xff]
  %v1312 = vld [vmem:[%s29 + $0x18] sm:$0xff]
  %v1313 = vld [vmem:[%s29 + $0x20] sm:$0xff]
  %v1314 = vld [vmem:[%s29 + $0x28] sm:$0xff]
  %v1315 = vld [vmem:[%s29 + $0x30] sm:$0xff]
  %v1316 = vld [vmem:[%s29 + $0x38] sm:$0xff]
  %v1317 = vld [vmem:[%s31] sm:$0xff]
  %v1318 = vld [vmem:[%s31 + $0x8] sm:$0xff]
  %v1319 = vld [vmem:[%s31 + $0x10] sm:$0xff]
  %v1320 = vld [vmem:[%s31 + $0x18] sm:$0xff]
  %v1321 = vld [vmem:[%s31 + $0x20] sm:$0xff]
  %v1322 = vld [vmem:[%s31 + $0x28] sm:$0xff]
  %v1323 = vld [vmem:[%s31 + $0x30] sm:$0xff]
  %v1324 = vld [vmem:[%s31 + $0x38] sm:$0xff]
  %v1325 = vld [vmem:[%s33] sm:$0xff]
  %v1326 = vld [vmem:[%s33 + $0x8] sm:$0xff]
  %v1327 = vld [vmem:[%s33 + $0x10] sm:$0xff]
  %v1328 = vld [vmem:[%s33 + $0x18] sm:$0xff]
  %v1329 = vld [vmem:[%s33 + $0x20] sm:$0xff]
  %v1330 = vld [vmem:[%s33 + $0x28] sm:$0xff]
  %v1331 = vld [vmem:[%s33 + $0x30] sm:$0xff]
  %v1332 = vld [vmem:[%s33 + $0x38] sm:$0xff]
  %v1333 = vld [vmem:[%s35] sm:$0xff]
  %v1334 = vld [vmem:[%s35 + $0x8] sm:$0xff]
  %v1335 = vld [vmem:[%s35 + $0x10] sm:$0xff]
  %v1336 = vld [vmem:[%s35 + $0x18] sm:$0xff]
  %v1337 = vld [vmem:[%s35 + $0x20] sm:$0xff]
  %v1338 = vld [vmem:[%s35 + $0x28] sm:$0xff]
  %v1339 = vld [vmem:[%s35 + $0x30] sm:$0xff]
  %v1340 = vld [vmem:[%s35 + $0x38] sm:$0xff]
  %v1341 = vld [vmem:[%s37] sm:$0xff]
  %v1342 = vld [vmem:[%s37 + $0x8] sm:$0xff]
  %v1343 = vld [vmem:[%s37 + $0x10] sm:$0xff]
  %v1344 = vld [vmem:[%s37 + $0x18] sm:$0xff]
  %v1345 = vld [vmem:[%s39] sm:$0xff]
  %v1346 = vld [vmem:[%s39 + $0x8] sm:$0xff]
  %v1347 = vld [vmem:[%s39 + $0x10] sm:$0xff]
  %v1348 = vld [vmem:[%s39 + $0x18] sm:$0xff]
  %v1349 = vld [vmem:[%s41] sm:$0xff]
  %v1350 = vld [vmem:[%s41 + $0x8] sm:$0xff]
  %v1351 = vld [vmem:[%s41 + $0x10] sm:$0xff]
  %v1352 = vld [vmem:[%s41 + $0x18] sm:$0xff]
  %v1353 = vld [vmem:[%s43] sm:$0xff]
  %v1354 = vld [vmem:[%s43 + $0x8] sm:$0xff]
  %v1355 = vld [vmem:[%s43 + $0x10] sm:$0xff]
  %v1356 = vld [vmem:[%s43 + $0x18] sm:$0xff]
  %v1357 = vld [vmem:[%s43 + $0x20] sm:$0xff]
  %v1358 = vld [vmem:[%s43 + $0x28] sm:$0xff]
  %v1359 = vld [vmem:[%s43 + $0x30] sm:$0xff]
  %v1360 = vld [vmem:[%s43 + $0x38] sm:$0xff]
  %v1361 = vld [vmem:[%s45] sm:$0xff]
  %v1362 = vld [vmem:[%s45 + $0x8] sm:$0xff]
  %v1363 = vld [vmem:[%s45 + $0x10] sm:$0xff]
  %v1364 = vld [vmem:[%s45 + $0x18] sm:$0xff]
  %v1365 = vld [vmem:[%s45 + $0x20] sm:$0xff]
  %v1366 = vld [vmem:[%s45 + $0x28] sm:$0xff]
  %v1367 = vld [vmem:[%s45 + $0x30] sm:$0xff]
  %v1368 = vld [vmem:[%s45 + $0x38] sm:$0xff]
  %v1369 = vld [vmem:[%s47] sm:$0xff]
  %v1370 = vld [vmem:[%s47 + $0x8] sm:$0xff]
  %v1371 = vld [vmem:[%s47 + $0x10] sm:$0xff]
  %v1372 = vld [vmem:[%s47 + $0x18] sm:$0xff]
  %v1373 = vld [vmem:[%s49] sm:$0xff]
  %v1374 = vld [vmem:[%s49 + $0x8] sm:$0xff]
  %v1375 = vld [vmem:[%s49 + $0x10] sm:$0xff]
  %v1376 = vld [vmem:[%s49 + $0x18] sm:$0xff]
  %vm1377 = vcmask 261120
  %v1379 = vsel %vm1377, %v1305, 0
  %v1382 = vsel %vm1377, %v1306, 0
  %v1385 = vsel %vm1377, %v1307, 0
  %v1388 = vsel %vm1377, %v1308, 0
  %1390 = vmatprep.subr.mxu0 0.0
  %1391 = vmatpush1.msra.mxu0 %v1341
  %1392 = vmatprep.subr.mxu0 0.0
  %1393 = vmatpush1.msra.mxu0 %v1342
  %1394 = vmatprep.subr.mxu0 0.0
  %1395 = vmatpush1.msra.mxu0 %v1343
  %1396 = vmatprep.subr.mxu0 0.0
  %1397 = vmatpush1.msra.mxu0 %v1344
  %1398 = vmatprep.subr.mxu0 0.0
  %1399 = vmatpush1.msra.mxu0 0.0
  %1400 = vmatprep.subr.mxu0 0.0
  %1401 = vmatpush1.msra.mxu0 0.0
  %1402 = vmatprep.subr.mxu0 0.0
  %1403 = vmatpush1.msra.mxu0 0.0
  %1404 = vmatprep.subr.mxu0 0.0
  %1405 = vmatpush1.msra.mxu0 0.0
  %1406 = vmatprep.subr.mxu0 0.0
  %1407 = vmatpush1.msra.mxu0 0.0
  %1408 = vmatprep.subr.mxu0 0.0
  %1409 = vmatpush1.msra.mxu0 0.0
  %1410 = vmatprep.subr.mxu0 0.0
  %1411 = vmatpush1.msra.mxu0 0.0
  %1412 = vmatprep.subr.mxu0 0.0
  %1413 = vmatpush1.msra.mxu0 0.0
  %1414 = vmatprep.subr.mxu0 0.0
  %1415 = vmatpush1.msra.mxu0 0.0
  %1416 = vmatprep.subr.mxu0 0.0
  %1417 = vmatpush1.msra.mxu0 0.0
  %1418 = vmatprep.subr.mxu0 0.0
  %1419 = vmatpush1.msra.mxu0 0.0
  %1420 = vmatprep.subr.mxu0 0.0
  %1421 = vmatpush1.msra.mxu0 0.0
  %1422 = vmatprep.subr.mxu0 0.0
  %1423 = vmatpush1.msra.mxu0 0.0
  %1424 = vmatprep.subr.mxu0 0.0
  %1425 = vmatpush1.msra.mxu0 0.0
  %1426 = vmatprep.subr.mxu0 0.0
  %1427 = vmatpush1.msra.mxu0 0.0
  %1428 = vmatprep.subr.mxu0 0.0
  %1429 = vmatpush1.msra.mxu0 0.0
  %1430 = vmatprep.subr.mxu0 0.0
  %1431 = vmatpush1.msra.mxu0 0.0
  %1432 = vmatprep.subr.mxu0 0.0
  %1433 = vmatpush1.msra.mxu0 0.0
  %1434 = vmatprep.subr.mxu0 0.0
  %1435 = vmatpush1.msra.mxu0 0.0
  %1436 = vmatprep.subr.mxu0 0.0
  %1437 = vmatpush1.msra.mxu0 0.0
  %1438 = vmatprep.subr.mxu0 0.0
  %1439 = vmatpush1.msra.mxu0 0.0
  %1440 = vmatprep.subr.mxu0 0.0
  %1441 = vmatpush1.msra.mxu0 0.0
  %1442 = vmatprep.subr.mxu0 0.0
  %1443 = vmatpush1.msra.mxu0 0.0
  %1444 = vmatprep.subr.mxu0 0.0
  %1445 = vmatpush1.msra.mxu0 0.0
  %1446 = vmatprep.subr.mxu0 0.0
  %1447 = vmatpush1.msra.mxu0 0.0
  %1448 = vmatprep.subr.mxu0 0.0
  %1449 = vmatpush1.msra.mxu0 0.0
  %1450 = vmatprep.subr.mxu0 0.0
  %1451 = vmatpush1.msra.mxu0 0.0
  %1452 = vmatprep.subr.mxu0 0.0
  %1453 = vmatpush1.msra.mxu0 0.0
  %1454 = vmatprep.mubr.f32.mxu0 0.0
  %1455 = vmatmul.mubr.f32.gmra.mrb[0].mxu0 %v1379
  %v1456 = vpop.f32.mrb[0].mxu0
  %v1457 = vadd.f32 0.0, %v1456
  %v1458 = vpop.f32.mrb[0].mxu0
  %1459 = vmatprep.mubr.f32.mxu0 0.0
  %1460 = vmatmul.mubr.f32.gmra.mrb[0].mxu0 %v1382
  %v1461 = vpop.f32.mrb[0].mxu0
  %v1462 = vadd.f32 0.0, %v1461
  %v1463 = vpop.f32.mrb[0].mxu0
  %1464 = vmatprep.mubr.f32.mxu0 0.0
  %1465 = vmatmul.mubr.f32.gmra.mrb[0].mxu0 %v1385
  %v1466 = vpop.f32.mrb[0].mxu0
  %v1467 = vadd.f32 0.0, %v1466
  %v1468 = vpop.f32.mrb[0].mxu0
  %1469 = vmatprep.mubr.f32.mxu0 0.0
  %1470 = vmatmul.mubr.f32.gmra.mrb[0].mxu0 %v1388
  %v1471 = vpop.f32.mrb[0].mxu0
  %v1472 = vadd.f32 0.0, %v1471
  %v1473 = vpop.f32.mrb[0].mxu0
  %1474 = vdwg.mxu0
  %1475 = vmatprep.subr.mxu0 0.0
  %1476 = vmatpush1.msra.mxu0 %v1345
  %1477 = vmatprep.subr.mxu0 0.0
  %1478 = vmatpush1.msra.mxu0 %v1346
  %1479 = vmatprep.subr.mxu0 0.0
  %1480 = vmatpush1.msra.mxu0 %v1347
  %1481 = vmatprep.subr.mxu0 0.0
  %1482 = vmatpush1.msra.mxu0 %v1348
  %1483 = vmatprep.subr.mxu0 0.0
  %1484 = vmatpush1.msra.mxu0 0.0
  %1485 = vmatprep.subr.mxu0 0.0
  %1486 = vmatpush1.msra.mxu0 0.0
  %1487 = vmatprep.subr.mxu0 0.0
  %1488 = vmatpush1.msra.mxu0 0.0
  %1489 = vmatprep.subr.mxu0 0.0
  %1490 = vmatpush1.msra.mxu0 0.0
  %1491 = vmatprep.subr.mxu0 0.0
  %1492 = vmatpush1.msra.mxu0 0.0
  %1493 = vmatprep.subr.mxu0 0.0
  %1494 = vmatpush1.msra.mxu0 0.0
  %1495 = vmatprep.subr.mxu0 0.0
  %1496 = vmatpush1.msra.mxu0 0.0
  %1497 = vmatprep.subr.mxu0 0.0
  %1498 = vmatpush1.msra.mxu0 0.0
  %1499 = vmatprep.subr.mxu0 0.0
  %1500 = vmatpush1.msra.mxu0 0.0
  %1501 = vmatprep.subr.mxu0 0.0
  %1502 = vmatpush1.msra.mxu0 0.0
  %1503 = vmatprep.subr.mxu0 0.0
  %1504 = vmatpush1.msra.mxu0 0.0
  %1505 = vmatprep.subr.mxu0 0.0
  %1506 = vmatpush1.msra.mxu0 0.0
  %1507 = vmatprep.subr.mxu0 0.0
  %1508 = vmatpush1.msra.mxu0 0.0
  %1509 = vmatprep.subr.mxu0 0.0
  %1510 = vmatpush1.msra.mxu0 0.0
  %1511 = vmatprep.subr.mxu0 0.0
  %1512 = vmatpush1.msra.mxu0 0.0
  %1513 = vmatprep.subr.mxu0 0.0
  %1514 = vmatpush1.msra.mxu0 0.0
  %1515 = vmatprep.subr.mxu0 0.0
  %1516 = vmatpush1.msra.mxu0 0.0
  %1517 = vmatprep.subr.mxu0 0.0
  %1518 = vmatpush1.msra.mxu0 0.0
  %1519 = vmatprep.subr.mxu0 0.0
  %1520 = vmatpush1.msra.mxu0 0.0
  %1521 = vmatprep.subr.mxu0 0.0
  %1522 = vmatpush1.msra.mxu0 0.0
  %1523 = vmatprep.subr.mxu0 0.0
  %1524 = vmatpush1.msra.mxu0 0.0
  %1525 = vmatprep.subr.mxu0 0.0
  %1526 = vmatpush1.msra.mxu0 0.0
  %1527 = vmatprep.subr.mxu0 0.0
  %1528 = vmatpush1.msra.mxu0 0.0
  %1529 = vmatprep.subr.mxu0 0.0
  %1530 = vmatpush1.msra.mxu0 0.0
  %1531 = vmatprep.subr.mxu0 0.0
  %1532 = vmatpush1.msra.mxu0 0.0
  %1533 = vmatprep.subr.mxu0 0.0
  %1534 = vmatpush1.msra.mxu0 0.0
  %1535 = vmatprep.subr.mxu0 0.0
  %1536 = vmatpush1.msra.mxu0 0.0
  %1537 = vmatprep.subr.mxu0 0.0
  %1538 = vmatpush1.msra.mxu0 0.0
  %1539 = vmatprep.mubr.f32.mxu0 0.0
  %1540 = vmatmul.mubr.f32.gmra.mrb[0].mxu0 %v1379
  %v1541 = vpop.f32.mrb[0].mxu0
  %v1542 = vadd.f32 0.0, %v1541
  %v1543 = vpop.f32.mrb[0].mxu0
  %1544 = vmatprep.mubr.f32.mxu0 0.0
  %1545 = vmatmul.mubr.f32.gmra.mrb[0].mxu0 %v1382
  %v1546 = vpop.f32.mrb[0].mxu0
  %v1547 = vadd.f32 0.0, %v1546
  %v1548 = vpop.f32.mrb[0].mxu0
  %1549 = vmatprep.mubr.f32.mxu0 0.0
  %1550 = vmatmul.mubr.f32.gmra.mrb[0].mxu0 %v1385
  %v1551 = vpop.f32.mrb[0].mxu0
  %v1552 = vadd.f32 0.0, %v1551
  %v1553 = vpop.f32.mrb[0].mxu0
  %1554 = vmatprep.mubr.f32.mxu0 0.0
  %1555 = vmatmul.mubr.f32.gmra.mrb[0].mxu0 %v1388
  %v1556 = vpop.f32.mrb[0].mxu0
  %v1557 = vadd.f32 0.0, %v1556
  %v1558 = vpop.f32.mrb[0].mxu0
  %1559 = vdwg.mxu0
  %v1561 = vsel %vm1377, %v1317, 0
  %v1564 = vsel %vm1377, %v1318, 0
  %v1567 = vsel %vm1377, %v1319, 0
  %v1570 = vsel %vm1377, %v1320, 0
  %v1573 = vsel %vm1377, %v1321, 0
  %v1576 = vsel %vm1377, %v1322, 0
  %v1579 = vsel %vm1377, %v1323, 0
  %v1582 = vsel %vm1377, %v1324, 0
  %1584 = vmatprep.subr.mxu0 0.0
  %1585 = vmatpush1.msra.mxu0 %v1542
  %1586 = vmatprep.subr.mxu0 0.0
  %1587 = vmatpush1.msra.mxu0 %v1547
  %1588 = vmatprep.subr.mxu0 0.0
  %1589 = vmatpush1.msra.mxu0 %v1552
  %1590 = vmatprep.subr.mxu0 0.0
  %1591 = vmatpush1.msra.mxu0 %v1557
  %1592 = vmatprep.subr.mxu0 0.0
  %1593 = vmatpush1.msra.mxu0 0.0
  %1594 = vmatprep.subr.mxu0 0.0
  %1595 = vmatpush1.msra.mxu0 0.0
  %1596 = vmatprep.subr.mxu0 0.0
  %1597 = vmatpush1.msra.mxu0 0.0
  %1598 = vmatprep.subr.mxu0 0.0
  %1599 = vmatpush1.msra.mxu0 0.0
  %1600 = vmatprep.subr.mxu0 0.0
  %1601 = vmatpush1.msra.mxu0 0.0
  %1602 = vmatprep.subr.mxu0 0.0
  %1603 = vmatpush1.msra.mxu0 0.0
  %1604 = vmatprep.subr.mxu0 0.0
  %1605 = vmatpush1.msra.mxu0 0.0
  %1606 = vmatprep.subr.mxu0 0.0
  %1607 = vmatpush1.msra.mxu0 0.0
  %1608 = vmatprep.subr.mxu0 0.0
  %1609 = vmatpush1.msra.mxu0 0.0
  %1610 = vmatprep.subr.mxu0 0.0
  %1611 = vmatpush1.msra.mxu0 0.0
  %1612 = vmatprep.subr.mxu0 0.0
  %1613 = vmatpush1.msra.mxu0 0.0
  %1614 = vmatprep.subr.mxu0 0.0
  %1615 = vmatpush1.msra.mxu0 0.0
  %1616 = vmatprep.subr.mxu0 0.0
  %1617 = vmatpush1.msra.mxu0 0.0
  %1618 = vmatprep.subr.mxu0 0.0
  %1619 = vmatpush1.msra.mxu0 0.0
  %1620 = vmatprep.subr.mxu0 0.0
  %1621 = vmatpush1.msra.mxu0 0.0
  %1622 = vmatprep.subr.mxu0 0.0
  %1623 = vmatpush1.msra.mxu0 0.0
  %1624 = vmatprep.subr.mxu0 0.0
  %1625 = vmatpush1.msra.mxu0 0.0
  %1626 = vmatprep.subr.mxu0 0.0
  %1627 = vmatpush1.msra.mxu0 0.0
  %1628 = vmatprep.subr.mxu0 0.0
  %1629 = vmatpush1.msra.mxu0 0.0
  %1630 = vmatprep.subr.mxu0 0.0
  %1631 = vmatpush1.msra.mxu0 0.0
  %1632 = vmatprep.subr.mxu0 0.0
  %1633 = vmatpush1.msra.mxu0 0.0
  %1634 = vmatprep.subr.mxu0 0.0
  %1635 = vmatpush1.msra.mxu0 0.0
  %1636 = vmatprep.subr.mxu0 0.0
  %1637 = vmatpush1.msra.mxu0 0.0
  %1638 = vmatprep.subr.mxu0 0.0
  %1639 = vmatpush1.msra.mxu0 0.0
  %1640 = vmatprep.subr.mxu0 0.0
  %1641 = vmatpush1.msra.mxu0 0.0
  %1642 = vmatprep.subr.mxu0 0.0
  %1643 = vmatpush1.msra.mxu0 0.0
  %1644 = vmatprep.subr.mxu0 0.0
  %1645 = vmatpush1.msra.mxu0 0.0
  %1646 = vmatprep.subr.mxu0 0.0
  %1647 = vmatpush1.msra.mxu0 0.0
  %1648 = vmatprep.mubr.f32.mxu0 0.0
  %1649 = vmatmul.mubr.f32.gmra.mrb[0].mxu0 %v1561
  %v1650 = vpop.f32.mrb[0].mxu0
  %v1651 = vadd.f32 0.0, %v1650
  %v1652 = vpop.f32.mrb[0].mxu0
  %1653 = vmatprep.mubr.f32.mxu0 0.0
  %1654 = vmatmul.mubr.f32.gmra.mrb[0].mxu0 %v1564
  %v1655 = vpop.f32.mrb[0].mxu0
  %v1656 = vadd.f32 0.0, %v1655
  %v1657 = vpop.f32.mrb[0].mxu0
  %1658 = vmatprep.mubr.f32.mxu0 0.0
  %1659 = vmatmul.mubr.f32.gmra.mrb[0].mxu0 %v1567
  %v1660 = vpop.f32.mrb[0].mxu0
  %v1661 = vadd.f32 0.0, %v1660
  %v1662 = vpop.f32.mrb[0].mxu0
  %1663 = vmatprep.mubr.f32.mxu0 0.0
  %1664 = vmatmul.mubr.f32.gmra.mrb[0].mxu0 %v1570
  %v1665 = vpop.f32.mrb[0].mxu0
  %v1666 = vadd.f32 0.0, %v1665
  %v1667 = vpop.f32.mrb[0].mxu0
  %1668 = vmatprep.mubr.f32.mxu0 0.0
  %1669 = vmatmul.mubr.f32.gmra.mrb[0].mxu0 %v1573
  %v1670 = vpop.f32.mrb[0].mxu0
  %v1671 = vadd.f32 0.0, %v1670
  %v1672 = vpop.f32.mrb[0].mxu0
  %1673 = vmatprep.mubr.f32.mxu0 0.0
  %1674 = vmatmul.mubr.f32.gmra.mrb[0].mxu0 %v1576
  %v1675 = vpop.f32.mrb[0].mxu0
  %v1676 = vadd.f32 0.0, %v1675
  %v1677 = vpop.f32.mrb[0].mxu0
  %1678 = vmatprep.mubr.f32.mxu0 0.0
  %1679 = vmatmul.mubr.f32.gmra.mrb[0].mxu0 %v1579
  %v1680 = vpop.f32.mrb[0].mxu0
  %v1681 = vadd.f32 0.0, %v1680
  %v1682 = vpop.f32.mrb[0].mxu0
  %1683 = vmatprep.mubr.f32.mxu0 0.0
  %1684 = vmatmul.mubr.f32.gmra.mrb[0].mxu0 %v1582
  %v1685 = vpop.f32.mrb[0].mxu0
  %v1686 = vadd.f32 0.0, %v1685
  %v1687 = vpop.f32.mrb[0].mxu0
  %1688 = vdwg.mxu0
  %v1690 = vsel %vm1377, %v1309, 0
  %v1693 = vsel %vm1377, %v1310, 0
  %v1696 = vsel %vm1377, %v1311, 0
  %v1699 = vsel %vm1377, %v1312, 0
  %v1702 = vsel %vm1377, %v1313, 0
  %v1705 = vsel %vm1377, %v1314, 0
  %v1708 = vsel %vm1377, %v1315, 0
  %v1711 = vsel %vm1377, %v1316, 0
  %1713 = vmatprep.subr.mxu0 0.0
  %1714 = vmatpush1.msra.mxu0 %v1457
  %1715 = vmatprep.subr.mxu0 0.0
  %1716 = vmatpush1.msra.mxu0 %v1462
  %1717 = vmatprep.subr.mxu0 0.0
  %1718 = vmatpush1.msra.mxu0 %v1467
  %1719 = vmatprep.subr.mxu0 0.0
  %1720 = vmatpush1.msra.mxu0 %v1472
  %1721 = vmatprep.subr.mxu0 0.0
  %1722 = vmatpush1.msra.mxu0 0.0
  %1723 = vmatprep.subr.mxu0 0.0
  %1724 = vmatpush1.msra.mxu0 0.0
  %1725 = vmatprep.subr.mxu0 0.0
  %1726 = vmatpush1.msra.mxu0 0.0
  %1727 = vmatprep.subr.mxu0 0.0
  %1728 = vmatpush1.msra.mxu0 0.0
  %1729 = vmatprep.subr.mxu0 0.0
  %1730 = vmatpush1.msra.mxu0 0.0
  %1731 = vmatprep.subr.mxu0 0.0
  %1732 = vmatpush1.msra.mxu0 0.0
  %1733 = vmatprep.subr.mxu0 0.0
  %1734 = vmatpush1.msra.mxu0 0.0
  %1735 = vmatprep.subr.mxu0 0.0
  %1736 = vmatpush1.msra.mxu0 0.0
  %1737 = vmatprep.subr.mxu0 0.0
  %1738 = vmatpush1.msra.mxu0 0.0
  %1739 = vmatprep.subr.mxu0 0.0
  %1740 = vmatpush1.msra.mxu0 0.0
  %1741 = vmatprep.subr.mxu0 0.0
  %1742 = vmatpush1.msra.mxu0 0.0
  %1743 = vmatprep.subr.mxu0 0.0
  %1744 = vmatpush1.msra.mxu0 0.0
  %1745 = vmatprep.subr.mxu0 0.0
  %1746 = vmatpush1.msra.mxu0 0.0
  %1747 = vmatprep.subr.mxu0 0.0
  %1748 = vmatpush1.msra.mxu0 0.0
  %1749 = vmatprep.subr.mxu0 0.0
  %1750 = vmatpush1.msra.mxu0 0.0
  %1751 = vmatprep.subr.mxu0 0.0
  %1752 = vmatpush1.msra.mxu0 0.0
  %1753 = vmatprep.subr.mxu0 0.0
  %1754 = vmatpush1.msra.mxu0 0.0
  %1755 = vmatprep.subr.mxu0 0.0
  %1756 = vmatpush1.msra.mxu0 0.0
  %1757 = vmatprep.subr.mxu0 0.0
  %1758 = vmatpush1.msra.mxu0 0.0
  %1759 = vmatprep.subr.mxu0 0.0
  %1760 = vmatpush1.msra.mxu0 0.0
  %1761 = vmatprep.subr.mxu0 0.0
  %1762 = vmatpush1.msra.mxu0 0.0
  %1763 = vmatprep.subr.mxu0 0.0
  %1764 = vmatpush1.msra.mxu0 0.0
  %1765 = vmatprep.subr.mxu0 0.0
  %1766 = vmatpush1.msra.mxu0 0.0
  %1767 = vmatprep.subr.mxu0 0.0
  %1768 = vmatpush1.msra.mxu0 0.0
  %1769 = vmatprep.subr.mxu0 0.0
  %1770 = vmatpush1.msra.mxu0 0.0
  %1771 = vmatprep.subr.mxu0 0.0
  %1772 = vmatpush1.msra.mxu0 0.0
  %1773 = vmatprep.subr.mxu0 0.0
  %1774 = vmatpush1.msra.mxu0 0.0
  %1775 = vmatprep.subr.mxu0 0.0
  %1776 = vmatpush1.msra.mxu0 0.0
  %1777 = vmatprep.mubr.f32.mxu0 0.0
  %1778 = vmatmul.mubr.f32.gmra.mrb[0].mxu0 %v1690
  %v1779 = vpop.f32.mrb[0].mxu0
  %v1780 = vadd.f32 %v1651, %v1779
  %v1781 = vpop.f32.mrb[0].mxu0
  %1782 = vmatprep.mubr.f32.mxu0 0.0
  %1783 = vmatmul.mubr.f32.gmra.mrb[0].mxu0 %v1693
  %v1784 = vpop.f32.mrb[0].mxu0
  %v1785 = vadd.f32 %v1656, %v1784
  %v1786 = vpop.f32.mrb[0].mxu0
  %1787 = vmatprep.mubr.f32.mxu0 0.0
  %1788 = vmatmul.mubr.f32.gmra.mrb[0].mxu0 %v1696
  %v1789 = vpop.f32.mrb[0].mxu0
  %v1790 = vadd.f32 %v1661, %v1789
  %v1791 = vpop.f32.mrb[0].mxu0
  %1792 = vmatprep.mubr.f32.mxu0 0.0
  %1793 = vmatmul.mubr.f32.gmra.mrb[0].mxu0 %v1699
  %v1794 = vpop.f32.mrb[0].mxu0
  %v1795 = vadd.f32 %v1666, %v1794
  %v1796 = vpop.f32.mrb[0].mxu0
  %1797 = vmatprep.mubr.f32.mxu0 0.0
  %1798 = vmatmul.mubr.f32.gmra.mrb[0].mxu0 %v1702
  %v1799 = vpop.f32.mrb[0].mxu0
  %v1800 = vadd.f32 %v1671, %v1799
  %v1801 = vpop.f32.mrb[0].mxu0
  %1802 = vmatprep.mubr.f32.mxu0 0.0
  %1803 = vmatmul.mubr.f32.gmra.mrb[0].mxu0 %v1705
  %v1804 = vpop.f32.mrb[0].mxu0
  %v1805 = vadd.f32 %v1676, %v1804
  %v1806 = vpop.f32.mrb[0].mxu0
  %1807 = vmatprep.mubr.f32.mxu0 0.0
  %1808 = vmatmul.mubr.f32.gmra.mrb[0].mxu0 %v1708
  %v1809 = vpop.f32.mrb[0].mxu0
  %v1810 = vadd.f32 %v1681, %v1809
  %v1811 = vpop.f32.mrb[0].mxu0
  %1812 = vmatprep.mubr.f32.mxu0 0.0
  %1813 = vmatmul.mubr.f32.gmra.mrb[0].mxu0 %v1711
  %v1814 = vpop.f32.mrb[0].mxu0
  %v1815 = vadd.f32 %v1686, %v1814
  %v1816 = vpop.f32.mrb[0].mxu0
  %1817 = vdwg.mxu0
  %1818 = vmatprep.subr.mxu0 0.0
  %1819 = vmatpush1.msra.mxu0 %v1349
  %1820 = vmatprep.subr.mxu0 0.0
  %1821 = vmatpush1.msra.mxu0 %v1350
  %1822 = vmatprep.subr.mxu0 0.0
  %1823 = vmatpush1.msra.mxu0 %v1351
  %1824 = vmatprep.subr.mxu0 0.0
  %1825 = vmatpush1.msra.mxu0 %v1352
  %1826 = vmatprep.subr.mxu0 0.0
  %1827 = vmatpush1.msra.mxu0 0.0
  %1828 = vmatprep.subr.mxu0 0.0
  %1829 = vmatpush1.msra.mxu0 0.0
  %1830 = vmatprep.subr.mxu0 0.0
  %1831 = vmatpush1.msra.mxu0 0.0
  %1832 = vmatprep.subr.mxu0 0.0
  %1833 = vmatpush1.msra.mxu0 0.0
  %1834 = vmatprep.subr.mxu0 0.0
  %1835 = vmatpush1.msra.mxu0 0.0
  %1836 = vmatprep.subr.mxu0 0.0
  %1837 = vmatpush1.msra.mxu0 0.0
  %1838 = vmatprep.subr.mxu0 0.0
  %1839 = vmatpush1.msra.mxu0 0.0
  %1840 = vmatprep.subr.mxu0 0.0
  %1841 = vmatpush1.msra.mxu0 0.0
  %1842 = vmatprep.subr.mxu0 0.0
  %1843 = vmatpush1.msra.mxu0 0.0
  %1844 = vmatprep.subr.mxu0 0.0
  %1845 = vmatpush1.msra.mxu0 0.0
  %1846 = vmatprep.subr.mxu0 0.0
  %1847 = vmatpush1.msra.mxu0 0.0
  %1848 = vmatprep.subr.mxu0 0.0
  %1849 = vmatpush1.msra.mxu0 0.0
  %1850 = vmatprep.subr.mxu0 0.0
  %1851 = vmatpush1.msra.mxu0 0.0
  %1852 = vmatprep.subr.mxu0 0.0
  %1853 = vmatpush1.msra.mxu0 0.0
  %1854 = vmatprep.subr.mxu0 0.0
  %1855 = vmatpush1.msra.mxu0 0.0
  %1856 = vmatprep.subr.mxu0 0.0
  %1857 = vmatpush1.msra.mxu0 0.0
  %1858 = vmatprep.subr.mxu0 0.0
  %1859 = vmatpush1.msra.mxu0 0.0
  %1860 = vmatprep.subr.mxu0 0.0
  %1861 = vmatpush1.msra.mxu0 0.0
  %1862 = vmatprep.subr.mxu0 0.0
  %1863 = vmatpush1.msra.mxu0 0.0
  %1864 = vmatprep.subr.mxu0 0.0
  %1865 = vmatpush1.msra.mxu0 0.0
  %1866 = vmatprep.subr.mxu0 0.0
  %1867 = vmatpush1.msra.mxu0 0.0
  %1868 = vmatprep.subr.mxu0 0.0
  %1869 = vmatpush1.msra.mxu0 0.0
  %1870 = vmatprep.subr.mxu0 0.0
  %1871 = vmatpush1.msra.mxu0 0.0
  %1872 = vmatprep.subr.mxu0 0.0
  %1873 = vmatpush1.msra.mxu0 0.0
  %1874 = vmatprep.subr.mxu0 0.0
  %1875 = vmatpush1.msra.mxu0 0.0
  %1876 = vmatprep.subr.mxu0 0.0
  %1877 = vmatpush1.msra.mxu0 0.0
  %1878 = vmatprep.subr.mxu0 0.0
  %1879 = vmatpush1.msra.mxu0 0.0
  %1880 = vmatprep.subr.mxu0 0.0
  %1881 = vmatpush1.msra.mxu0 0.0
  %1882 = vmatprep.mubr.f32.mxu0 0.0
  %1883 = vmatmul.mubr.f32.gmra.mrb[0].mxu0 %v1379
  %v1884 = vpop.f32.mrb[0].mxu0
  %v1885 = vadd.f32 0.0, %v1884
  %v1886 = vpop.f32.mrb[0].mxu0
  %1887 = vmatprep.mubr.f32.mxu0 0.0
  %1888 = vmatmul.mubr.f32.gmra.mrb[0].mxu0 %v1382
  %v1889 = vpop.f32.mrb[0].mxu0
  %v1890 = vadd.f32 0.0, %v1889
  %v1891 = vpop.f32.mrb[0].mxu0
  %1892 = vmatprep.mubr.f32.mxu0 0.0
  %1893 = vmatmul.mubr.f32.gmra.mrb[0].mxu0 %v1385
  %v1894 = vpop.f32.mrb[0].mxu0
  %v1895 = vadd.f32 0.0, %v1894
  %v1896 = vpop.f32.mrb[0].mxu0
  %1897 = vmatprep.mubr.f32.mxu0 0.0
  %1898 = vmatmul.mubr.f32.gmra.mrb[0].mxu0 %v1388
  %v1899 = vpop.f32.mrb[0].mxu0
  %v1900 = vadd.f32 0.0, %v1899
  %v1901 = vpop.f32.mrb[0].mxu0
  %1902 = vdwg.mxu0
  %v1904 = vsel %vm1377, %v1325, 0
  %v1907 = vsel %vm1377, %v1326, 0
  %v1910 = vsel %vm1377, %v1327, 0
  %v1913 = vsel %vm1377, %v1328, 0
  %v1916 = vsel %vm1377, %v1329, 0
  %v1919 = vsel %vm1377, %v1330, 0
  %v1922 = vsel %vm1377, %v1331, 0
  %v1925 = vsel %vm1377, %v1332, 0
  %1927 = vmatprep.subr.mxu0 0.0
  %1928 = vmatpush1.msra.mxu0 %v1885
  %1929 = vmatprep.subr.mxu0 0.0
  %1930 = vmatpush1.msra.mxu0 %v1890
  %1931 = vmatprep.subr.mxu0 0.0
  %1932 = vmatpush1.msra.mxu0 %v1895
  %1933 = vmatprep.subr.mxu0 0.0
  %1934 = vmatpush1.msra.mxu0 %v1900
  %1935 = vmatprep.subr.mxu0 0.0
  %1936 = vmatpush1.msra.mxu0 0.0
  %1937 = vmatprep.subr.mxu0 0.0
  %1938 = vmatpush1.msra.mxu0 0.0
  %1939 = vmatprep.subr.mxu0 0.0
  %1940 = vmatpush1.msra.mxu0 0.0
  %1941 = vmatprep.subr.mxu0 0.0
  %1942 = vmatpush1.msra.mxu0 0.0
  %1943 = vmatprep.subr.mxu0 0.0
  %1944 = vmatpush1.msra.mxu0 0.0
  %1945 = vmatprep.subr.mxu0 0.0
  %1946 = vmatpush1.msra.mxu0 0.0
  %1947 = vmatprep.subr.mxu0 0.0
  %1948 = vmatpush1.msra.mxu0 0.0
  %1949 = vmatprep.subr.mxu0 0.0
  %1950 = vmatpush1.msra.mxu0 0.0
  %1951 = vmatprep.subr.mxu0 0.0
  %1952 = vmatpush1.msra.mxu0 0.0
  %1953 = vmatprep.subr.mxu0 0.0
  %1954 = vmatpush1.msra.mxu0 0.0
  %1955 = vmatprep.subr.mxu0 0.0
  %1956 = vmatpush1.msra.mxu0 0.0
  %1957 = vmatprep.subr.mxu0 0.0
  %1958 = vmatpush1.msra.mxu0 0.0
  %1959 = vmatprep.subr.mxu0 0.0
  %1960 = vmatpush1.msra.mxu0 0.0
  %1961 = vmatprep.subr.mxu0 0.0
  %1962 = vmatpush1.msra.mxu0 0.0
  %1963 = vmatprep.subr.mxu0 0.0
  %1964 = vmatpush1.msra.mxu0 0.0
  %1965 = vmatprep.subr.mxu0 0.0
  %1966 = vmatpush1.msra.mxu0 0.0
  %1967 = vmatprep.subr.mxu0 0.0
  %1968 = vmatpush1.msra.mxu0 0.0
  %1969 = vmatprep.subr.mxu0 0.0
  %1970 = vmatpush1.msra.mxu0 0.0
  %1971 = vmatprep.subr.mxu0 0.0
  %1972 = vmatpush1.msra.mxu0 0.0
  %1973 = vmatprep.subr.mxu0 0.0
  %1974 = vmatpush1.msra.mxu0 0.0
  %1975 = vmatprep.subr.mxu0 0.0
  %1976 = vmatpush1.msra.mxu0 0.0
  %1977 = vmatprep.subr.mxu0 0.0
  %1978 = vmatpush1.msra.mxu0 0.0
  %1979 = vmatprep.subr.mxu0 0.0
  %1980 = vmatpush1.msra.mxu0 0.0
  %1981 = vmatprep.subr.mxu0 0.0
  %1982 = vmatpush1.msra.mxu0 0.0
  %1983 = vmatprep.subr.mxu0 0.0
  %1984 = vmatpush1.msra.mxu0 0.0
  %1985 = vmatprep.subr.mxu0 0.0
  %1986 = vmatpush1.msra.mxu0 0.0
  %1987 = vmatprep.subr.mxu0 0.0
  %1988 = vmatpush1.msra.mxu0 0.0
  %1989 = vmatprep.subr.mxu0 0.0
  %1990 = vmatpush1.msra.mxu0 0.0
  %1991 = vmatprep.mubr.f32.mxu0 0.0
  %1992 = vmatmul.mubr.f32.gmra.mrb[0].mxu0 %v1904
  %v1993 = vpop.f32.mrb[0].mxu0
  %v1994 = vadd.f32 0.0, %v1993
  %v1995 = vpop.f32.mrb[0].mxu0
  %1996 = vmatprep.mubr.f32.mxu0 0.0
  %1997 = vmatmul.mubr.f32.gmra.mrb[0].mxu0 %v1907
  %v1998 = vpop.f32.mrb[0].mxu0
  %v1999 = vadd.f32 0.0, %v1998
  %v2000 = vpop.f32.mrb[0].mxu0
  %2001 = vmatprep.mubr.f32.mxu0 0.0
  %2002 = vmatmul.mubr.f32.gmra.mrb[0].mxu0 %v1910
  %v2003 = vpop.f32.mrb[0].mxu0
  %v2004 = vadd.f32 0.0, %v2003
  %v2005 = vpop.f32.mrb[0].mxu0
  %2006 = vmatprep.mubr.f32.mxu0 0.0
  %2007 = vmatmul.mubr.f32.gmra.mrb[0].mxu0 %v1913
  %v2008 = vpop.f32.mrb[0].mxu0
  %v2009 = vadd.f32 0.0, %v2008
  %v2010 = vpop.f32.mrb[0].mxu0
  %2011 = vmatprep.mubr.f32.mxu0 0.0
  %2012 = vmatmul.mubr.f32.gmra.mrb[0].mxu0 %v1916
  %v2013 = vpop.f32.mrb[0].mxu0
  %v2014 = vadd.f32 0.0, %v2013
  %v2015 = vpop.f32.mrb[0].mxu0
  %2016 = vmatprep.mubr.f32.mxu0 0.0
  %2017 = vmatmul.mubr.f32.gmra.mrb[0].mxu0 %v1919
  %v2018 = vpop.f32.mrb[0].mxu0
  %v2019 = vadd.f32 0.0, %v2018
  %v2020 = vpop.f32.mrb[0].mxu0
  %2021 = vmatprep.mubr.f32.mxu0 0.0
  %2022 = vmatmul.mubr.f32.gmra.mrb[0].mxu0 %v1922
  %v2023 = vpop.f32.mrb[0].mxu0
  %v2024 = vadd.f32 0.0, %v2023
  %v2025 = vpop.f32.mrb[0].mxu0
  %2026 = vmatprep.mubr.f32.mxu0 0.0
  %2027 = vmatmul.mubr.f32.gmra.mrb[0].mxu0 %v1925
  %v2028 = vpop.f32.mrb[0].mxu0
  %v2029 = vadd.f32 0.0, %v2028
  %v2030 = vpop.f32.mrb[0].mxu0
  %2031 = vdwg.mxu0
  %v2032 = vadd.f32 %v1780, %v1994
  %v2033 = vadd.f32 %v1785, %v1999
  %v2034 = vadd.f32 %v1790, %v2004
  %v2035 = vadd.f32 %v1795, %v2009
  %v2036 = vadd.f32 %v1800, %v2014
  %v2037 = vadd.f32 %v1805, %v2019
  %v2038 = vadd.f32 %v1810, %v2024
  %v2039 = vadd.f32 %v1815, %v2029
  %2041 = vset.pattern.permute.xlu0 0
  %2042 = vperm.xlu0 %2041, %v1333
  %v2043 = vpop.permute.xlu0 %2042
  %2046 = vset.pattern.permute.xlu0 0
  %2047 = vperm.xlu0 %2046, %v1334
  %v2048 = vpop.permute.xlu0 %2047
  %2051 = vset.pattern.permute.xlu0 0
  %2052 = vperm.xlu0 %2051, %v1335
  %v2053 = vpop.permute.xlu0 %2052
  %2056 = vset.pattern.permute.xlu0 0
  %2057 = vperm.xlu0 %2056, %v1336
  %v2058 = vpop.permute.xlu0 %2057
  %2061 = vset.pattern.permute.xlu0 0
  %2062 = vperm.xlu0 %2061, %v1337
  %v2063 = vpop.permute.xlu0 %2062
  %2066 = vset.pattern.permute.xlu0 0
  %2067 = vperm.xlu0 %2066, %v1338
  %v2068 = vpop.permute.xlu0 %2067
  %2071 = vset.pattern.permute.xlu0 0
  %2072 = vperm.xlu0 %2071, %v1339
  %v2073 = vpop.permute.xlu0 %2072
  %2076 = vset.pattern.permute.xlu0 0
  %2077 = vperm.xlu0 %2076, %v1340
  %v2078 = vpop.permute.xlu0 %2077
  %v2080 = vadd.f32 %v2032, %v2043
  %v2081 = vadd.f32 %v2033, %v2048
  %v2082 = vadd.f32 %v2034, %v2053
  %v2083 = vadd.f32 %v2035, %v2058
  %v2084 = vadd.f32 %v2036, %v2063
  %v2085 = vadd.f32 %v2037, %v2068
  %v2086 = vadd.f32 %v2038, %v2073
  %v2087 = vadd.f32 %v2039, %v2078
  %v2088 = vsel %vm1377, %v2080, 0.0
  %2089 = vadd.xlane.f32.xlu0 %v2088
  %v2090 = vpop.xlane.xlu0 %2089
  %v2091 = vsel %vm1377, %v2081, 0.0
  %2092 = vadd.xlane.f32.xlu0 %v2091
  %v2093 = vpop.xlane.xlu0 %2092
  %v2094 = vsel %vm1377, %v2082, 0.0
  %2095 = vadd.xlane.f32.xlu0 %v2094
  %v2096 = vpop.xlane.xlu0 %2095
  %v2097 = vsel %vm1377, %v2083, 0.0
  %2098 = vadd.xlane.f32.xlu0 %v2097
  %v2099 = vpop.xlane.xlu0 %2098
  %v2100 = vsel %vm1377, %v2084, 0.0
  %2101 = vadd.xlane.f32.xlu0 %v2100
  %v2102 = vpop.xlane.xlu0 %2101
  %v2103 = vsel %vm1377, %v2085, 0.0
  %2104 = vadd.xlane.f32.xlu0 %v2103
  %v2105 = vpop.xlane.xlu0 %2104
  %v2106 = vsel %vm1377, %v2086, 0.0
  %2107 = vadd.xlane.f32.xlu0 %v2106
  %v2108 = vpop.xlane.xlu0 %2107
  %v2109 = vsel %vm1377, %v2087, 0.0
  %2110 = vadd.xlane.f32.xlu0 %v2109
  %v2111 = vpop.xlane.xlu0 %2110
  %v2112 = vmul.f32 %v2080, %v2080
  %v2113 = vmul.f32 %v2081, %v2081
  %v2114 = vmul.f32 %v2082, %v2082
  %v2115 = vmul.f32 %v2083, %v2083
  %v2116 = vmul.f32 %v2084, %v2084
  %v2117 = vmul.f32 %v2085, %v2085
  %v2118 = vmul.f32 %v2086, %v2086
  %v2119 = vmul.f32 %v2087, %v2087
  %v2120 = vsel %vm1377, %v2112, 0.0
  %2121 = vadd.xlane.f32.xlu0 %v2120
  %v2122 = vpop.xlane.xlu0 %2121
  %v2123 = vsel %vm1377, %v2113, 0.0
  %2124 = vadd.xlane.f32.xlu0 %v2123
  %v2125 = vpop.xlane.xlu0 %2124
  %v2126 = vsel %vm1377, %v2114, 0.0
  %2127 = vadd.xlane.f32.xlu0 %v2126
  %v2128 = vpop.xlane.xlu0 %2127
  %v2129 = vsel %vm1377, %v2115, 0.0
  %2130 = vadd.xlane.f32.xlu0 %v2129
  %v2131 = vpop.xlane.xlu0 %2130
  %v2132 = vsel %vm1377, %v2116, 0.0
  %2133 = vadd.xlane.f32.xlu0 %v2132
  %v2134 = vpop.xlane.xlu0 %2133
  %v2135 = vsel %vm1377, %v2117, 0.0
  %2136 = vadd.xlane.f32.xlu0 %v2135
  %v2137 = vpop.xlane.xlu0 %2136
  %v2138 = vsel %vm1377, %v2118, 0.0
  %2139 = vadd.xlane.f32.xlu0 %v2138
  %v2140 = vpop.xlane.xlu0 %2139
  %v2141 = vsel %vm1377, %v2119, 0.0
  %2142 = vadd.xlane.f32.xlu0 %v2141
  %v2143 = vpop.xlane.xlu0 %2142
  %v2144 = vmul.f32 %v2090, 0.03125
  %v2145 = vmul.f32 %v2093, 0.03125
  %v2146 = vmul.f32 %v2096, 0.03125
  %v2147 = vmul.f32 %v2099, 0.03125
  %v2148 = vmul.f32 %v2102, 0.03125
  %v2149 = vmul.f32 %v2105, 0.03125
  %v2150 = vmul.f32 %v2108, 0.03125
  %v2151 = vmul.f32 %v2111, 0.03125
  %v2152 = vmul.f32 %v2122, 0.03125
  %v2153 = vmul.f32 %v2125, 0.03125
  %v2154 = vmul.f32 %v2128, 0.03125
  %v2155 = vmul.f32 %v2131, 0.03125
  %v2156 = vmul.f32 %v2134, 0.03125
  %v2157 = vmul.f32 %v2137, 0.03125
  %v2158 = vmul.f32 %v2140, 0.03125
  %v2159 = vmul.f32 %v2143, 0.03125
  %v2160 = vmul.f32 %v2144, %v2144
  %v2161 = vmul.f32 %v2145, %v2145
  %v2162 = vmul.f32 %v2146, %v2146
  %v2163 = vmul.f32 %v2147, %v2147
  %v2164 = vmul.f32 %v2148, %v2148
  %v2165 = vmul.f32 %v2149, %v2149
  %v2166 = vmul.f32 %v2150, %v2150
  %v2167 = vmul.f32 %v2151, %v2151
  %v2168 = vsub.f32 %v2152, %v2160
  %v2169 = vsub.f32 %v2153, %v2161
  %v2170 = vsub.f32 %v2154, %v2162
  %v2171 = vsub.f32 %v2155, %v2163
  %v2172 = vsub.f32 %v2156, %v2164
  %v2173 = vsub.f32 %v2157, %v2165
  %v2174 = vsub.f32 %v2158, %v2166
  %v2175 = vsub.f32 %v2159, %v2167
  %v2176 = vsub.f32 %v2080, %v2144
  %v2177 = vsub.f32 %v2081, %v2145
  %v2178 = vsub.f32 %v2082, %v2146
  %v2179 = vsub.f32 %v2083, %v2147
  %v2180 = vsub.f32 %v2084, %v2148
  %v2181 = vsub.f32 %v2085, %v2149
  %v2182 = vsub.f32 %v2086, %v2150
  %v2183 = vsub.f32 %v2087, %v2151
  %v2184 = vadd.f32 %v2168, 1e-05
  %v2185 = vadd.f32 %v2169, 1e-05
  %v2186 = vadd.f32 %v2170, 1e-05
  %v2187 = vadd.f32 %v2171, 1e-05
  %v2188 = vadd.f32 %v2172, 1e-05
  %v2189 = vadd.f32 %v2173, 1e-05
  %v2190 = vadd.f32 %v2174, 1e-05
  %v2191 = vadd.f32 %v2175, 1e-05
  %v2192 = vrsqrt.pop %v2184
  %v2193 = vrsqrt.pop %v2185
  %v2194 = vrsqrt.pop %v2186
  %v2195 = vrsqrt.pop %v2187
  %v2196 = vrsqrt.pop %v2188
  %v2197 = vrsqrt.pop %v2189
  %v2198 = vrsqrt.pop %v2190
  %v2199 = vrsqrt.pop %v2191
  %v2200 = vmul.f32 %v2192, %v1353
  %v2201 = vmul.f32 %v2193, %v1354
  %v2202 = vmul.f32 %v2194, %v1355
  %v2203 = vmul.f32 %v2195, %v1356
  %v2204 = vmul.f32 %v2196, %v1357
  %v2205 = vmul.f32 %v2197, %v1358
  %v2206 = vmul.f32 %v2198, %v1359
  %v2207 = vmul.f32 %v2199, %v1360
  %2209 = vset.pattern.permute.xlu0 0
  %2210 = vperm.xlu0 %2209, %v2200
  %v2211 = vpop.permute.xlu0 %2210
  %2214 = vset.pattern.permute.xlu0 0
  %2215 = vperm.xlu0 %2214, %v2201
  %v2216 = vpop.permute.xlu0 %2215
  %2219 = vset.pattern.permute.xlu0 0
  %2220 = vperm.xlu0 %2219, %v2202
  %v2221 = vpop.permute.xlu0 %2220
  %2224 = vset.pattern.permute.xlu0 0
  %2225 = vperm.xlu0 %2224, %v2203
  %v2226 = vpop.permute.xlu0 %2225
  %2229 = vset.pattern.permute.xlu0 0
  %2230 = vperm.xlu0 %2229, %v2204
  %v2231 = vpop.permute.xlu0 %2230
  %2234 = vset.pattern.permute.xlu0 0
  %2235 = vperm.xlu0 %2234, %v2205
  %v2236 = vpop.permute.xlu0 %2235
  %2239 = vset.pattern.permute.xlu0 0
  %2240 = vperm.xlu0 %2239, %v2206
  %v2241 = vpop.permute.xlu0 %2240
  %2244 = vset.pattern.permute.xlu0 0
  %2245 = vperm.xlu0 %2244, %v2207
  %v2246 = vpop.permute.xlu0 %2245
  %v2248 = vmul.f32 %v2176, %v2211
  %v2249 = vmul.f32 %v2177, %v2216
  %v2250 = vmul.f32 %v2178, %v2221
  %v2251 = vmul.f32 %v2179, %v2226
  %v2252 = vmul.f32 %v2180, %v2231
  %v2253 = vmul.f32 %v2181, %v2236
  %v2254 = vmul.f32 %v2182, %v2241
  %v2255 = vmul.f32 %v2183, %v2246
  %2257 = vset.pattern.permute.xlu0 0
  %2258 = vperm.xlu0 %2257, %v1361
  %v2259 = vpop.permute.xlu0 %2258
  %2262 = vset.pattern.permute.xlu0 0
  %2263 = vperm.xlu0 %2262, %v1362
  %v2264 = vpop.permute.xlu0 %2263
  %2267 = vset.pattern.permute.xlu0 0
  %2268 = vperm.xlu0 %2267, %v1363
  %v2269 = vpop.permute.xlu0 %2268
  %2272 = vset.pattern.permute.xlu0 0
  %2273 = vperm.xlu0 %2272, %v1364
  %v2274 = vpop.permute.xlu0 %2273
  %2277 = vset.pattern.permute.xlu0 0
  %2278 = vperm.xlu0 %2277, %v1365
  %v2279 = vpop.permute.xlu0 %2278
  %2282 = vset.pattern.permute.xlu0 0
  %2283 = vperm.xlu0 %2282, %v1366
  %v2284 = vpop.permute.xlu0 %2283
  %2287 = vset.pattern.permute.xlu0 0
  %2288 = vperm.xlu0 %2287, %v1367
  %v2289 = vpop.permute.xlu0 %2288
  %2292 = vset.pattern.permute.xlu0 0
  %2293 = vperm.xlu0 %2292, %v1368
  %v2294 = vpop.permute.xlu0 %2293
  %v2296 = vadd.f32 %v2248, %v2259
  %v2297 = vadd.f32 %v2249, %v2264
  %v2298 = vadd.f32 %v2250, %v2269
  %v2299 = vadd.f32 %v2251, %v2274
  %v2300 = vadd.f32 %v2252, %v2279
  %v2301 = vadd.f32 %v2253, %v2284
  %v2302 = vadd.f32 %v2254, %v2289
  %v2303 = vadd.f32 %v2255, %v2294
  %v2304 = vmax.f32 %v2296, 0.0
  %v2305 = vmax.f32 %v2297, 0.0
  %v2306 = vmax.f32 %v2298, 0.0
  %v2307 = vmax.f32 %v2299, 0.0
  %v2308 = vmax.f32 %v2300, 0.0
  %v2309 = vmax.f32 %v2301, 0.0
  %v2310 = vmax.f32 %v2302, 0.0
  %v2311 = vmax.f32 %v2303, 0.0
  %v2313 = vsel %vm1377, %v2304, 0
  %v2316 = vsel %vm1377, %v2305, 0
  %v2319 = vsel %vm1377, %v2306, 0
  %v2322 = vsel %vm1377, %v2307, 0
  %v2325 = vsel %vm1377, %v2308, 0
  %v2328 = vsel %vm1377, %v2309, 0
  %v2331 = vsel %vm1377, %v2310, 0
  %v2334 = vsel %vm1377, %v2311, 0
  %2336 = vmatprep.subr.mxu0 0.0
  %2337 = vmatpush1.msra.mxu0 %v1369
  %2338 = vmatprep.subr.mxu0 0.0
  %2339 = vmatpush1.msra.mxu0 %v1370
  %2340 = vmatprep.subr.mxu0 0.0
  %2341 = vmatpush1.msra.mxu0 %v1371
  %2342 = vmatprep.subr.mxu0 0.0
  %2343 = vmatpush1.msra.mxu0 %v1372
  %2344 = vmatprep.subr.mxu0 0.0
  %2345 = vmatpush1.msra.mxu0 0.0
  %2346 = vmatprep.subr.mxu0 0.0
  %2347 = vmatpush1.msra.mxu0 0.0
  %2348 = vmatprep.subr.mxu0 0.0
  %2349 = vmatpush1.msra.mxu0 0.0
  %2350 = vmatprep.subr.mxu0 0.0
  %2351 = vmatpush1.msra.mxu0 0.0
  %2352 = vmatprep.subr.mxu0 0.0
  %2353 = vmatpush1.msra.mxu0 0.0
  %2354 = vmatprep.subr.mxu0 0.0
  %2355 = vmatpush1.msra.mxu0 0.0
  %2356 = vmatprep.subr.mxu0 0.0
  %2357 = vmatpush1.msra.mxu0 0.0
  %2358 = vmatprep.subr.mxu0 0.0
  %2359 = vmatpush1.msra.mxu0 0.0
  %2360 = vmatprep.subr.mxu0 0.0
  %2361 = vmatpush1.msra.mxu0 0.0
  %2362 = vmatprep.subr.mxu0 0.0
  %2363 = vmatpush1.msra.mxu0 0.0
  %2364 = vmatprep.subr.mxu0 0.0
  %2365 = vmatpush1.msra.mxu0 0.0
  %2366 = vmatprep.subr.mxu0 0.0
  %2367 = vmatpush1.msra.mxu0 0.0
  %2368 = vmatprep.subr.mxu0 0.0
  %2369 = vmatpush1.msra.mxu0 0.0
  %2370 = vmatprep.subr.mxu0 0.0
  %2371 = vmatpush1.msra.mxu0 0.0
  %2372 = vmatprep.subr.mxu0 0.0
  %2373 = vmatpush1.msra.mxu0 0.0
  %2374 = vmatprep.subr.mxu0 0.0
  %2375 = vmatpush1.msra.mxu0 0.0
  %2376 = vmatprep.subr.mxu0 0.0
  %2377 = vmatpush1.msra.mxu0 0.0
  %2378 = vmatprep.subr.mxu0 0.0
  %2379 = vmatpush1.msra.mxu0 0.0
  %2380 = vmatprep.subr.mxu0 0.0
  %2381 = vmatpush1.msra.mxu0 0.0
  %2382 = vmatprep.subr.mxu0 0.0
  %2383 = vmatpush1.msra.mxu0 0.0
  %2384 = vmatprep.subr.mxu0 0.0
  %2385 = vmatpush1.msra.mxu0 0.0
  %2386 = vmatprep.subr.mxu0 0.0
  %2387 = vmatpush1.msra.mxu0 0.0
  %2388 = vmatprep.subr.mxu0 0.0
  %2389 = vmatpush1.msra.mxu0 0.0
  %2390 = vmatprep.subr.mxu0 0.0
  %2391 = vmatpush1.msra.mxu0 0.0
  %2392 = vmatprep.subr.mxu0 0.0
  %2393 = vmatpush1.msra.mxu0 0.0
  %2394 = vmatprep.subr.mxu0 0.0
  %2395 = vmatpush1.msra.mxu0 0.0
  %2396 = vmatprep.subr.mxu0 0.0
  %2397 = vmatpush1.msra.mxu0 0.0
  %2398 = vmatprep.subr.mxu0 0.0
  %2399 = vmatpush1.msra.mxu0 0.0
  %2400 = vmatprep.mubr.f32.mxu0 0.0
  %2401 = vmatmul.mubr.f32.gmra.mrb[0].mxu0 %v2313
  %v2402 = vpop.f32.mrb[0].mxu0
  %v2403 = vadd.f32 0.0, %v2402
  %v2404 = vpop.f32.mrb[0].mxu0
  %2405 = vmatprep.mubr.f32.mxu0 0.0
  %2406 = vmatmul.mubr.f32.gmra.mrb[0].mxu0 %v2316
  %v2407 = vpop.f32.mrb[0].mxu0
  %v2408 = vadd.f32 0.0, %v2407
  %v2409 = vpop.f32.mrb[0].mxu0
  %2410 = vmatprep.mubr.f32.mxu0 0.0
  %2411 = vmatmul.mubr.f32.gmra.mrb[0].mxu0 %v2319
  %v2412 = vpop.f32.mrb[0].mxu0
  %v2413 = vadd.f32 0.0, %v2412
  %v2414 = vpop.f32.mrb[0].mxu0
  %2415 = vmatprep.mubr.f32.mxu0 0.0
  %2416 = vmatmul.mubr.f32.gmra.mrb[0].mxu0 %v2322
  %v2417 = vpop.f32.mrb[0].mxu0
  %v2418 = vadd.f32 0.0, %v2417
  %v2419 = vpop.f32.mrb[0].mxu0
  %2420 = vmatprep.mubr.f32.mxu0 0.0
  %2421 = vmatmul.mubr.f32.gmra.mrb[0].mxu0 %v2325
  %v2422 = vpop.f32.mrb[0].mxu0
  %v2423 = vadd.f32 0.0, %v2422
  %v2424 = vpop.f32.mrb[0].mxu0
  %2425 = vmatprep.mubr.f32.mxu0 0.0
  %2426 = vmatmul.mubr.f32.gmra.mrb[0].mxu0 %v2328
  %v2427 = vpop.f32.mrb[0].mxu0
  %v2428 = vadd.f32 0.0, %v2427
  %v2429 = vpop.f32.mrb[0].mxu0
  %2430 = vmatprep.mubr.f32.mxu0 0.0
  %2431 = vmatmul.mubr.f32.gmra.mrb[0].mxu0 %v2331
  %v2432 = vpop.f32.mrb[0].mxu0
  %v2433 = vadd.f32 0.0, %v2432
  %v2434 = vpop.f32.mrb[0].mxu0
  %2435 = vmatprep.mubr.f32.mxu0 0.0
  %2436 = vmatmul.mubr.f32.gmra.mrb[0].mxu0 %v2334
  %v2437 = vpop.f32.mrb[0].mxu0
  %v2438 = vadd.f32 0.0, %v2437
  %v2439 = vpop.f32.mrb[0].mxu0
  %2440 = vdwg.mxu0
  %2441 = vmatprep.subr.mxu0 0.0
  %2442 = vmatpush1.msra.mxu0 %v1373
  %2443 = vmatprep.subr.mxu0 0.0
  %2444 = vmatpush1.msra.mxu0 %v1374
  %2445 = vmatprep.subr.mxu0 0.0
  %2446 = vmatpush1.msra.mxu0 %v1375
  %2447 = vmatprep.subr.mxu0 0.0
  %2448 = vmatpush1.msra.mxu0 %v1376
  %2449 = vmatprep.subr.mxu0 0.0
  %2450 = vmatpush1.msra.mxu0 0.0
  %2451 = vmatprep.subr.mxu0 0.0
  %2452 = vmatpush1.msra.mxu0 0.0
  %2453 = vmatprep.subr.mxu0 0.0
  %2454 = vmatpush1.msra.mxu0 0.0
  %2455 = vmatprep.subr.mxu0 0.0
  %2456 = vmatpush1.msra.mxu0 0.0
  %2457 = vmatprep.subr.mxu0 0.0
  %2458 = vmatpush1.msra.mxu0 0.0
  %2459 = vmatprep.subr.mxu0 0.0
  %2460 = vmatpush1.msra.mxu0 0.0
  %2461 = vmatprep.subr.mxu0 0.0
  %2462 = vmatpush1.msra.mxu0 0.0
  %2463 = vmatprep.subr.mxu0 0.0
  %2464 = vmatpush1.msra.mxu0 0.0
  %2465 = vmatprep.subr.mxu0 0.0
  %2466 = vmatpush1.msra.mxu0 0.0
  %2467 = vmatprep.subr.mxu0 0.0
  %2468 = vmatpush1.msra.mxu0 0.0
  %2469 = vmatprep.subr.mxu0 0.0
  %2470 = vmatpush1.msra.mxu0 0.0
  %2471 = vmatprep.subr.mxu0 0.0
  %2472 = vmatpush1.msra.mxu0 0.0
  %2473 = vmatprep.subr.mxu0 0.0
  %2474 = vmatpush1.msra.mxu0 0.0
  %2475 = vmatprep.subr.mxu0 0.0
  %2476 = vmatpush1.msra.mxu0 0.0
  %2477 = vmatprep.subr.mxu0 0.0
  %2478 = vmatpush1.msra.mxu0 0.0
  %2479 = vmatprep.subr.mxu0 0.0
  %2480 = vmatpush1.msra.mxu0 0.0
  %2481 = vmatprep.subr.mxu0 0.0
  %2482 = vmatpush1.msra.mxu0 0.0
  %2483 = vmatprep.subr.mxu0 0.0
  %2484 = vmatpush1.msra.mxu0 0.0
  %2485 = vmatprep.subr.mxu0 0.0
  %2486 = vmatpush1.msra.mxu0 0.0
  %2487 = vmatprep.subr.mxu0 0.0
  %2488 = vmatpush1.msra.mxu0 0.0
  %2489 = vmatprep.subr.mxu0 0.0
  %2490 = vmatpush1.msra.mxu0 0.0
  %2491 = vmatprep.subr.mxu0 0.0
  %2492 = vmatpush1.msra.mxu0 0.0
  %2493 = vmatprep.subr.mxu0 0.0
  %2494 = vmatpush1.msra.mxu0 0.0
  %2495 = vmatprep.subr.mxu0 0.0
  %2496 = vmatpush1.msra.mxu0 0.0
  %2497 = vmatprep.subr.mxu0 0.0
  %2498 = vmatpush1.msra.mxu0 0.0
  %2499 = vmatprep.subr.mxu0 0.0
  %2500 = vmatpush1.msra.mxu0 0.0
  %2501 = vmatprep.subr.mxu0 0.0
  %2502 = vmatpush1.msra.mxu0 0.0
  %2503 = vmatprep.subr.mxu0 0.0
  %2504 = vmatpush1.msra.mxu0 0.0
  %2505 = vmatprep.mubr.f32.mxu0 0.0
  %2506 = vmatmul.mubr.f32.gmra.mrb[0].mxu0 %v2313
  %v2507 = vpop.f32.mrb[0].mxu0
  %v2508 = vadd.f32 0.0, %v2507
  %v2509 = vpop.f32.mrb[0].mxu0
  %2510 = vmatprep.mubr.f32.mxu0 0.0
  %2511 = vmatmul.mubr.f32.gmra.mrb[0].mxu0 %v2316
  %v2512 = vpop.f32.mrb[0].mxu0
  %v2513 = vadd.f32 0.0, %v2512
  %v2514 = vpop.f32.mrb[0].mxu0
  %2515 = vmatprep.mubr.f32.mxu0 0.0
  %2516 = vmatmul.mubr.f32.gmra.mrb[0].mxu0 %v2319
  %v2517 = vpop.f32.mrb[0].mxu0
  %v2518 = vadd.f32 0.0, %v2517
  %v2519 = vpop.f32.mrb[0].mxu0
  %2520 = vmatprep.mubr.f32.mxu0 0.0
  %2521 = vmatmul.mubr.f32.gmra.mrb[0].mxu0 %v2322
  %v2522 = vpop.f32.mrb[0].mxu0
  %v2523 = vadd.f32 0.0, %v2522
  %v2524 = vpop.f32.mrb[0].mxu0
  %2525 = vmatprep.mubr.f32.mxu0 0.0
  %2526 = vmatmul.mubr.f32.gmra.mrb[0].mxu0 %v2325
  %v2527 = vpop.f32.mrb[0].mxu0
  %v2528 = vadd.f32 0.0, %v2527
  %v2529 = vpop.f32.mrb[0].mxu0
  %2530 = vmatprep.mubr.f32.mxu0 0.0
  %2531 = vmatmul.mubr.f32.gmra.mrb[0].mxu0 %v2328
  %v2532 = vpop.f32.mrb[0].mxu0
  %v2533 = vadd.f32 0.0, %v2532
  %v2534 = vpop.f32.mrb[0].mxu0
  %2535 = vmatprep.mubr.f32.mxu0 0.0
  %2536 = vmatmul.mubr.f32.gmra.mrb[0].mxu0 %v2331
  %v2537 = vpop.f32.mrb[0].mxu0
  %v2538 = vadd.f32 0.0, %v2537
  %v2539 = vpop.f32.mrb[0].mxu0
  %2540 = vmatprep.mubr.f32.mxu0 0.0
  %2541 = vmatmul.mubr.f32.gmra.mrb[0].mxu0 %v2334
  %v2542 = vpop.f32.mrb[0].mxu0
  %v2543 = vadd.f32 0.0, %v2542
  %v2544 = vpop.f32.mrb[0].mxu0
  %2545 = vdwg.mxu0
  %v2546 = vmax.f32 %v2403, %v2508
  %v2547 = vmax.f32 %v2408, %v2513
  %v2548 = vmax.f32 %v2413, %v2518
  %v2549 = vmax.f32 %v2418, %v2523
  %v2550 = vmax.f32 %v2423, %v2528
  %v2551 = vmax.f32 %v2428, %v2533
  %v2552 = vmax.f32 %v2433, %v2538
  %v2553 = vmax.f32 %v2438, %v2543
  %v2554 = vld [vmem:[%s51] sm:$0xff]
  %v2555 = vld [vmem:[%s51 + $0x8] sm:$0xff]
  %v2556 = vld [vmem:[%s51 + $0x10] sm:$0xff]
  %v2557 = vld [vmem:[%s51 + $0x18] sm:$0xff]
  %v2558 = vld [vmem:[%s51 + $0x20] sm:$0xff]
  %v2559 = vld [vmem:[%s51 + $0x28] sm:$0xff]
  %v2560 = vld [vmem:[%s51 + $0x30] sm:$0xff]
  %v2561 = vld [vmem:[%s51 + $0x38] sm:$0xff]
  %v2562 = vld [vmem:[%s51 + $0x40] sm:$0xff]
  %v2563 = vld [vmem:[%s51 + $0x48] sm:$0xff]
  %v2564 = vld [vmem:[%s51 + $0x50] sm:$0xff]
  %v2565 = vld [vmem:[%s51 + $0x58] sm:$0xff]
  %v2566 = vld [vmem:[%s51 + $0x60] sm:$0xff]
  %v2567 = vld [vmem:[%s51 + $0x68] sm:$0xff]
  %v2568 = vld [vmem:[%s51 + $0x70] sm:$0xff]
  %v2569 = vld [vmem:[%s51 + $0x78] sm:$0xff]
  %v2570 = vld [vmem:[%s53] sm:$0xff]
  %v2571 = vld [vmem:[%s53 + $0x8] sm:$0xff]
  %v2572 = vld [vmem:[%s53 + $0x10] sm:$0xff]
  %v2573 = vld [vmem:[%s53 + $0x18] sm:$0xff]
  %v2574 = vld [vmem:[%s53 + $0x20] sm:$0xff]
  %v2575 = vld [vmem:[%s53 + $0x28] sm:$0xff]
  %v2576 = vld [vmem:[%s53 + $0x30] sm:$0xff]
  %v2577 = vld [vmem:[%s53 + $0x38] sm:$0xff]
  %v2578 = vld [vmem:[%s53 + $0x40] sm:$0xff]
  %v2579 = vld [vmem:[%s53 + $0x48] sm:$0xff]
  %v2580 = vld [vmem:[%s53 + $0x50] sm:$0xff]
  %v2581 = vld [vmem:[%s53 + $0x58] sm:$0xff]
  %v2582 = vld [vmem:[%s53 + $0x60] sm:$0xff]
  %v2583 = vld [vmem:[%s53 + $0x68] sm:$0xff]
  %v2584 = vld [vmem:[%s53 + $0x70] sm:$0xff]
  %v2585 = vld [vmem:[%s53 + $0x78] sm:$0xff]
  %v2586 = vld [vmem:[%s55] sm:$0xff]
  %v2587 = vld [vmem:[%s55 + $0x8] sm:$0xff]
  %v2588 = vld [vmem:[%s55 + $0x10] sm:$0xff]
  %v2589 = vld [vmem:[%s55 + $0x18] sm:$0xff]
  %v2590 = vld [vmem:[%s55 + $0x20] sm:$0xff]
  %v2591 = vld [vmem:[%s55 + $0x28] sm:$0xff]
  %v2592 = vld [vmem:[%s55 + $0x30] sm:$0xff]
  %v2593 = vld [vmem:[%s55 + $0x38] sm:$0xff]
  %v2594 = vld [vmem:[%s55 + $0x40] sm:$0xff]
  %v2595 = vld [vmem:[%s55 + $0x48] sm:$0xff]
  %v2596 = vld [vmem:[%s55 + $0x50] sm:$0xff]
  %v2597 = vld [vmem:[%s55 + $0x58] sm:$0xff]
  %v2598 = vld [vmem:[%s55 + $0x60] sm:$0xff]
  %v2599 = vld [vmem:[%s55 + $0x68] sm:$0xff]
  %v2600 = vld [vmem:[%s55 + $0x70] sm:$0xff]
  %v2601 = vld [vmem:[%s55 + $0x78] sm:$0xff]
  %v2602 = vld [vmem:[%s57] sm:$0xff]
  %v2603 = vld [vmem:[%s57 + $0x8] sm:$0xff]
  %v2604 = vld [vmem:[%s57 + $0x10] sm:$0xff]
  %v2605 = vld [vmem:[%s57 + $0x18] sm:$0xff]
  %v2606 = vld [vmem:[%s57 + $0x20] sm:$0xff]
  %v2607 = vld [vmem:[%s57 + $0x28] sm:$0xff]
  %v2608 = vld [vmem:[%s57 + $0x30] sm:$0xff]
  %v2609 = vld [vmem:[%s57 + $0x38] sm:$0xff]
  %v2610 = vld [vmem:[%s57 + $0x40] sm:$0xff]
  %v2611 = vld [vmem:[%s57 + $0x48] sm:$0xff]
  %v2612 = vld [vmem:[%s57 + $0x50] sm:$0xff]
  %v2613 = vld [vmem:[%s57 + $0x58] sm:$0xff]
  %v2614 = vld [vmem:[%s57 + $0x60] sm:$0xff]
  %v2615 = vld [vmem:[%s57 + $0x68] sm:$0xff]
  %v2616 = vld [vmem:[%s57 + $0x70] sm:$0xff]
  %v2617 = vld [vmem:[%s57 + $0x78] sm:$0xff]
  %v2618 = vld [vmem:[%s59] sm:$0xff]
  %v2619 = vld [vmem:[%s59 + $0x8] sm:$0xff]
  %v2620 = vld [vmem:[%s61] sm:$0xff]
  %v2621 = vld [vmem:[%s61 + $0x8] sm:$0xff]
  %v2622 = vld [vmem:[%s63] sm:$0xff]
  %v2623 = vld [vmem:[%s63 + $0x8] sm:$0xff]
  %v2624 = vld [vmem:[%s65] sm:$0xff]
  %v2625 = vld [vmem:[%s65 + $0x8] sm:$0xff]
  %v2626 = vld [vmem:[%s65 + $0x10] sm:$0xff]
  %v2627 = vld [vmem:[%s65 + $0x18] sm:$0xff]
  %v2628 = vld [vmem:[%s65 + $0x20] sm:$0xff]
  %v2629 = vld [vmem:[%s65 + $0x28] sm:$0xff]
  %v2630 = vld [vmem:[%s65 + $0x30] sm:$0xff]
  %v2631 = vld [vmem:[%s65 + $0x38] sm:$0xff]
  %v2632 = vld [vmem:[%s65 + $0x40] sm:$0xff]
  %v2633 = vld [vmem:[%s65 + $0x48] sm:$0xff]
  %v2634 = vld [vmem:[%s65 + $0x50] sm:$0xff]
  %v2635 = vld [vmem:[%s65 + $0x58] sm:$0xff]
  %v2636 = vld [vmem:[%s65 + $0x60] sm:$0xff]
  %v2637 = vld [vmem:[%s65 + $0x68] sm:$0xff]
  %v2638 = vld [vmem:[%s65 + $0x70] sm:$0xff]
  %v2639 = vld [vmem:[%s65 + $0x78] sm:$0xff]
  %v2640 = vld [vmem:[%s67] sm:$0xff]
  %v2641 = vld [vmem:[%s67 + $0x8] sm:$0xff]
  %v2642 = vld [vmem:[%s67 + $0x10] sm:$0xff]
  %v2643 = vld [vmem:[%s67 + $0x18] sm:$0xff]
  %v2644 = vld [vmem:[%s67 + $0x20] sm:$0xff]
  %v2645 = vld [vmem:[%s67 + $0x28] sm:$0xff]
  %v2646 = vld [vmem:[%s67 + $0x30] sm:$0xff]
  %v2647 = vld [vmem:[%s67 + $0x38] sm:$0xff]
  %v2648 = vld [vmem:[%s67 + $0x40] sm:$0xff]
  %v2649 = vld [vmem:[%s67 + $0x48] sm:$0xff]
  %v2650 = vld [vmem:[%s67 + $0x50] sm:$0xff]
  %v2651 = vld [vmem:[%s67 + $0x58] sm:$0xff]
  %v2652 = vld [vmem:[%s67 + $0x60] sm:$0xff]
  %v2653 = vld [vmem:[%s67 + $0x68] sm:$0xff]
  %v2654 = vld [vmem:[%s67 + $0x70] sm:$0xff]
  %v2655 = vld [vmem:[%s67 + $0x78] sm:$0xff]
  %v2656 = vld [vmem:[%s69] sm:$0xff]
  %v2657 = vld [vmem:[%s69 + $0x8] sm:$0xff]
  %v2658 = vld [vmem:[%s71] sm:$0xff]
  %v2659 = vld [vmem:[%s71 + $0x8] sm:$0xff]
  %vm2660 = vcmask 130048
  %v2662 = vsel %vm2660, %v2546, 0
  %v2665 = vsel %vm2660, %v2547, 0
  %v2668 = vsel %vm2660, %v2548, 0
  %v2671 = vsel %vm2660, %v2549, 0
  %v2674 = vsel %vm2660, %v2550, 0
  %v2677 = vsel %vm2660, %v2551, 0
  %v2680 = vsel %vm2660, %v2552, 0
  %v2683 = vsel %vm2660, %v2553, 0
  %2685 = vmatprep.subr.mxu0 0.0
  %2686 = vmatpush1.msra.mxu0 %v2618
  %2687 = vmatprep.subr.mxu0 0.0
  %2688 = vmatpush1.msra.mxu0 %v2619
  %2689 = vmatprep.subr.mxu0 0.0
  %2690 = vmatpush1.msra.mxu0 0.0
  %2691 = vmatprep.subr.mxu0 0.0
  %2692 = vmatpush1.msra.mxu0 0.0
  %2693 = vmatprep.subr.mxu0 0.0
  %2694 = vmatpush1.msra.mxu0 0.0
  %2695 = vmatprep.subr.mxu0 0.0
  %2696 = vmatpush1.msra.mxu0 0.0
  %2697 = vmatprep.subr.mxu0 0.0
  %2698 = vmatpush1.msra.mxu0 0.0
  %2699 = vmatprep.subr.mxu0 0.0
  %2700 = vmatpush1.msra.mxu0 0.0
  %2701 = vmatprep.subr.mxu0 0.0
  %2702 = vmatpush1.msra.mxu0 0.0
  %2703 = vmatprep.subr.mxu0 0.0
  %2704 = vmatpush1.msra.mxu0 0.0
  %2705 = vmatprep.subr.mxu0 0.0
  %2706 = vmatpush1.msra.mxu0 0.0
  %2707 = vmatprep.subr.mxu0 0.0
  %2708 = vmatpush1.msra.mxu0 0.0
  %2709 = vmatprep.subr.mxu0 0.0
  %2710 = vmatpush1.msra.mxu0 0.0
  %2711 = vmatprep.subr.mxu0 0.0
  %2712 = vmatpush1.msra.mxu0 0.0
  %2713 = vmatprep.subr.mxu0 0.0
  %2714 = vmatpush1.msra.mxu0 0.0
  %2715 = vmatprep.subr.mxu0 0.0
  %2716 = vmatpush1.msra.mxu0 0.0
  %2717 = vmatprep.subr.mxu0 0.0
  %2718 = vmatpush1.msra.mxu0 0.0
  %2719 = vmatprep.subr.mxu0 0.0
  %2720 = vmatpush1.msra.mxu0 0.0
  %2721 = vmatprep.subr.mxu0 0.0
  %2722 = vmatpush1.msra.mxu0 0.0
  %2723 = vmatprep.subr.mxu0 0.0
  %2724 = vmatpush1.msra.mxu0 0.0
  %2725 = vmatprep.subr.mxu0 0.0
  %2726 = vmatpush1.msra.mxu0 0.0
  %2727 = vmatprep.subr.mxu0 0.0
  %2728 = vmatpush1.msra.mxu0 0.0
  %2729 = vmatprep.subr.mxu0 0.0
  %2730 = vmatpush1.msra.mxu0 0.0
  %2731 = vmatprep.subr.mxu0 0.0
  %2732 = vmatpush1.msra.mxu0 0.0
  %2733 = vmatprep.subr.mxu0 0.0
  %2734 = vmatpush1.msra.mxu0 0.0
  %2735 = vmatprep.subr.mxu0 0.0
  %2736 = vmatpush1.msra.mxu0 0.0
  %2737 = vmatprep.subr.mxu0 0.0
  %2738 = vmatpush1.msra.mxu0 0.0
  %2739 = vmatprep.subr.mxu0 0.0
  %2740 = vmatpush1.msra.mxu0 0.0
  %2741 = vmatprep.subr.mxu0 0.0
  %2742 = vmatpush1.msra.mxu0 0.0
  %2743 = vmatprep.subr.mxu0 0.0
  %2744 = vmatpush1.msra.mxu0 0.0
  %2745 = vmatprep.subr.mxu0 0.0
  %2746 = vmatpush1.msra.mxu0 0.0
  %2747 = vmatprep.subr.mxu0 0.0
  %2748 = vmatpush1.msra.mxu0 0.0
  %2749 = vmatprep.mubr.f32.mxu0 0.0
  %2750 = vmatmul.mubr.f32.gmra.mrb[0].mxu0 %v2662
  %v2751 = vpop.f32.mrb[0].mxu0
  %v2752 = vadd.f32 0.0, %v2751
  %v2753 = vpop.f32.mrb[0].mxu0
  %2754 = vmatprep.mubr.f32.mxu0 0.0
  %2755 = vmatmul.mubr.f32.gmra.mrb[0].mxu0 %v2665
  %v2756 = vpop.f32.mrb[0].mxu0
  %v2757 = vadd.f32 0.0, %v2756
  %v2758 = vpop.f32.mrb[0].mxu0
  %2759 = vmatprep.mubr.f32.mxu0 0.0
  %2760 = vmatmul.mubr.f32.gmra.mrb[0].mxu0 %v2668
  %v2761 = vpop.f32.mrb[0].mxu0
  %v2762 = vadd.f32 0.0, %v2761
  %v2763 = vpop.f32.mrb[0].mxu0
  %2764 = vmatprep.mubr.f32.mxu0 0.0
  %2765 = vmatmul.mubr.f32.gmra.mrb[0].mxu0 %v2671
  %v2766 = vpop.f32.mrb[0].mxu0
  %v2767 = vadd.f32 0.0, %v2766
  %v2768 = vpop.f32.mrb[0].mxu0
  %2769 = vmatprep.mubr.f32.mxu0 0.0
  %2770 = vmatmul.mubr.f32.gmra.mrb[0].mxu0 %v2674
  %v2771 = vpop.f32.mrb[0].mxu0
  %v2772 = vadd.f32 0.0, %v2771
  %v2773 = vpop.f32.mrb[0].mxu0
  %2774 = vmatprep.mubr.f32.mxu0 0.0
  %2775 = vmatmul.mubr.f32.gmra.mrb[0].mxu0 %v2677
  %v2776 = vpop.f32.mrb[0].mxu0
  %v2777 = vadd.f32 0.0, %v2776
  %v2778 = vpop.f32.mrb[0].mxu0
  %2779 = vmatprep.mubr.f32.mxu0 0.0
  %2780 = vmatmul.mubr.f32.gmra.mrb[0].mxu0 %v2680
  %v2781 = vpop.f32.mrb[0].mxu0
  %v2782 = vadd.f32 0.0, %v2781
  %v2783 = vpop.f32.mrb[0].mxu0
  %2784 = vmatprep.mubr.f32.mxu0 0.0
  %2785 = vmatmul.mubr.f32.gmra.mrb[0].mxu0 %v2683
  %v2786 = vpop.f32.mrb[0].mxu0
  %v2787 = vadd.f32 0.0, %v2786
  %v2788 = vpop.f32.mrb[0].mxu0
  %2789 = vdwg.mxu0
  %2790 = vmatprep.subr.mxu0 0.0
  %2791 = vmatpush1.msra.mxu0 %v2620
  %2792 = vmatprep.subr.mxu0 0.0
  %2793 = vmatpush1.msra.mxu0 %v2621
  %2794 = vmatprep.subr.mxu0 0.0
  %2795 = vmatpush1.msra.mxu0 0.0
  %2796 = vmatprep.subr.mxu0 0.0
  %2797 = vmatpush1.msra.mxu0 0.0
  %2798 = vmatprep.subr.mxu0 0.0
  %2799 = vmatpush1.msra.mxu0 0.0
  %2800 = vmatprep.subr.mxu0 0.0
  %2801 = vmatpush1.msra.mxu0 0.0
  %2802 = vmatprep.subr.mxu0 0.0
  %2803 = vmatpush1.msra.mxu0 0.0
  %2804 = vmatprep.subr.mxu0 0.0
  %2805 = vmatpush1.msra.mxu0 0.0
  %2806 = vmatprep.subr.mxu0 0.0
  %2807 = vmatpush1.msra.mxu0 0.0
  %2808 = vmatprep.subr.mxu0 0.0
  %2809 = vmatpush1.msra.mxu0 0.0
  %2810 = vmatprep.subr.mxu0 0.0
  %2811 = vmatpush1.msra.mxu0 0.0
  %2812 = vmatprep.subr.mxu0 0.0
  %2813 = vmatpush1.msra.mxu0 0.0
  %2814 = vmatprep.subr.mxu0 0.0
  %2815 = vmatpush1.msra.mxu0 0.0
  %2816 = vmatprep.subr.mxu0 0.0
  %2817 = vmatpush1.msra.mxu0 0.0
  %2818 = vmatprep.subr.mxu0 0.0
  %2819 = vmatpush1.msra.mxu0 0.0
  %2820 = vmatprep.subr.mxu0 0.0
  %2821 = vmatpush1.msra.mxu0 0.0
  %2822 = vmatprep.subr.mxu0 0.0
  %2823 = vmatpush1.msra.mxu0 0.0
  %2824 = vmatprep.subr.mxu0 0.0
  %2825 = vmatpush1.msra.mxu0 0.0
  %2826 = vmatprep.subr.mxu0 0.0
  %2827 = vmatpush1.msra.mxu0 0.0
  %2828 = vmatprep.subr.mxu0 0.0
  %2829 = vmatpush1.msra.mxu0 0.0
  %2830 = vmatprep.subr.mxu0 0.0
  %2831 = vmatpush1.msra.mxu0 0.0
  %2832 = vmatprep.subr.mxu0 0.0
  %2833 = vmatpush1.msra.mxu0 0.0
  %2834 = vmatprep.subr.mxu0 0.0
  %2835 = vmatpush1.msra.mxu0 0.0
  %2836 = vmatprep.subr.mxu0 0.0
  %2837 = vmatpush1.msra.mxu0 0.0
  %2838 = vmatprep.subr.mxu0 0.0
  %2839 = vmatpush1.msra.mxu0 0.0
  %2840 = vmatprep.subr.mxu0 0.0
  %2841 = vmatpush1.msra.mxu0 0.0
  %2842 = vmatprep.subr.mxu0 0.0
  %2843 = vmatpush1.msra.mxu0 0.0
  %2844 = vmatprep.subr.mxu0 0.0
  %2845 = vmatpush1.msra.mxu0 0.0
  %2846 = vmatprep.subr.mxu0 0.0
  %2847 = vmatpush1.msra.mxu0 0.0
  %2848 = vmatprep.subr.mxu0 0.0
  %2849 = vmatpush1.msra.mxu0 0.0
  %2850 = vmatprep.subr.mxu0 0.0
  %2851 = vmatpush1.msra.mxu0 0.0
  %2852 = vmatprep.subr.mxu0 0.0
  %2853 = vmatpush1.msra.mxu0 0.0
  %2854 = vmatprep.mubr.f32.mxu0 0.0
  %2855 = vmatmul.mubr.f32.gmra.mrb[0].mxu0 %v2662
  %v2856 = vpop.f32.mrb[0].mxu0
  %v2857 = vadd.f32 0.0, %v2856
  %v2858 = vpop.f32.mrb[0].mxu0
  %2859 = vmatprep.mubr.f32.mxu0 0.0
  %2860 = vmatmul.mubr.f32.gmra.mrb[0].mxu0 %v2665
  %v2861 = vpop.f32.mrb[0].mxu0
  %v2862 = vadd.f32 0.0, %v2861
  %v2863 = vpop.f32.mrb[0].mxu0
  %2864 = vmatprep.mubr.f32.mxu0 0.0
  %2865 = vmatmul.mubr.f32.gmra.mrb[0].mxu0 %v2668
  %v2866 = vpop.f32.mrb[0].mxu0
  %v2867 = vadd.f32 0.0, %v2866
  %v2868 = vpop.f32.mrb[0].mxu0
  %2869 = vmatprep.mubr.f32.mxu0 0.0
  %2870 = vmatmul.mubr.f32.gmra.mrb[0].mxu0 %v2671
  %v2871 = vpop.f32.mrb[0].mxu0
  %v2872 = vadd.f32 0.0, %v2871
  %v2873 = vpop.f32.mrb[0].mxu0
  %2874 = vmatprep.mubr.f32.mxu0 0.0
  %2875 = vmatmul.mubr.f32.gmra.mrb[0].mxu0 %v2674
  %v2876 = vpop.f32.mrb[0].mxu0
  %v2877 = vadd.f32 0.0, %v2876
  %v2878 = vpop.f32.mrb[0].mxu0
  %2879 = vmatprep.mubr.f32.mxu0 0.0
  %2880 = vmatmul.mubr.f32.gmra.mrb[0].mxu0 %v2677
  %v2881 = vpop.f32.mrb[0].mxu0
  %v2882 = vadd.f32 0.0, %v2881
  %v2883 = vpop.f32.mrb[0].mxu0
  %2884 = vmatprep.mubr.f32.mxu0 0.0
  %2885 = vmatmul.mubr.f32.gmra.mrb[0].mxu0 %v2680
  %v2886 = vpop.f32.mrb[0].mxu0
  %v2887 = vadd.f32 0.0, %v2886
  %v2888 = vpop.f32.mrb[0].mxu0
  %2889 = vmatprep.mubr.f32.mxu0 0.0
  %2890 = vmatmul.mubr.f32.gmra.mrb[0].mxu0 %v2683
  %v2891 = vpop.f32.mrb[0].mxu0
  %v2892 = vadd.f32 0.0, %v2891
  %v2893 = vpop.f32.mrb[0].mxu0
  %2894 = vdwg.mxu0
  %v2896 = vsel %vm467, %v2570, 0
  %v2899 = vsel %vm467, %v2571, 0
  %v2902 = vsel %vm467, %v2572, 0
  %v2905 = vsel %vm467, %v2573, 0
  %v2908 = vsel %vm467, %v2574, 0
  %v2911 = vsel %vm467, %v2575, 0
  %v2914 = vsel %vm467, %v2576, 0
  %v2917 = vsel %vm467, %v2577, 0
  %v2920 = vsel %vm467, %v2578, 0
  %v2923 = vsel %vm467, %v2579, 0
  %v2926 = vsel %vm467, %v2580, 0
  %v2929 = vsel %vm467, %v2581, 0
  %v2932 = vsel %vm467, %v2582, 0
  %v2935 = vsel %vm467, %v2583, 0
  %v2938 = vsel %vm467, %v2584, 0
  %v2941 = vsel %vm467, %v2585, 0
  %2943 = vmatprep.subr.mxu0 0.0
  %2944 = vmatpush1.msra.mxu0 %v2857
  %2945 = vmatprep.subr.mxu0 0.0
  %2946 = vmatpush1.msra.mxu0 %v2862
  %2947 = vmatprep.subr.mxu0 0.0
  %2948 = vmatpush1.msra.mxu0 %v2867
  %2949 = vmatprep.subr.mxu0 0.0
  %2950 = vmatpush1.msra.mxu0 %v2872
  %2951 = vmatprep.subr.mxu0 0.0
  %2952 = vmatpush1.msra.mxu0 %v2877
  %2953 = vmatprep.subr.mxu0 0.0
  %2954 = vmatpush1.msra.mxu0 %v2882
  %2955 = vmatprep.subr.mxu0 0.0
  %2956 = vmatpush1.msra.mxu0 %v2887
  %2957 = vmatprep.subr.mxu0 0.0
  %2958 = vmatpush1.msra.mxu0 %v2892
  %2959 = vmatprep.subr.mxu0 0.0
  %2960 = vmatpush1.msra.mxu0 0.0
  %2961 = vmatprep.subr.mxu0 0.0
  %2962 = vmatpush1.msra.mxu0 0.0
  %2963 = vmatprep.subr.mxu0 0.0
  %2964 = vmatpush1.msra.mxu0 0.0
  %2965 = vmatprep.subr.mxu0 0.0
  %2966 = vmatpush1.msra.mxu0 0.0
  %2967 = vmatprep.subr.mxu0 0.0
  %2968 = vmatpush1.msra.mxu0 0.0
  %2969 = vmatprep.subr.mxu0 0.0
  %2970 = vmatpush1.msra.mxu0 0.0
  %2971 = vmatprep.subr.mxu0 0.0
  %2972 = vmatpush1.msra.mxu0 0.0
  %2973 = vmatprep.subr.mxu0 0.0
  %2974 = vmatpush1.msra.mxu0 0.0
  %2975 = vmatprep.subr.mxu0 0.0
  %2976 = vmatpush1.msra.mxu0 0.0
  %2977 = vmatprep.subr.mxu0 0.0
  %2978 = vmatpush1.msra.mxu0 0.0
  %2979 = vmatprep.subr.mxu0 0.0
  %2980 = vmatpush1.msra.mxu0 0.0
  %2981 = vmatprep.subr.mxu0 0.0
  %2982 = vmatpush1.msra.mxu0 0.0
  %2983 = vmatprep.subr.mxu0 0.0
  %2984 = vmatpush1.msra.mxu0 0.0
  %2985 = vmatprep.subr.mxu0 0.0
  %2986 = vmatpush1.msra.mxu0 0.0
  %2987 = vmatprep.subr.mxu0 0.0
  %2988 = vmatpush1.msra.mxu0 0.0
  %2989 = vmatprep.subr.mxu0 0.0
  %2990 = vmatpush1.msra.mxu0 0.0
  %2991 = vmatprep.subr.mxu0 0.0
  %2992 = vmatpush1.msra.mxu0 0.0
  %2993 = vmatprep.subr.mxu0 0.0
  %2994 = vmatpush1.msra.mxu0 0.0
  %2995 = vmatprep.subr.mxu0 0.0
  %2996 = vmatpush1.msra.mxu0 0.0
  %2997 = vmatprep.subr.mxu0 0.0
  %2998 = vmatpush1.msra.mxu0 0.0
  %2999 = vmatprep.subr.mxu0 0.0
  %3000 = vmatpush1.msra.mxu0 0.0
  %3001 = vmatprep.subr.mxu0 0.0
  %3002 = vmatpush1.msra.mxu0 0.0
  %3003 = vmatprep.subr.mxu0 0.0
  %3004 = vmatpush1.msra.mxu0 0.0
  %3005 = vmatprep.subr.mxu0 0.0
  %3006 = vmatpush1.msra.mxu0 0.0
  %3007 = vmatprep.mubr.f32.mxu0 0.0
  %3008 = vmatmul.mubr.f32.gmra.mrb[0].mxu0 %v2896
  %v3009 = vpop.f32.mrb[0].mxu0
  %v3010 = vadd.f32 0.0, %v3009
  %v3011 = vpop.f32.mrb[0].mxu0
  %3012 = vmatprep.mubr.f32.mxu0 0.0
  %3013 = vmatmul.mubr.f32.gmra.mrb[0].mxu0 %v2899
  %v3014 = vpop.f32.mrb[0].mxu0
  %v3015 = vadd.f32 0.0, %v3014
  %v3016 = vpop.f32.mrb[0].mxu0
  %3017 = vmatprep.mubr.f32.mxu0 0.0
  %3018 = vmatmul.mubr.f32.gmra.mrb[0].mxu0 %v2902
  %v3019 = vpop.f32.mrb[0].mxu0
  %v3020 = vadd.f32 0.0, %v3019
  %v3021 = vpop.f32.mrb[0].mxu0
  %3022 = vmatprep.mubr.f32.mxu0 0.0
  %3023 = vmatmul.mubr.f32.gmra.mrb[0].mxu0 %v2905
  %v3024 = vpop.f32.mrb[0].mxu0
  %v3025 = vadd.f32 0.0, %v3024
  %v3026 = vpop.f32.mrb[0].mxu0
  %3027 = vmatprep.mubr.f32.mxu0 0.0
  %3028 = vmatmul.mubr.f32.gmra.mrb[0].mxu0 %v2908
  %v3029 = vpop.f32.mrb[0].mxu0
  %v3030 = vadd.f32 0.0, %v3029
  %v3031 = vpop.f32.mrb[0].mxu0
  %3032 = vmatprep.mubr.f32.mxu0 0.0
  %3033 = vmatmul.mubr.f32.gmra.mrb[0].mxu0 %v2911
  %v3034 = vpop.f32.mrb[0].mxu0
  %v3035 = vadd.f32 0.0, %v3034
  %v3036 = vpop.f32.mrb[0].mxu0
  %3037 = vmatprep.mubr.f32.mxu0 0.0
  %3038 = vmatmul.mubr.f32.gmra.mrb[0].mxu0 %v2914
  %v3039 = vpop.f32.mrb[0].mxu0
  %v3040 = vadd.f32 0.0, %v3039
  %v3041 = vpop.f32.mrb[0].mxu0
  %3042 = vmatprep.mubr.f32.mxu0 0.0
  %3043 = vmatmul.mubr.f32.gmra.mrb[0].mxu0 %v2917
  %v3044 = vpop.f32.mrb[0].mxu0
  %v3045 = vadd.f32 0.0, %v3044
  %v3046 = vpop.f32.mrb[0].mxu0
  %3047 = vmatprep.mubr.f32.mxu0 0.0
  %3048 = vmatmul.mubr.f32.gmra.mrb[0].mxu0 %v2920
  %v3049 = vpop.f32.mrb[0].mxu0
  %v3050 = vadd.f32 0.0, %v3049
  %v3051 = vpop.f32.mrb[0].mxu0
  %3052 = vmatprep.mubr.f32.mxu0 0.0
  %3053 = vmatmul.mubr.f32.gmra.mrb[0].mxu0 %v2923
  %v3054 = vpop.f32.mrb[0].mxu0
  %v3055 = vadd.f32 0.0, %v3054
  %v3056 = vpop.f32.mrb[0].mxu0
  %3057 = vmatprep.mubr.f32.mxu0 0.0
  %3058 = vmatmul.mubr.f32.gmra.mrb[0].mxu0 %v2926
  %v3059 = vpop.f32.mrb[0].mxu0
  %v3060 = vadd.f32 0.0, %v3059
  %v3061 = vpop.f32.mrb[0].mxu0
  %3062 = vmatprep.mubr.f32.mxu0 0.0
  %3063 = vmatmul.mubr.f32.gmra.mrb[0].mxu0 %v2929
  %v3064 = vpop.f32.mrb[0].mxu0
  %v3065 = vadd.f32 0.0, %v3064
  %v3066 = vpop.f32.mrb[0].mxu0
  %3067 = vmatprep.mubr.f32.mxu0 0.0
  %3068 = vmatmul.mubr.f32.gmra.mrb[0].mxu0 %v2932
  %v3069 = vpop.f32.mrb[0].mxu0
  %v3070 = vadd.f32 0.0, %v3069
  %v3071 = vpop.f32.mrb[0].mxu0
  %3072 = vmatprep.mubr.f32.mxu0 0.0
  %3073 = vmatmul.mubr.f32.gmra.mrb[0].mxu0 %v2935
  %v3074 = vpop.f32.mrb[0].mxu0
  %v3075 = vadd.f32 0.0, %v3074
  %v3076 = vpop.f32.mrb[0].mxu0
  %3077 = vmatprep.mubr.f32.mxu0 0.0
  %3078 = vmatmul.mubr.f32.gmra.mrb[0].mxu0 %v2938
  %v3079 = vpop.f32.mrb[0].mxu0
  %v3080 = vadd.f32 0.0, %v3079
  %v3081 = vpop.f32.mrb[0].mxu0
  %3082 = vmatprep.mubr.f32.mxu0 0.0
  %3083 = vmatmul.mubr.f32.gmra.mrb[0].mxu0 %v2941
  %v3084 = vpop.f32.mrb[0].mxu0
  %v3085 = vadd.f32 0.0, %v3084
  %v3086 = vpop.f32.mrb[0].mxu0
  %3087 = vdwg.mxu0
  %v3089 = vsel %vm467, %v2554, 0
  %v3092 = vsel %vm467, %v2555, 0
  %v3095 = vsel %vm467, %v2556, 0
  %v3098 = vsel %vm467, %v2557, 0
  %v3101 = vsel %vm467, %v2558, 0
  %v3104 = vsel %vm467, %v2559, 0
  %v3107 = vsel %vm467, %v2560, 0
  %v3110 = vsel %vm467, %v2561, 0
  %v3113 = vsel %vm467, %v2562, 0
  %v3116 = vsel %vm467, %v2563, 0
  %v3119 = vsel %vm467, %v2564, 0
  %v3122 = vsel %vm467, %v2565, 0
  %v3125 = vsel %vm467, %v2566, 0
  %v3128 = vsel %vm467, %v2567, 0
  %v3131 = vsel %vm467, %v2568, 0
  %v3134 = vsel %vm467, %v2569, 0
  %3136 = vmatprep.subr.mxu0 0.0
  %3137 = vmatpush1.msra.mxu0 %v2752
  %3138 = vmatprep.subr.mxu0 0.0
  %3139 = vmatpush1.msra.mxu0 %v2757
  %3140 = vmatprep.subr.mxu0 0.0
  %3141 = vmatpush1.msra.mxu0 %v2762
  %3142 = vmatprep.subr.mxu0 0.0
  %3143 = vmatpush1.msra.mxu0 %v2767
  %3144 = vmatprep.subr.mxu0 0.0
  %3145 = vmatpush1.msra.mxu0 %v2772
  %3146 = vmatprep.subr.mxu0 0.0
  %3147 = vmatpush1.msra.mxu0 %v2777
  %3148 = vmatprep.subr.mxu0 0.0
  %3149 = vmatpush1.msra.mxu0 %v2782
  %3150 = vmatprep.subr.mxu0 0.0
  %3151 = vmatpush1.msra.mxu0 %v2787
  %3152 = vmatprep.subr.mxu0 0.0
  %3153 = vmatpush1.msra.mxu0 0.0
  %3154 = vmatprep.subr.mxu0 0.0
  %3155 = vmatpush1.msra.mxu0 0.0
  %3156 = vmatprep.subr.mxu0 0.0
  %3157 = vmatpush1.msra.mxu0 0.0
  %3158 = vmatprep.subr.mxu0 0.0
  %3159 = vmatpush1.msra.mxu0 0.0
  %3160 = vmatprep.subr.mxu0 0.0
  %3161 = vmatpush1.msra.mxu0 0.0
  %3162 = vmatprep.subr.mxu0 0.0
  %3163 = vmatpush1.msra.mxu0 0.0
  %3164 = vmatprep.subr.mxu0 0.0
  %3165 = vmatpush1.msra.mxu0 0.0
  %3166 = vmatprep.subr.mxu0 0.0
  %3167 = vmatpush1.msra.mxu0 0.0
  %3168 = vmatprep.subr.mxu0 0.0
  %3169 = vmatpush1.msra.mxu0 0.0
  %3170 = vmatprep.subr.mxu0 0.0
  %3171 = vmatpush1.msra.mxu0 0.0
  %3172 = vmatprep.subr.mxu0 0.0
  %3173 = vmatpush1.msra.mxu0 0.0
  %3174 = vmatprep.subr.mxu0 0.0
  %3175 = vmatpush1.msra.mxu0 0.0
  %3176 = vmatprep.subr.mxu0 0.0
  %3177 = vmatpush1.msra.mxu0 0.0
  %3178 = vmatprep.subr.mxu0 0.0
  %3179 = vmatpush1.msra.mxu0 0.0
  %3180 = vmatprep.subr.mxu0 0.0
  %3181 = vmatpush1.msra.mxu0 0.0
  %3182 = vmatprep.subr.mxu0 0.0
  %3183 = vmatpush1.msra.mxu0 0.0
  %3184 = vmatprep.subr.mxu0 0.0
  %3185 = vmatpush1.msra.mxu0 0.0
  %3186 = vmatprep.subr.mxu0 0.0
  %3187 = vmatpush1.msra.mxu0 0.0
  %3188 = vmatprep.subr.mxu0 0.0
  %3189 = vmatpush1.msra.mxu0 0.0
  %3190 = vmatprep.subr.mxu0 0.0
  %3191 = vmatpush1.msra.mxu0 0.0
  %3192 = vmatprep.subr.mxu0 0.0
  %3193 = vmatpush1.msra.mxu0 0.0
  %3194 = vmatprep.subr.mxu0 0.0
  %3195 = vmatpush1.msra.mxu0 0.0
  %3196 = vmatprep.subr.mxu0 0.0
  %3197 = vmatpush1.msra.mxu0 0.0
  %3198 = vmatprep.subr.mxu0 0.0
  %3199 = vmatpush1.msra.mxu0 0.0
  %3200 = vmatprep.mubr.f32.mxu0 0.0
  %3201 = vmatmul.mubr.f32.gmra.mrb[0].mxu0 %v3089
  %v3202 = vpop.f32.mrb[0].mxu0
  %v3203 = vadd.f32 %v3010, %v3202
  %v3204 = vpop.f32.mrb[0].mxu0
  %3205 = vmatprep.mubr.f32.mxu0 0.0
  %3206 = vmatmul.mubr.f32.gmra.mrb[0].mxu0 %v3092
  %v3207 = vpop.f32.mrb[0].mxu0
  %v3208 = vadd.f32 %v3015, %v3207
  %v3209 = vpop.f32.mrb[0].mxu0
  %3210 = vmatprep.mubr.f32.mxu0 0.0
  %3211 = vmatmul.mubr.f32.gmra.mrb[0].mxu0 %v3095
  %v3212 = vpop.f32.mrb[0].mxu0
  %v3213 = vadd.f32 %v3020, %v3212
  %v3214 = vpop.f32.mrb[0].mxu0
  %3215 = vmatprep.mubr.f32.mxu0 0.0
  %3216 = vmatmul.mubr.f32.gmra.mrb[0].mxu0 %v3098
  %v3217 = vpop.f32.mrb[0].mxu0
  %v3218 = vadd.f32 %v3025, %v3217
  %v3219 = vpop.f32.mrb[0].mxu0
  %3220 = vmatprep.mubr.f32.mxu0 0.0
  %3221 = vmatmul.mubr.f32.gmra.mrb[0].mxu0 %v3101
  %v3222 = vpop.f32.mrb[0].mxu0
  %v3223 = vadd.f32 %v3030, %v3222
  %v3224 = vpop.f32.mrb[0].mxu0
  %3225 = vmatprep.mubr.f32.mxu0 0.0
  %3226 = vmatmul.mubr.f32.gmra.mrb[0].mxu0 %v3104
  %v3227 = vpop.f32.mrb[0].mxu0
  %v3228 = vadd.f32 %v3035, %v3227
  %v3229 = vpop.f32.mrb[0].mxu0
  %3230 = vmatprep.mubr.f32.mxu0 0.0
  %3231 = vmatmul.mubr.f32.gmra.mrb[0].mxu0 %v3107
  %v3232 = vpop.f32.mrb[0].mxu0
  %v3233 = vadd.f32 %v3040, %v3232
  %v3234 = vpop.f32.mrb[0].mxu0
  %3235 = vmatprep.mubr.f32.mxu0 0.0
  %3236 = vmatmul.mubr.f32.gmra.mrb[0].mxu0 %v3110
  %v3237 = vpop.f32.mrb[0].mxu0
  %v3238 = vadd.f32 %v3045, %v3237
  %v3239 = vpop.f32.mrb[0].mxu0
  %3240 = vmatprep.mubr.f32.mxu0 0.0
  %3241 = vmatmul.mubr.f32.gmra.mrb[0].mxu0 %v3113
  %v3242 = vpop.f32.mrb[0].mxu0
  %v3243 = vadd.f32 %v3050, %v3242
  %v3244 = vpop.f32.mrb[0].mxu0
  %3245 = vmatprep.mubr.f32.mxu0 0.0
  %3246 = vmatmul.mubr.f32.gmra.mrb[0].mxu0 %v3116
  %v3247 = vpop.f32.mrb[0].mxu0
  %v3248 = vadd.f32 %v3055, %v3247
  %v3249 = vpop.f32.mrb[0].mxu0
  %3250 = vmatprep.mubr.f32.mxu0 0.0
  %3251 = vmatmul.mubr.f32.gmra.mrb[0].mxu0 %v3119
  %v3252 = vpop.f32.mrb[0].mxu0
  %v3253 = vadd.f32 %v3060, %v3252
  %v3254 = vpop.f32.mrb[0].mxu0
  %3255 = vmatprep.mubr.f32.mxu0 0.0
  %3256 = vmatmul.mubr.f32.gmra.mrb[0].mxu0 %v3122
  %v3257 = vpop.f32.mrb[0].mxu0
  %v3258 = vadd.f32 %v3065, %v3257
  %v3259 = vpop.f32.mrb[0].mxu0
  %3260 = vmatprep.mubr.f32.mxu0 0.0
  %3261 = vmatmul.mubr.f32.gmra.mrb[0].mxu0 %v3125
  %v3262 = vpop.f32.mrb[0].mxu0
  %v3263 = vadd.f32 %v3070, %v3262
  %v3264 = vpop.f32.mrb[0].mxu0
  %3265 = vmatprep.mubr.f32.mxu0 0.0
  %3266 = vmatmul.mubr.f32.gmra.mrb[0].mxu0 %v3128
  %v3267 = vpop.f32.mrb[0].mxu0
  %v3268 = vadd.f32 %v3075, %v3267
  %v3269 = vpop.f32.mrb[0].mxu0
  %3270 = vmatprep.mubr.f32.mxu0 0.0
  %3271 = vmatmul.mubr.f32.gmra.mrb[0].mxu0 %v3131
  %v3272 = vpop.f32.mrb[0].mxu0
  %v3273 = vadd.f32 %v3080, %v3272
  %v3274 = vpop.f32.mrb[0].mxu0
  %3275 = vmatprep.mubr.f32.mxu0 0.0
  %3276 = vmatmul.mubr.f32.gmra.mrb[0].mxu0 %v3134
  %v3277 = vpop.f32.mrb[0].mxu0
  %v3278 = vadd.f32 %v3085, %v3277
  %v3279 = vpop.f32.mrb[0].mxu0
  %3280 = vdwg.mxu0
  %3281 = vmatprep.subr.mxu0 0.0
  %3282 = vmatpush1.msra.mxu0 %v2622
  %3283 = vmatprep.subr.mxu0 0.0
  %3284 = vmatpush1.msra.mxu0 %v2623
  %3285 = vmatprep.subr.mxu0 0.0
  %3286 = vmatpush1.msra.mxu0 0.0
  %3287 = vmatprep.subr.mxu0 0.0
  %3288 = vmatpush1.msra.mxu0 0.0
  %3289 = vmatprep.subr.mxu0 0.0
  %3290 = vmatpush1.msra.mxu0 0.0
  %3291 = vmatprep.subr.mxu0 0.0
  %3292 = vmatpush1.msra.mxu0 0.0
  %3293 = vmatprep.subr.mxu0 0.0
  %3294 = vmatpush1.msra.mxu0 0.0
  %3295 = vmatprep.subr.mxu0 0.0
  %3296 = vmatpush1.msra.mxu0 0.0
  %3297 = vmatprep.subr.mxu0 0.0
  %3298 = vmatpush1.msra.mxu0 0.0
  %3299 = vmatprep.subr.mxu0 0.0
  %3300 = vmatpush1.msra.mxu0 0.0
  %3301 = vmatprep.subr.mxu0 0.0
  %3302 = vmatpush1.msra.mxu0 0.0
  %3303 = vmatprep.subr.mxu0 0.0
  %3304 = vmatpush1.msra.mxu0 0.0
  %3305 = vmatprep.subr.mxu0 0.0
  %3306 = vmatpush1.msra.mxu0 0.0
  %3307 = vmatprep.subr.mxu0 0.0
  %3308 = vmatpush1.msra.mxu0 0.0
  %3309 = vmatprep.subr.mxu0 0.0
  %3310 = vmatpush1.msra.mxu0 0.0
  %3311 = vmatprep.subr.mxu0 0.0
  %3312 = vmatpush1.msra.mxu0 0.0
  %3313 = vmatprep.subr.mxu0 0.0
  %3314 = vmatpush1.msra.mxu0 0.0
  %3315 = vmatprep.subr.mxu0 0.0
  %3316 = vmatpush1.msra.mxu0 0.0
  %3317 = vmatprep.subr.mxu0 0.0
  %3318 = vmatpush1.msra.mxu0 0.0
  %3319 = vmatprep.subr.mxu0 0.0
  %3320 = vmatpush1.msra.mxu0 0.0
  %3321 = vmatprep.subr.mxu0 0.0
  %3322 = vmatpush1.msra.mxu0 0.0
  %3323 = vmatprep.subr.mxu0 0.0
  %3324 = vmatpush1.msra.mxu0 0.0
  %3325 = vmatprep.subr.mxu0 0.0
  %3326 = vmatpush1.msra.mxu0 0.0
  %3327 = vmatprep.subr.mxu0 0.0
  %3328 = vmatpush1.msra.mxu0 0.0
  %3329 = vmatprep.subr.mxu0 0.0
  %3330 = vmatpush1.msra.mxu0 0.0
  %3331 = vmatprep.subr.mxu0 0.0
  %3332 = vmatpush1.msra.mxu0 0.0
  %3333 = vmatprep.subr.mxu0 0.0
  %3334 = vmatpush1.msra.mxu0 0.0
  %3335 = vmatprep.subr.mxu0 0.0
  %3336 = vmatpush1.msra.mxu0 0.0
  %3337 = vmatprep.subr.mxu0 0.0
  %3338 = vmatpush1.msra.mxu0 0.0
  %3339 = vmatprep.subr.mxu0 0.0
  %3340 = vmatpush1.msra.mxu0 0.0
  %3341 = vmatprep.subr.mxu0 0.0
  %3342 = vmatpush1.msra.mxu0 0.0
  %3343 = vmatprep.subr.mxu0 0.0
  %3344 = vmatpush1.msra.mxu0 0.0
  %3345 = vmatprep.mubr.f32.mxu0 0.0
  %3346 = vmatmul.mubr.f32.gmra.mrb[0].mxu0 %v2662
  %v3347 = vpop.f32.mrb[0].mxu0
  %v3348 = vadd.f32 0.0, %v3347
  %v3349 = vpop.f32.mrb[0].mxu0
  %3350 = vmatprep.mubr.f32.mxu0 0.0
  %3351 = vmatmul.mubr.f32.gmra.mrb[0].mxu0 %v2665
  %v3352 = vpop.f32.mrb[0].mxu0
  %v3353 = vadd.f32 0.0, %v3352
  %v3354 = vpop.f32.mrb[0].mxu0
  %3355 = vmatprep.mubr.f32.mxu0 0.0
  %3356 = vmatmul.mubr.f32.gmra.mrb[0].mxu0 %v2668
  %v3357 = vpop.f32.mrb[0].mxu0
  %v3358 = vadd.f32 0.0, %v3357
  %v3359 = vpop.f32.mrb[0].mxu0
  %3360 = vmatprep.mubr.f32.mxu0 0.0
  %3361 = vmatmul.mubr.f32.gmra.mrb[0].mxu0 %v2671
  %v3362 = vpop.f32.mrb[0].mxu0
  %v3363 = vadd.f32 0.0, %v3362
  %v3364 = vpop.f32.mrb[0].mxu0
  %3365 = vmatprep.mubr.f32.mxu0 0.0
  %3366 = vmatmul.mubr.f32.gmra.mrb[0].mxu0 %v2674
  %v3367 = vpop.f32.mrb[0].mxu0
  %v3368 = vadd.f32 0.0, %v3367
  %v3369 = vpop.f32.mrb[0].mxu0
  %3370 = vmatprep.mubr.f32.mxu0 0.0
  %3371 = vmatmul.mubr.f32.gmra.mrb[0].mxu0 %v2677
  %v3372 = vpop.f32.mrb[0].mxu0
  %v3373 = vadd.f32 0.0, %v3372
  %v3374 = vpop.f32.mrb[0].mxu0
  %3375 = vmatprep.mubr.f32.mxu0 0.0
  %3376 = vmatmul.mubr.f32.gmra.mrb[0].mxu0 %v2680
  %v3377 = vpop.f32.mrb[0].mxu0
  %v3378 = vadd.f32 0.0, %v3377
  %v3379 = vpop.f32.mrb[0].mxu0
  %3380 = vmatprep.mubr.f32.mxu0 0.0
  %3381 = vmatmul.mubr.f32.gmra.mrb[0].mxu0 %v2683
  %v3382 = vpop.f32.mrb[0].mxu0
  %v3383 = vadd.f32 0.0, %v3382
  %v3384 = vpop.f32.mrb[0].mxu0
  %3385 = vdwg.mxu0
  %v3387 = vsel %vm467, %v2586, 0
  %v3390 = vsel %vm467, %v2587, 0
  %v3393 = vsel %vm467, %v2588, 0
  %v3396 = vsel %vm467, %v2589, 0
  %v3399 = vsel %vm467, %v2590, 0
  %v3402 = vsel %vm467, %v2591, 0
  %v3405 = vsel %vm467, %v2592, 0
  %v3408 = vsel %vm467, %v2593, 0
  %v3411 = vsel %vm467, %v2594, 0
  %v3414 = vsel %vm467, %v2595, 0
  %v3417 = vsel %vm467, %v2596, 0
  %v3420 = vsel %vm467, %v2597, 0
  %v3423 = vsel %vm467, %v2598, 0
  %v3426 = vsel %vm467, %v2599, 0
  %v3429 = vsel %vm467, %v2600, 0
  %v3432 = vsel %vm467, %v2601, 0
  %3434 = vmatprep.subr.mxu0 0.0
  %3435 = vmatpush1.msra.mxu0 %v3348
  %3436 = vmatprep.subr.mxu0 0.0
  %3437 = vmatpush1.msra.mxu0 %v3353
  %3438 = vmatprep.subr.mxu0 0.0
  %3439 = vmatpush1.msra.mxu0 %v3358
  %3440 = vmatprep.subr.mxu0 0.0
  %3441 = vmatpush1.msra.mxu0 %v3363
  %3442 = vmatprep.subr.mxu0 0.0
  %3443 = vmatpush1.msra.mxu0 %v3368
  %3444 = vmatprep.subr.mxu0 0.0
  %3445 = vmatpush1.msra.mxu0 %v3373
  %3446 = vmatprep.subr.mxu0 0.0
  %3447 = vmatpush1.msra.mxu0 %v3378
  %3448 = vmatprep.subr.mxu0 0.0
  %3449 = vmatpush1.msra.mxu0 %v3383
  %3450 = vmatprep.subr.mxu0 0.0
  %3451 = vmatpush1.msra.mxu0 0.0
  %3452 = vmatprep.subr.mxu0 0.0
  %3453 = vmatpush1.msra.mxu0 0.0
  %3454 = vmatprep.subr.mxu0 0.0
  %3455 = vmatpush1.msra.mxu0 0.0
  %3456 = vmatprep.subr.mxu0 0.0
  %3457 = vmatpush1.msra.mxu0 0.0
  %3458 = vmatprep.subr.mxu0 0.0
  %3459 = vmatpush1.msra.mxu0 0.0
  %3460 = vmatprep.subr.mxu0 0.0
  %3461 = vmatpush1.msra.mxu0 0.0
  %3462 = vmatprep.subr.mxu0 0.0
  %3463 = vmatpush1.msra.mxu0 0.0
  %3464 = vmatprep.subr.mxu0 0.0
  %3465 = vmatpush1.msra.mxu0 0.0
  %3466 = vmatprep.subr.mxu0 0.0
  %3467 = vmatpush1.msra.mxu0 0.0
  %3468 = vmatprep.subr.mxu0 0.0
  %3469 = vmatpush1.msra.mxu0 0.0
  %3470 = vmatprep.subr.mxu0 0.0
  %3471 = vmatpush1.msra.mxu0 0.0
  %3472 = vmatprep.subr.mxu0 0.0
  %3473 = vmatpush1.msra.mxu0 0.0
  %3474 = vmatprep.subr.mxu0 0.0
  %3475 = vmatpush1.msra.mxu0 0.0
  %3476 = vmatprep.subr.mxu0 0.0
  %3477 = vmatpush1.msra.mxu0 0.0
  %3478 = vmatprep.subr.mxu0 0.0
  %3479 = vmatpush1.msra.mxu0 0.0
  %3480 = vmatprep.subr.mxu0 0.0
  %3481 = vmatpush1.msra.mxu0 0.0
  %3482 = vmatprep.subr.mxu0 0.0
  %3483 = vmatpush1.msra.mxu0 0.0
  %3484 = vmatprep.subr.mxu0 0.0
  %3485 = vmatpush1.msra.mxu0 0.0
  %3486 = vmatprep.subr.mxu0 0.0
  %3487 = vmatpush1.msra.mxu0 0.0
  %3488 = vmatprep.subr.mxu0 0.0
  %3489 = vmatpush1.msra.mxu0 0.0
  %3490 = vmatprep.subr.mxu0 0.0
  %3491 = vmatpush1.msra.mxu0 0.0
  %3492 = vmatprep.subr.mxu0 0.0
  %3493 = vmatpush1.msra.mxu0 0.0
  %3494 = vmatprep.subr.mxu0 0.0
  %3495 = vmatpush1.msra.mxu0 0.0
  %3496 = vmatprep.subr.mxu0 0.0
  %3497 = vmatpush1.msra.mxu0 0.0
  %3498 = vmatprep.mubr.f32.mxu0 0.0
  %3499 = vmatmul.mubr.f32.gmra.mrb[0].mxu0 %v3387
  %v3500 = vpop.f32.mrb[0].mxu0
  %v3501 = vadd.f32 0.0, %v3500
  %v3502 = vpop.f32.mrb[0].mxu0
  %3503 = vmatprep.mubr.f32.mxu0 0.0
  %3504 = vmatmul.mubr.f32.gmra.mrb[0].mxu0 %v3390
  %v3505 = vpop.f32.mrb[0].mxu0
  %v3506 = vadd.f32 0.0, %v3505
  %v3507 = vpop.f32.mrb[0].mxu0
  %3508 = vmatprep.mubr.f32.mxu0 0.0
  %3509 = vmatmul.mubr.f32.gmra.mrb[0].mxu0 %v3393
  %v3510 = vpop.f32.mrb[0].mxu0
  %v3511 = vadd.f32 0.0, %v3510
  %v3512 = vpop.f32.mrb[0].mxu0
  %3513 = vmatprep.mubr.f32.mxu0 0.0
  %3514 = vmatmul.mubr.f32.gmra.mrb[0].mxu0 %v3396
  %v3515 = vpop.f32.mrb[0].mxu0
  %v3516 = vadd.f32 0.0, %v3515
  %v3517 = vpop.f32.mrb[0].mxu0
  %3518 = vmatprep.mubr.f32.mxu0 0.0
  %3519 = vmatmul.mubr.f32.gmra.mrb[0].mxu0 %v3399
  %v3520 = vpop.f32.mrb[0].mxu0
  %v3521 = vadd.f32 0.0, %v3520
  %v3522 = vpop.f32.mrb[0].mxu0
  %3523 = vmatprep.mubr.f32.mxu0 0.0
  %3524 = vmatmul.mubr.f32.gmra.mrb[0].mxu0 %v3402
  %v3525 = vpop.f32.mrb[0].mxu0
  %v3526 = vadd.f32 0.0, %v3525
  %v3527 = vpop.f32.mrb[0].mxu0
  %3528 = vmatprep.mubr.f32.mxu0 0.0
  %3529 = vmatmul.mubr.f32.gmra.mrb[0].mxu0 %v3405
  %v3530 = vpop.f32.mrb[0].mxu0
  %v3531 = vadd.f32 0.0, %v3530
  %v3532 = vpop.f32.mrb[0].mxu0
  %3533 = vmatprep.mubr.f32.mxu0 0.0
  %3534 = vmatmul.mubr.f32.gmra.mrb[0].mxu0 %v3408
  %v3535 = vpop.f32.mrb[0].mxu0
  %v3536 = vadd.f32 0.0, %v3535
  %v3537 = vpop.f32.mrb[0].mxu0
  %3538 = vmatprep.mubr.f32.mxu0 0.0
  %3539 = vmatmul.mubr.f32.gmra.mrb[0].mxu0 %v3411
  %v3540 = vpop.f32.mrb[0].mxu0
  %v3541 = vadd.f32 0.0, %v3540
  %v3542 = vpop.f32.mrb[0].mxu0
  %3543 = vmatprep.mubr.f32.mxu0 0.0
  %3544 = vmatmul.mubr.f32.gmra.mrb[0].mxu0 %v3414
  %v3545 = vpop.f32.mrb[0].mxu0
  %v3546 = vadd.f32 0.0, %v3545
  %v3547 = vpop.f32.mrb[0].mxu0
  %3548 = vmatprep.mubr.f32.mxu0 0.0
  %3549 = vmatmul.mubr.f32.gmra.mrb[0].mxu0 %v3417
  %v3550 = vpop.f32.mrb[0].mxu0
  %v3551 = vadd.f32 0.0, %v3550
  %v3552 = vpop.f32.mrb[0].mxu0
  %3553 = vmatprep.mubr.f32.mxu0 0.0
  %3554 = vmatmul.mubr.f32.gmra.mrb[0].mxu0 %v3420
  %v3555 = vpop.f32.mrb[0].mxu0
  %v3556 = vadd.f32 0.0, %v3555
  %v3557 = vpop.f32.mrb[0].mxu0
  %3558 = vmatprep.mubr.f32.mxu0 0.0
  %3559 = vmatmul.mubr.f32.gmra.mrb[0].mxu0 %v3423
  %v3560 = vpop.f32.mrb[0].mxu0
  %v3561 = vadd.f32 0.0, %v3560
  %v3562 = vpop.f32.mrb[0].mxu0
  %3563 = vmatprep.mubr.f32.mxu0 0.0
  %3564 = vmatmul.mubr.f32.gmra.mrb[0].mxu0 %v3426
  %v3565 = vpop.f32.mrb[0].mxu0
  %v3566 = vadd.f32 0.0, %v3565
  %v3567 = vpop.f32.mrb[0].mxu0
  %3568 = vmatprep.mubr.f32.mxu0 0.0
  %3569 = vmatmul.mubr.f32.gmra.mrb[0].mxu0 %v3429
  %v3570 = vpop.f32.mrb[0].mxu0
  %v3571 = vadd.f32 0.0, %v3570
  %v3572 = vpop.f32.mrb[0].mxu0
  %3573 = vmatprep.mubr.f32.mxu0 0.0
  %3574 = vmatmul.mubr.f32.gmra.mrb[0].mxu0 %v3432
  %v3575 = vpop.f32.mrb[0].mxu0
  %v3576 = vadd.f32 0.0, %v3575
  %v3577 = vpop.f32.mrb[0].mxu0
  %3578 = vdwg.mxu0
  %v3579 = vadd.f32 %v3203, %v3501
  %v3580 = vadd.f32 %v3208, %v3506
  %v3581 = vadd.f32 %v3213, %v3511
  %v3582 = vadd.f32 %v3218, %v3516
  %v3583 = vadd.f32 %v3223, %v3521
  %v3584 = vadd.f32 %v3228, %v3526
  %v3585 = vadd.f32 %v3233, %v3531
  %v3586 = vadd.f32 %v3238, %v3536
  %v3587 = vadd.f32 %v3243, %v3541
  %v3588 = vadd.f32 %v3248, %v3546
  %v3589 = vadd.f32 %v3253, %v3551
  %v3590 = vadd.f32 %v3258, %v3556
  %v3591 = vadd.f32 %v3263, %v3561
  %v3592 = vadd.f32 %v3268, %v3566
  %v3593 = vadd.f32 %v3273, %v3571
  %v3594 = vadd.f32 %v3278, %v3576
  %3596 = vset.pattern.permute.xlu0 0
  %3597 = vperm.xlu0 %3596, %v2602
  %v3598 = vpop.permute.xlu0 %3597
  %3601 = vset.pattern.permute.xlu0 0
  %3602 = vperm.xlu0 %3601, %v2603
  %v3603 = vpop.permute.xlu0 %3602
  %3606 = vset.pattern.permute.xlu0 0
  %3607 = vperm.xlu0 %3606, %v2604
  %v3608 = vpop.permute.xlu0 %3607
  %3611 = vset.pattern.permute.xlu0 0
  %3612 = vperm.xlu0 %3611, %v2605
  %v3613 = vpop.permute.xlu0 %3612
  %3616 = vset.pattern.permute.xlu0 0
  %3617 = vperm.xlu0 %3616, %v2606
  %v3618 = vpop.permute.xlu0 %3617
  %3621 = vset.pattern.permute.xlu0 0
  %3622 = vperm.xlu0 %3621, %v2607
  %v3623 = vpop.permute.xlu0 %3622
  %3626 = vset.pattern.permute.xlu0 0
  %3627 = vperm.xlu0 %3626, %v2608
  %v3628 = vpop.permute.xlu0 %3627
  %3631 = vset.pattern.permute.xlu0 0
  %3632 = vperm.xlu0 %3631, %v2609
  %v3633 = vpop.permute.xlu0 %3632
  %3636 = vset.pattern.permute.xlu0 0
  %3637 = vperm.xlu0 %3636, %v2610
  %v3638 = vpop.permute.xlu0 %3637
  %3641 = vset.pattern.permute.xlu0 0
  %3642 = vperm.xlu0 %3641, %v2611
  %v3643 = vpop.permute.xlu0 %3642
  %3646 = vset.pattern.permute.xlu0 0
  %3647 = vperm.xlu0 %3646, %v2612
  %v3648 = vpop.permute.xlu0 %3647
  %3651 = vset.pattern.permute.xlu0 0
  %3652 = vperm.xlu0 %3651, %v2613
  %v3653 = vpop.permute.xlu0 %3652
  %3656 = vset.pattern.permute.xlu0 0
  %3657 = vperm.xlu0 %3656, %v2614
  %v3658 = vpop.permute.xlu0 %3657
  %3661 = vset.pattern.permute.xlu0 0
  %3662 = vperm.xlu0 %3661, %v2615
  %v3663 = vpop.permute.xlu0 %3662
  %3666 = vset.pattern.permute.xlu0 0
  %3667 = vperm.xlu0 %3666, %v2616
  %v3668 = vpop.permute.xlu0 %3667
  %3671 = vset.pattern.permute.xlu0 0
  %3672 = vperm.xlu0 %3671, %v2617
  %v3673 = vpop.permute.xlu0 %3672
  %v3675 = vadd.f32 %v3579, %v3598
  %v3676 = vadd.f32 %v3580, %v3603
  %v3677 = vadd.f32 %v3581, %v3608
  %v3678 = vadd.f32 %v3582, %v3613
  %v3679 = vadd.f32 %v3583, %v3618
  %v3680 = vadd.f32 %v3584, %v3623
  %v3681 = vadd.f32 %v3585, %v3628
  %v3682 = vadd.f32 %v3586, %v3633
  %v3683 = vadd.f32 %v3587, %v3638
  %v3684 = vadd.f32 %v3588, %v3643
  %v3685 = vadd.f32 %v3589, %v3648
  %v3686 = vadd.f32 %v3590, %v3653
  %v3687 = vadd.f32 %v3591, %v3658
  %v3688 = vadd.f32 %v3592, %v3663
  %v3689 = vadd.f32 %v3593, %v3668
  %v3690 = vadd.f32 %v3594, %v3673
  %v3691 = vsel %vm2660, %v3675, 0.0
  %3692 = vadd.xlane.f32.xlu0 %v3691
  %v3693 = vpop.xlane.xlu0 %3692
  %v3694 = vsel %vm2660, %v3676, 0.0
  %3695 = vadd.xlane.f32.xlu0 %v3694
  %v3696 = vpop.xlane.xlu0 %3695
  %v3697 = vsel %vm2660, %v3677, 0.0
  %3698 = vadd.xlane.f32.xlu0 %v3697
  %v3699 = vpop.xlane.xlu0 %3698
  %v3700 = vsel %vm2660, %v3678, 0.0
  %3701 = vadd.xlane.f32.xlu0 %v3700
  %v3702 = vpop.xlane.xlu0 %3701
  %v3703 = vsel %vm2660, %v3679, 0.0
  %3704 = vadd.xlane.f32.xlu0 %v3703
  %v3705 = vpop.xlane.xlu0 %3704
  %v3706 = vsel %vm2660, %v3680, 0.0
  %3707 = vadd.xlane.f32.xlu0 %v3706
  %v3708 = vpop.xlane.xlu0 %3707
  %v3709 = vsel %vm2660, %v3681, 0.0
  %3710 = vadd.xlane.f32.xlu0 %v3709
  %v3711 = vpop.xlane.xlu0 %3710
  %v3712 = vsel %vm2660, %v3682, 0.0
  %3713 = vadd.xlane.f32.xlu0 %v3712
  %v3714 = vpop.xlane.xlu0 %3713
  %v3715 = vsel %vm2660, %v3683, 0.0
  %3716 = vadd.xlane.f32.xlu0 %v3715
  %v3717 = vpop.xlane.xlu0 %3716
  %v3718 = vsel %vm2660, %v3684, 0.0
  %3719 = vadd.xlane.f32.xlu0 %v3718
  %v3720 = vpop.xlane.xlu0 %3719
  %v3721 = vsel %vm2660, %v3685, 0.0
  %3722 = vadd.xlane.f32.xlu0 %v3721
  %v3723 = vpop.xlane.xlu0 %3722
  %v3724 = vsel %vm2660, %v3686, 0.0
  %3725 = vadd.xlane.f32.xlu0 %v3724
  %v3726 = vpop.xlane.xlu0 %3725
  %v3727 = vsel %vm2660, %v3687, 0.0
  %3728 = vadd.xlane.f32.xlu0 %v3727
  %v3729 = vpop.xlane.xlu0 %3728
  %v3730 = vsel %vm2660, %v3688, 0.0
  %3731 = vadd.xlane.f32.xlu0 %v3730
  %v3732 = vpop.xlane.xlu0 %3731
  %v3733 = vsel %vm2660, %v3689, 0.0
  %3734 = vadd.xlane.f32.xlu0 %v3733
  %v3735 = vpop.xlane.xlu0 %3734
  %v3736 = vsel %vm2660, %v3690, 0.0
  %3737 = vadd.xlane.f32.xlu0 %v3736
  %v3738 = vpop.xlane.xlu0 %3737
  %v3739 = vmul.f32 %v3675, %v3675
  %v3740 = vmul.f32 %v3676, %v3676
  %v3741 = vmul.f32 %v3677, %v3677
  %v3742 = vmul.f32 %v3678, %v3678
  %v3743 = vmul.f32 %v3679, %v3679
  %v3744 = vmul.f32 %v3680, %v3680
  %v3745 = vmul.f32 %v3681, %v3681
  %v3746 = vmul.f32 %v3682, %v3682
  %v3747 = vmul.f32 %v3683, %v3683
  %v3748 = vmul.f32 %v3684, %v3684
  %v3749 = vmul.f32 %v3685, %v3685
  %v3750 = vmul.f32 %v3686, %v3686
  %v3751 = vmul.f32 %v3687, %v3687
  %v3752 = vmul.f32 %v3688, %v3688
  %v3753 = vmul.f32 %v3689, %v3689
  %v3754 = vmul.f32 %v3690, %v3690
  %v3755 = vsel %vm2660, %v3739, 0.0
  %3756 = vadd.xlane.f32.xlu0 %v3755
  %v3757 = vpop.xlane.xlu0 %3756
  %v3758 = vsel %vm2660, %v3740, 0.0
  %3759 = vadd.xlane.f32.xlu0 %v3758
  %v3760 = vpop.xlane.xlu0 %3759
  %v3761 = vsel %vm2660, %v3741, 0.0
  %3762 = vadd.xlane.f32.xlu0 %v3761
  %v3763 = vpop.xlane.xlu0 %3762
  %v3764 = vsel %vm2660, %v3742, 0.0
  %3765 = vadd.xlane.f32.xlu0 %v3764
  %v3766 = vpop.xlane.xlu0 %3765
  %v3767 = vsel %vm2660, %v3743, 0.0
  %3768 = vadd.xlane.f32.xlu0 %v3767
  %v3769 = vpop.xlane.xlu0 %3768
  %v3770 = vsel %vm2660, %v3744, 0.0
  %3771 = vadd.xlane.f32.xlu0 %v3770
  %v3772 = vpop.xlane.xlu0 %3771
  %v3773 = vsel %vm2660, %v3745, 0.0
  %3774 = vadd.xlane.f32.xlu0 %v3773
  %v3775 = vpop.xlane.xlu0 %3774
  %v3776 = vsel %vm2660, %v3746, 0.0
  %3777 = vadd.xlane.f32.xlu0 %v3776
  %v3778 = vpop.xlane.xlu0 %3777
  %v3779 = vsel %vm2660, %v3747, 0.0
  %3780 = vadd.xlane.f32.xlu0 %v3779
  %v3781 = vpop.xlane.xlu0 %3780
  %v3782 = vsel %vm2660, %v3748, 0.0
  %3783 = vadd.xlane.f32.xlu0 %v3782
  %v3784 = vpop.xlane.xlu0 %3783
  %v3785 = vsel %vm2660, %v3749, 0.0
  %3786 = vadd.xlane.f32.xlu0 %v3785
  %v3787 = vpop.xlane.xlu0 %3786
  %v3788 = vsel %vm2660, %v3750, 0.0
  %3789 = vadd.xlane.f32.xlu0 %v3788
  %v3790 = vpop.xlane.xlu0 %3789
  %v3791 = vsel %vm2660, %v3751, 0.0
  %3792 = vadd.xlane.f32.xlu0 %v3791
  %v3793 = vpop.xlane.xlu0 %3792
  %v3794 = vsel %vm2660, %v3752, 0.0
  %3795 = vadd.xlane.f32.xlu0 %v3794
  %v3796 = vpop.xlane.xlu0 %3795
  %v3797 = vsel %vm2660, %v3753, 0.0
  %3798 = vadd.xlane.f32.xlu0 %v3797
  %v3799 = vpop.xlane.xlu0 %3798
  %v3800 = vsel %vm2660, %v3754, 0.0
  %3801 = vadd.xlane.f32.xlu0 %v3800
  %v3802 = vpop.xlane.xlu0 %3801
  %v3803 = vmul.f32 %v3693, 0.0625
  %v3804 = vmul.f32 %v3696, 0.0625
  %v3805 = vmul.f32 %v3699, 0.0625
  %v3806 = vmul.f32 %v3702, 0.0625
  %v3807 = vmul.f32 %v3705, 0.0625
  %v3808 = vmul.f32 %v3708, 0.0625
  %v3809 = vmul.f32 %v3711, 0.0625
  %v3810 = vmul.f32 %v3714, 0.0625
  %v3811 = vmul.f32 %v3717, 0.0625
  %v3812 = vmul.f32 %v3720, 0.0625
  %v3813 = vmul.f32 %v3723, 0.0625
  %v3814 = vmul.f32 %v3726, 0.0625
  %v3815 = vmul.f32 %v3729, 0.0625
  %v3816 = vmul.f32 %v3732, 0.0625
  %v3817 = vmul.f32 %v3735, 0.0625
  %v3818 = vmul.f32 %v3738, 0.0625
  %v3819 = vmul.f32 %v3757, 0.0625
  %v3820 = vmul.f32 %v3760, 0.0625
  %v3821 = vmul.f32 %v3763, 0.0625
  %v3822 = vmul.f32 %v3766, 0.0625
  %v3823 = vmul.f32 %v3769, 0.0625
  %v3824 = vmul.f32 %v3772, 0.0625
  %v3825 = vmul.f32 %v3775, 0.0625
  %v3826 = vmul.f32 %v3778, 0.0625
  %v3827 = vmul.f32 %v3781, 0.0625
  %v3828 = vmul.f32 %v3784, 0.0625
  %v3829 = vmul.f32 %v3787, 0.0625
  %v3830 = vmul.f32 %v3790, 0.0625
  %v3831 = vmul.f32 %v3793, 0.0625
  %v3832 = vmul.f32 %v3796, 0.0625
  %v3833 = vmul.f32 %v3799, 0.0625
  %v3834 = vmul.f32 %v3802, 0.0625
  %v3835 = vmul.f32 %v3803, %v3803
  %v3836 = vmul.f32 %v3804, %v3804
  %v3837 = vmul.f32 %v3805, %v3805
  %v3838 = vmul.f32 %v3806, %v3806
  %v3839 = vmul.f32 %v3807, %v3807
  %v3840 = vmul.f32 %v3808, %v3808
  %v3841 = vmul.f32 %v3809, %v3809
  %v3842 = vmul.f32 %v3810, %v3810
  %v3843 = vmul.f32 %v3811, %v3811
  %v3844 = vmul.f32 %v3812, %v3812
  %v3845 = vmul.f32 %v3813, %v3813
  %v3846 = vmul.f32 %v3814, %v3814
  %v3847 = vmul.f32 %v3815, %v3815
  %v3848 = vmul.f32 %v3816, %v3816
  %v3849 = vmul.f32 %v3817, %v3817
  %v3850 = vmul.f32 %v3818, %v3818
  %v3851 = vsub.f32 %v3819, %v3835
  %v3852 = vsub.f32 %v3820, %v3836
  %v3853 = vsub.f32 %v3821, %v3837
  %v3854 = vsub.f32 %v3822, %v3838
  %v3855 = vsub.f32 %v3823, %v3839
  %v3856 = vsub.f32 %v3824, %v3840
  %v3857 = vsub.f32 %v3825, %v3841
  %v3858 = vsub.f32 %v3826, %v3842
  %v3859 = vsub.f32 %v3827, %v3843
  %v3860 = vsub.f32 %v3828, %v3844
  %v3861 = vsub.f32 %v3829, %v3845
  %v3862 = vsub.f32 %v3830, %v3846
  %v3863 = vsub.f32 %v3831, %v3847
  %v3864 = vsub.f32 %v3832, %v3848
  %v3865 = vsub.f32 %v3833, %v3849
  %v3866 = vsub.f32 %v3834, %v3850
  %v3867 = vsub.f32 %v3675, %v3803
  %v3868 = vsub.f32 %v3676, %v3804
  %v3869 = vsub.f32 %v3677, %v3805
  %v3870 = vsub.f32 %v3678, %v3806
  %v3871 = vsub.f32 %v3679, %v3807
  %v3872 = vsub.f32 %v3680, %v3808
  %v3873 = vsub.f32 %v3681, %v3809
  %v3874 = vsub.f32 %v3682, %v3810
  %v3875 = vsub.f32 %v3683, %v3811
  %v3876 = vsub.f32 %v3684, %v3812
  %v3877 = vsub.f32 %v3685, %v3813
  %v3878 = vsub.f32 %v3686, %v3814
  %v3879 = vsub.f32 %v3687, %v3815
  %v3880 = vsub.f32 %v3688, %v3816
  %v3881 = vsub.f32 %v3689, %v3817
  %v3882 = vsub.f32 %v3690, %v3818
  %v3883 = vadd.f32 %v3851, 1e-05
  %v3884 = vadd.f32 %v3852, 1e-05
  %v3885 = vadd.f32 %v3853, 1e-05
  %v3886 = vadd.f32 %v3854, 1e-05
  %v3887 = vadd.f32 %v3855, 1e-05
  %v3888 = vadd.f32 %v3856, 1e-05
  %v3889 = vadd.f32 %v3857, 1e-05
  %v3890 = vadd.f32 %v3858, 1e-05
  %v3891 = vadd.f32 %v3859, 1e-05
  %v3892 = vadd.f32 %v3860, 1e-05
  %v3893 = vadd.f32 %v3861, 1e-05
  %v3894 = vadd.f32 %v3862, 1e-05
  %v3895 = vadd.f32 %v3863, 1e-05
  %v3896 = vadd.f32 %v3864, 1e-05
  %v3897 = vadd.f32 %v3865, 1e-05
  %v3898 = vadd.f32 %v3866, 1e-05
  %v3899 = vrsqrt.pop %v3883
  %v3900 = vrsqrt.pop %v3884
  %v3901 = vrsqrt.pop %v3885
  %v3902 = vrsqrt.pop %v3886
  %v3903 = vrsqrt.pop %v3887
  %v3904 = vrsqrt.pop %v3888
  %v3905 = vrsqrt.pop %v3889
  %v3906 = vrsqrt.pop %v3890
  %v3907 = vrsqrt.pop %v3891
  %v3908 = vrsqrt.pop %v3892
  %v3909 = vrsqrt.pop %v3893
  %v3910 = vrsqrt.pop %v3894
  %v3911 = vrsqrt.pop %v3895
  %v3912 = vrsqrt.pop %v3896
  %v3913 = vrsqrt.pop %v3897
  %v3914 = vrsqrt.pop %v3898
  %v3915 = vmul.f32 %v3899, %v2624
  %v3916 = vmul.f32 %v3900, %v2625
  %v3917 = vmul.f32 %v3901, %v2626
  %v3918 = vmul.f32 %v3902, %v2627
  %v3919 = vmul.f32 %v3903, %v2628
  %v3920 = vmul.f32 %v3904, %v2629
  %v3921 = vmul.f32 %v3905, %v2630
  %v3922 = vmul.f32 %v3906, %v2631
  %v3923 = vmul.f32 %v3907, %v2632
  %v3924 = vmul.f32 %v3908, %v2633
  %v3925 = vmul.f32 %v3909, %v2634
  %v3926 = vmul.f32 %v3910, %v2635
  %v3927 = vmul.f32 %v3911, %v2636
  %v3928 = vmul.f32 %v3912, %v2637
  %v3929 = vmul.f32 %v3913, %v2638
  %v3930 = vmul.f32 %v3914, %v2639
  %3932 = vset.pattern.permute.xlu0 0
  %3933 = vperm.xlu0 %3932, %v3915
  %v3934 = vpop.permute.xlu0 %3933
  %3937 = vset.pattern.permute.xlu0 0
  %3938 = vperm.xlu0 %3937, %v3916
  %v3939 = vpop.permute.xlu0 %3938
  %3942 = vset.pattern.permute.xlu0 0
  %3943 = vperm.xlu0 %3942, %v3917
  %v3944 = vpop.permute.xlu0 %3943
  %3947 = vset.pattern.permute.xlu0 0
  %3948 = vperm.xlu0 %3947, %v3918
  %v3949 = vpop.permute.xlu0 %3948
  %3952 = vset.pattern.permute.xlu0 0
  %3953 = vperm.xlu0 %3952, %v3919
  %v3954 = vpop.permute.xlu0 %3953
  %3957 = vset.pattern.permute.xlu0 0
  %3958 = vperm.xlu0 %3957, %v3920
  %v3959 = vpop.permute.xlu0 %3958
  %3962 = vset.pattern.permute.xlu0 0
  %3963 = vperm.xlu0 %3962, %v3921
  %v3964 = vpop.permute.xlu0 %3963
  %3967 = vset.pattern.permute.xlu0 0
  %3968 = vperm.xlu0 %3967, %v3922
  %v3969 = vpop.permute.xlu0 %3968
  %3972 = vset.pattern.permute.xlu0 0
  %3973 = vperm.xlu0 %3972, %v3923
  %v3974 = vpop.permute.xlu0 %3973
  %3977 = vset.pattern.permute.xlu0 0
  %3978 = vperm.xlu0 %3977, %v3924
  %v3979 = vpop.permute.xlu0 %3978
  %3982 = vset.pattern.permute.xlu0 0
  %3983 = vperm.xlu0 %3982, %v3925
  %v3984 = vpop.permute.xlu0 %3983
  %3987 = vset.pattern.permute.xlu0 0
  %3988 = vperm.xlu0 %3987, %v3926
  %v3989 = vpop.permute.xlu0 %3988
  %3992 = vset.pattern.permute.xlu0 0
  %3993 = vperm.xlu0 %3992, %v3927
  %v3994 = vpop.permute.xlu0 %3993
  %3997 = vset.pattern.permute.xlu0 0
  %3998 = vperm.xlu0 %3997, %v3928
  %v3999 = vpop.permute.xlu0 %3998
  %4002 = vset.pattern.permute.xlu0 0
  %4003 = vperm.xlu0 %4002, %v3929
  %v4004 = vpop.permute.xlu0 %4003
  %4007 = vset.pattern.permute.xlu0 0
  %4008 = vperm.xlu0 %4007, %v3930
  %v4009 = vpop.permute.xlu0 %4008
  %v4011 = vmul.f32 %v3867, %v3934
  %v4012 = vmul.f32 %v3868, %v3939
  %v4013 = vmul.f32 %v3869, %v3944
  %v4014 = vmul.f32 %v3870, %v3949
  %v4015 = vmul.f32 %v3871, %v3954
  %v4016 = vmul.f32 %v3872, %v3959
  %v4017 = vmul.f32 %v3873, %v3964
  %v4018 = vmul.f32 %v3874, %v3969
  %v4019 = vmul.f32 %v3875, %v3974
  %v4020 = vmul.f32 %v3876, %v3979
  %v4021 = vmul.f32 %v3877, %v3984
  %v4022 = vmul.f32 %v3878, %v3989
  %v4023 = vmul.f32 %v3879, %v3994
  %v4024 = vmul.f32 %v3880, %v3999
  %v4025 = vmul.f32 %v3881, %v4004
  %v4026 = vmul.f32 %v3882, %v4009
  %4028 = vset.pattern.permute.xlu0 0
  %4029 = vperm.xlu0 %4028, %v2640
  %v4030 = vpop.permute.xlu0 %4029
  %4033 = vset.pattern.permute.xlu0 0
  %4034 = vperm.xlu0 %4033, %v2641
  %v4035 = vpop.permute.xlu0 %4034
  %4038 = vset.pattern.permute.xlu0 0
  %4039 = vperm.xlu0 %4038, %v2642
  %v4040 = vpop.permute.xlu0 %4039
  %4043 = vset.pattern.permute.xlu0 0
  %4044 = vperm.xlu0 %4043, %v2643
  %v4045 = vpop.permute.xlu0 %4044
  %4048 = vset.pattern.permute.xlu0 0
  %4049 = vperm.xlu0 %4048, %v2644
  %v4050 = vpop.permute.xlu0 %4049
  %4053 = vset.pattern.permute.xlu0 0
  %4054 = vperm.xlu0 %4053, %v2645
  %v4055 = vpop.permute.xlu0 %4054
  %4058 = vset.pattern.permute.xlu0 0
  %4059 = vperm.xlu0 %4058, %v2646
  %v4060 = vpop.permute.xlu0 %4059
  %4063 = vset.pattern.permute.xlu0 0
  %4064 = vperm.xlu0 %4063, %v2647
  %v4065 = vpop.permute.xlu0 %4064
  %4068 = vset.pattern.permute.xlu0 0
  %4069 = vperm.xlu0 %4068, %v2648
  %v4070 = vpop.permute.xlu0 %4069
  %4073 = vset.pattern.permute.xlu0 0
  %4074 = vperm.xlu0 %4073, %v2649
  %v4075 = vpop.permute.xlu0 %4074
  %4078 = vset.pattern.permute.xlu0 0
  %4079 = vperm.xlu0 %4078, %v2650
  %v4080 = vpop.permute.xlu0 %4079
  %4083 = vset.pattern.permute.xlu0 0
  %4084 = vperm.xlu0 %4083, %v2651
  %v4085 = vpop.permute.xlu0 %4084
  %4088 = vset.pattern.permute.xlu0 0
  %4089 = vperm.xlu0 %4088, %v2652
  %v4090 = vpop.permute.xlu0 %4089
  %4093 = vset.pattern.permute.xlu0 0
  %4094 = vperm.xlu0 %4093, %v2653
  %v4095 = vpop.permute.xlu0 %4094
  %4098 = vset.pattern.permute.xlu0 0
  %4099 = vperm.xlu0 %4098, %v2654
  %v4100 = vpop.permute.xlu0 %4099
  %4103 = vset.pattern.permute.xlu0 0
  %4104 = vperm.xlu0 %4103, %v2655
  %v4105 = vpop.permute.xlu0 %4104
  %v4107 = vadd.f32 %v4011, %v4030
  %v4108 = vadd.f32 %v4012, %v4035
  %v4109 = vadd.f32 %v4013, %v4040
  %v4110 = vadd.f32 %v4014, %v4045
  %v4111 = vadd.f32 %v4015, %v4050
  %v4112 = vadd.f32 %v4016, %v4055
  %v4113 = vadd.f32 %v4017, %v4060
  %v4114 = vadd.f32 %v4018, %v4065
  %v4115 = vadd.f32 %v4019, %v4070
  %v4116 = vadd.f32 %v4020, %v4075
  %v4117 = vadd.f32 %v4021, %v4080
  %v4118 = vadd.f32 %v4022, %v4085
  %v4119 = vadd.f32 %v4023, %v4090
  %v4120 = vadd.f32 %v4024, %v4095
  %v4121 = vadd.f32 %v4025, %v4100
  %v4122 = vadd.f32 %v4026, %v4105
  %v4123 = vmax.f32 %v4107, 0.0
  %v4124 = vmax.f32 %v4108, 0.0
  %v4125 = vmax.f32 %v4109, 0.0
  %v4126 = vmax.f32 %v4110, 0.0
  %v4127 = vmax.f32 %v4111, 0.0
  %v4128 = vmax.f32 %v4112, 0.0
  %v4129 = vmax.f32 %v4113, 0.0
  %v4130 = vmax.f32 %v4114, 0.0
  %v4131 = vmax.f32 %v4115, 0.0
  %v4132 = vmax.f32 %v4116, 0.0
  %v4133 = vmax.f32 %v4117, 0.0
  %v4134 = vmax.f32 %v4118, 0.0
  %v4135 = vmax.f32 %v4119, 0.0
  %v4136 = vmax.f32 %v4120, 0.0
  %v4137 = vmax.f32 %v4121, 0.0
  %v4138 = vmax.f32 %v4122, 0.0
  %v4140 = vsel %vm2660, %v4123, 0
  %v4143 = vsel %vm2660, %v4124, 0
  %v4146 = vsel %vm2660, %v4125, 0
  %v4149 = vsel %vm2660, %v4126, 0
  %v4152 = vsel %vm2660, %v4127, 0
  %v4155 = vsel %vm2660, %v4128, 0
  %v4158 = vsel %vm2660, %v4129, 0
  %v4161 = vsel %vm2660, %v4130, 0
  %v4164 = vsel %vm2660, %v4131, 0
  %v4167 = vsel %vm2660, %v4132, 0
  %v4170 = vsel %vm2660, %v4133, 0
  %v4173 = vsel %vm2660, %v4134, 0
  %v4176 = vsel %vm2660, %v4135, 0
  %v4179 = vsel %vm2660, %v4136, 0
  %v4182 = vsel %vm2660, %v4137, 0
  %v4185 = vsel %vm2660, %v4138, 0
  %4187 = vmatprep.subr.mxu0 0.0
  %4188 = vmatpush1.msra.mxu0 %v2656
  %4189 = vmatprep.subr.mxu0 0.0
  %4190 = vmatpush1.msra.mxu0 %v2657
  %4191 = vmatprep.subr.mxu0 0.0
  %4192 = vmatpush1.msra.mxu0 0.0
  %4193 = vmatprep.subr.mxu0 0.0
  %4194 = vmatpush1.msra.mxu0 0.0
  %4195 = vmatprep.subr.mxu0 0.0
  %4196 = vmatpush1.msra.mxu0 0.0
  %4197 = vmatprep.subr.mxu0 0.0
  %4198 = vmatpush1.msra.mxu0 0.0
  %4199 = vmatprep.subr.mxu0 0.0
  %4200 = vmatpush1.msra.mxu0 0.0
  %4201 = vmatprep.subr.mxu0 0.0
  %4202 = vmatpush1.msra.mxu0 0.0
  %4203 = vmatprep.subr.mxu0 0.0
  %4204 = vmatpush1.msra.mxu0 0.0
  %4205 = vmatprep.subr.mxu0 0.0
  %4206 = vmatpush1.msra.mxu0 0.0
  %4207 = vmatprep.subr.mxu0 0.0
  %4208 = vmatpush1.msra.mxu0 0.0
  %4209 = vmatprep.subr.mxu0 0.0
  %4210 = vmatpush1.msra.mxu0 0.0
  %4211 = vmatprep.subr.mxu0 0.0
  %4212 = vmatpush1.msra.mxu0 0.0
  %4213 = vmatprep.subr.mxu0 0.0
  %4214 = vmatpush1.msra.mxu0 0.0
  %4215 = vmatprep.subr.mxu0 0.0
  %4216 = vmatpush1.msra.mxu0 0.0
  %4217 = vmatprep.subr.mxu0 0.0
  %4218 = vmatpush1.msra.mxu0 0.0
  %4219 = vmatprep.subr.mxu0 0.0
  %4220 = vmatpush1.msra.mxu0 0.0
  %4221 = vmatprep.subr.mxu0 0.0
  %4222 = vmatpush1.msra.mxu0 0.0
  %4223 = vmatprep.subr.mxu0 0.0
  %4224 = vmatpush1.msra.mxu0 0.0
  %4225 = vmatprep.subr.mxu0 0.0
  %4226 = vmatpush1.msra.mxu0 0.0
  %4227 = vmatprep.subr.mxu0 0.0
  %4228 = vmatpush1.msra.mxu0 0.0
  %4229 = vmatprep.subr.mxu0 0.0
  %4230 = vmatpush1.msra.mxu0 0.0
  %4231 = vmatprep.subr.mxu0 0.0
  %4232 = vmatpush1.msra.mxu0 0.0
  %4233 = vmatprep.subr.mxu0 0.0
  %4234 = vmatpush1.msra.mxu0 0.0
  %4235 = vmatprep.subr.mxu0 0.0
  %4236 = vmatpush1.msra.mxu0 0.0
  %4237 = vmatprep.subr.mxu0 0.0
  %4238 = vmatpush1.msra.mxu0 0.0
  %4239 = vmatprep.subr.mxu0 0.0
  %4240 = vmatpush1.msra.mxu0 0.0
  %4241 = vmatprep.subr.mxu0 0.0
  %4242 = vmatpush1.msra.mxu0 0.0
  %4243 = vmatprep.subr.mxu0 0.0
  %4244 = vmatpush1.msra.mxu0 0.0
  %4245 = vmatprep.subr.mxu0 0.0
  %4246 = vmatpush1.msra.mxu0 0.0
  %4247 = vmatprep.subr.mxu0 0.0
  %4248 = vmatpush1.msra.mxu0 0.0
  %4249 = vmatprep.subr.mxu0 0.0
  %4250 = vmatpush1.msra.mxu0 0.0
  %4251 = vmatprep.mubr.f32.mxu0 0.0
  %4252 = vmatmul.mubr.f32.gmra.mrb[0].mxu0 %v4140
  %v4253 = vpop.f32.mrb[0].mxu0
  %v4254 = vadd.f32 0.0, %v4253
  %v4255 = vpop.f32.mrb[0].mxu0
  %4256 = vmatprep.mubr.f32.mxu0 0.0
  %4257 = vmatmul.mubr.f32.gmra.mrb[0].mxu0 %v4143
  %v4258 = vpop.f32.mrb[0].mxu0
  %v4259 = vadd.f32 0.0, %v4258
  %v4260 = vpop.f32.mrb[0].mxu0
  %4261 = vmatprep.mubr.f32.mxu0 0.0
  %4262 = vmatmul.mubr.f32.gmra.mrb[0].mxu0 %v4146
  %v4263 = vpop.f32.mrb[0].mxu0
  %v4264 = vadd.f32 0.0, %v4263
  %v4265 = vpop.f32.mrb[0].mxu0
  %4266 = vmatprep.mubr.f32.mxu0 0.0
  %4267 = vmatmul.mubr.f32.gmra.mrb[0].mxu0 %v4149
  %v4268 = vpop.f32.mrb[0].mxu0
  %v4269 = vadd.f32 0.0, %v4268
  %v4270 = vpop.f32.mrb[0].mxu0
  %4271 = vmatprep.mubr.f32.mxu0 0.0
  %4272 = vmatmul.mubr.f32.gmra.mrb[0].mxu0 %v4152
  %v4273 = vpop.f32.mrb[0].mxu0
  %v4274 = vadd.f32 0.0, %v4273
  %v4275 = vpop.f32.mrb[0].mxu0
  %4276 = vmatprep.mubr.f32.mxu0 0.0
  %4277 = vmatmul.mubr.f32.gmra.mrb[0].mxu0 %v4155
  %v4278 = vpop.f32.mrb[0].mxu0
  %v4279 = vadd.f32 0.0, %v4278
  %v4280 = vpop.f32.mrb[0].mxu0
  %4281 = vmatprep.mubr.f32.mxu0 0.0
  %4282 = vmatmul.mubr.f32.gmra.mrb[0].mxu0 %v4158
  %v4283 = vpop.f32.mrb[0].mxu0
  %v4284 = vadd.f32 0.0, %v4283
  %v4285 = vpop.f32.mrb[0].mxu0
  %4286 = vmatprep.mubr.f32.mxu0 0.0
  %4287 = vmatmul.mubr.f32.gmra.mrb[0].mxu0 %v4161
  %v4288 = vpop.f32.mrb[0].mxu0
  %v4289 = vadd.f32 0.0, %v4288
  %v4290 = vpop.f32.mrb[0].mxu0
  %4291 = vmatprep.mubr.f32.mxu0 0.0
  %4292 = vmatmul.mubr.f32.gmra.mrb[0].mxu0 %v4164
  %v4293 = vpop.f32.mrb[0].mxu0
  %v4294 = vadd.f32 0.0, %v4293
  %v4295 = vpop.f32.mrb[0].mxu0
  %4296 = vmatprep.mubr.f32.mxu0 0.0
  %4297 = vmatmul.mubr.f32.gmra.mrb[0].mxu0 %v4167
  %v4298 = vpop.f32.mrb[0].mxu0
  %v4299 = vadd.f32 0.0, %v4298
  %v4300 = vpop.f32.mrb[0].mxu0
  %4301 = vmatprep.mubr.f32.mxu0 0.0
  %4302 = vmatmul.mubr.f32.gmra.mrb[0].mxu0 %v4170
  %v4303 = vpop.f32.mrb[0].mxu0
  %v4304 = vadd.f32 0.0, %v4303
  %v4305 = vpop.f32.mrb[0].mxu0
  %4306 = vmatprep.mubr.f32.mxu0 0.0
  %4307 = vmatmul.mubr.f32.gmra.mrb[0].mxu0 %v4173
  %v4308 = vpop.f32.mrb[0].mxu0
  %v4309 = vadd.f32 0.0, %v4308
  %v4310 = vpop.f32.mrb[0].mxu0
  %4311 = vmatprep.mubr.f32.mxu0 0.0
  %4312 = vmatmul.mubr.f32.gmra.mrb[0].mxu0 %v4176
  %v4313 = vpop.f32.mrb[0].mxu0
  %v4314 = vadd.f32 0.0, %v4313
  %v4315 = vpop.f32.mrb[0].mxu0
  %4316 = vmatprep.mubr.f32.mxu0 0.0
  %4317 = vmatmul.mubr.f32.gmra.mrb[0].mxu0 %v4179
  %v4318 = vpop.f32.mrb[0].mxu0
  %v4319 = vadd.f32 0.0, %v4318
  %v4320 = vpop.f32.mrb[0].mxu0
  %4321 = vmatprep.mubr.f32.mxu0 0.0
  %4322 = vmatmul.mubr.f32.gmra.mrb[0].mxu0 %v4182
  %v4323 = vpop.f32.mrb[0].mxu0
  %v4324 = vadd.f32 0.0, %v4323
  %v4325 = vpop.f32.mrb[0].mxu0
  %4326 = vmatprep.mubr.f32.mxu0 0.0
  %4327 = vmatmul.mubr.f32.gmra.mrb[0].mxu0 %v4185
  %v4328 = vpop.f32.mrb[0].mxu0
  %v4329 = vadd.f32 0.0, %v4328
  %v4330 = vpop.f32.mrb[0].mxu0
  %4331 = vdwg.mxu0
  %4332 = vmatprep.subr.mxu0 0.0
  %4333 = vmatpush1.msra.mxu0 %v2658
  %4334 = vmatprep.subr.mxu0 0.0
  %4335 = vmatpush1.msra.mxu0 %v2659
  %4336 = vmatprep.subr.mxu0 0.0
  %4337 = vmatpush1.msra.mxu0 0.0
  %4338 = vmatprep.subr.mxu0 0.0
  %4339 = vmatpush1.msra.mxu0 0.0
  %4340 = vmatprep.subr.mxu0 0.0
  %4341 = vmatpush1.msra.mxu0 0.0
  %4342 = vmatprep.subr.mxu0 0.0
  %4343 = vmatpush1.msra.mxu0 0.0
  %4344 = vmatprep.subr.mxu0 0.0
  %4345 = vmatpush1.msra.mxu0 0.0
  %4346 = vmatprep.subr.mxu0 0.0
  %4347 = vmatpush1.msra.mxu0 0.0
  %4348 = vmatprep.subr.mxu0 0.0
  %4349 = vmatpush1.msra.mxu0 0.0
  %4350 = vmatprep.subr.mxu0 0.0
  %4351 = vmatpush1.msra.mxu0 0.0
  %4352 = vmatprep.subr.mxu0 0.0
  %4353 = vmatpush1.msra.mxu0 0.0
  %4354 = vmatprep.subr.mxu0 0.0
  %4355 = vmatpush1.msra.mxu0 0.0
  %4356 = vmatprep.subr.mxu0 0.0
  %4357 = vmatpush1.msra.mxu0 0.0
  %4358 = vmatprep.subr.mxu0 0.0
  %4359 = vmatpush1.msra.mxu0 0.0
  %4360 = vmatprep.subr.mxu0 0.0
  %4361 = vmatpush1.msra.mxu0 0.0
  %4362 = vmatprep.subr.mxu0 0.0
  %4363 = vmatpush1.msra.mxu0 0.0
  %4364 = vmatprep.subr.mxu0 0.0
  %4365 = vmatpush1.msra.mxu0 0.0
  %4366 = vmatprep.subr.mxu0 0.0
  %4367 = vmatpush1.msra.mxu0 0.0
  %4368 = vmatprep.subr.mxu0 0.0
  %4369 = vmatpush1.msra.mxu0 0.0
  %4370 = vmatprep.subr.mxu0 0.0
  %4371 = vmatpush1.msra.mxu0 0.0
  %4372 = vmatprep.subr.mxu0 0.0
  %4373 = vmatpush1.msra.mxu0 0.0
  %4374 = vmatprep.subr.mxu0 0.0
  %4375 = vmatpush1.msra.mxu0 0.0
  %4376 = vmatprep.subr.mxu0 0.0
  %4377 = vmatpush1.msra.mxu0 0.0
  %4378 = vmatprep.subr.mxu0 0.0
  %4379 = vmatpush1.msra.mxu0 0.0
  %4380 = vmatprep.subr.mxu0 0.0
  %4381 = vmatpush1.msra.mxu0 0.0
  %4382 = vmatprep.subr.mxu0 0.0
  %4383 = vmatpush1.msra.mxu0 0.0
  %4384 = vmatprep.subr.mxu0 0.0
  %4385 = vmatpush1.msra.mxu0 0.0
  %4386 = vmatprep.subr.mxu0 0.0
  %4387 = vmatpush1.msra.mxu0 0.0
  %4388 = vmatprep.subr.mxu0 0.0
  %4389 = vmatpush1.msra.mxu0 0.0
  %4390 = vmatprep.subr.mxu0 0.0
  %4391 = vmatpush1.msra.mxu0 0.0
  %4392 = vmatprep.subr.mxu0 0.0
  %4393 = vmatpush1.msra.mxu0 0.0
  %4394 = vmatprep.subr.mxu0 0.0
  %4395 = vmatpush1.msra.mxu0 0.0
  %4396 = vmatprep.mubr.f32.mxu0 0.0
  %4397 = vmatmul.mubr.f32.gmra.mrb[0].mxu0 %v4140
  %v4398 = vpop.f32.mrb[0].mxu0
  %v4399 = vadd.f32 0.0, %v4398
  %v4400 = vpop.f32.mrb[0].mxu0
  %4401 = vmatprep.mubr.f32.mxu0 0.0
  %4402 = vmatmul.mubr.f32.gmra.mrb[0].mxu0 %v4143
  %v4403 = vpop.f32.mrb[0].mxu0
  %v4404 = vadd.f32 0.0, %v4403
  %v4405 = vpop.f32.mrb[0].mxu0
  %4406 = vmatprep.mubr.f32.mxu0 0.0
  %4407 = vmatmul.mubr.f32.gmra.mrb[0].mxu0 %v4146
  %v4408 = vpop.f32.mrb[0].mxu0
  %v4409 = vadd.f32 0.0, %v4408
  %v4410 = vpop.f32.mrb[0].mxu0
  %4411 = vmatprep.mubr.f32.mxu0 0.0
  %4412 = vmatmul.mubr.f32.gmra.mrb[0].mxu0 %v4149
  %v4413 = vpop.f32.mrb[0].mxu0
  %v4414 = vadd.f32 0.0, %v4413
  %v4415 = vpop.f32.mrb[0].mxu0
  %4416 = vmatprep.mubr.f32.mxu0 0.0
  %4417 = vmatmul.mubr.f32.gmra.mrb[0].mxu0 %v4152
  %v4418 = vpop.f32.mrb[0].mxu0
  %v4419 = vadd.f32 0.0, %v4418
  %v4420 = vpop.f32.mrb[0].mxu0
  %4421 = vmatprep.mubr.f32.mxu0 0.0
  %4422 = vmatmul.mubr.f32.gmra.mrb[0].mxu0 %v4155
  %v4423 = vpop.f32.mrb[0].mxu0
  %v4424 = vadd.f32 0.0, %v4423
  %v4425 = vpop.f32.mrb[0].mxu0
  %4426 = vmatprep.mubr.f32.mxu0 0.0
  %4427 = vmatmul.mubr.f32.gmra.mrb[0].mxu0 %v4158
  %v4428 = vpop.f32.mrb[0].mxu0
  %v4429 = vadd.f32 0.0, %v4428
  %v4430 = vpop.f32.mrb[0].mxu0
  %4431 = vmatprep.mubr.f32.mxu0 0.0
  %4432 = vmatmul.mubr.f32.gmra.mrb[0].mxu0 %v4161
  %v4433 = vpop.f32.mrb[0].mxu0
  %v4434 = vadd.f32 0.0, %v4433
  %v4435 = vpop.f32.mrb[0].mxu0
  %4436 = vmatprep.mubr.f32.mxu0 0.0
  %4437 = vmatmul.mubr.f32.gmra.mrb[0].mxu0 %v4164
  %v4438 = vpop.f32.mrb[0].mxu0
  %v4439 = vadd.f32 0.0, %v4438
  %v4440 = vpop.f32.mrb[0].mxu0
  %4441 = vmatprep.mubr.f32.mxu0 0.0
  %4442 = vmatmul.mubr.f32.gmra.mrb[0].mxu0 %v4167
  %v4443 = vpop.f32.mrb[0].mxu0
  %v4444 = vadd.f32 0.0, %v4443
  %v4445 = vpop.f32.mrb[0].mxu0
  %4446 = vmatprep.mubr.f32.mxu0 0.0
  %4447 = vmatmul.mubr.f32.gmra.mrb[0].mxu0 %v4170
  %v4448 = vpop.f32.mrb[0].mxu0
  %v4449 = vadd.f32 0.0, %v4448
  %v4450 = vpop.f32.mrb[0].mxu0
  %4451 = vmatprep.mubr.f32.mxu0 0.0
  %4452 = vmatmul.mubr.f32.gmra.mrb[0].mxu0 %v4173
  %v4453 = vpop.f32.mrb[0].mxu0
  %v4454 = vadd.f32 0.0, %v4453
  %v4455 = vpop.f32.mrb[0].mxu0
  %4456 = vmatprep.mubr.f32.mxu0 0.0
  %4457 = vmatmul.mubr.f32.gmra.mrb[0].mxu0 %v4176
  %v4458 = vpop.f32.mrb[0].mxu0
  %v4459 = vadd.f32 0.0, %v4458
  %v4460 = vpop.f32.mrb[0].mxu0
  %4461 = vmatprep.mubr.f32.mxu0 0.0
  %4462 = vmatmul.mubr.f32.gmra.mrb[0].mxu0 %v4179
  %v4463 = vpop.f32.mrb[0].mxu0
  %v4464 = vadd.f32 0.0, %v4463
  %v4465 = vpop.f32.mrb[0].mxu0
  %4466 = vmatprep.mubr.f32.mxu0 0.0
  %4467 = vmatmul.mubr.f32.gmra.mrb[0].mxu0 %v4182
  %v4468 = vpop.f32.mrb[0].mxu0
  %v4469 = vadd.f32 0.0, %v4468
  %v4470 = vpop.f32.mrb[0].mxu0
  %4471 = vmatprep.mubr.f32.mxu0 0.0
  %4472 = vmatmul.mubr.f32.gmra.mrb[0].mxu0 %v4185
  %v4473 = vpop.f32.mrb[0].mxu0
  %v4474 = vadd.f32 0.0, %v4473
  %v4475 = vpop.f32.mrb[0].mxu0
  %4476 = vdwg.mxu0
  %v4477 = vmax.f32 %v4254, %v4399
  %v4478 = vmax.f32 %v4259, %v4404
  %v4479 = vmax.f32 %v4264, %v4409
  %v4480 = vmax.f32 %v4269, %v4414
  %v4481 = vmax.f32 %v4274, %v4419
  %v4482 = vmax.f32 %v4279, %v4424
  %v4483 = vmax.f32 %v4284, %v4429
  %v4484 = vmax.f32 %v4289, %v4434
  %v4485 = vmax.f32 %v4294, %v4439
  %v4486 = vmax.f32 %v4299, %v4444
  %v4487 = vmax.f32 %v4304, %v4449
  %v4488 = vmax.f32 %v4309, %v4454
  %v4489 = vmax.f32 %v4314, %v4459
  %v4490 = vmax.f32 %v4319, %v4464
  %v4491 = vmax.f32 %v4324, %v4469
  %v4492 = vmax.f32 %v4329, %v4474
  %v4493 = vld [vmem:[%s73] sm:$0xff]
  %v4494 = vld [vmem:[%s73 + $0x8] sm:$0xff]
  %v4495 = vld [vmem:[%s75] sm:$0xff]
  %v4496 = vld [vmem:[%s75 + $0x8] sm:$0xff]
  %v4497 = vld [vmem:[%s77] sm:$0xff]
  %v4498 = vld [vmem:[%s77 + $0x8] sm:$0xff]
  %v4499 = vld [vmem:[%s79] sm:$0xff]
  %v4500 = vld [vmem:[%s79 + $0x8] sm:$0xff]
  %v4501 = vld [vmem:[%s81] sm:$0xff]
  %v4502 = vld [vmem:[%s83] sm:$0xff]
  %v4503 = vld [vmem:[%s85] sm:$0xff]
  %4504 = vmatprep.subr.mxu0 0.0
  %4505 = vmatpush1.msra.mxu0 %v4477
  %4506 = vmatprep.subr.mxu0 0.0
  %4507 = vmatpush1.msra.mxu0 %v4478
  %4508 = vmatprep.subr.mxu0 0.0
  %4509 = vmatpush1.msra.mxu0 %v4479
  %4510 = vmatprep.subr.mxu0 0.0
  %4511 = vmatpush1.msra.mxu0 %v4480
  %4512 = vmatprep.subr.mxu0 0.0
  %4513 = vmatpush1.msra.mxu0 %v4481
  %4514 = vmatprep.subr.mxu0 0.0
  %4515 = vmatpush1.msra.mxu0 %v4482
  %4516 = vmatprep.subr.mxu0 0.0
  %4517 = vmatpush1.msra.mxu0 %v4483
  %4518 = vmatprep.subr.mxu0 0.0
  %4519 = vmatpush1.msra.mxu0 %v4484
  %4520 = vmatprep.subr.mxu0 0.0
  %4521 = vmatpush1.msra.mxu0 %v4485
  %4522 = vmatprep.subr.mxu0 0.0
  %4523 = vmatpush1.msra.mxu0 %v4486
  %4524 = vmatprep.subr.mxu0 0.0
  %4525 = vmatpush1.msra.mxu0 %v4487
  %4526 = vmatprep.subr.mxu0 0.0
  %4527 = vmatpush1.msra.mxu0 %v4488
  %4528 = vmatprep.subr.mxu0 0.0
  %4529 = vmatpush1.msra.mxu0 %v4489
  %4530 = vmatprep.subr.mxu0 0.0
  %4531 = vmatpush1.msra.mxu0 %v4490
  %4532 = vmatprep.subr.mxu0 0.0
  %4533 = vmatpush1.msra.mxu0 %v4491
  %4534 = vmatprep.subr.mxu0 0.0
  %4535 = vmatpush1.msra.mxu0 %v4492
  %4536 = vmatprep.subr.mxu0 0.0
  %4537 = vmatpush1.msra.mxu0 0.0
  %4538 = vmatprep.subr.mxu0 0.0
  %4539 = vmatpush1.msra.mxu0 0.0
  %4540 = vmatprep.subr.mxu0 0.0
  %4541 = vmatpush1.msra.mxu0 0.0
  %4542 = vmatprep.subr.mxu0 0.0
  %4543 = vmatpush1.msra.mxu0 0.0
  %4544 = vmatprep.subr.mxu0 0.0
  %4545 = vmatpush1.msra.mxu0 0.0
  %4546 = vmatprep.subr.mxu0 0.0
  %4547 = vmatpush1.msra.mxu0 0.0
  %4548 = vmatprep.subr.mxu0 0.0
  %4549 = vmatpush1.msra.mxu0 0.0
  %4550 = vmatprep.subr.mxu0 0.0
  %4551 = vmatpush1.msra.mxu0 0.0
  %4552 = vmatprep.subr.mxu0 0.0
  %4553 = vmatpush1.msra.mxu0 0.0
  %4554 = vmatprep.subr.mxu0 0.0
  %4555 = vmatpush1.msra.mxu0 0.0
  %4556 = vmatprep.subr.mxu0 0.0
  %4557 = vmatpush1.msra.mxu0 0.0
  %4558 = vmatprep.subr.mxu0 0.0
  %4559 = vmatpush1.msra.mxu0 0.0
  %4560 = vmatprep.subr.mxu0 0.0
  %4561 = vmatpush1.msra.mxu0 0.0
  %4562 = vmatprep.subr.mxu0 0.0
  %4563 = vmatpush1.msra.mxu0 0.0
  %4564 = vmatprep.subr.mxu0 0.0
  %4565 = vmatpush1.msra.mxu0 0.0
  %4566 = vmatprep.subr.mxu0 0.0
  %4567 = vmatpush1.msra.mxu0 0.0
  %4568 = vmatprep.mubr.f32.mxu0 0.0
  %4569 = vmatmul.mubr.f32.gmra.mrb[0].mxu0 %v4493
  %v4570 = vpop.f32.mrb[0].mxu0
  %v4571 = vadd.f32 0.0, %v4570
  %v4572 = vpop.f32.mrb[0].mxu0
  %4573 = vmatprep.mubr.f32.mxu0 0.0
  %4574 = vmatmul.mubr.f32.gmra.mrb[0].mxu0 %v4494
  %v4575 = vpop.f32.mrb[0].mxu0
  %v4576 = vadd.f32 0.0, %v4575
  %v4577 = vpop.f32.mrb[0].mxu0
  %4578 = vdwg.mxu0
  %4579 = vmatprep.subr.mxu0 0.0
  %4580 = vmatpush1.msra.mxu0 %v4477
  %4581 = vmatprep.subr.mxu0 0.0
  %4582 = vmatpush1.msra.mxu0 %v4478
  %4583 = vmatprep.subr.mxu0 0.0
  %4584 = vmatpush1.msra.mxu0 %v4479
  %4585 = vmatprep.subr.mxu0 0.0
  %4586 = vmatpush1.msra.mxu0 %v4480
  %4587 = vmatprep.subr.mxu0 0.0
  %4588 = vmatpush1.msra.mxu0 %v4481
  %4589 = vmatprep.subr.mxu0 0.0
  %4590 = vmatpush1.msra.mxu0 %v4482
  %4591 = vmatprep.subr.mxu0 0.0
  %4592 = vmatpush1.msra.mxu0 %v4483
  %4593 = vmatprep.subr.mxu0 0.0
  %4594 = vmatpush1.msra.mxu0 %v4484
  %4595 = vmatprep.subr.mxu0 0.0
  %4596 = vmatpush1.msra.mxu0 %v4485
  %4597 = vmatprep.subr.mxu0 0.0
  %4598 = vmatpush1.msra.mxu0 %v4486
  %4599 = vmatprep.subr.mxu0 0.0
  %4600 = vmatpush1.msra.mxu0 %v4487
  %4601 = vmatprep.subr.mxu0 0.0
  %4602 = vmatpush1.msra.mxu0 %v4488
  %4603 = vmatprep.subr.mxu0 0.0
  %4604 = vmatpush1.msra.mxu0 %v4489
  %4605 = vmatprep.subr.mxu0 0.0
  %4606 = vmatpush1.msra.mxu0 %v4490
  %4607 = vmatprep.subr.mxu0 0.0
  %4608 = vmatpush1.msra.mxu0 %v4491
  %4609 = vmatprep.subr.mxu0 0.0
  %4610 = vmatpush1.msra.mxu0 %v4492
  %4611 = vmatprep.subr.mxu0 0.0
  %4612 = vmatpush1.msra.mxu0 0.0
  %4613 = vmatprep.subr.mxu0 0.0
  %4614 = vmatpush1.msra.mxu0 0.0
  %4615 = vmatprep.subr.mxu0 0.0
  %4616 = vmatpush1.msra.mxu0 0.0
  %4617 = vmatprep.subr.mxu0 0.0
  %4618 = vmatpush1.msra.mxu0 0.0
  %4619 = vmatprep.subr.mxu0 0.0
  %4620 = vmatpush1.msra.mxu0 0.0
  %4621 = vmatprep.subr.mxu0 0.0
  %4622 = vmatpush1.msra.mxu0 0.0
  %4623 = vmatprep.subr.mxu0 0.0
  %4624 = vmatpush1.msra.mxu0 0.0
  %4625 = vmatprep.subr.mxu0 0.0
  %4626 = vmatpush1.msra.mxu0 0.0
  %4627 = vmatprep.subr.mxu0 0.0
  %4628 = vmatpush1.msra.mxu0 0.0
  %4629 = vmatprep.subr.mxu0 0.0
  %4630 = vmatpush1.msra.mxu0 0.0
  %4631 = vmatprep.subr.mxu0 0.0
  %4632 = vmatpush1.msra.mxu0 0.0
  %4633 = vmatprep.subr.mxu0 0.0
  %4634 = vmatpush1.msra.mxu0 0.0
  %4635 = vmatprep.subr.mxu0 0.0
  %4636 = vmatpush1.msra.mxu0 0.0
  %4637 = vmatprep.subr.mxu0 0.0
  %4638 = vmatpush1.msra.mxu0 0.0
  %4639 = vmatprep.subr.mxu0 0.0
  %4640 = vmatpush1.msra.mxu0 0.0
  %4641 = vmatprep.subr.mxu0 0.0
  %4642 = vmatpush1.msra.mxu0 0.0
  %4643 = vmatprep.mubr.f32.mxu0 0.0
  %4644 = vmatmul.mubr.f32.gmra.mrb[0].mxu0 %v4495
  %v4645 = vpop.f32.mrb[0].mxu0
  %v4646 = vadd.f32 0.0, %v4645
  %v4647 = vpop.f32.mrb[0].mxu0
  %4648 = vmatprep.mubr.f32.mxu0 0.0
  %4649 = vmatmul.mubr.f32.gmra.mrb[0].mxu0 %v4496
  %v4650 = vpop.f32.mrb[0].mxu0
  %v4651 = vadd.f32 0.0, %v4650
  %v4652 = vpop.f32.mrb[0].mxu0
  %4653 = vdwg.mxu0
  %vm4654 = vcmask 64512
  %v4656 = vsel %vm4654, %v4646, 0
  %v4659 = vsel %vm4654, %v4651, 0
  %4661 = vmatprep.subr.mxu0 0.0
  %4662 = vmatpush1.msra.mxu0 %v4502
  %4663 = vmatprep.subr.mxu0 0.0
  %4664 = vmatpush1.msra.mxu0 0.0
  %4665 = vmatprep.subr.mxu0 0.0
  %4666 = vmatpush1.msra.mxu0 0.0
  %4667 = vmatprep.subr.mxu0 0.0
  %4668 = vmatpush1.msra.mxu0 0.0
  %4669 = vmatprep.subr.mxu0 0.0
  %4670 = vmatpush1.msra.mxu0 0.0
  %4671 = vmatprep.subr.mxu0 0.0
  %4672 = vmatpush1.msra.mxu0 0.0
  %4673 = vmatprep.subr.mxu0 0.0
  %4674 = vmatpush1.msra.mxu0 0.0
  %4675 = vmatprep.subr.mxu0 0.0
  %4676 = vmatpush1.msra.mxu0 0.0
  %4677 = vmatprep.subr.mxu0 0.0
  %4678 = vmatpush1.msra.mxu0 0.0
  %4679 = vmatprep.subr.mxu0 0.0
  %4680 = vmatpush1.msra.mxu0 0.0
  %4681 = vmatprep.subr.mxu0 0.0
  %4682 = vmatpush1.msra.mxu0 0.0
  %4683 = vmatprep.subr.mxu0 0.0
  %4684 = vmatpush1.msra.mxu0 0.0
  %4685 = vmatprep.subr.mxu0 0.0
  %4686 = vmatpush1.msra.mxu0 0.0
  %4687 = vmatprep.subr.mxu0 0.0
  %4688 = vmatpush1.msra.mxu0 0.0
  %4689 = vmatprep.subr.mxu0 0.0
  %4690 = vmatpush1.msra.mxu0 0.0
  %4691 = vmatprep.subr.mxu0 0.0
  %4692 = vmatpush1.msra.mxu0 0.0
  %4693 = vmatprep.subr.mxu0 0.0
  %4694 = vmatpush1.msra.mxu0 0.0
  %4695 = vmatprep.subr.mxu0 0.0
  %4696 = vmatpush1.msra.mxu0 0.0
  %4697 = vmatprep.subr.mxu0 0.0
  %4698 = vmatpush1.msra.mxu0 0.0
  %4699 = vmatprep.subr.mxu0 0.0
  %4700 = vmatpush1.msra.mxu0 0.0
  %4701 = vmatprep.subr.mxu0 0.0
  %4702 = vmatpush1.msra.mxu0 0.0
  %4703 = vmatprep.subr.mxu0 0.0
  %4704 = vmatpush1.msra.mxu0 0.0
  %4705 = vmatprep.subr.mxu0 0.0
  %4706 = vmatpush1.msra.mxu0 0.0
  %4707 = vmatprep.subr.mxu0 0.0
  %4708 = vmatpush1.msra.mxu0 0.0
  %4709 = vmatprep.subr.mxu0 0.0
  %4710 = vmatpush1.msra.mxu0 0.0
  %4711 = vmatprep.subr.mxu0 0.0
  %4712 = vmatpush1.msra.mxu0 0.0
  %4713 = vmatprep.subr.mxu0 0.0
  %4714 = vmatpush1.msra.mxu0 0.0
  %4715 = vmatprep.subr.mxu0 0.0
  %4716 = vmatpush1.msra.mxu0 0.0
  %4717 = vmatprep.subr.mxu0 0.0
  %4718 = vmatpush1.msra.mxu0 0.0
  %4719 = vmatprep.subr.mxu0 0.0
  %4720 = vmatpush1.msra.mxu0 0.0
  %4721 = vmatprep.subr.mxu0 0.0
  %4722 = vmatpush1.msra.mxu0 0.0
  %4723 = vmatprep.subr.mxu0 0.0
  %4724 = vmatpush1.msra.mxu0 0.0
  %4725 = vmatprep.mubr.f32.mxu0 0.0
  %4726 = vmatmul.mubr.f32.gmra.mrb[0].mxu0 %v4656
  %v4727 = vpop.f32.mrb[0].mxu0
  %v4728 = vadd.f32 0.0, %v4727
  %v4729 = vpop.f32.mrb[0].mxu0
  %4730 = vmatprep.mubr.f32.mxu0 0.0
  %4731 = vmatmul.mubr.f32.gmra.mrb[0].mxu0 %v4659
  %v4732 = vpop.f32.mrb[0].mxu0
  %v4733 = vadd.f32 0.0, %v4732
  %v4734 = vpop.f32.mrb[0].mxu0
  %4735 = vdwg.mxu0
  %v4737 = vsel %vm4654, %v4571, 0
  %v4740 = vsel %vm4654, %v4576, 0
  %4742 = vmatprep.subr.mxu0 0.0
  %4743 = vmatpush1.msra.mxu0 %v4501
  %4744 = vmatprep.subr.mxu0 0.0
  %4745 = vmatpush1.msra.mxu0 0.0
  %4746 = vmatprep.subr.mxu0 0.0
  %4747 = vmatpush1.msra.mxu0 0.0
  %4748 = vmatprep.subr.mxu0 0.0
  %4749 = vmatpush1.msra.mxu0 0.0
  %4750 = vmatprep.subr.mxu0 0.0
  %4751 = vmatpush1.msra.mxu0 0.0
  %4752 = vmatprep.subr.mxu0 0.0
  %4753 = vmatpush1.msra.mxu0 0.0
  %4754 = vmatprep.subr.mxu0 0.0
  %4755 = vmatpush1.msra.mxu0 0.0
  %4756 = vmatprep.subr.mxu0 0.0
  %4757 = vmatpush1.msra.mxu0 0.0
  %4758 = vmatprep.subr.mxu0 0.0
  %4759 = vmatpush1.msra.mxu0 0.0
  %4760 = vmatprep.subr.mxu0 0.0
  %4761 = vmatpush1.msra.mxu0 0.0
  %4762 = vmatprep.subr.mxu0 0.0
  %4763 = vmatpush1.msra.mxu0 0.0
  %4764 = vmatprep.subr.mxu0 0.0
  %4765 = vmatpush1.msra.mxu0 0.0
  %4766 = vmatprep.subr.mxu0 0.0
  %4767 = vmatpush1.msra.mxu0 0.0
  %4768 = vmatprep.subr.mxu0 0.0
  %4769 = vmatpush1.msra.mxu0 0.0
  %4770 = vmatprep.subr.mxu0 0.0
  %4771 = vmatpush1.msra.mxu0 0.0
  %4772 = vmatprep.subr.mxu0 0.0
  %4773 = vmatpush1.msra.mxu0 0.0
  %4774 = vmatprep.subr.mxu0 0.0
  %4775 = vmatpush1.msra.mxu0 0.0
  %4776 = vmatprep.subr.mxu0 0.0
  %4777 = vmatpush1.msra.mxu0 0.0
  %4778 = vmatprep.subr.mxu0 0.0
  %4779 = vmatpush1.msra.mxu0 0.0
  %4780 = vmatprep.subr.mxu0 0.0
  %4781 = vmatpush1.msra.mxu0 0.0
  %4782 = vmatprep.subr.mxu0 0.0
  %4783 = vmatpush1.msra.mxu0 0.0
  %4784 = vmatprep.subr.mxu0 0.0
  %4785 = vmatpush1.msra.mxu0 0.0
  %4786 = vmatprep.subr.mxu0 0.0
  %4787 = vmatpush1.msra.mxu0 0.0
  %4788 = vmatprep.subr.mxu0 0.0
  %4789 = vmatpush1.msra.mxu0 0.0
  %4790 = vmatprep.subr.mxu0 0.0
  %4791 = vmatpush1.msra.mxu0 0.0
  %4792 = vmatprep.subr.mxu0 0.0
  %4793 = vmatpush1.msra.mxu0 0.0
  %4794 = vmatprep.subr.mxu0 0.0
  %4795 = vmatpush1.msra.mxu0 0.0
  %4796 = vmatprep.subr.mxu0 0.0
  %4797 = vmatpush1.msra.mxu0 0.0
  %4798 = vmatprep.subr.mxu0 0.0
  %4799 = vmatpush1.msra.mxu0 0.0
  %4800 = vmatprep.subr.mxu0 0.0
  %4801 = vmatpush1.msra.mxu0 0.0
  %4802 = vmatprep.subr.mxu0 0.0
  %4803 = vmatpush1.msra.mxu0 0.0
  %4804 = vmatprep.subr.mxu0 0.0
  %4805 = vmatpush1.msra.mxu0 0.0
  %4806 = vmatprep.mubr.f32.mxu0 0.0
  %4807 = vmatmul.mubr.f32.gmra.mrb[0].mxu0 %v4737
  %v4808 = vpop.f32.mrb[0].mxu0
  %v4809 = vadd.f32 %v4728, %v4808
  %v4810 = vpop.f32.mrb[0].mxu0
  %4811 = vmatprep.mubr.f32.mxu0 0.0
  %4812 = vmatmul.mubr.f32.gmra.mrb[0].mxu0 %v4740
  %v4813 = vpop.f32.mrb[0].mxu0
  %v4814 = vadd.f32 %v4733, %v4813
  %v4815 = vpop.f32.mrb[0].mxu0
  %4816 = vdwg.mxu0
  %4817 = vmatprep.subr.mxu0 0.0
  %4818 = vmatpush1.msra.mxu0 %v4477
  %4819 = vmatprep.subr.mxu0 0.0
  %4820 = vmatpush1.msra.mxu0 %v4478
  %4821 = vmatprep.subr.mxu0 0.0
  %4822 = vmatpush1.msra.mxu0 %v4479
  %4823 = vmatprep.subr.mxu0 0.0
  %4824 = vmatpush1.msra.mxu0 %v4480
  %4825 = vmatprep.subr.mxu0 0.0
  %4826 = vmatpush1.msra.mxu0 %v4481
  %4827 = vmatprep.subr.mxu0 0.0
  %4828 = vmatpush1.msra.mxu0 %v4482
  %4829 = vmatprep.subr.mxu0 0.0
  %4830 = vmatpush1.msra.mxu0 %v4483
  %4831 = vmatprep.subr.mxu0 0.0
  %4832 = vmatpush1.msra.mxu0 %v4484
  %4833 = vmatprep.subr.mxu0 0.0
  %4834 = vmatpush1.msra.mxu0 %v4485
  %4835 = vmatprep.subr.mxu0 0.0
  %4836 = vmatpush1.msra.mxu0 %v4486
  %4837 = vmatprep.subr.mxu0 0.0
  %4838 = vmatpush1.msra.mxu0 %v4487
  %4839 = vmatprep.subr.mxu0 0.0
  %4840 = vmatpush1.msra.mxu0 %v4488
  %4841 = vmatprep.subr.mxu0 0.0
  %4842 = vmatpush1.msra.mxu0 %v4489
  %4843 = vmatprep.subr.mxu0 0.0
  %4844 = vmatpush1.msra.mxu0 %v4490
  %4845 = vmatprep.subr.mxu0 0.0
  %4846 = vmatpush1.msra.mxu0 %v4491
  %4847 = vmatprep.subr.mxu0 0.0
  %4848 = vmatpush1.msra.mxu0 %v4492
  %4849 = vmatprep.subr.mxu0 0.0
  %4850 = vmatpush1.msra.mxu0 0.0
  %4851 = vmatprep.subr.mxu0 0.0
  %4852 = vmatpush1.msra.mxu0 0.0
  %4853 = vmatprep.subr.mxu0 0.0
  %4854 = vmatpush1.msra.mxu0 0.0
  %4855 = vmatprep.subr.mxu0 0.0
  %4856 = vmatpush1.msra.mxu0 0.0
  %4857 = vmatprep.subr.mxu0 0.0
  %4858 = vmatpush1.msra.mxu0 0.0
  %4859 = vmatprep.subr.mxu0 0.0
  %4860 = vmatpush1.msra.mxu0 0.0
  %4861 = vmatprep.subr.mxu0 0.0
  %4862 = vmatpush1.msra.mxu0 0.0
  %4863 = vmatprep.subr.mxu0 0.0
  %4864 = vmatpush1.msra.mxu0 0.0
  %4865 = vmatprep.subr.mxu0 0.0
  %4866 = vmatpush1.msra.mxu0 0.0
  %4867 = vmatprep.subr.mxu0 0.0
  %4868 = vmatpush1.msra.mxu0 0.0
  %4869 = vmatprep.subr.mxu0 0.0
  %4870 = vmatpush1.msra.mxu0 0.0
  %4871 = vmatprep.subr.mxu0 0.0
  %4872 = vmatpush1.msra.mxu0 0.0
  %4873 = vmatprep.subr.mxu0 0.0
  %4874 = vmatpush1.msra.mxu0 0.0
  %4875 = vmatprep.subr.mxu0 0.0
  %4876 = vmatpush1.msra.mxu0 0.0
  %4877 = vmatprep.subr.mxu0 0.0
  %4878 = vmatpush1.msra.mxu0 0.0
  %4879 = vmatprep.subr.mxu0 0.0
  %4880 = vmatpush1.msra.mxu0 0.0
  %4881 = vmatprep.mubr.f32.mxu0 0.0
  %4882 = vmatmul.mubr.f32.gmra.mrb[0].mxu0 %v4497
  %v4883 = vpop.f32.mrb[0].mxu0
  %v4884 = vadd.f32 0.0, %v4883
  %v4885 = vpop.f32.mrb[0].mxu0
  %4886 = vmatprep.mubr.f32.mxu0 0.0
  %4887 = vmatmul.mubr.f32.gmra.mrb[0].mxu0 %v4498
  %v4888 = vpop.f32.mrb[0].mxu0
  %v4889 = vadd.f32 0.0, %v4888
  %v4890 = vpop.f32.mrb[0].mxu0
  %4891 = vdwg.mxu0
  %v4893 = vsel %vm4654, %v4884, 0
  %v4896 = vsel %vm4654, %v4889, 0
  %4898 = vmatprep.subr.mxu0 0.0
  %4899 = vmatpush1.msra.mxu0 %v4503
  %4900 = vmatprep.subr.mxu0 0.0
  %4901 = vmatpush1.msra.mxu0 0.0
  %4902 = vmatprep.subr.mxu0 0.0
  %4903 = vmatpush1.msra.mxu0 0.0
  %4904 = vmatprep.subr.mxu0 0.0
  %4905 = vmatpush1.msra.mxu0 0.0
  %4906 = vmatprep.subr.mxu0 0.0
  %4907 = vmatpush1.msra.mxu0 0.0
  %4908 = vmatprep.subr.mxu0 0.0
  %4909 = vmatpush1.msra.mxu0 0.0
  %4910 = vmatprep.subr.mxu0 0.0
  %4911 = vmatpush1.msra.mxu0 0.0
  %4912 = vmatprep.subr.mxu0 0.0
  %4913 = vmatpush1.msra.mxu0 0.0
  %4914 = vmatprep.subr.mxu0 0.0
  %4915 = vmatpush1.msra.mxu0 0.0
  %4916 = vmatprep.subr.mxu0 0.0
  %4917 = vmatpush1.msra.mxu0 0.0
  %4918 = vmatprep.subr.mxu0 0.0
  %4919 = vmatpush1.msra.mxu0 0.0
  %4920 = vmatprep.subr.mxu0 0.0
  %4921 = vmatpush1.msra.mxu0 0.0
  %4922 = vmatprep.subr.mxu0 0.0
  %4923 = vmatpush1.msra.mxu0 0.0
  %4924 = vmatprep.subr.mxu0 0.0
  %4925 = vmatpush1.msra.mxu0 0.0
  %4926 = vmatprep.subr.mxu0 0.0
  %4927 = vmatpush1.msra.mxu0 0.0
  %4928 = vmatprep.subr.mxu0 0.0
  %4929 = vmatpush1.msra.mxu0 0.0
  %4930 = vmatprep.subr.mxu0 0.0
  %4931 = vmatpush1.msra.mxu0 0.0
  %4932 = vmatprep.subr.mxu0 0.0
  %4933 = vmatpush1.msra.mxu0 0.0
  %4934 = vmatprep.subr.mxu0 0.0
  %4935 = vmatpush1.msra.mxu0 0.0
  %4936 = vmatprep.subr.mxu0 0.0
  %4937 = vmatpush1.msra.mxu0 0.0
  %4938 = vmatprep.subr.mxu0 0.0
  %4939 = vmatpush1.msra.mxu0 0.0
  %4940 = vmatprep.subr.mxu0 0.0
  %4941 = vmatpush1.msra.mxu0 0.0
  %4942 = vmatprep.subr.mxu0 0.0
  %4943 = vmatpush1.msra.mxu0 0.0
  %4944 = vmatprep.subr.mxu0 0.0
  %4945 = vmatpush1.msra.mxu0 0.0
  %4946 = vmatprep.subr.mxu0 0.0
  %4947 = vmatpush1.msra.mxu0 0.0
  %4948 = vmatprep.subr.mxu0 0.0
  %4949 = vmatpush1.msra.mxu0 0.0
  %4950 = vmatprep.subr.mxu0 0.0
  %4951 = vmatpush1.msra.mxu0 0.0
  %4952 = vmatprep.subr.mxu0 0.0
  %4953 = vmatpush1.msra.mxu0 0.0
  %4954 = vmatprep.subr.mxu0 0.0
  %4955 = vmatpush1.msra.mxu0 0.0
  %4956 = vmatprep.subr.mxu0 0.0
  %4957 = vmatpush1.msra.mxu0 0.0
  %4958 = vmatprep.subr.mxu0 0.0
  %4959 = vmatpush1.msra.mxu0 0.0
  %4960 = vmatprep.subr.mxu0 0.0
  %4961 = vmatpush1.msra.mxu0 0.0
  %4962 = vmatprep.mubr.f32.mxu0 0.0
  %4963 = vmatmul.mubr.f32.gmra.mrb[0].mxu0 %v4893
  %v4964 = vpop.f32.mrb[0].mxu0
  %v4965 = vadd.f32 0.0, %v4964
  %v4966 = vpop.f32.mrb[0].mxu0
  %4967 = vmatprep.mubr.f32.mxu0 0.0
  %4968 = vmatmul.mubr.f32.gmra.mrb[0].mxu0 %v4896
  %v4969 = vpop.f32.mrb[0].mxu0
  %v4970 = vadd.f32 0.0, %v4969
  %v4971 = vpop.f32.mrb[0].mxu0
  %4972 = vdwg.mxu0
  %v4973 = vadd.f32 %v4809, %v4965
  %v4974 = vadd.f32 %v4814, %v4970
  %4976 = vset.pattern.permute.xlu0 0
  %4977 = vperm.xlu0 %4976, %v4499
  %v4978 = vpop.permute.xlu0 %4977
  %4981 = vset.pattern.permute.xlu0 0
  %4982 = vperm.xlu0 %4981, %v4500
  %v4983 = vpop.permute.xlu0 %4982
  %v4985 = vadd.f32 %v4973, %v4978
  %v4986 = vadd.f32 %v4974, %v4983
  %v4987 = vld [vmem:[%s87] sm:$0xff]
  %v4988 = vld [vmem:[%s87 + $0x8] sm:$0xff]
  %v4989 = vld [vmem:[%s87 + $0x10] sm:$0xff]
  %v4990 = vld [vmem:[%s87 + $0x18] sm:$0xff]
  %v4991 = vld [vmem:[%s87 + $0x20] sm:$0xff]
  %v4992 = vld [vmem:[%s87 + $0x28] sm:$0xff]
  %v4993 = vld [vmem:[%s87 + $0x30] sm:$0xff]
  %v4994 = vld [vmem:[%s87 + $0x38] sm:$0xff]
  %v4995 = vld [vmem:[%s87 + $0x40] sm:$0xff]
  %v4996 = vld [vmem:[%s87 + $0x48] sm:$0xff]
  %v4997 = vld [vmem:[%s87 + $0x50] sm:$0xff]
  %v4998 = vld [vmem:[%s87 + $0x58] sm:$0xff]
  %v4999 = vld [vmem:[%s87 + $0x60] sm:$0xff]
  %v5000 = vld [vmem:[%s87 + $0x68] sm:$0xff]
  %v5001 = vld [vmem:[%s87 + $0x70] sm:$0xff]
  %v5002 = vld [vmem:[%s87 + $0x78] sm:$0xff]
  %v5003 = vld [vmem:[%s89] sm:$0xff]
  %v5004 = vld [vmem:[%s89 + $0x8] sm:$0xff]
  %v5005 = vld [vmem:[%s89 + $0x10] sm:$0xff]
  %v5006 = vld [vmem:[%s89 + $0x18] sm:$0xff]
  %v5007 = vld [vmem:[%s89 + $0x20] sm:$0xff]
  %v5008 = vld [vmem:[%s89 + $0x28] sm:$0xff]
  %v5009 = vld [vmem:[%s89 + $0x30] sm:$0xff]
  %v5010 = vld [vmem:[%s89 + $0x38] sm:$0xff]
  %v5011 = vld [vmem:[%s89 + $0x40] sm:$0xff]
  %v5012 = vld [vmem:[%s89 + $0x48] sm:$0xff]
  %v5013 = vld [vmem:[%s89 + $0x50] sm:$0xff]
  %v5014 = vld [vmem:[%s89 + $0x58] sm:$0xff]
  %v5015 = vld [vmem:[%s89 + $0x60] sm:$0xff]
  %v5016 = vld [vmem:[%s89 + $0x68] sm:$0xff]
  %v5017 = vld [vmem:[%s89 + $0x70] sm:$0xff]
  %v5018 = vld [vmem:[%s89 + $0x78] sm:$0xff]
  %v5019 = vld [vmem:[%s91] sm:$0xff]
  %v5020 = vld [vmem:[%s91 + $0x8] sm:$0xff]
  %v5021 = vld [vmem:[%s91 + $0x10] sm:$0xff]
  %v5022 = vld [vmem:[%s91 + $0x18] sm:$0xff]
  %v5023 = vld [vmem:[%s91 + $0x20] sm:$0xff]
  %v5024 = vld [vmem:[%s91 + $0x28] sm:$0xff]
  %v5025 = vld [vmem:[%s91 + $0x30] sm:$0xff]
  %v5026 = vld [vmem:[%s91 + $0x38] sm:$0xff]
  %v5027 = vld [vmem:[%s91 + $0x40] sm:$0xff]
  %v5028 = vld [vmem:[%s91 + $0x48] sm:$0xff]
  %v5029 = vld [vmem:[%s91 + $0x50] sm:$0xff]
  %v5030 = vld [vmem:[%s91 + $0x58] sm:$0xff]
  %v5031 = vld [vmem:[%s91 + $0x60] sm:$0xff]
  %v5032 = vld [vmem:[%s91 + $0x68] sm:$0xff]
  %v5033 = vld [vmem:[%s91 + $0x70] sm:$0xff]
  %v5034 = vld [vmem:[%s91 + $0x78] sm:$0xff]
  %v5035 = vld [vmem:[%s93] sm:$0xff]
  %v5036 = vld [vmem:[%s93 + $0x8] sm:$0xff]
  %v5037 = vld [vmem:[%s93 + $0x10] sm:$0xff]
  %v5038 = vld [vmem:[%s93 + $0x18] sm:$0xff]
  %v5039 = vld [vmem:[%s93 + $0x20] sm:$0xff]
  %v5040 = vld [vmem:[%s93 + $0x28] sm:$0xff]
  %v5041 = vld [vmem:[%s93 + $0x30] sm:$0xff]
  %v5042 = vld [vmem:[%s93 + $0x38] sm:$0xff]
  %v5043 = vld [vmem:[%s93 + $0x40] sm:$0xff]
  %v5044 = vld [vmem:[%s93 + $0x48] sm:$0xff]
  %v5045 = vld [vmem:[%s93 + $0x50] sm:$0xff]
  %v5046 = vld [vmem:[%s93 + $0x58] sm:$0xff]
  %v5047 = vld [vmem:[%s93 + $0x60] sm:$0xff]
  %v5048 = vld [vmem:[%s93 + $0x68] sm:$0xff]
  %v5049 = vld [vmem:[%s93 + $0x70] sm:$0xff]
  %v5050 = vld [vmem:[%s93 + $0x78] sm:$0xff]
  %v5051 = vld [vmem:[%s95] sm:$0xff]
  %v5052 = vld [vmem:[%s97] sm:$0xff]
  %v5053 = vld [vmem:[%s99] sm:$0xff]
  %v5054 = vld [vmem:[%s101] sm:$0xff]
  %v5055 = vld [vmem:[%s101 + $0x8] sm:$0xff]
  %v5056 = vld [vmem:[%s101 + $0x10] sm:$0xff]
  %v5057 = vld [vmem:[%s101 + $0x18] sm:$0xff]
  %v5058 = vld [vmem:[%s101 + $0x20] sm:$0xff]
  %v5059 = vld [vmem:[%s101 + $0x28] sm:$0xff]
  %v5060 = vld [vmem:[%s101 + $0x30] sm:$0xff]
  %v5061 = vld [vmem:[%s101 + $0x38] sm:$0xff]
  %v5062 = vld [vmem:[%s101 + $0x40] sm:$0xff]
  %v5063 = vld [vmem:[%s101 + $0x48] sm:$0xff]
  %v5064 = vld [vmem:[%s101 + $0x50] sm:$0xff]
  %v5065 = vld [vmem:[%s101 + $0x58] sm:$0xff]
  %v5066 = vld [vmem:[%s101 + $0x60] sm:$0xff]
  %v5067 = vld [vmem:[%s101 + $0x68] sm:$0xff]
  %v5068 = vld [vmem:[%s101 + $0x70] sm:$0xff]
  %v5069 = vld [vmem:[%s101 + $0x78] sm:$0xff]
  %v5070 = vld [vmem:[%s103] sm:$0xff]
  %v5071 = vld [vmem:[%s103 + $0x8] sm:$0xff]
  %v5072 = vld [vmem:[%s103 + $0x10] sm:$0xff]
  %v5073 = vld [vmem:[%s103 + $0x18] sm:$0xff]
  %v5074 = vld [vmem:[%s103 + $0x20] sm:$0xff]
  %v5075 = vld [vmem:[%s103 + $0x28] sm:$0xff]
  %v5076 = vld [vmem:[%s103 + $0x30] sm:$0xff]
  %v5077 = vld [vmem:[%s103 + $0x38] sm:$0xff]
  %v5078 = vld [vmem:[%s103 + $0x40] sm:$0xff]
  %v5079 = vld [vmem:[%s103 + $0x48] sm:$0xff]
  %v5080 = vld [vmem:[%s103 + $0x50] sm:$0xff]
  %v5081 = vld [vmem:[%s103 + $0x58] sm:$0xff]
  %v5082 = vld [vmem:[%s103 + $0x60] sm:$0xff]
  %v5083 = vld [vmem:[%s103 + $0x68] sm:$0xff]
  %v5084 = vld [vmem:[%s103 + $0x70] sm:$0xff]
  %v5085 = vld [vmem:[%s103 + $0x78] sm:$0xff]
  %v5087 = vsel %vm4654, %v4985, 0
  %v5090 = vsel %vm4654, %v4986, 0
  %5092 = vmatprep.subr.mxu0 0.0
  %5093 = vmatpush1.msra.mxu0 %v5051
  %5094 = vmatprep.subr.mxu0 0.0
  %5095 = vmatpush1.msra.mxu0 0.0
  %5096 = vmatprep.subr.mxu0 0.0
  %5097 = vmatpush1.msra.mxu0 0.0
  %5098 = vmatprep.subr.mxu0 0.0
  %5099 = vmatpush1.msra.mxu0 0.0
  %5100 = vmatprep.subr.mxu0 0.0
  %5101 = vmatpush1.msra.mxu0 0.0
  %5102 = vmatprep.subr.mxu0 0.0
  %5103 = vmatpush1.msra.mxu0 0.0
  %5104 = vmatprep.subr.mxu0 0.0
  %5105 = vmatpush1.msra.mxu0 0.0
  %5106 = vmatprep.subr.mxu0 0.0
  %5107 = vmatpush1.msra.mxu0 0.0
  %5108 = vmatprep.subr.mxu0 0.0
  %5109 = vmatpush1.msra.mxu0 0.0
  %5110 = vmatprep.subr.mxu0 0.0
  %5111 = vmatpush1.msra.mxu0 0.0
  %5112 = vmatprep.subr.mxu0 0.0
  %5113 = vmatpush1.msra.mxu0 0.0
  %5114 = vmatprep.subr.mxu0 0.0
  %5115 = vmatpush1.msra.mxu0 0.0
  %5116 = vmatprep.subr.mxu0 0.0
  %5117 = vmatpush1.msra.mxu0 0.0
  %5118 = vmatprep.subr.mxu0 0.0
  %5119 = vmatpush1.msra.mxu0 0.0
  %5120 = vmatprep.subr.mxu0 0.0
  %5121 = vmatpush1.msra.mxu0 0.0
  %5122 = vmatprep.subr.mxu0 0.0
  %5123 = vmatpush1.msra.mxu0 0.0
  %5124 = vmatprep.subr.mxu0 0.0
  %5125 = vmatpush1.msra.mxu0 0.0
  %5126 = vmatprep.subr.mxu0 0.0
  %5127 = vmatpush1.msra.mxu0 0.0
  %5128 = vmatprep.subr.mxu0 0.0
  %5129 = vmatpush1.msra.mxu0 0.0
  %5130 = vmatprep.subr.mxu0 0.0
  %5131 = vmatpush1.msra.mxu0 0.0
  %5132 = vmatprep.subr.mxu0 0.0
  %5133 = vmatpush1.msra.mxu0 0.0
  %5134 = vmatprep.subr.mxu0 0.0
  %5135 = vmatpush1.msra.mxu0 0.0
  %5136 = vmatprep.subr.mxu0 0.0
  %5137 = vmatpush1.msra.mxu0 0.0
  %5138 = vmatprep.subr.mxu0 0.0
  %5139 = vmatpush1.msra.mxu0 0.0
  %5140 = vmatprep.subr.mxu0 0.0
  %5141 = vmatpush1.msra.mxu0 0.0
  %5142 = vmatprep.subr.mxu0 0.0
  %5143 = vmatpush1.msra.mxu0 0.0
  %5144 = vmatprep.subr.mxu0 0.0
  %5145 = vmatpush1.msra.mxu0 0.0
  %5146 = vmatprep.subr.mxu0 0.0
  %5147 = vmatpush1.msra.mxu0 0.0
  %5148 = vmatprep.subr.mxu0 0.0
  %5149 = vmatpush1.msra.mxu0 0.0
  %5150 = vmatprep.subr.mxu0 0.0
  %5151 = vmatpush1.msra.mxu0 0.0
  %5152 = vmatprep.subr.mxu0 0.0
  %5153 = vmatpush1.msra.mxu0 0.0
  %5154 = vmatprep.subr.mxu0 0.0
  %5155 = vmatpush1.msra.mxu0 0.0
  %5156 = vmatprep.mubr.f32.mxu0 0.0
  %5157 = vmatmul.mubr.f32.gmra.mrb[0].mxu0 %v5087
  %v5158 = vpop.f32.mrb[0].mxu0
  %v5159 = vadd.f32 0.0, %v5158
  %v5160 = vpop.f32.mrb[0].mxu0
  %5161 = vmatprep.mubr.f32.mxu0 0.0
  %5162 = vmatmul.mubr.f32.gmra.mrb[0].mxu0 %v5090
  %v5163 = vpop.f32.mrb[0].mxu0
  %v5164 = vadd.f32 0.0, %v5163
  %v5165 = vpop.f32.mrb[0].mxu0
  %5166 = vdwg.mxu0
  %5167 = vmatprep.subr.mxu0 0.0
  %5168 = vmatpush1.msra.mxu0 %v5052
  %5169 = vmatprep.subr.mxu0 0.0
  %5170 = vmatpush1.msra.mxu0 0.0
  %5171 = vmatprep.subr.mxu0 0.0
  %5172 = vmatpush1.msra.mxu0 0.0
  %5173 = vmatprep.subr.mxu0 0.0
  %5174 = vmatpush1.msra.mxu0 0.0
  %5175 = vmatprep.subr.mxu0 0.0
  %5176 = vmatpush1.msra.mxu0 0.0
  %5177 = vmatprep.subr.mxu0 0.0
  %5178 = vmatpush1.msra.mxu0 0.0
  %5179 = vmatprep.subr.mxu0 0.0
  %5180 = vmatpush1.msra.mxu0 0.0
  %5181 = vmatprep.subr.mxu0 0.0
  %5182 = vmatpush1.msra.mxu0 0.0
  %5183 = vmatprep.subr.mxu0 0.0
  %5184 = vmatpush1.msra.mxu0 0.0
  %5185 = vmatprep.subr.mxu0 0.0
  %5186 = vmatpush1.msra.mxu0 0.0
  %5187 = vmatprep.subr.mxu0 0.0
  %5188 = vmatpush1.msra.mxu0 0.0
  %5189 = vmatprep.subr.mxu0 0.0
  %5190 = vmatpush1.msra.mxu0 0.0
  %5191 = vmatprep.subr.mxu0 0.0
  %5192 = vmatpush1.msra.mxu0 0.0
  %5193 = vmatprep.subr.mxu0 0.0
  %5194 = vmatpush1.msra.mxu0 0.0
  %5195 = vmatprep.subr.mxu0 0.0
  %5196 = vmatpush1.msra.mxu0 0.0
  %5197 = vmatprep.subr.mxu0 0.0
  %5198 = vmatpush1.msra.mxu0 0.0
  %5199 = vmatprep.subr.mxu0 0.0
  %5200 = vmatpush1.msra.mxu0 0.0
  %5201 = vmatprep.subr.mxu0 0.0
  %5202 = vmatpush1.msra.mxu0 0.0
  %5203 = vmatprep.subr.mxu0 0.0
  %5204 = vmatpush1.msra.mxu0 0.0
  %5205 = vmatprep.subr.mxu0 0.0
  %5206 = vmatpush1.msra.mxu0 0.0
  %5207 = vmatprep.subr.mxu0 0.0
  %5208 = vmatpush1.msra.mxu0 0.0
  %5209 = vmatprep.subr.mxu0 0.0
  %5210 = vmatpush1.msra.mxu0 0.0
  %5211 = vmatprep.subr.mxu0 0.0
  %5212 = vmatpush1.msra.mxu0 0.0
  %5213 = vmatprep.subr.mxu0 0.0
  %5214 = vmatpush1.msra.mxu0 0.0
  %5215 = vmatprep.subr.mxu0 0.0
  %5216 = vmatpush1.msra.mxu0 0.0
  %5217 = vmatprep.subr.mxu0 0.0
  %5218 = vmatpush1.msra.mxu0 0.0
  %5219 = vmatprep.subr.mxu0 0.0
  %5220 = vmatpush1.msra.mxu0 0.0
  %5221 = vmatprep.subr.mxu0 0.0
  %5222 = vmatpush1.msra.mxu0 0.0
  %5223 = vmatprep.subr.mxu0 0.0
  %5224 = vmatpush1.msra.mxu0 0.0
  %5225 = vmatprep.subr.mxu0 0.0
  %5226 = vmatpush1.msra.mxu0 0.0
  %5227 = vmatprep.subr.mxu0 0.0
  %5228 = vmatpush1.msra.mxu0 0.0
  %5229 = vmatprep.subr.mxu0 0.0
  %5230 = vmatpush1.msra.mxu0 0.0
  %5231 = vmatprep.mubr.f32.mxu0 0.0
  %5232 = vmatmul.mubr.f32.gmra.mrb[0].mxu0 %v5087
  %v5233 = vpop.f32.mrb[0].mxu0
  %v5234 = vadd.f32 0.0, %v5233
  %v5235 = vpop.f32.mrb[0].mxu0
  %5236 = vmatprep.mubr.f32.mxu0 0.0
  %5237 = vmatmul.mubr.f32.gmra.mrb[0].mxu0 %v5090
  %v5238 = vpop.f32.mrb[0].mxu0
  %v5239 = vadd.f32 0.0, %v5238
  %v5240 = vpop.f32.mrb[0].mxu0
  %5241 = vdwg.mxu0
  %v5243 = vsel %vm2660, %v5003, 0
  %v5246 = vsel %vm2660, %v5004, 0
  %v5249 = vsel %vm2660, %v5005, 0
  %v5252 = vsel %vm2660, %v5006, 0
  %v5255 = vsel %vm2660, %v5007, 0
  %v5258 = vsel %vm2660, %v5008, 0
  %v5261 = vsel %vm2660, %v5009, 0
  %v5264 = vsel %vm2660, %v5010, 0
  %v5267 = vsel %vm2660, %v5011, 0
  %v5270 = vsel %vm2660, %v5012, 0
  %v5273 = vsel %vm2660, %v5013, 0
  %v5276 = vsel %vm2660, %v5014, 0
  %v5279 = vsel %vm2660, %v5015, 0
  %v5282 = vsel %vm2660, %v5016, 0
  %v5285 = vsel %vm2660, %v5017, 0
  %v5288 = vsel %vm2660, %v5018, 0
  %5290 = vmatprep.subr.mxu0 0.0
  %5291 = vmatpush1.msra.mxu0 %v5234
  %5292 = vmatprep.subr.mxu0 0.0
  %5293 = vmatpush1.msra.mxu0 %v5239
  %5294 = vmatprep.subr.mxu0 0.0
  %5295 = vmatpush1.msra.mxu0 0.0
  %5296 = vmatprep.subr.mxu0 0.0
  %5297 = vmatpush1.msra.mxu0 0.0
  %5298 = vmatprep.subr.mxu0 0.0
  %5299 = vmatpush1.msra.mxu0 0.0
  %5300 = vmatprep.subr.mxu0 0.0
  %5301 = vmatpush1.msra.mxu0 0.0
  %5302 = vmatprep.subr.mxu0 0.0
  %5303 = vmatpush1.msra.mxu0 0.0
  %5304 = vmatprep.subr.mxu0 0.0
  %5305 = vmatpush1.msra.mxu0 0.0
  %5306 = vmatprep.subr.mxu0 0.0
  %5307 = vmatpush1.msra.mxu0 0.0
  %5308 = vmatprep.subr.mxu0 0.0
  %5309 = vmatpush1.msra.mxu0 0.0
  %5310 = vmatprep.subr.mxu0 0.0
  %5311 = vmatpush1.msra.mxu0 0.0
  %5312 = vmatprep.subr.mxu0 0.0
  %5313 = vmatpush1.msra.mxu0 0.0
  %5314 = vmatprep.subr.mxu0 0.0
  %5315 = vmatpush1.msra.mxu0 0.0
  %5316 = vmatprep.subr.mxu0 0.0
  %5317 = vmatpush1.msra.mxu0 0.0
  %5318 = vmatprep.subr.mxu0 0.0
  %5319 = vmatpush1.msra.mxu0 0.0
  %5320 = vmatprep.subr.mxu0 0.0
  %5321 = vmatpush1.msra.mxu0 0.0
  %5322 = vmatprep.subr.mxu0 0.0
  %5323 = vmatpush1.msra.mxu0 0.0
  %5324 = vmatprep.subr.mxu0 0.0
  %5325 = vmatpush1.msra.mxu0 0.0
  %5326 = vmatprep.subr.mxu0 0.0
  %5327 = vmatpush1.msra.mxu0 0.0
  %5328 = vmatprep.subr.mxu0 0.0
  %5329 = vmatpush1.msra.mxu0 0.0
  %5330 = vmatprep.subr.mxu0 0.0
  %5331 = vmatpush1.msra.mxu0 0.0
  %5332 = vmatprep.subr.mxu0 0.0
  %5333 = vmatpush1.msra.mxu0 0.0
  %5334 = vmatprep.subr.mxu0 0.0
  %5335 = vmatpush1.msra.mxu0 0.0
  %5336 = vmatprep.subr.mxu0 0.0
  %5337 = vmatpush1.msra.mxu0 0.0
  %5338 = vmatprep.subr.mxu0 0.0
  %5339 = vmatpush1.msra.mxu0 0.0
  %5340 = vmatprep.subr.mxu0 0.0
  %5341 = vmatpush1.msra.mxu0 0.0
  %5342 = vmatprep.subr.mxu0 0.0
  %5343 = vmatpush1.msra.mxu0 0.0
  %5344 = vmatprep.subr.mxu0 0.0
  %5345 = vmatpush1.msra.mxu0 0.0
  %5346 = vmatprep.subr.mxu0 0.0
  %5347 = vmatpush1.msra.mxu0 0.0
  %5348 = vmatprep.subr.mxu0 0.0
  %5349 = vmatpush1.msra.mxu0 0.0
  %5350 = vmatprep.subr.mxu0 0.0
  %5351 = vmatpush1.msra.mxu0 0.0
  %5352 = vmatprep.subr.mxu0 0.0
  %5353 = vmatpush1.msra.mxu0 0.0
  %5354 = vmatprep.mubr.f32.mxu0 0.0
  %5355 = vmatmul.mubr.f32.gmra.mrb[0].mxu0 %v5243
  %v5356 = vpop.f32.mrb[0].mxu0
  %v5357 = vadd.f32 0.0, %v5356
  %v5358 = vpop.f32.mrb[0].mxu0
  %5359 = vmatprep.mubr.f32.mxu0 0.0
  %5360 = vmatmul.mubr.f32.gmra.mrb[0].mxu0 %v5246
  %v5361 = vpop.f32.mrb[0].mxu0
  %v5362 = vadd.f32 0.0, %v5361
  %v5363 = vpop.f32.mrb[0].mxu0
  %5364 = vmatprep.mubr.f32.mxu0 0.0
  %5365 = vmatmul.mubr.f32.gmra.mrb[0].mxu0 %v5249
  %v5366 = vpop.f32.mrb[0].mxu0
  %v5367 = vadd.f32 0.0, %v5366
  %v5368 = vpop.f32.mrb[0].mxu0
  %5369 = vmatprep.mubr.f32.mxu0 0.0
  %5370 = vmatmul.mubr.f32.gmra.mrb[0].mxu0 %v5252
  %v5371 = vpop.f32.mrb[0].mxu0
  %v5372 = vadd.f32 0.0, %v5371
  %v5373 = vpop.f32.mrb[0].mxu0
  %5374 = vmatprep.mubr.f32.mxu0 0.0
  %5375 = vmatmul.mubr.f32.gmra.mrb[0].mxu0 %v5255
  %v5376 = vpop.f32.mrb[0].mxu0
  %v5377 = vadd.f32 0.0, %v5376
  %v5378 = vpop.f32.mrb[0].mxu0
  %5379 = vmatprep.mubr.f32.mxu0 0.0
  %5380 = vmatmul.mubr.f32.gmra.mrb[0].mxu0 %v5258
  %v5381 = vpop.f32.mrb[0].mxu0
  %v5382 = vadd.f32 0.0, %v5381
  %v5383 = vpop.f32.mrb[0].mxu0
  %5384 = vmatprep.mubr.f32.mxu0 0.0
  %5385 = vmatmul.mubr.f32.gmra.mrb[0].mxu0 %v5261
  %v5386 = vpop.f32.mrb[0].mxu0
  %v5387 = vadd.f32 0.0, %v5386
  %v5388 = vpop.f32.mrb[0].mxu0
  %5389 = vmatprep.mubr.f32.mxu0 0.0
  %5390 = vmatmul.mubr.f32.gmra.mrb[0].mxu0 %v5264
  %v5391 = vpop.f32.mrb[0].mxu0
  %v5392 = vadd.f32 0.0, %v5391
  %v5393 = vpop.f32.mrb[0].mxu0
  %5394 = vmatprep.mubr.f32.mxu0 0.0
  %5395 = vmatmul.mubr.f32.gmra.mrb[0].mxu0 %v5267
  %v5396 = vpop.f32.mrb[0].mxu0
  %v5397 = vadd.f32 0.0, %v5396
  %v5398 = vpop.f32.mrb[0].mxu0
  %5399 = vmatprep.mubr.f32.mxu0 0.0
  %5400 = vmatmul.mubr.f32.gmra.mrb[0].mxu0 %v5270
  %v5401 = vpop.f32.mrb[0].mxu0
  %v5402 = vadd.f32 0.0, %v5401
  %v5403 = vpop.f32.mrb[0].mxu0
  %5404 = vmatprep.mubr.f32.mxu0 0.0
  %5405 = vmatmul.mubr.f32.gmra.mrb[0].mxu0 %v5273
  %v5406 = vpop.f32.mrb[0].mxu0
  %v5407 = vadd.f32 0.0, %v5406
  %v5408 = vpop.f32.mrb[0].mxu0
  %5409 = vmatprep.mubr.f32.mxu0 0.0
  %5410 = vmatmul.mubr.f32.gmra.mrb[0].mxu0 %v5276
  %v5411 = vpop.f32.mrb[0].mxu0
  %v5412 = vadd.f32 0.0, %v5411
  %v5413 = vpop.f32.mrb[0].mxu0
  %5414 = vmatprep.mubr.f32.mxu0 0.0
  %5415 = vmatmul.mubr.f32.gmra.mrb[0].mxu0 %v5279
  %v5416 = vpop.f32.mrb[0].mxu0
  %v5417 = vadd.f32 0.0, %v5416
  %v5418 = vpop.f32.mrb[0].mxu0
  %5419 = vmatprep.mubr.f32.mxu0 0.0
  %5420 = vmatmul.mubr.f32.gmra.mrb[0].mxu0 %v5282
  %v5421 = vpop.f32.mrb[0].mxu0
  %v5422 = vadd.f32 0.0, %v5421
  %v5423 = vpop.f32.mrb[0].mxu0
  %5424 = vmatprep.mubr.f32.mxu0 0.0
  %5425 = vmatmul.mubr.f32.gmra.mrb[0].mxu0 %v5285
  %v5426 = vpop.f32.mrb[0].mxu0
  %v5427 = vadd.f32 0.0, %v5426
  %v5428 = vpop.f32.mrb[0].mxu0
  %5429 = vmatprep.mubr.f32.mxu0 0.0
  %5430 = vmatmul.mubr.f32.gmra.mrb[0].mxu0 %v5288
  %v5431 = vpop.f32.mrb[0].mxu0
  %v5432 = vadd.f32 0.0, %v5431
  %v5433 = vpop.f32.mrb[0].mxu0
  %5434 = vdwg.mxu0
  %v5436 = vsel %vm2660, %v4987, 0
  %v5439 = vsel %vm2660, %v4988, 0
  %v5442 = vsel %vm2660, %v4989, 0
  %v5445 = vsel %vm2660, %v4990, 0
  %v5448 = vsel %vm2660, %v4991, 0
  %v5451 = vsel %vm2660, %v4992, 0
  %v5454 = vsel %vm2660, %v4993, 0
  %v5457 = vsel %vm2660, %v4994, 0
  %v5460 = vsel %vm2660, %v4995, 0
  %v5463 = vsel %vm2660, %v4996, 0
  %v5466 = vsel %vm2660, %v4997, 0
  %v5469 = vsel %vm2660, %v4998, 0
  %v5472 = vsel %vm2660, %v4999, 0
  %v5475 = vsel %vm2660, %v5000, 0
  %v5478 = vsel %vm2660, %v5001, 0
  %v5481 = vsel %vm2660, %v5002, 0
  %5483 = vmatprep.subr.mxu0 0.0
  %5484 = vmatpush1.msra.mxu0 %v5159
  %5485 = vmatprep.subr.mxu0 0.0
  %5486 = vmatpush1.msra.mxu0 %v5164
  %5487 = vmatprep.subr.mxu0 0.0
  %5488 = vmatpush1.msra.mxu0 0.0
  %5489 = vmatprep.subr.mxu0 0.0
  %5490 = vmatpush1.msra.mxu0 0.0
  %5491 = vmatprep.subr.mxu0 0.0
  %5492 = vmatpush1.msra.mxu0 0.0
  %5493 = vmatprep.subr.mxu0 0.0
  %5494 = vmatpush1.msra.mxu0 0.0
  %5495 = vmatprep.subr.mxu0 0.0
  %5496 = vmatpush1.msra.mxu0 0.0
  %5497 = vmatprep.subr.mxu0 0.0
  %5498 = vmatpush1.msra.mxu0 0.0
  %5499 = vmatprep.subr.mxu0 0.0
  %5500 = vmatpush1.msra.mxu0 0.0
  %5501 = vmatprep.subr.mxu0 0.0
  %5502 = vmatpush1.msra.mxu0 0.0
  %5503 = vmatprep.subr.mxu0 0.0
  %5504 = vmatpush1.msra.mxu0 0.0
  %5505 = vmatprep.subr.mxu0 0.0
  %5506 = vmatpush1.msra.mxu0 0.0
  %5507 = vmatprep.subr.mxu0 0.0
  %5508 = vmatpush1.msra.mxu0 0.0
  %5509 = vmatprep.subr.mxu0 0.0
  %5510 = vmatpush1.msra.mxu0 0.0
  %5511 = vmatprep.subr.mxu0 0.0
  %5512 = vmatpush1.msra.mxu0 0.0
  %5513 = vmatprep.subr.mxu0 0.0
  %5514 = vmatpush1.msra.mxu0 0.0
  %5515 = vmatprep.subr.mxu0 0.0
  %5516 = vmatpush1.msra.mxu0 0.0
  %5517 = vmatprep.subr.mxu0 0.0
  %5518 = vmatpush1.msra.mxu0 0.0
  %5519 = vmatprep.subr.mxu0 0.0
  %5520 = vmatpush1.msra.mxu0 0.0
  %5521 = vmatprep.subr.mxu0 0.0
  %5522 = vmatpush1.msra.mxu0 0.0
  %5523 = vmatprep.subr.mxu0 0.0
  %5524 = vmatpush1.msra.mxu0 0.0
  %5525 = vmatprep.subr.mxu0 0.0
  %5526 = vmatpush1.msra.mxu0 0.0
  %5527 = vmatprep.subr.mxu0 0.0
  %5528 = vmatpush1.msra.mxu0 0.0
  %5529 = vmatprep.subr.mxu0 0.0
  %5530 = vmatpush1.msra.mxu0 0.0
  %5531 = vmatprep.subr.mxu0 0.0
  %5532 = vmatpush1.msra.mxu0 0.0
  %5533 = vmatprep.subr.mxu0 0.0
  %5534 = vmatpush1.msra.mxu0 0.0
  %5535 = vmatprep.subr.mxu0 0.0
  %5536 = vmatpush1.msra.mxu0 0.0
  %5537 = vmatprep.subr.mxu0 0.0
  %5538 = vmatpush1.msra.mxu0 0.0
  %5539 = vmatprep.subr.mxu0 0.0
  %5540 = vmatpush1.msra.mxu0 0.0
  %5541 = vmatprep.subr.mxu0 0.0
  %5542 = vmatpush1.msra.mxu0 0.0
  %5543 = vmatprep.subr.mxu0 0.0
  %5544 = vmatpush1.msra.mxu0 0.0
  %5545 = vmatprep.subr.mxu0 0.0
  %5546 = vmatpush1.msra.mxu0 0.0
  %5547 = vmatprep.mubr.f32.mxu0 0.0
  %5548 = vmatmul.mubr.f32.gmra.mrb[0].mxu0 %v5436
  %v5549 = vpop.f32.mrb[0].mxu0
  %v5550 = vadd.f32 %v5357, %v5549
  %v5551 = vpop.f32.mrb[0].mxu0
  %5552 = vmatprep.mubr.f32.mxu0 0.0
  %5553 = vmatmul.mubr.f32.gmra.mrb[0].mxu0 %v5439
  %v5554 = vpop.f32.mrb[0].mxu0
  %v5555 = vadd.f32 %v5362, %v5554
  %v5556 = vpop.f32.mrb[0].mxu0
  %5557 = vmatprep.mubr.f32.mxu0 0.0
  %5558 = vmatmul.mubr.f32.gmra.mrb[0].mxu0 %v5442
  %v5559 = vpop.f32.mrb[0].mxu0
  %v5560 = vadd.f32 %v5367, %v5559
  %v5561 = vpop.f32.mrb[0].mxu0
  %5562 = vmatprep.mubr.f32.mxu0 0.0
  %5563 = vmatmul.mubr.f32.gmra.mrb[0].mxu0 %v5445
  %v5564 = vpop.f32.mrb[0].mxu0
  %v5565 = vadd.f32 %v5372, %v5564
  %v5566 = vpop.f32.mrb[0].mxu0
  %5567 = vmatprep.mubr.f32.mxu0 0.0
  %5568 = vmatmul.mubr.f32.gmra.mrb[0].mxu0 %v5448
  %v5569 = vpop.f32.mrb[0].mxu0
  %v5570 = vadd.f32 %v5377, %v5569
  %v5571 = vpop.f32.mrb[0].mxu0
  %5572 = vmatprep.mubr.f32.mxu0 0.0
  %5573 = vmatmul.mubr.f32.gmra.mrb[0].mxu0 %v5451
  %v5574 = vpop.f32.mrb[0].mxu0
  %v5575 = vadd.f32 %v5382, %v5574
  %v5576 = vpop.f32.mrb[0].mxu0
  %5577 = vmatprep.mubr.f32.mxu0 0.0
  %5578 = vmatmul.mubr.f32.gmra.mrb[0].mxu0 %v5454
  %v5579 = vpop.f32.mrb[0].mxu0
  %v5580 = vadd.f32 %v5387, %v5579
  %v5581 = vpop.f32.mrb[0].mxu0
  %5582 = vmatprep.mubr.f32.mxu0 0.0
  %5583 = vmatmul.mubr.f32.gmra.mrb[0].mxu0 %v5457
  %v5584 = vpop.f32.mrb[0].mxu0
  %v5585 = vadd.f32 %v5392, %v5584
  %v5586 = vpop.f32.mrb[0].mxu0
  %5587 = vmatprep.mubr.f32.mxu0 0.0
  %5588 = vmatmul.mubr.f32.gmra.mrb[0].mxu0 %v5460
  %v5589 = vpop.f32.mrb[0].mxu0
  %v5590 = vadd.f32 %v5397, %v5589
  %v5591 = vpop.f32.mrb[0].mxu0
  %5592 = vmatprep.mubr.f32.mxu0 0.0
  %5593 = vmatmul.mubr.f32.gmra.mrb[0].mxu0 %v5463
  %v5594 = vpop.f32.mrb[0].mxu0
  %v5595 = vadd.f32 %v5402, %v5594
  %v5596 = vpop.f32.mrb[0].mxu0
  %5597 = vmatprep.mubr.f32.mxu0 0.0
  %5598 = vmatmul.mubr.f32.gmra.mrb[0].mxu0 %v5466
  %v5599 = vpop.f32.mrb[0].mxu0
  %v5600 = vadd.f32 %v5407, %v5599
  %v5601 = vpop.f32.mrb[0].mxu0
  %5602 = vmatprep.mubr.f32.mxu0 0.0
  %5603 = vmatmul.mubr.f32.gmra.mrb[0].mxu0 %v5469
  %v5604 = vpop.f32.mrb[0].mxu0
  %v5605 = vadd.f32 %v5412, %v5604
  %v5606 = vpop.f32.mrb[0].mxu0
  %5607 = vmatprep.mubr.f32.mxu0 0.0
  %5608 = vmatmul.mubr.f32.gmra.mrb[0].mxu0 %v5472
  %v5609 = vpop.f32.mrb[0].mxu0
  %v5610 = vadd.f32 %v5417, %v5609
  %v5611 = vpop.f32.mrb[0].mxu0
  %5612 = vmatprep.mubr.f32.mxu0 0.0
  %5613 = vmatmul.mubr.f32.gmra.mrb[0].mxu0 %v5475
  %v5614 = vpop.f32.mrb[0].mxu0
  %v5615 = vadd.f32 %v5422, %v5614
  %v5616 = vpop.f32.mrb[0].mxu0
  %5617 = vmatprep.mubr.f32.mxu0 0.0
  %5618 = vmatmul.mubr.f32.gmra.mrb[0].mxu0 %v5478
  %v5619 = vpop.f32.mrb[0].mxu0
  %v5620 = vadd.f32 %v5427, %v5619
  %v5621 = vpop.f32.mrb[0].mxu0
  %5622 = vmatprep.mubr.f32.mxu0 0.0
  %5623 = vmatmul.mubr.f32.gmra.mrb[0].mxu0 %v5481
  %v5624 = vpop.f32.mrb[0].mxu0
  %v5625 = vadd.f32 %v5432, %v5624
  %v5626 = vpop.f32.mrb[0].mxu0
  %5627 = vdwg.mxu0
  %5628 = vmatprep.subr.mxu0 0.0
  %5629 = vmatpush1.msra.mxu0 %v5053
  %5630 = vmatprep.subr.mxu0 0.0
  %5631 = vmatpush1.msra.mxu0 0.0
  %5632 = vmatprep.subr.mxu0 0.0
  %5633 = vmatpush1.msra.mxu0 0.0
  %5634 = vmatprep.subr.mxu0 0.0
  %5635 = vmatpush1.msra.mxu0 0.0
  %5636 = vmatprep.subr.mxu0 0.0
  %5637 = vmatpush1.msra.mxu0 0.0
  %5638 = vmatprep.subr.mxu0 0.0
  %5639 = vmatpush1.msra.mxu0 0.0
  %5640 = vmatprep.subr.mxu0 0.0
  %5641 = vmatpush1.msra.mxu0 0.0
  %5642 = vmatprep.subr.mxu0 0.0
  %5643 = vmatpush1.msra.mxu0 0.0
  %5644 = vmatprep.subr.mxu0 0.0
  %5645 = vmatpush1.msra.mxu0 0.0
  %5646 = vmatprep.subr.mxu0 0.0
  %5647 = vmatpush1.msra.mxu0 0.0
  %5648 = vmatprep.subr.mxu0 0.0
  %5649 = vmatpush1.msra.mxu0 0.0
  %5650 = vmatprep.subr.mxu0 0.0
  %5651 = vmatpush1.msra.mxu0 0.0
  %5652 = vmatprep.subr.mxu0 0.0
  %5653 = vmatpush1.msra.mxu0 0.0
  %5654 = vmatprep.subr.mxu0 0.0
  %5655 = vmatpush1.msra.mxu0 0.0
  %5656 = vmatprep.subr.mxu0 0.0
  %5657 = vmatpush1.msra.mxu0 0.0
  %5658 = vmatprep.subr.mxu0 0.0
  %5659 = vmatpush1.msra.mxu0 0.0
  %5660 = vmatprep.subr.mxu0 0.0
  %5661 = vmatpush1.msra.mxu0 0.0
  %5662 = vmatprep.subr.mxu0 0.0
  %5663 = vmatpush1.msra.mxu0 0.0
  %5664 = vmatprep.subr.mxu0 0.0
  %5665 = vmatpush1.msra.mxu0 0.0
  %5666 = vmatprep.subr.mxu0 0.0
  %5667 = vmatpush1.msra.mxu0 0.0
  %5668 = vmatprep.subr.mxu0 0.0
  %5669 = vmatpush1.msra.mxu0 0.0
  %5670 = vmatprep.subr.mxu0 0.0
  %5671 = vmatpush1.msra.mxu0 0.0
  %5672 = vmatprep.subr.mxu0 0.0
  %5673 = vmatpush1.msra.mxu0 0.0
  %5674 = vmatprep.subr.mxu0 0.0
  %5675 = vmatpush1.msra.mxu0 0.0
  %5676 = vmatprep.subr.mxu0 0.0
  %5677 = vmatpush1.msra.mxu0 0.0
  %5678 = vmatprep.subr.mxu0 0.0
  %5679 = vmatpush1.msra.mxu0 0.0
  %5680 = vmatprep.subr.mxu0 0.0
  %5681 = vmatpush1.msra.mxu0 0.0
  %5682 = vmatprep.subr.mxu0 0.0
  %5683 = vmatpush1.msra.mxu0 0.0
  %5684 = vmatprep.subr.mxu0 0.0
  %5685 = vmatpush1.msra.mxu0 0.0
  %5686 = vmatprep.subr.mxu0 0.0
  %5687 = vmatpush1.msra.mxu0 0.0
  %5688 = vmatprep.subr.mxu0 0.0
  %5689 = vmatpush1.msra.mxu0 0.0
  %5690 = vmatprep.subr.mxu0 0.0
  %5691 = vmatpush1.msra.mxu0 0.0
  %5692 = vmatprep.mubr.f32.mxu0 0.0
  %5693 = vmatmul.mubr.f32.gmra.mrb[0].mxu0 %v5087
  %v5694 = vpop.f32.mrb[0].mxu0
  %v5695 = vadd.f32 0.0, %v5694
  %v5696 = vpop.f32.mrb[0].mxu0
  %5697 = vmatprep.mubr.f32.mxu0 0.0
  %5698 = vmatmul.mubr.f32.gmra.mrb[0].mxu0 %v5090
  %v5699 = vpop.f32.mrb[0].mxu0
  %v5700 = vadd.f32 0.0, %v5699
  %v5701 = vpop.f32.mrb[0].mxu0
  %5702 = vdwg.mxu0
  %v5704 = vsel %vm2660, %v5019, 0
  %v5707 = vsel %vm2660, %v5020, 0
  %v5710 = vsel %vm2660, %v5021, 0
  %v5713 = vsel %vm2660, %v5022, 0
  %v5716 = vsel %vm2660, %v5023, 0
  %v5719 = vsel %vm2660, %v5024, 0
  %v5722 = vsel %vm2660, %v5025, 0
  %v5725 = vsel %vm2660, %v5026, 0
  %v5728 = vsel %vm2660, %v5027, 0
  %v5731 = vsel %vm2660, %v5028, 0
  %v5734 = vsel %vm2660, %v5029, 0
  %v5737 = vsel %vm2660, %v5030, 0
  %v5740 = vsel %vm2660, %v5031, 0
  %v5743 = vsel %vm2660, %v5032, 0
  %v5746 = vsel %vm2660, %v5033, 0
  %v5749 = vsel %vm2660, %v5034, 0
  %5751 = vmatprep.subr.mxu0 0.0
  %5752 = vmatpush1.msra.mxu0 %v5695
  %5753 = vmatprep.subr.mxu0 0.0
  %5754 = vmatpush1.msra.mxu0 %v5700
  %5755 = vmatprep.subr.mxu0 0.0
  %5756 = vmatpush1.msra.mxu0 0.0
  %5757 = vmatprep.subr.mxu0 0.0
  %5758 = vmatpush1.msra.mxu0 0.0
  %5759 = vmatprep.subr.mxu0 0.0
  %5760 = vmatpush1.msra.mxu0 0.0
  %5761 = vmatprep.subr.mxu0 0.0
  %5762 = vmatpush1.msra.mxu0 0.0
  %5763 = vmatprep.subr.mxu0 0.0
  %5764 = vmatpush1.msra.mxu0 0.0
  %5765 = vmatprep.subr.mxu0 0.0
  %5766 = vmatpush1.msra.mxu0 0.0
  %5767 = vmatprep.subr.mxu0 0.0
  %5768 = vmatpush1.msra.mxu0 0.0
  %5769 = vmatprep.subr.mxu0 0.0
  %5770 = vmatpush1.msra.mxu0 0.0
  %5771 = vmatprep.subr.mxu0 0.0
  %5772 = vmatpush1.msra.mxu0 0.0
  %5773 = vmatprep.subr.mxu0 0.0
  %5774 = vmatpush1.msra.mxu0 0.0
  %5775 = vmatprep.subr.mxu0 0.0
  %5776 = vmatpush1.msra.mxu0 0.0
  %5777 = vmatprep.subr.mxu0 0.0
  %5778 = vmatpush1.msra.mxu0 0.0
  %5779 = vmatprep.subr.mxu0 0.0
  %5780 = vmatpush1.msra.mxu0 0.0
  %5781 = vmatprep.subr.mxu0 0.0
  %5782 = vmatpush1.msra.mxu0 0.0
  %5783 = vmatprep.subr.mxu0 0.0
  %5784 = vmatpush1.msra.mxu0 0.0
  %5785 = vmatprep.subr.mxu0 0.0
  %5786 = vmatpush1.msra.mxu0 0.0
  %5787 = vmatprep.subr.mxu0 0.0
  %5788 = vmatpush1.msra.mxu0 0.0
  %5789 = vmatprep.subr.mxu0 0.0
  %5790 = vmatpush1.msra.mxu0 0.0
  %5791 = vmatprep.subr.mxu0 0.0
  %5792 = vmatpush1.msra.mxu0 0.0
  %5793 = vmatprep.subr.mxu0 0.0
  %5794 = vmatpush1.msra.mxu0 0.0
  %5795 = vmatprep.subr.mxu0 0.0
  %5796 = vmatpush1.msra.mxu0 0.0
  %5797 = vmatprep.subr.mxu0 0.0
  %5798 = vmatpush1.msra.mxu0 0.0
  %5799 = vmatprep.subr.mxu0 0.0
  %5800 = vmatpush1.msra.mxu0 0.0
  %5801 = vmatprep.subr.mxu0 0.0
  %5802 = vmatpush1.msra.mxu0 0.0
  %5803 = vmatprep.subr.mxu0 0.0
  %5804 = vmatpush1.msra.mxu0 0.0
  %5805 = vmatprep.subr.mxu0 0.0
  %5806 = vmatpush1.msra.mxu0 0.0
  %5807 = vmatprep.subr.mxu0 0.0
  %5808 = vmatpush1.msra.mxu0 0.0
  %5809 = vmatprep.subr.mxu0 0.0
  %5810 = vmatpush1.msra.mxu0 0.0
  %5811 = vmatprep.subr.mxu0 0.0
  %5812 = vmatpush1.msra.mxu0 0.0
  %5813 = vmatprep.subr.mxu0 0.0
  %5814 = vmatpush1.msra.mxu0 0.0
  %5815 = vmatprep.mubr.f32.mxu0 0.0
  %5816 = vmatmul.mubr.f32.gmra.mrb[0].mxu0 %v5704
  %v5817 = vpop.f32.mrb[0].mxu0
  %v5818 = vadd.f32 0.0, %v5817
  %v5819 = vpop.f32.mrb[0].mxu0
  %5820 = vmatprep.mubr.f32.mxu0 0.0
  %5821 = vmatmul.mubr.f32.gmra.mrb[0].mxu0 %v5707
  %v5822 = vpop.f32.mrb[0].mxu0
  %v5823 = vadd.f32 0.0, %v5822
  %v5824 = vpop.f32.mrb[0].mxu0
  %5825 = vmatprep.mubr.f32.mxu0 0.0
  %5826 = vmatmul.mubr.f32.gmra.mrb[0].mxu0 %v5710
  %v5827 = vpop.f32.mrb[0].mxu0
  %v5828 = vadd.f32 0.0, %v5827
  %v5829 = vpop.f32.mrb[0].mxu0
  %5830 = vmatprep.mubr.f32.mxu0 0.0
  %5831 = vmatmul.mubr.f32.gmra.mrb[0].mxu0 %v5713
  %v5832 = vpop.f32.mrb[0].mxu0
  %v5833 = vadd.f32 0.0, %v5832
  %v5834 = vpop.f32.mrb[0].mxu0
  %5835 = vmatprep.mubr.f32.mxu0 0.0
  %5836 = vmatmul.mubr.f32.gmra.mrb[0].mxu0 %v5716
  %v5837 = vpop.f32.mrb[0].mxu0
  %v5838 = vadd.f32 0.0, %v5837
  %v5839 = vpop.f32.mrb[0].mxu0
  %5840 = vmatprep.mubr.f32.mxu0 0.0
  %5841 = vmatmul.mubr.f32.gmra.mrb[0].mxu0 %v5719
  %v5842 = vpop.f32.mrb[0].mxu0
  %v5843 = vadd.f32 0.0, %v5842
  %v5844 = vpop.f32.mrb[0].mxu0
  %5845 = vmatprep.mubr.f32.mxu0 0.0
  %5846 = vmatmul.mubr.f32.gmra.mrb[0].mxu0 %v5722
  %v5847 = vpop.f32.mrb[0].mxu0
  %v5848 = vadd.f32 0.0, %v5847
  %v5849 = vpop.f32.mrb[0].mxu0
  %5850 = vmatprep.mubr.f32.mxu0 0.0
  %5851 = vmatmul.mubr.f32.gmra.mrb[0].mxu0 %v5725
  %v5852 = vpop.f32.mrb[0].mxu0
  %v5853 = vadd.f32 0.0, %v5852
  %v5854 = vpop.f32.mrb[0].mxu0
  %5855 = vmatprep.mubr.f32.mxu0 0.0
  %5856 = vmatmul.mubr.f32.gmra.mrb[0].mxu0 %v5728
  %v5857 = vpop.f32.mrb[0].mxu0
  %v5858 = vadd.f32 0.0, %v5857
  %v5859 = vpop.f32.mrb[0].mxu0
  %5860 = vmatprep.mubr.f32.mxu0 0.0
  %5861 = vmatmul.mubr.f32.gmra.mrb[0].mxu0 %v5731
  %v5862 = vpop.f32.mrb[0].mxu0
  %v5863 = vadd.f32 0.0, %v5862
  %v5864 = vpop.f32.mrb[0].mxu0
  %5865 = vmatprep.mubr.f32.mxu0 0.0
  %5866 = vmatmul.mubr.f32.gmra.mrb[0].mxu0 %v5734
  %v5867 = vpop.f32.mrb[0].mxu0
  %v5868 = vadd.f32 0.0, %v5867
  %v5869 = vpop.f32.mrb[0].mxu0
  %5870 = vmatprep.mubr.f32.mxu0 0.0
  %5871 = vmatmul.mubr.f32.gmra.mrb[0].mxu0 %v5737
  %v5872 = vpop.f32.mrb[0].mxu0
  %v5873 = vadd.f32 0.0, %v5872
  %v5874 = vpop.f32.mrb[0].mxu0
  %5875 = vmatprep.mubr.f32.mxu0 0.0
  %5876 = vmatmul.mubr.f32.gmra.mrb[0].mxu0 %v5740
  %v5877 = vpop.f32.mrb[0].mxu0
  %v5878 = vadd.f32 0.0, %v5877
  %v5879 = vpop.f32.mrb[0].mxu0
  %5880 = vmatprep.mubr.f32.mxu0 0.0
  %5881 = vmatmul.mubr.f32.gmra.mrb[0].mxu0 %v5743
  %v5882 = vpop.f32.mrb[0].mxu0
  %v5883 = vadd.f32 0.0, %v5882
  %v5884 = vpop.f32.mrb[0].mxu0
  %5885 = vmatprep.mubr.f32.mxu0 0.0
  %5886 = vmatmul.mubr.f32.gmra.mrb[0].mxu0 %v5746
  %v5887 = vpop.f32.mrb[0].mxu0
  %v5888 = vadd.f32 0.0, %v5887
  %v5889 = vpop.f32.mrb[0].mxu0
  %5890 = vmatprep.mubr.f32.mxu0 0.0
  %5891 = vmatmul.mubr.f32.gmra.mrb[0].mxu0 %v5749
  %v5892 = vpop.f32.mrb[0].mxu0
  %v5893 = vadd.f32 0.0, %v5892
  %v5894 = vpop.f32.mrb[0].mxu0
  %5895 = vdwg.mxu0
  %v5896 = vadd.f32 %v5550, %v5818
  %v5897 = vadd.f32 %v5555, %v5823
  %v5898 = vadd.f32 %v5560, %v5828
  %v5899 = vadd.f32 %v5565, %v5833
  %v5900 = vadd.f32 %v5570, %v5838
  %v5901 = vadd.f32 %v5575, %v5843
  %v5902 = vadd.f32 %v5580, %v5848
  %v5903 = vadd.f32 %v5585, %v5853
  %v5904 = vadd.f32 %v5590, %v5858
  %v5905 = vadd.f32 %v5595, %v5863
  %v5906 = vadd.f32 %v5600, %v5868
  %v5907 = vadd.f32 %v5605, %v5873
  %v5908 = vadd.f32 %v5610, %v5878
  %v5909 = vadd.f32 %v5615, %v5883
  %v5910 = vadd.f32 %v5620, %v5888
  %v5911 = vadd.f32 %v5625, %v5893
  %5913 = vset.pattern.permute.xlu0 0
  %5914 = vperm.xlu0 %5913, %v5035
  %v5915 = vpop.permute.xlu0 %5914
  %5918 = vset.pattern.permute.xlu0 0
  %5919 = vperm.xlu0 %5918, %v5036
  %v5920 = vpop.permute.xlu0 %5919
  %5923 = vset.pattern.permute.xlu0 0
  %5924 = vperm.xlu0 %5923, %v5037
  %v5925 = vpop.permute.xlu0 %5924
  %5928 = vset.pattern.permute.xlu0 0
  %5929 = vperm.xlu0 %5928, %v5038
  %v5930 = vpop.permute.xlu0 %5929
  %5933 = vset.pattern.permute.xlu0 0
  %5934 = vperm.xlu0 %5933, %v5039
  %v5935 = vpop.permute.xlu0 %5934
  %5938 = vset.pattern.permute.xlu0 0
  %5939 = vperm.xlu0 %5938, %v5040
  %v5940 = vpop.permute.xlu0 %5939
  %5943 = vset.pattern.permute.xlu0 0
  %5944 = vperm.xlu0 %5943, %v5041
  %v5945 = vpop.permute.xlu0 %5944
  %5948 = vset.pattern.permute.xlu0 0
  %5949 = vperm.xlu0 %5948, %v5042
  %v5950 = vpop.permute.xlu0 %5949
  %5953 = vset.pattern.permute.xlu0 0
  %5954 = vperm.xlu0 %5953, %v5043
  %v5955 = vpop.permute.xlu0 %5954
  %5958 = vset.pattern.permute.xlu0 0
  %5959 = vperm.xlu0 %5958, %v5044
  %v5960 = vpop.permute.xlu0 %5959
  %5963 = vset.pattern.permute.xlu0 0
  %5964 = vperm.xlu0 %5963, %v5045
  %v5965 = vpop.permute.xlu0 %5964
  %5968 = vset.pattern.permute.xlu0 0
  %5969 = vperm.xlu0 %5968, %v5046
  %v5970 = vpop.permute.xlu0 %5969
  %5973 = vset.pattern.permute.xlu0 0
  %5974 = vperm.xlu0 %5973, %v5047
  %v5975 = vpop.permute.xlu0 %5974
  %5978 = vset.pattern.permute.xlu0 0
  %5979 = vperm.xlu0 %5978, %v5048
  %v5980 = vpop.permute.xlu0 %5979
  %5983 = vset.pattern.permute.xlu0 0
  %5984 = vperm.xlu0 %5983, %v5049
  %v5985 = vpop.permute.xlu0 %5984
  %5988 = vset.pattern.permute.xlu0 0
  %5989 = vperm.xlu0 %5988, %v5050
  %v5990 = vpop.permute.xlu0 %5989
  %v5992 = vadd.f32 %v5896, %v5915
  %v5993 = vadd.f32 %v5897, %v5920
  %v5994 = vadd.f32 %v5898, %v5925
  %v5995 = vadd.f32 %v5899, %v5930
  %v5996 = vadd.f32 %v5900, %v5935
  %v5997 = vadd.f32 %v5901, %v5940
  %v5998 = vadd.f32 %v5902, %v5945
  %v5999 = vadd.f32 %v5903, %v5950
  %v6000 = vadd.f32 %v5904, %v5955
  %v6001 = vadd.f32 %v5905, %v5960
  %v6002 = vadd.f32 %v5906, %v5965
  %v6003 = vadd.f32 %v5907, %v5970
  %v6004 = vadd.f32 %v5908, %v5975
  %v6005 = vadd.f32 %v5909, %v5980
  %v6006 = vadd.f32 %v5910, %v5985
  %v6007 = vadd.f32 %v5911, %v5990
  %v6008 = vsel %vm4654, %v5992, 0.0
  %6009 = vadd.xlane.f32.xlu0 %v6008
  %v6010 = vpop.xlane.xlu0 %6009
  %v6011 = vsel %vm4654, %v5993, 0.0
  %6012 = vadd.xlane.f32.xlu0 %v6011
  %v6013 = vpop.xlane.xlu0 %6012
  %v6014 = vsel %vm4654, %v5994, 0.0
  %6015 = vadd.xlane.f32.xlu0 %v6014
  %v6016 = vpop.xlane.xlu0 %6015
  %v6017 = vsel %vm4654, %v5995, 0.0
  %6018 = vadd.xlane.f32.xlu0 %v6017
  %v6019 = vpop.xlane.xlu0 %6018
  %v6020 = vsel %vm4654, %v5996, 0.0
  %6021 = vadd.xlane.f32.xlu0 %v6020
  %v6022 = vpop.xlane.xlu0 %6021
  %v6023 = vsel %vm4654, %v5997, 0.0
  %6024 = vadd.xlane.f32.xlu0 %v6023
  %v6025 = vpop.xlane.xlu0 %6024
  %v6026 = vsel %vm4654, %v5998, 0.0
  %6027 = vadd.xlane.f32.xlu0 %v6026
  %v6028 = vpop.xlane.xlu0 %6027
  %v6029 = vsel %vm4654, %v5999, 0.0
  %6030 = vadd.xlane.f32.xlu0 %v6029
  %v6031 = vpop.xlane.xlu0 %6030
  %v6032 = vsel %vm4654, %v6000, 0.0
  %6033 = vadd.xlane.f32.xlu0 %v6032
  %v6034 = vpop.xlane.xlu0 %6033
  %v6035 = vsel %vm4654, %v6001, 0.0
  %6036 = vadd.xlane.f32.xlu0 %v6035
  %v6037 = vpop.xlane.xlu0 %6036
  %v6038 = vsel %vm4654, %v6002, 0.0
  %6039 = vadd.xlane.f32.xlu0 %v6038
  %v6040 = vpop.xlane.xlu0 %6039
  %v6041 = vsel %vm4654, %v6003, 0.0
  %6042 = vadd.xlane.f32.xlu0 %v6041
  %v6043 = vpop.xlane.xlu0 %6042
  %v6044 = vsel %vm4654, %v6004, 0.0
  %6045 = vadd.xlane.f32.xlu0 %v6044
  %v6046 = vpop.xlane.xlu0 %6045
  %v6047 = vsel %vm4654, %v6005, 0.0
  %6048 = vadd.xlane.f32.xlu0 %v6047
  %v6049 = vpop.xlane.xlu0 %6048
  %v6050 = vsel %vm4654, %v6006, 0.0
  %6051 = vadd.xlane.f32.xlu0 %v6050
  %v6052 = vpop.xlane.xlu0 %6051
  %v6053 = vsel %vm4654, %v6007, 0.0
  %6054 = vadd.xlane.f32.xlu0 %v6053
  %v6055 = vpop.xlane.xlu0 %6054
  %v6056 = vmul.f32 %v5992, %v5992
  %v6057 = vmul.f32 %v5993, %v5993
  %v6058 = vmul.f32 %v5994, %v5994
  %v6059 = vmul.f32 %v5995, %v5995
  %v6060 = vmul.f32 %v5996, %v5996
  %v6061 = vmul.f32 %v5997, %v5997
  %v6062 = vmul.f32 %v5998, %v5998
  %v6063 = vmul.f32 %v5999, %v5999
  %v6064 = vmul.f32 %v6000, %v6000
  %v6065 = vmul.f32 %v6001, %v6001
  %v6066 = vmul.f32 %v6002, %v6002
  %v6067 = vmul.f32 %v6003, %v6003
  %v6068 = vmul.f32 %v6004, %v6004
  %v6069 = vmul.f32 %v6005, %v6005
  %v6070 = vmul.f32 %v6006, %v6006
  %v6071 = vmul.f32 %v6007, %v6007
  %v6072 = vsel %vm4654, %v6056, 0.0
  %6073 = vadd.xlane.f32.xlu0 %v6072
  %v6074 = vpop.xlane.xlu0 %6073
  %v6075 = vsel %vm4654, %v6057, 0.0
  %6076 = vadd.xlane.f32.xlu0 %v6075
  %v6077 = vpop.xlane.xlu0 %6076
  %v6078 = vsel %vm4654, %v6058, 0.0
  %6079 = vadd.xlane.f32.xlu0 %v6078
  %v6080 = vpop.xlane.xlu0 %6079
  %v6081 = vsel %vm4654, %v6059, 0.0
  %6082 = vadd.xlane.f32.xlu0 %v6081
  %v6083 = vpop.xlane.xlu0 %6082
  %v6084 = vsel %vm4654, %v6060, 0.0
  %6085 = vadd.xlane.f32.xlu0 %v6084
  %v6086 = vpop.xlane.xlu0 %6085
  %v6087 = vsel %vm4654, %v6061, 0.0
  %6088 = vadd.xlane.f32.xlu0 %v6087
  %v6089 = vpop.xlane.xlu0 %6088
  %v6090 = vsel %vm4654, %v6062, 0.0
  %6091 = vadd.xlane.f32.xlu0 %v6090
  %v6092 = vpop.xlane.xlu0 %6091
  %v6093 = vsel %vm4654, %v6063, 0.0
  %6094 = vadd.xlane.f32.xlu0 %v6093
  %v6095 = vpop.xlane.xlu0 %6094
  %v6096 = vsel %vm4654, %v6064, 0.0
  %6097 = vadd.xlane.f32.xlu0 %v6096
  %v6098 = vpop.xlane.xlu0 %6097
  %v6099 = vsel %vm4654, %v6065, 0.0
  %6100 = vadd.xlane.f32.xlu0 %v6099
  %v6101 = vpop.xlane.xlu0 %6100
  %v6102 = vsel %vm4654, %v6066, 0.0
  %6103 = vadd.xlane.f32.xlu0 %v6102
  %v6104 = vpop.xlane.xlu0 %6103
  %v6105 = vsel %vm4654, %v6067, 0.0
  %6106 = vadd.xlane.f32.xlu0 %v6105
  %v6107 = vpop.xlane.xlu0 %6106
  %v6108 = vsel %vm4654, %v6068, 0.0
  %6109 = vadd.xlane.f32.xlu0 %v6108
  %v6110 = vpop.xlane.xlu0 %6109
  %v6111 = vsel %vm4654, %v6069, 0.0
  %6112 = vadd.xlane.f32.xlu0 %v6111
  %v6113 = vpop.xlane.xlu0 %6112
  %v6114 = vsel %vm4654, %v6070, 0.0
  %6115 = vadd.xlane.f32.xlu0 %v6114
  %v6116 = vpop.xlane.xlu0 %6115
  %v6117 = vsel %vm4654, %v6071, 0.0
  %6118 = vadd.xlane.f32.xlu0 %v6117
  %v6119 = vpop.xlane.xlu0 %6118
  %v6120 = vmul.f32 %v6010, 0.125
  %v6121 = vmul.f32 %v6013, 0.125
  %v6122 = vmul.f32 %v6016, 0.125
  %v6123 = vmul.f32 %v6019, 0.125
  %v6124 = vmul.f32 %v6022, 0.125
  %v6125 = vmul.f32 %v6025, 0.125
  %v6126 = vmul.f32 %v6028, 0.125
  %v6127 = vmul.f32 %v6031, 0.125
  %v6128 = vmul.f32 %v6034, 0.125
  %v6129 = vmul.f32 %v6037, 0.125
  %v6130 = vmul.f32 %v6040, 0.125
  %v6131 = vmul.f32 %v6043, 0.125
  %v6132 = vmul.f32 %v6046, 0.125
  %v6133 = vmul.f32 %v6049, 0.125
  %v6134 = vmul.f32 %v6052, 0.125
  %v6135 = vmul.f32 %v6055, 0.125
  %v6136 = vmul.f32 %v6074, 0.125
  %v6137 = vmul.f32 %v6077, 0.125
  %v6138 = vmul.f32 %v6080, 0.125
  %v6139 = vmul.f32 %v6083, 0.125
  %v6140 = vmul.f32 %v6086, 0.125
  %v6141 = vmul.f32 %v6089, 0.125
  %v6142 = vmul.f32 %v6092, 0.125
  %v6143 = vmul.f32 %v6095, 0.125
  %v6144 = vmul.f32 %v6098, 0.125
  %v6145 = vmul.f32 %v6101, 0.125
  %v6146 = vmul.f32 %v6104, 0.125
  %v6147 = vmul.f32 %v6107, 0.125
  %v6148 = vmul.f32 %v6110, 0.125
  %v6149 = vmul.f32 %v6113, 0.125
  %v6150 = vmul.f32 %v6116, 0.125
  %v6151 = vmul.f32 %v6119, 0.125
  %v6152 = vmul.f32 %v6120, %v6120
  %v6153 = vmul.f32 %v6121, %v6121
  %v6154 = vmul.f32 %v6122, %v6122
  %v6155 = vmul.f32 %v6123, %v6123
  %v6156 = vmul.f32 %v6124, %v6124
  %v6157 = vmul.f32 %v6125, %v6125
  %v6158 = vmul.f32 %v6126, %v6126
  %v6159 = vmul.f32 %v6127, %v6127
  %v6160 = vmul.f32 %v6128, %v6128
  %v6161 = vmul.f32 %v6129, %v6129
  %v6162 = vmul.f32 %v6130, %v6130
  %v6163 = vmul.f32 %v6131, %v6131
  %v6164 = vmul.f32 %v6132, %v6132
  %v6165 = vmul.f32 %v6133, %v6133
  %v6166 = vmul.f32 %v6134, %v6134
  %v6167 = vmul.f32 %v6135, %v6135
  %v6168 = vsub.f32 %v6136, %v6152
  %v6169 = vsub.f32 %v6137, %v6153
  %v6170 = vsub.f32 %v6138, %v6154
  %v6171 = vsub.f32 %v6139, %v6155
  %v6172 = vsub.f32 %v6140, %v6156
  %v6173 = vsub.f32 %v6141, %v6157
  %v6174 = vsub.f32 %v6142, %v6158
  %v6175 = vsub.f32 %v6143, %v6159
  %v6176 = vsub.f32 %v6144, %v6160
  %v6177 = vsub.f32 %v6145, %v6161
  %v6178 = vsub.f32 %v6146, %v6162
  %v6179 = vsub.f32 %v6147, %v6163
  %v6180 = vsub.f32 %v6148, %v6164
  %v6181 = vsub.f32 %v6149, %v6165
  %v6182 = vsub.f32 %v6150, %v6166
  %v6183 = vsub.f32 %v6151, %v6167
  %v6184 = vsub.f32 %v5992, %v6120
  %v6185 = vsub.f32 %v5993, %v6121
  %v6186 = vsub.f32 %v5994, %v6122
  %v6187 = vsub.f32 %v5995, %v6123
  %v6188 = vsub.f32 %v5996, %v6124
  %v6189 = vsub.f32 %v5997, %v6125
  %v6190 = vsub.f32 %v5998, %v6126
  %v6191 = vsub.f32 %v5999, %v6127
  %v6192 = vsub.f32 %v6000, %v6128
  %v6193 = vsub.f32 %v6001, %v6129
  %v6194 = vsub.f32 %v6002, %v6130
  %v6195 = vsub.f32 %v6003, %v6131
  %v6196 = vsub.f32 %v6004, %v6132
  %v6197 = vsub.f32 %v6005, %v6133
  %v6198 = vsub.f32 %v6006, %v6134
  %v6199 = vsub.f32 %v6007, %v6135
  %v6200 = vadd.f32 %v6168, 1e-05
  %v6201 = vadd.f32 %v6169, 1e-05
  %v6202 = vadd.f32 %v6170, 1e-05
  %v6203 = vadd.f32 %v6171, 1e-05
  %v6204 = vadd.f32 %v6172, 1e-05
  %v6205 = vadd.f32 %v6173, 1e-05
  %v6206 = vadd.f32 %v6174, 1e-05
  %v6207 = vadd.f32 %v6175, 1e-05
  %v6208 = vadd.f32 %v6176, 1e-05
  %v6209 = vadd.f32 %v6177, 1e-05
  %v6210 = vadd.f32 %v6178, 1e-05
  %v6211 = vadd.f32 %v6179, 1e-05
  %v6212 = vadd.f32 %v6180, 1e-05
  %v6213 = vadd.f32 %v6181, 1e-05
  %v6214 = vadd.f32 %v6182, 1e-05
  %v6215 = vadd.f32 %v6183, 1e-05
  %v6216 = vrsqrt.pop %v6200
  %v6217 = vrsqrt.pop %v6201
  %v6218 = vrsqrt.pop %v6202
  %v6219 = vrsqrt.pop %v6203
  %v6220 = vrsqrt.pop %v6204
  %v6221 = vrsqrt.pop %v6205
  %v6222 = vrsqrt.pop %v6206
  %v6223 = vrsqrt.pop %v6207
  %v6224 = vrsqrt.pop %v6208
  %v6225 = vrsqrt.pop %v6209
  %v6226 = vrsqrt.pop %v6210
  %v6227 = vrsqrt.pop %v6211
  %v6228 = vrsqrt.pop %v6212
  %v6229 = vrsqrt.pop %v6213
  %v6230 = vrsqrt.pop %v6214
  %v6231 = vrsqrt.pop %v6215
  %v6232 = vmul.f32 %v6216, %v5054
  %v6233 = vmul.f32 %v6217, %v5055
  %v6234 = vmul.f32 %v6218, %v5056
  %v6235 = vmul.f32 %v6219, %v5057
  %v6236 = vmul.f32 %v6220, %v5058
  %v6237 = vmul.f32 %v6221, %v5059
  %v6238 = vmul.f32 %v6222, %v5060
  %v6239 = vmul.f32 %v6223, %v5061
  %v6240 = vmul.f32 %v6224, %v5062
  %v6241 = vmul.f32 %v6225, %v5063
  %v6242 = vmul.f32 %v6226, %v5064
  %v6243 = vmul.f32 %v6227, %v5065
  %v6244 = vmul.f32 %v6228, %v5066
  %v6245 = vmul.f32 %v6229, %v5067
  %v6246 = vmul.f32 %v6230, %v5068
  %v6247 = vmul.f32 %v6231, %v5069
  %6249 = vset.pattern.permute.xlu0 0
  %6250 = vperm.xlu0 %6249, %v6232
  %v6251 = vpop.permute.xlu0 %6250
  %6254 = vset.pattern.permute.xlu0 0
  %6255 = vperm.xlu0 %6254, %v6233
  %v6256 = vpop.permute.xlu0 %6255
  %6259 = vset.pattern.permute.xlu0 0
  %6260 = vperm.xlu0 %6259, %v6234
  %v6261 = vpop.permute.xlu0 %6260
  %6264 = vset.pattern.permute.xlu0 0
  %6265 = vperm.xlu0 %6264, %v6235
  %v6266 = vpop.permute.xlu0 %6265
  %6269 = vset.pattern.permute.xlu0 0
  %6270 = vperm.xlu0 %6269, %v6236
  %v6271 = vpop.permute.xlu0 %6270
  %6274 = vset.pattern.permute.xlu0 0
  %6275 = vperm.xlu0 %6274, %v6237
  %v6276 = vpop.permute.xlu0 %6275
  %6279 = vset.pattern.permute.xlu0 0
  %6280 = vperm.xlu0 %6279, %v6238
  %v6281 = vpop.permute.xlu0 %6280
  %6284 = vset.pattern.permute.xlu0 0
  %6285 = vperm.xlu0 %6284, %v6239
  %v6286 = vpop.permute.xlu0 %6285
  %6289 = vset.pattern.permute.xlu0 0
  %6290 = vperm.xlu0 %6289, %v6240
  %v6291 = vpop.permute.xlu0 %6290
  %6294 = vset.pattern.permute.xlu0 0
  %6295 = vperm.xlu0 %6294, %v6241
  %v6296 = vpop.permute.xlu0 %6295
  %6299 = vset.pattern.permute.xlu0 0
  %6300 = vperm.xlu0 %6299, %v6242
  %v6301 = vpop.permute.xlu0 %6300
  %6304 = vset.pattern.permute.xlu0 0
  %6305 = vperm.xlu0 %6304, %v6243
  %v6306 = vpop.permute.xlu0 %6305
  %6309 = vset.pattern.permute.xlu0 0
  %6310 = vperm.xlu0 %6309, %v6244
  %v6311 = vpop.permute.xlu0 %6310
  %6314 = vset.pattern.permute.xlu0 0
  %6315 = vperm.xlu0 %6314, %v6245
  %v6316 = vpop.permute.xlu0 %6315
  %6319 = vset.pattern.permute.xlu0 0
  %6320 = vperm.xlu0 %6319, %v6246
  %v6321 = vpop.permute.xlu0 %6320
  %6324 = vset.pattern.permute.xlu0 0
  %6325 = vperm.xlu0 %6324, %v6247
  %v6326 = vpop.permute.xlu0 %6325
  %v6328 = vmul.f32 %v6184, %v6251
  %v6329 = vmul.f32 %v6185, %v6256
  %v6330 = vmul.f32 %v6186, %v6261
  %v6331 = vmul.f32 %v6187, %v6266
  %v6332 = vmul.f32 %v6188, %v6271
  %v6333 = vmul.f32 %v6189, %v6276
  %v6334 = vmul.f32 %v6190, %v6281
  %v6335 = vmul.f32 %v6191, %v6286
  %v6336 = vmul.f32 %v6192, %v6291
  %v6337 = vmul.f32 %v6193, %v6296
  %v6338 = vmul.f32 %v6194, %v6301
  %v6339 = vmul.f32 %v6195, %v6306
  %v6340 = vmul.f32 %v6196, %v6311
  %v6341 = vmul.f32 %v6197, %v6316
  %v6342 = vmul.f32 %v6198, %v6321
  %v6343 = vmul.f32 %v6199, %v6326
  %6345 = vset.pattern.permute.xlu0 0
  %6346 = vperm.xlu0 %6345, %v5070
  %v6347 = vpop.permute.xlu0 %6346
  %6350 = vset.pattern.permute.xlu0 0
  %6351 = vperm.xlu0 %6350, %v5071
  %v6352 = vpop.permute.xlu0 %6351
  %6355 = vset.pattern.permute.xlu0 0
  %6356 = vperm.xlu0 %6355, %v5072
  %v6357 = vpop.permute.xlu0 %6356
  %6360 = vset.pattern.permute.xlu0 0
  %6361 = vperm.xlu0 %6360, %v5073
  %v6362 = vpop.permute.xlu0 %6361
  %6365 = vset.pattern.permute.xlu0 0
  %6366 = vperm.xlu0 %6365, %v5074
  %v6367 = vpop.permute.xlu0 %6366
  %6370 = vset.pattern.permute.xlu0 0
  %6371 = vperm.xlu0 %6370, %v5075
  %v6372 = vpop.permute.xlu0 %6371
  %6375 = vset.pattern.permute.xlu0 0
  %6376 = vperm.xlu0 %6375, %v5076
  %v6377 = vpop.permute.xlu0 %6376
  %6380 = vset.pattern.permute.xlu0 0
  %6381 = vperm.xlu0 %6380, %v5077
  %v6382 = vpop.permute.xlu0 %6381
  %6385 = vset.pattern.permute.xlu0 0
  %6386 = vperm.xlu0 %6385, %v5078
  %v6387 = vpop.permute.xlu0 %6386
  %6390 = vset.pattern.permute.xlu0 0
  %6391 = vperm.xlu0 %6390, %v5079
  %v6392 = vpop.permute.xlu0 %6391
  %6395 = vset.pattern.permute.xlu0 0
  %6396 = vperm.xlu0 %6395, %v5080
  %v6397 = vpop.permute.xlu0 %6396
  %6400 = vset.pattern.permute.xlu0 0
  %6401 = vperm.xlu0 %6400, %v5081
  %v6402 = vpop.permute.xlu0 %6401
  %6405 = vset.pattern.permute.xlu0 0
  %6406 = vperm.xlu0 %6405, %v5082
  %v6407 = vpop.permute.xlu0 %6406
  %6410 = vset.pattern.permute.xlu0 0
  %6411 = vperm.xlu0 %6410, %v5083
  %v6412 = vpop.permute.xlu0 %6411
  %6415 = vset.pattern.permute.xlu0 0
  %6416 = vperm.xlu0 %6415, %v5084
  %v6417 = vpop.permute.xlu0 %6416
  %6420 = vset.pattern.permute.xlu0 0
  %6421 = vperm.xlu0 %6420, %v5085
  %v6422 = vpop.permute.xlu0 %6421
  %v6424 = vadd.f32 %v6328, %v6347
  %v6425 = vadd.f32 %v6329, %v6352
  %v6426 = vadd.f32 %v6330, %v6357
  %v6427 = vadd.f32 %v6331, %v6362
  %v6428 = vadd.f32 %v6332, %v6367
  %v6429 = vadd.f32 %v6333, %v6372
  %v6430 = vadd.f32 %v6334, %v6377
  %v6431 = vadd.f32 %v6335, %v6382
  %v6432 = vadd.f32 %v6336, %v6387
  %v6433 = vadd.f32 %v6337, %v6392
  %v6434 = vadd.f32 %v6338, %v6397
  %v6435 = vadd.f32 %v6339, %v6402
  %v6436 = vadd.f32 %v6340, %v6407
  %v6437 = vadd.f32 %v6341, %v6412
  %v6438 = vadd.f32 %v6342, %v6417
  %v6439 = vadd.f32 %v6343, %v6422
  %v6440 = vmax.f32 %v6424, 0.0
  %v6441 = vmax.f32 %v6425, 0.0
  %v6442 = vmax.f32 %v6426, 0.0
  %v6443 = vmax.f32 %v6427, 0.0
  %v6444 = vmax.f32 %v6428, 0.0
  %v6445 = vmax.f32 %v6429, 0.0
  %v6446 = vmax.f32 %v6430, 0.0
  %v6447 = vmax.f32 %v6431, 0.0
  %v6448 = vmax.f32 %v6432, 0.0
  %v6449 = vmax.f32 %v6433, 0.0
  %v6450 = vmax.f32 %v6434, 0.0
  %v6451 = vmax.f32 %v6435, 0.0
  %v6452 = vmax.f32 %v6436, 0.0
  %v6453 = vmax.f32 %v6437, 0.0
  %v6454 = vmax.f32 %v6438, 0.0
  %v6455 = vmax.f32 %v6439, 0.0
  %v6456 = vld [vmem:[%s105] sm:$0xff]
  %v6457 = vld [vmem:[%s105 + $0x8] sm:$0xff]
  %v6458 = vld [vmem:[%s105 + $0x10] sm:$0xff]
  %v6459 = vld [vmem:[%s105 + $0x18] sm:$0xff]
  %v6460 = vld [vmem:[%s105 + $0x20] sm:$0xff]
  %v6461 = vld [vmem:[%s105 + $0x28] sm:$0xff]
  %v6462 = vld [vmem:[%s105 + $0x30] sm:$0xff]
  %v6463 = vld [vmem:[%s105 + $0x38] sm:$0xff]
  %v6464 = vld [vmem:[%s107] sm:$0xff]
  %v6465 = vld [vmem:[%s107 + $0x8] sm:$0xff]
  %v6466 = vld [vmem:[%s107 + $0x10] sm:$0xff]
  %v6467 = vld [vmem:[%s107 + $0x18] sm:$0xff]
  %v6468 = vld [vmem:[%s107 + $0x20] sm:$0xff]
  %v6469 = vld [vmem:[%s107 + $0x28] sm:$0xff]
  %v6470 = vld [vmem:[%s107 + $0x30] sm:$0xff]
  %v6471 = vld [vmem:[%s107 + $0x38] sm:$0xff]
  %v6472 = vld [vmem:[%s109] sm:$0xff]
  %v6473 = vld [vmem:[%s109 + $0x8] sm:$0xff]
  %v6474 = vld [vmem:[%s109 + $0x10] sm:$0xff]
  %v6475 = vld [vmem:[%s109 + $0x18] sm:$0xff]
  %v6476 = vld [vmem:[%s109 + $0x20] sm:$0xff]
  %v6477 = vld [vmem:[%s109 + $0x28] sm:$0xff]
  %v6478 = vld [vmem:[%s109 + $0x30] sm:$0xff]
  %v6479 = vld [vmem:[%s109 + $0x38] sm:$0xff]
  %v6480 = vld [vmem:[%s111] sm:$0xff]
  %v6481 = vld [vmem:[%s111 + $0x8] sm:$0xff]
  %v6482 = vld [vmem:[%s111 + $0x10] sm:$0xff]
  %v6483 = vld [vmem:[%s111 + $0x18] sm:$0xff]
  %v6484 = vld [vmem:[%s111 + $0x20] sm:$0xff]
  %v6485 = vld [vmem:[%s111 + $0x28] sm:$0xff]
  %v6486 = vld [vmem:[%s111 + $0x30] sm:$0xff]
  %v6487 = vld [vmem:[%s111 + $0x38] sm:$0xff]
  %v6488 = vld [vmem:[%s113] sm:$0xff]
  %v6489 = vld [vmem:[%s115] sm:$0xff]
  %v6490 = vld [vmem:[%s117] sm:$0xff]
  %v6491 = vld [vmem:[%s119] sm:$0xff]
  %v6492 = vld [vmem:[%s119 + $0x8] sm:$0xff]
  %v6493 = vld [vmem:[%s119 + $0x10] sm:$0xff]
  %v6494 = vld [vmem:[%s119 + $0x18] sm:$0xff]
  %v6495 = vld [vmem:[%s119 + $0x20] sm:$0xff]
  %v6496 = vld [vmem:[%s119 + $0x28] sm:$0xff]
  %v6497 = vld [vmem:[%s119 + $0x30] sm:$0xff]
  %v6498 = vld [vmem:[%s119 + $0x38] sm:$0xff]
  %v6499 = vld [vmem:[%s121] sm:$0xff]
  %v6500 = vld [vmem:[%s121 + $0x8] sm:$0xff]
  %v6501 = vld [vmem:[%s121 + $0x10] sm:$0xff]
  %v6502 = vld [vmem:[%s121 + $0x18] sm:$0xff]
  %v6503 = vld [vmem:[%s121 + $0x20] sm:$0xff]
  %v6504 = vld [vmem:[%s121 + $0x28] sm:$0xff]
  %v6505 = vld [vmem:[%s121 + $0x30] sm:$0xff]
  %v6506 = vld [vmem:[%s121 + $0x38] sm:$0xff]
  %6507 = vmatprep.subr.mxu0 0.0
  %6508 = vmatpush1.msra.mxu0 %v6440
  %6509 = vmatprep.subr.mxu0 0.0
  %6510 = vmatpush1.msra.mxu0 %v6441
  %6511 = vmatprep.subr.mxu0 0.0
  %6512 = vmatpush1.msra.mxu0 %v6442
  %6513 = vmatprep.subr.mxu0 0.0
  %6514 = vmatpush1.msra.mxu0 %v6443
  %6515 = vmatprep.subr.mxu0 0.0
  %6516 = vmatpush1.msra.mxu0 %v6444
  %6517 = vmatprep.subr.mxu0 0.0
  %6518 = vmatpush1.msra.mxu0 %v6445
  %6519 = vmatprep.subr.mxu0 0.0
  %6520 = vmatpush1.msra.mxu0 %v6446
  %6521 = vmatprep.subr.mxu0 0.0
  %6522 = vmatpush1.msra.mxu0 %v6447
  %6523 = vmatprep.subr.mxu0 0.0
  %6524 = vmatpush1.msra.mxu0 %v6448
  %6525 = vmatprep.subr.mxu0 0.0
  %6526 = vmatpush1.msra.mxu0 %v6449
  %6527 = vmatprep.subr.mxu0 0.0
  %6528 = vmatpush1.msra.mxu0 %v6450
  %6529 = vmatprep.subr.mxu0 0.0
  %6530 = vmatpush1.msra.mxu0 %v6451
  %6531 = vmatprep.subr.mxu0 0.0
  %6532 = vmatpush1.msra.mxu0 %v6452
  %6533 = vmatprep.subr.mxu0 0.0
  %6534 = vmatpush1.msra.mxu0 %v6453
  %6535 = vmatprep.subr.mxu0 0.0
  %6536 = vmatpush1.msra.mxu0 %v6454
  %6537 = vmatprep.subr.mxu0 0.0
  %6538 = vmatpush1.msra.mxu0 %v6455
  %6539 = vmatprep.subr.mxu0 0.0
  %6540 = vmatpush1.msra.mxu0 0.0
  %6541 = vmatprep.subr.mxu0 0.0
  %6542 = vmatpush1.msra.mxu0 0.0
  %6543 = vmatprep.subr.mxu0 0.0
  %6544 = vmatpush1.msra.mxu0 0.0
  %6545 = vmatprep.subr.mxu0 0.0
  %6546 = vmatpush1.msra.mxu0 0.0
  %6547 = vmatprep.subr.mxu0 0.0
  %6548 = vmatpush1.msra.mxu0 0.0
  %6549 = vmatprep.subr.mxu0 0.0
  %6550 = vmatpush1.msra.mxu0 0.0
  %6551 = vmatprep.subr.mxu0 0.0
  %6552 = vmatpush1.msra.mxu0 0.0
  %6553 = vmatprep.subr.mxu0 0.0
  %6554 = vmatpush1.msra.mxu0 0.0
  %6555 = vmatprep.subr.mxu0 0.0
  %6556 = vmatpush1.msra.mxu0 0.0
  %6557 = vmatprep.subr.mxu0 0.0
  %6558 = vmatpush1.msra.mxu0 0.0
  %6559 = vmatprep.subr.mxu0 0.0
  %6560 = vmatpush1.msra.mxu0 0.0
  %6561 = vmatprep.subr.mxu0 0.0
  %6562 = vmatpush1.msra.mxu0 0.0
  %6563 = vmatprep.subr.mxu0 0.0
  %6564 = vmatpush1.msra.mxu0 0.0
  %6565 = vmatprep.subr.mxu0 0.0
  %6566 = vmatpush1.msra.mxu0 0.0
  %6567 = vmatprep.subr.mxu0 0.0
  %6568 = vmatpush1.msra.mxu0 0.0
  %6569 = vmatprep.subr.mxu0 0.0
  %6570 = vmatpush1.msra.mxu0 0.0
  %6571 = vmatprep.mubr.f32.mxu0 0.0
  %6572 = vmatmul.mubr.f32.gmra.mrb[0].mxu0 %v6456
  %v6573 = vpop.f32.mrb[0].mxu0
  %v6574 = vadd.f32 0.0, %v6573
  %v6575 = vpop.f32.mrb[0].mxu0
  %6576 = vmatprep.mubr.f32.mxu0 0.0
  %6577 = vmatmul.mubr.f32.gmra.mrb[0].mxu0 %v6457
  %v6578 = vpop.f32.mrb[0].mxu0
  %v6579 = vadd.f32 0.0, %v6578
  %v6580 = vpop.f32.mrb[0].mxu0
  %6581 = vmatprep.mubr.f32.mxu0 0.0
  %6582 = vmatmul.mubr.f32.gmra.mrb[0].mxu0 %v6458
  %v6583 = vpop.f32.mrb[0].mxu0
  %v6584 = vadd.f32 0.0, %v6583
  %v6585 = vpop.f32.mrb[0].mxu0
  %6586 = vmatprep.mubr.f32.mxu0 0.0
  %6587 = vmatmul.mubr.f32.gmra.mrb[0].mxu0 %v6459
  %v6588 = vpop.f32.mrb[0].mxu0
  %v6589 = vadd.f32 0.0, %v6588
  %v6590 = vpop.f32.mrb[0].mxu0
  %6591 = vmatprep.mubr.f32.mxu0 0.0
  %6592 = vmatmul.mubr.f32.gmra.mrb[0].mxu0 %v6460
  %v6593 = vpop.f32.mrb[0].mxu0
  %v6594 = vadd.f32 0.0, %v6593
  %v6595 = vpop.f32.mrb[0].mxu0
  %6596 = vmatprep.mubr.f32.mxu0 0.0
  %6597 = vmatmul.mubr.f32.gmra.mrb[0].mxu0 %v6461
  %v6598 = vpop.f32.mrb[0].mxu0
  %v6599 = vadd.f32 0.0, %v6598
  %v6600 = vpop.f32.mrb[0].mxu0
  %6601 = vmatprep.mubr.f32.mxu0 0.0
  %6602 = vmatmul.mubr.f32.gmra.mrb[0].mxu0 %v6462
  %v6603 = vpop.f32.mrb[0].mxu0
  %v6604 = vadd.f32 0.0, %v6603
  %v6605 = vpop.f32.mrb[0].mxu0
  %6606 = vmatprep.mubr.f32.mxu0 0.0
  %6607 = vmatmul.mubr.f32.gmra.mrb[0].mxu0 %v6463
  %v6608 = vpop.f32.mrb[0].mxu0
  %v6609 = vadd.f32 0.0, %v6608
  %v6610 = vpop.f32.mrb[0].mxu0
  %6611 = vdwg.mxu0
  %6612 = vmatprep.subr.mxu0 0.0
  %6613 = vmatpush1.msra.mxu0 %v6440
  %6614 = vmatprep.subr.mxu0 0.0
  %6615 = vmatpush1.msra.mxu0 %v6441
  %6616 = vmatprep.subr.mxu0 0.0
  %6617 = vmatpush1.msra.mxu0 %v6442
  %6618 = vmatprep.subr.mxu0 0.0
  %6619 = vmatpush1.msra.mxu0 %v6443
  %6620 = vmatprep.subr.mxu0 0.0
  %6621 = vmatpush1.msra.mxu0 %v6444
  %6622 = vmatprep.subr.mxu0 0.0
  %6623 = vmatpush1.msra.mxu0 %v6445
  %6624 = vmatprep.subr.mxu0 0.0
  %6625 = vmatpush1.msra.mxu0 %v6446
  %6626 = vmatprep.subr.mxu0 0.0
  %6627 = vmatpush1.msra.mxu0 %v6447
  %6628 = vmatprep.subr.mxu0 0.0
  %6629 = vmatpush1.msra.mxu0 %v6448
  %6630 = vmatprep.subr.mxu0 0.0
  %6631 = vmatpush1.msra.mxu0 %v6449
  %6632 = vmatprep.subr.mxu0 0.0
  %6633 = vmatpush1.msra.mxu0 %v6450
  %6634 = vmatprep.subr.mxu0 0.0
  %6635 = vmatpush1.msra.mxu0 %v6451
  %6636 = vmatprep.subr.mxu0 0.0
  %6637 = vmatpush1.msra.mxu0 %v6452
  %6638 = vmatprep.subr.mxu0 0.0
  %6639 = vmatpush1.msra.mxu0 %v6453
  %6640 = vmatprep.subr.mxu0 0.0
  %6641 = vmatpush1.msra.mxu0 %v6454
  %6642 = vmatprep.subr.mxu0 0.0
  %6643 = vmatpush1.msra.mxu0 %v6455
  %6644 = vmatprep.subr.mxu0 0.0
  %6645 = vmatpush1.msra.mxu0 0.0
  %6646 = vmatprep.subr.mxu0 0.0
  %6647 = vmatpush1.msra.mxu0 0.0
  %6648 = vmatprep.subr.mxu0 0.0
  %6649 = vmatpush1.msra.mxu0 0.0
  %6650 = vmatprep.subr.mxu0 0.0
  %6651 = vmatpush1.msra.mxu0 0.0
  %6652 = vmatprep.subr.mxu0 0.0
  %6653 = vmatpush1.msra.mxu0 0.0
  %6654 = vmatprep.subr.mxu0 0.0
  %6655 = vmatpush1.msra.mxu0 0.0
  %6656 = vmatprep.subr.mxu0 0.0
  %6657 = vmatpush1.msra.mxu0 0.0
  %6658 = vmatprep.subr.mxu0 0.0
  %6659 = vmatpush1.msra.mxu0 0.0
  %6660 = vmatprep.subr.mxu0 0.0
  %6661 = vmatpush1.msra.mxu0 0.0
  %6662 = vmatprep.subr.mxu0 0.0
  %6663 = vmatpush1.msra.mxu0 0.0
  %6664 = vmatprep.subr.mxu0 0.0
  %6665 = vmatpush1.msra.mxu0 0.0
  %6666 = vmatprep.subr.mxu0 0.0
  %6667 = vmatpush1.msra.mxu0 0.0
  %6668 = vmatprep.subr.mxu0 0.0
  %6669 = vmatpush1.msra.mxu0 0.0
  %6670 = vmatprep.subr.mxu0 0.0
  %6671 = vmatpush1.msra.mxu0 0.0
  %6672 = vmatprep.subr.mxu0 0.0
  %6673 = vmatpush1.msra.mxu0 0.0
  %6674 = vmatprep.subr.mxu0 0.0
  %6675 = vmatpush1.msra.mxu0 0.0
  %6676 = vmatprep.mubr.f32.mxu0 0.0
  %6677 = vmatmul.mubr.f32.gmra.mrb[0].mxu0 %v6464
  %v6678 = vpop.f32.mrb[0].mxu0
  %v6679 = vadd.f32 0.0, %v6678
  %v6680 = vpop.f32.mrb[0].mxu0
  %6681 = vmatprep.mubr.f32.mxu0 0.0
  %6682 = vmatmul.mubr.f32.gmra.mrb[0].mxu0 %v6465
  %v6683 = vpop.f32.mrb[0].mxu0
  %v6684 = vadd.f32 0.0, %v6683
  %v6685 = vpop.f32.mrb[0].mxu0
  %6686 = vmatprep.mubr.f32.mxu0 0.0
  %6687 = vmatmul.mubr.f32.gmra.mrb[0].mxu0 %v6466
  %v6688 = vpop.f32.mrb[0].mxu0
  %v6689 = vadd.f32 0.0, %v6688
  %v6690 = vpop.f32.mrb[0].mxu0
  %6691 = vmatprep.mubr.f32.mxu0 0.0
  %6692 = vmatmul.mubr.f32.gmra.mrb[0].mxu0 %v6467
  %v6693 = vpop.f32.mrb[0].mxu0
  %v6694 = vadd.f32 0.0, %v6693
  %v6695 = vpop.f32.mrb[0].mxu0
  %6696 = vmatprep.mubr.f32.mxu0 0.0
  %6697 = vmatmul.mubr.f32.gmra.mrb[0].mxu0 %v6468
  %v6698 = vpop.f32.mrb[0].mxu0
  %v6699 = vadd.f32 0.0, %v6698
  %v6700 = vpop.f32.mrb[0].mxu0
  %6701 = vmatprep.mubr.f32.mxu0 0.0
  %6702 = vmatmul.mubr.f32.gmra.mrb[0].mxu0 %v6469
  %v6703 = vpop.f32.mrb[0].mxu0
  %v6704 = vadd.f32 0.0, %v6703
  %v6705 = vpop.f32.mrb[0].mxu0
  %6706 = vmatprep.mubr.f32.mxu0 0.0
  %6707 = vmatmul.mubr.f32.gmra.mrb[0].mxu0 %v6470
  %v6708 = vpop.f32.mrb[0].mxu0
  %v6709 = vadd.f32 0.0, %v6708
  %v6710 = vpop.f32.mrb[0].mxu0
  %6711 = vmatprep.mubr.f32.mxu0 0.0
  %6712 = vmatmul.mubr.f32.gmra.mrb[0].mxu0 %v6471
  %v6713 = vpop.f32.mrb[0].mxu0
  %v6714 = vadd.f32 0.0, %v6713
  %v6715 = vpop.f32.mrb[0].mxu0
  %6716 = vdwg.mxu0
  %v6718 = vsel %vm4654, %v6679, 0
  %v6721 = vsel %vm4654, %v6684, 0
  %v6724 = vsel %vm4654, %v6689, 0
  %v6727 = vsel %vm4654, %v6694, 0
  %v6730 = vsel %vm4654, %v6699, 0
  %v6733 = vsel %vm4654, %v6704, 0
  %v6736 = vsel %vm4654, %v6709, 0
  %v6739 = vsel %vm4654, %v6714, 0
  %6741 = vmatprep.subr.mxu0 0.0
  %6742 = vmatpush1.msra.mxu0 %v6489
  %6743 = vmatprep.subr.mxu0 0.0
  %6744 = vmatpush1.msra.mxu0 0.0
  %6745 = vmatprep.subr.mxu0 0.0
  %6746 = vmatpush1.msra.mxu0 0.0
  %6747 = vmatprep.subr.mxu0 0.0
  %6748 = vmatpush1.msra.mxu0 0.0
  %6749 = vmatprep.subr.mxu0 0.0
  %6750 = vmatpush1.msra.mxu0 0.0
  %6751 = vmatprep.subr.mxu0 0.0
  %6752 = vmatpush1.msra.mxu0 0.0
  %6753 = vmatprep.subr.mxu0 0.0
  %6754 = vmatpush1.msra.mxu0 0.0
  %6755 = vmatprep.subr.mxu0 0.0
  %6756 = vmatpush1.msra.mxu0 0.0
  %6757 = vmatprep.subr.mxu0 0.0
  %6758 = vmatpush1.msra.mxu0 0.0
  %6759 = vmatprep.subr.mxu0 0.0
  %6760 = vmatpush1.msra.mxu0 0.0
  %6761 = vmatprep.subr.mxu0 0.0
  %6762 = vmatpush1.msra.mxu0 0.0
  %6763 = vmatprep.subr.mxu0 0.0
  %6764 = vmatpush1.msra.mxu0 0.0
  %6765 = vmatprep.subr.mxu0 0.0
  %6766 = vmatpush1.msra.mxu0 0.0
  %6767 = vmatprep.subr.mxu0 0.0
  %6768 = vmatpush1.msra.mxu0 0.0
  %6769 = vmatprep.subr.mxu0 0.0
  %6770 = vmatpush1.msra.mxu0 0.0
  %6771 = vmatprep.subr.mxu0 0.0
  %6772 = vmatpush1.msra.mxu0 0.0
  %6773 = vmatprep.subr.mxu0 0.0
  %6774 = vmatpush1.msra.mxu0 0.0
  %6775 = vmatprep.subr.mxu0 0.0
  %6776 = vmatpush1.msra.mxu0 0.0
  %6777 = vmatprep.subr.mxu0 0.0
  %6778 = vmatpush1.msra.mxu0 0.0
  %6779 = vmatprep.subr.mxu0 0.0
  %6780 = vmatpush1.msra.mxu0 0.0
  %6781 = vmatprep.subr.mxu0 0.0
  %6782 = vmatpush1.msra.mxu0 0.0
  %6783 = vmatprep.subr.mxu0 0.0
  %6784 = vmatpush1.msra.mxu0 0.0
  %6785 = vmatprep.subr.mxu0 0.0
  %6786 = vmatpush1.msra.mxu0 0.0
  %6787 = vmatprep.subr.mxu0 0.0
  %6788 = vmatpush1.msra.mxu0 0.0
  %6789 = vmatprep.subr.mxu0 0.0
  %6790 = vmatpush1.msra.mxu0 0.0
  %6791 = vmatprep.subr.mxu0 0.0
  %6792 = vmatpush1.msra.mxu0 0.0
  %6793 = vmatprep.subr.mxu0 0.0
  %6794 = vmatpush1.msra.mxu0 0.0
  %6795 = vmatprep.subr.mxu0 0.0
  %6796 = vmatpush1.msra.mxu0 0.0
  %6797 = vmatprep.subr.mxu0 0.0
  %6798 = vmatpush1.msra.mxu0 0.0
  %6799 = vmatprep.subr.mxu0 0.0
  %6800 = vmatpush1.msra.mxu0 0.0
  %6801 = vmatprep.subr.mxu0 0.0
  %6802 = vmatpush1.msra.mxu0 0.0
  %6803 = vmatprep.subr.mxu0 0.0
  %6804 = vmatpush1.msra.mxu0 0.0
  %6805 = vmatprep.mubr.f32.mxu0 0.0
  %6806 = vmatmul.mubr.f32.gmra.mrb[0].mxu0 %v6718
  %v6807 = vpop.f32.mrb[0].mxu0
  %v6808 = vadd.f32 0.0, %v6807
  %v6809 = vpop.f32.mrb[0].mxu0
  %6810 = vmatprep.mubr.f32.mxu0 0.0
  %6811 = vmatmul.mubr.f32.gmra.mrb[0].mxu0 %v6721
  %v6812 = vpop.f32.mrb[0].mxu0
  %v6813 = vadd.f32 0.0, %v6812
  %v6814 = vpop.f32.mrb[0].mxu0
  %6815 = vmatprep.mubr.f32.mxu0 0.0
  %6816 = vmatmul.mubr.f32.gmra.mrb[0].mxu0 %v6724
  %v6817 = vpop.f32.mrb[0].mxu0
  %v6818 = vadd.f32 0.0, %v6817
  %v6819 = vpop.f32.mrb[0].mxu0
  %6820 = vmatprep.mubr.f32.mxu0 0.0
  %6821 = vmatmul.mubr.f32.gmra.mrb[0].mxu0 %v6727
  %v6822 = vpop.f32.mrb[0].mxu0
  %v6823 = vadd.f32 0.0, %v6822
  %v6824 = vpop.f32.mrb[0].mxu0
  %6825 = vmatprep.mubr.f32.mxu0 0.0
  %6826 = vmatmul.mubr.f32.gmra.mrb[0].mxu0 %v6730
  %v6827 = vpop.f32.mrb[0].mxu0
  %v6828 = vadd.f32 0.0, %v6827
  %v6829 = vpop.f32.mrb[0].mxu0
  %6830 = vmatprep.mubr.f32.mxu0 0.0
  %6831 = vmatmul.mubr.f32.gmra.mrb[0].mxu0 %v6733
  %v6832 = vpop.f32.mrb[0].mxu0
  %v6833 = vadd.f32 0.0, %v6832
  %v6834 = vpop.f32.mrb[0].mxu0
  %6835 = vmatprep.mubr.f32.mxu0 0.0
  %6836 = vmatmul.mubr.f32.gmra.mrb[0].mxu0 %v6736
  %v6837 = vpop.f32.mrb[0].mxu0
  %v6838 = vadd.f32 0.0, %v6837
  %v6839 = vpop.f32.mrb[0].mxu0
  %6840 = vmatprep.mubr.f32.mxu0 0.0
  %6841 = vmatmul.mubr.f32.gmra.mrb[0].mxu0 %v6739
  %v6842 = vpop.f32.mrb[0].mxu0
  %v6843 = vadd.f32 0.0, %v6842
  %v6844 = vpop.f32.mrb[0].mxu0
  %6845 = vdwg.mxu0
  %v6847 = vsel %vm4654, %v6574, 0
  %v6850 = vsel %vm4654, %v6579, 0
  %v6853 = vsel %vm4654, %v6584, 0
  %v6856 = vsel %vm4654, %v6589, 0
  %v6859 = vsel %vm4654, %v6594, 0
  %v6862 = vsel %vm4654, %v6599, 0
  %v6865 = vsel %vm4654, %v6604, 0
  %v6868 = vsel %vm4654, %v6609, 0
  %6870 = vmatprep.subr.mxu0 0.0
  %6871 = vmatpush1.msra.mxu0 %v6488
  %6872 = vmatprep.subr.mxu0 0.0
  %6873 = vmatpush1.msra.mxu0 0.0
  %6874 = vmatprep.subr.mxu0 0.0
  %6875 = vmatpush1.msra.mxu0 0.0
  %6876 = vmatprep.subr.mxu0 0.0
  %6877 = vmatpush1.msra.mxu0 0.0
  %6878 = vmatprep.subr.mxu0 0.0
  %6879 = vmatpush1.msra.mxu0 0.0
  %6880 = vmatprep.subr.mxu0 0.0
  %6881 = vmatpush1.msra.mxu0 0.0
  %6882 = vmatprep.subr.mxu0 0.0
  %6883 = vmatpush1.msra.mxu0 0.0
  %6884 = vmatprep.subr.mxu0 0.0
  %6885 = vmatpush1.msra.mxu0 0.0
  %6886 = vmatprep.subr.mxu0 0.0
  %6887 = vmatpush1.msra.mxu0 0.0
  %6888 = vmatprep.subr.mxu0 0.0
  %6889 = vmatpush1.msra.mxu0 0.0
  %6890 = vmatprep.subr.mxu0 0.0
  %6891 = vmatpush1.msra.mxu0 0.0
  %6892 = vmatprep.subr.mxu0 0.0
  %6893 = vmatpush1.msra.mxu0 0.0
  %6894 = vmatprep.subr.mxu0 0.0
  %6895 = vmatpush1.msra.mxu0 0.0
  %6896 = vmatprep.subr.mxu0 0.0
  %6897 = vmatpush1.msra.mxu0 0.0
  %6898 = vmatprep.subr.mxu0 0.0
  %6899 = vmatpush1.msra.mxu0 0.0
  %6900 = vmatprep.subr.mxu0 0.0
  %6901 = vmatpush1.msra.mxu0 0.0
  %6902 = vmatprep.subr.mxu0 0.0
  %6903 = vmatpush1.msra.mxu0 0.0
  %6904 = vmatprep.subr.mxu0 0.0
  %6905 = vmatpush1.msra.mxu0 0.0
  %6906 = vmatprep.subr.mxu0 0.0
  %6907 = vmatpush1.msra.mxu0 0.0
  %6908 = vmatprep.subr.mxu0 0.0
  %6909 = vmatpush1.msra.mxu0 0.0
  %6910 = vmatprep.subr.mxu0 0.0
  %6911 = vmatpush1.msra.mxu0 0.0
  %6912 = vmatprep.subr.mxu0 0.0
  %6913 = vmatpush1.msra.mxu0 0.0
  %6914 = vmatprep.subr.mxu0 0.0
  %6915 = vmatpush1.msra.mxu0 0.0
  %6916 = vmatprep.subr.mxu0 0.0
  %6917 = vmatpush1.msra.mxu0 0.0
  %6918 = vmatprep.subr.mxu0 0.0
  %6919 = vmatpush1.msra.mxu0 0.0
  %6920 = vmatprep.subr.mxu0 0.0
  %6921 = vmatpush1.msra.mxu0 0.0
  %6922 = vmatprep.subr.mxu0 0.0
  %6923 = vmatpush1.msra.mxu0 0.0
  %6924 = vmatprep.subr.mxu0 0.0
  %6925 = vmatpush1.msra.mxu0 0.0
  %6926 = vmatprep.subr.mxu0 0.0
  %6927 = vmatpush1.msra.mxu0 0.0
  %6928 = vmatprep.subr.mxu0 0.0
  %6929 = vmatpush1.msra.mxu0 0.0
  %6930 = vmatprep.subr.mxu0 0.0
  %6931 = vmatpush1.msra.mxu0 0.0
  %6932 = vmatprep.subr.mxu0 0.0
  %6933 = vmatpush1.msra.mxu0 0.0
  %6934 = vmatprep.mubr.f32.mxu0 0.0
  %6935 = vmatmul.mubr.f32.gmra.mrb[0].mxu0 %v6847
  %v6936 = vpop.f32.mrb[0].mxu0
  %v6937 = vadd.f32 %v6808, %v6936
  %v6938 = vpop.f32.mrb[0].mxu0
  %6939 = vmatprep.mubr.f32.mxu0 0.0
  %6940 = vmatmul.mubr.f32.gmra.mrb[0].mxu0 %v6850
  %v6941 = vpop.f32.mrb[0].mxu0
  %v6942 = vadd.f32 %v6813, %v6941
  %v6943 = vpop.f32.mrb[0].mxu0
  %6944 = vmatprep.mubr.f32.mxu0 0.0
  %6945 = vmatmul.mubr.f32.gmra.mrb[0].mxu0 %v6853
  %v6946 = vpop.f32.mrb[0].mxu0
  %v6947 = vadd.f32 %v6818, %v6946
  %v6948 = vpop.f32.mrb[0].mxu0
  %6949 = vmatprep.mubr.f32.mxu0 0.0
  %6950 = vmatmul.mubr.f32.gmra.mrb[0].mxu0 %v6856
  %v6951 = vpop.f32.mrb[0].mxu0
  %v6952 = vadd.f32 %v6823, %v6951
  %v6953 = vpop.f32.mrb[0].mxu0
  %6954 = vmatprep.mubr.f32.mxu0 0.0
  %6955 = vmatmul.mubr.f32.gmra.mrb[0].mxu0 %v6859
  %v6956 = vpop.f32.mrb[0].mxu0
  %v6957 = vadd.f32 %v6828, %v6956
  %v6958 = vpop.f32.mrb[0].mxu0
  %6959 = vmatprep.mubr.f32.mxu0 0.0
  %6960 = vmatmul.mubr.f32.gmra.mrb[0].mxu0 %v6862
  %v6961 = vpop.f32.mrb[0].mxu0
  %v6962 = vadd.f32 %v6833, %v6961
  %v6963 = vpop.f32.mrb[0].mxu0
  %6964 = vmatprep.mubr.f32.mxu0 0.0
  %6965 = vmatmul.mubr.f32.gmra.mrb[0].mxu0 %v6865
  %v6966 = vpop.f32.mrb[0].mxu0
  %v6967 = vadd.f32 %v6838, %v6966
  %v6968 = vpop.f32.mrb[0].mxu0
  %6969 = vmatprep.mubr.f32.mxu0 0.0
  %6970 = vmatmul.mubr.f32.gmra.mrb[0].mxu0 %v6868
  %v6971 = vpop.f32.mrb[0].mxu0
  %v6972 = vadd.f32 %v6843, %v6971
  %v6973 = vpop.f32.mrb[0].mxu0
  %6974 = vdwg.mxu0
  %6975 = vmatprep.subr.mxu0 0.0
  %6976 = vmatpush1.msra.mxu0 %v6440
  %6977 = vmatprep.subr.mxu0 0.0
  %6978 = vmatpush1.msra.mxu0 %v6441
  %6979 = vmatprep.subr.mxu0 0.0
  %6980 = vmatpush1.msra.mxu0 %v6442
  %6981 = vmatprep.subr.mxu0 0.0
  %6982 = vmatpush1.msra.mxu0 %v6443
  %6983 = vmatprep.subr.mxu0 0.0
  %6984 = vmatpush1.msra.mxu0 %v6444
  %6985 = vmatprep.subr.mxu0 0.0
  %6986 = vmatpush1.msra.mxu0 %v6445
  %6987 = vmatprep.subr.mxu0 0.0
  %6988 = vmatpush1.msra.mxu0 %v6446
  %6989 = vmatprep.subr.mxu0 0.0
  %6990 = vmatpush1.msra.mxu0 %v6447
  %6991 = vmatprep.subr.mxu0 0.0
  %6992 = vmatpush1.msra.mxu0 %v6448
  %6993 = vmatprep.subr.mxu0 0.0
  %6994 = vmatpush1.msra.mxu0 %v6449
  %6995 = vmatprep.subr.mxu0 0.0
  %6996 = vmatpush1.msra.mxu0 %v6450
  %6997 = vmatprep.subr.mxu0 0.0
  %6998 = vmatpush1.msra.mxu0 %v6451
  %6999 = vmatprep.subr.mxu0 0.0
  %7000 = vmatpush1.msra.mxu0 %v6452
  %7001 = vmatprep.subr.mxu0 0.0
  %7002 = vmatpush1.msra.mxu0 %v6453
  %7003 = vmatprep.subr.mxu0 0.0
  %7004 = vmatpush1.msra.mxu0 %v6454
  %7005 = vmatprep.subr.mxu0 0.0
  %7006 = vmatpush1.msra.mxu0 %v6455
  %7007 = vmatprep.subr.mxu0 0.0
  %7008 = vmatpush1.msra.mxu0 0.0
  %7009 = vmatprep.subr.mxu0 0.0
  %7010 = vmatpush1.msra.mxu0 0.0
  %7011 = vmatprep.subr.mxu0 0.0
  %7012 = vmatpush1.msra.mxu0 0.0
  %7013 = vmatprep.subr.mxu0 0.0
  %7014 = vmatpush1.msra.mxu0 0.0
  %7015 = vmatprep.subr.mxu0 0.0
  %7016 = vmatpush1.msra.mxu0 0.0
  %7017 = vmatprep.subr.mxu0 0.0
  %7018 = vmatpush1.msra.mxu0 0.0
  %7019 = vmatprep.subr.mxu0 0.0
  %7020 = vmatpush1.msra.mxu0 0.0
  %7021 = vmatprep.subr.mxu0 0.0
  %7022 = vmatpush1.msra.mxu0 0.0
  %7023 = vmatprep.subr.mxu0 0.0
  %7024 = vmatpush1.msra.mxu0 0.0
  %7025 = vmatprep.subr.mxu0 0.0
  %7026 = vmatpush1.msra.mxu0 0.0
  %7027 = vmatprep.subr.mxu0 0.0
  %7028 = vmatpush1.msra.mxu0 0.0
  %7029 = vmatprep.subr.mxu0 0.0
  %7030 = vmatpush1.msra.mxu0 0.0
  %7031 = vmatprep.subr.mxu0 0.0
  %7032 = vmatpush1.msra.mxu0 0.0
  %7033 = vmatprep.subr.mxu0 0.0
  %7034 = vmatpush1.msra.mxu0 0.0
  %7035 = vmatprep.subr.mxu0 0.0
  %7036 = vmatpush1.msra.mxu0 0.0
  %7037 = vmatprep.subr.mxu0 0.0
  %7038 = vmatpush1.msra.mxu0 0.0
  %7039 = vmatprep.mubr.f32.mxu0 0.0
  %7040 = vmatmul.mubr.f32.gmra.mrb[0].mxu0 %v6472
  %v7041 = vpop.f32.mrb[0].mxu0
  %v7042 = vadd.f32 0.0, %v7041
  %v7043 = vpop.f32.mrb[0].mxu0
  %7044 = vmatprep.mubr.f32.mxu0 0.0
  %7045 = vmatmul.mubr.f32.gmra.mrb[0].mxu0 %v6473
  %v7046 = vpop.f32.mrb[0].mxu0
  %v7047 = vadd.f32 0.0, %v7046
  %v7048 = vpop.f32.mrb[0].mxu0
  %7049 = vmatprep.mubr.f32.mxu0 0.0
  %7050 = vmatmul.mubr.f32.gmra.mrb[0].mxu0 %v6474
  %v7051 = vpop.f32.mrb[0].mxu0
  %v7052 = vadd.f32 0.0, %v7051
  %v7053 = vpop.f32.mrb[0].mxu0
  %7054 = vmatprep.mubr.f32.mxu0 0.0
  %7055 = vmatmul.mubr.f32.gmra.mrb[0].mxu0 %v6475
  %v7056 = vpop.f32.mrb[0].mxu0
  %v7057 = vadd.f32 0.0, %v7056
  %v7058 = vpop.f32.mrb[0].mxu0
  %7059 = vmatprep.mubr.f32.mxu0 0.0
  %7060 = vmatmul.mubr.f32.gmra.mrb[0].mxu0 %v6476
  %v7061 = vpop.f32.mrb[0].mxu0
  %v7062 = vadd.f32 0.0, %v7061
  %v7063 = vpop.f32.mrb[0].mxu0
  %7064 = vmatprep.mubr.f32.mxu0 0.0
  %7065 = vmatmul.mubr.f32.gmra.mrb[0].mxu0 %v6477
  %v7066 = vpop.f32.mrb[0].mxu0
  %v7067 = vadd.f32 0.0, %v7066
  %v7068 = vpop.f32.mrb[0].mxu0
  %7069 = vmatprep.mubr.f32.mxu0 0.0
  %7070 = vmatmul.mubr.f32.gmra.mrb[0].mxu0 %v6478
  %v7071 = vpop.f32.mrb[0].mxu0
  %v7072 = vadd.f32 0.0, %v7071
  %v7073 = vpop.f32.mrb[0].mxu0
  %7074 = vmatprep.mubr.f32.mxu0 0.0
  %7075 = vmatmul.mubr.f32.gmra.mrb[0].mxu0 %v6479
  %v7076 = vpop.f32.mrb[0].mxu0
  %v7077 = vadd.f32 0.0, %v7076
  %v7078 = vpop.f32.mrb[0].mxu0
  %7079 = vdwg.mxu0
  %v7081 = vsel %vm4654, %v7042, 0
  %v7084 = vsel %vm4654, %v7047, 0
  %v7087 = vsel %vm4654, %v7052, 0
  %v7090 = vsel %vm4654, %v7057, 0
  %v7093 = vsel %vm4654, %v7062, 0
  %v7096 = vsel %vm4654, %v7067, 0
  %v7099 = vsel %vm4654, %v7072, 0
  %v7102 = vsel %vm4654, %v7077, 0
  %7104 = vmatprep.subr.mxu0 0.0
  %7105 = vmatpush1.msra.mxu0 %v6490
  %7106 = vmatprep.subr.mxu0 0.0
  %7107 = vmatpush1.msra.mxu0 0.0
  %7108 = vmatprep.subr.mxu0 0.0
  %7109 = vmatpush1.msra.mxu0 0.0
  %7110 = vmatprep.subr.mxu0 0.0
  %7111 = vmatpush1.msra.mxu0 0.0
  %7112 = vmatprep.subr.mxu0 0.0
  %7113 = vmatpush1.msra.mxu0 0.0
  %7114 = vmatprep.subr.mxu0 0.0
  %7115 = vmatpush1.msra.mxu0 0.0
  %7116 = vmatprep.subr.mxu0 0.0
  %7117 = vmatpush1.msra.mxu0 0.0
  %7118 = vmatprep.subr.mxu0 0.0
  %7119 = vmatpush1.msra.mxu0 0.0
  %7120 = vmatprep.subr.mxu0 0.0
  %7121 = vmatpush1.msra.mxu0 0.0
  %7122 = vmatprep.subr.mxu0 0.0
  %7123 = vmatpush1.msra.mxu0 0.0
  %7124 = vmatprep.subr.mxu0 0.0
  %7125 = vmatpush1.msra.mxu0 0.0
  %7126 = vmatprep.subr.mxu0 0.0
  %7127 = vmatpush1.msra.mxu0 0.0
  %7128 = vmatprep.subr.mxu0 0.0
  %7129 = vmatpush1.msra.mxu0 0.0
  %7130 = vmatprep.subr.mxu0 0.0
  %7131 = vmatpush1.msra.mxu0 0.0
  %7132 = vmatprep.subr.mxu0 0.0
  %7133 = vmatpush1.msra.mxu0 0.0
  %7134 = vmatprep.subr.mxu0 0.0
  %7135 = vmatpush1.msra.mxu0 0.0
  %7136 = vmatprep.subr.mxu0 0.0
  %7137 = vmatpush1.msra.mxu0 0.0
  %7138 = vmatprep.subr.mxu0 0.0
  %7139 = vmatpush1.msra.mxu0 0.0
  %7140 = vmatprep.subr.mxu0 0.0
  %7141 = vmatpush1.msra.mxu0 0.0
  %7142 = vmatprep.subr.mxu0 0.0
  %7143 = vmatpush1.msra.mxu0 0.0
  %7144 = vmatprep.subr.mxu0 0.0
  %7145 = vmatpush1.msra.mxu0 0.0
  %7146 = vmatprep.subr.mxu0 0.0
  %7147 = vmatpush1.msra.mxu0 0.0
  %7148 = vmatprep.subr.mxu0 0.0
  %7149 = vmatpush1.msra.mxu0 0.0
  %7150 = vmatprep.subr.mxu0 0.0
  %7151 = vmatpush1.msra.mxu0 0.0
  %7152 = vmatprep.subr.mxu0 0.0
  %7153 = vmatpush1.msra.mxu0 0.0
  %7154 = vmatprep.subr.mxu0 0.0
  %7155 = vmatpush1.msra.mxu0 0.0
  %7156 = vmatprep.subr.mxu0 0.0
  %7157 = vmatpush1.msra.mxu0 0.0
  %7158 = vmatprep.subr.mxu0 0.0
  %7159 = vmatpush1.msra.mxu0 0.0
  %7160 = vmatprep.subr.mxu0 0.0
  %7161 = vmatpush1.msra.mxu0 0.0
  %7162 = vmatprep.subr.mxu0 0.0
  %7163 = vmatpush1.msra.mxu0 0.0
  %7164 = vmatprep.subr.mxu0 0.0
  %7165 = vmatpush1.msra.mxu0 0.0
  %7166 = vmatprep.subr.mxu0 0.0
  %7167 = vmatpush1.msra.mxu0 0.0
  %7168 = vmatprep.mubr.f32.mxu0 0.0
  %7169 = vmatmul.mubr.f32.gmra.mrb[0].mxu0 %v7081
  %v7170 = vpop.f32.mrb[0].mxu0
  %v7171 = vadd.f32 0.0, %v7170
  %v7172 = vpop.f32.mrb[0].mxu0
  %7173 = vmatprep.mubr.f32.mxu0 0.0
  %7174 = vmatmul.mubr.f32.gmra.mrb[0].mxu0 %v7084
  %v7175 = vpop.f32.mrb[0].mxu0
  %v7176 = vadd.f32 0.0, %v7175
  %v7177 = vpop.f32.mrb[0].mxu0
  %7178 = vmatprep.mubr.f32.mxu0 0.0
  %7179 = vmatmul.mubr.f32.gmra.mrb[0].mxu0 %v7087
  %v7180 = vpop.f32.mrb[0].mxu0
  %v7181 = vadd.f32 0.0, %v7180
  %v7182 = vpop.f32.mrb[0].mxu0
  %7183 = vmatprep.mubr.f32.mxu0 0.0
  %7184 = vmatmul.mubr.f32.gmra.mrb[0].mxu0 %v7090
  %v7185 = vpop.f32.mrb[0].mxu0
  %v7186 = vadd.f32 0.0, %v7185
  %v7187 = vpop.f32.mrb[0].mxu0
  %7188 = vmatprep.mubr.f32.mxu0 0.0
  %7189 = vmatmul.mubr.f32.gmra.mrb[0].mxu0 %v7093
  %v7190 = vpop.f32.mrb[0].mxu0
  %v7191 = vadd.f32 0.0, %v7190
  %v7192 = vpop.f32.mrb[0].mxu0
  %7193 = vmatprep.mubr.f32.mxu0 0.0
  %7194 = vmatmul.mubr.f32.gmra.mrb[0].mxu0 %v7096
  %v7195 = vpop.f32.mrb[0].mxu0
  %v7196 = vadd.f32 0.0, %v7195
  %v7197 = vpop.f32.mrb[0].mxu0
  %7198 = vmatprep.mubr.f32.mxu0 0.0
  %7199 = vmatmul.mubr.f32.gmra.mrb[0].mxu0 %v7099
  %v7200 = vpop.f32.mrb[0].mxu0
  %v7201 = vadd.f32 0.0, %v7200
  %v7202 = vpop.f32.mrb[0].mxu0
  %7203 = vmatprep.mubr.f32.mxu0 0.0
  %7204 = vmatmul.mubr.f32.gmra.mrb[0].mxu0 %v7102
  %v7205 = vpop.f32.mrb[0].mxu0
  %v7206 = vadd.f32 0.0, %v7205
  %v7207 = vpop.f32.mrb[0].mxu0
  %7208 = vdwg.mxu0
  %v7209 = vadd.f32 %v6937, %v7171
  %v7210 = vadd.f32 %v6942, %v7176
  %v7211 = vadd.f32 %v6947, %v7181
  %v7212 = vadd.f32 %v6952, %v7186
  %v7213 = vadd.f32 %v6957, %v7191
  %v7214 = vadd.f32 %v6962, %v7196
  %v7215 = vadd.f32 %v6967, %v7201
  %v7216 = vadd.f32 %v6972, %v7206
  %7218 = vset.pattern.permute.xlu0 0
  %7219 = vperm.xlu0 %7218, %v6480
  %v7220 = vpop.permute.xlu0 %7219
  %7223 = vset.pattern.permute.xlu0 0
  %7224 = vperm.xlu0 %7223, %v6481
  %v7225 = vpop.permute.xlu0 %7224
  %7228 = vset.pattern.permute.xlu0 0
  %7229 = vperm.xlu0 %7228, %v6482
  %v7230 = vpop.permute.xlu0 %7229
  %7233 = vset.pattern.permute.xlu0 0
  %7234 = vperm.xlu0 %7233, %v6483
  %v7235 = vpop.permute.xlu0 %7234
  %7238 = vset.pattern.permute.xlu0 0
  %7239 = vperm.xlu0 %7238, %v6484
  %v7240 = vpop.permute.xlu0 %7239
  %7243 = vset.pattern.permute.xlu0 0
  %7244 = vperm.xlu0 %7243, %v6485
  %v7245 = vpop.permute.xlu0 %7244
  %7248 = vset.pattern.permute.xlu0 0
  %7249 = vperm.xlu0 %7248, %v6486
  %v7250 = vpop.permute.xlu0 %7249
  %7253 = vset.pattern.permute.xlu0 0
  %7254 = vperm.xlu0 %7253, %v6487
  %v7255 = vpop.permute.xlu0 %7254
  %v7257 = vadd.f32 %v7209, %v7220
  %v7258 = vadd.f32 %v7210, %v7225
  %v7259 = vadd.f32 %v7211, %v7230
  %v7260 = vadd.f32 %v7212, %v7235
  %v7261 = vadd.f32 %v7213, %v7240
  %v7262 = vadd.f32 %v7214, %v7245
  %v7263 = vadd.f32 %v7215, %v7250
  %v7264 = vadd.f32 %v7216, %v7255
  %v7265 = vsel %vm2660, %v7257, 0.0
  %7266 = vadd.xlane.f32.xlu0 %v7265
  %v7267 = vpop.xlane.xlu0 %7266
  %v7268 = vsel %vm2660, %v7258, 0.0
  %7269 = vadd.xlane.f32.xlu0 %v7268
  %v7270 = vpop.xlane.xlu0 %7269
  %v7271 = vsel %vm2660, %v7259, 0.0
  %7272 = vadd.xlane.f32.xlu0 %v7271
  %v7273 = vpop.xlane.xlu0 %7272
  %v7274 = vsel %vm2660, %v7260, 0.0
  %7275 = vadd.xlane.f32.xlu0 %v7274
  %v7276 = vpop.xlane.xlu0 %7275
  %v7277 = vsel %vm2660, %v7261, 0.0
  %7278 = vadd.xlane.f32.xlu0 %v7277
  %v7279 = vpop.xlane.xlu0 %7278
  %v7280 = vsel %vm2660, %v7262, 0.0
  %7281 = vadd.xlane.f32.xlu0 %v7280
  %v7282 = vpop.xlane.xlu0 %7281
  %v7283 = vsel %vm2660, %v7263, 0.0
  %7284 = vadd.xlane.f32.xlu0 %v7283
  %v7285 = vpop.xlane.xlu0 %7284
  %v7286 = vsel %vm2660, %v7264, 0.0
  %7287 = vadd.xlane.f32.xlu0 %v7286
  %v7288 = vpop.xlane.xlu0 %7287
  %v7289 = vmul.f32 %v7257, %v7257
  %v7290 = vmul.f32 %v7258, %v7258
  %v7291 = vmul.f32 %v7259, %v7259
  %v7292 = vmul.f32 %v7260, %v7260
  %v7293 = vmul.f32 %v7261, %v7261
  %v7294 = vmul.f32 %v7262, %v7262
  %v7295 = vmul.f32 %v7263, %v7263
  %v7296 = vmul.f32 %v7264, %v7264
  %v7297 = vsel %vm2660, %v7289, 0.0
  %7298 = vadd.xlane.f32.xlu0 %v7297
  %v7299 = vpop.xlane.xlu0 %7298
  %v7300 = vsel %vm2660, %v7290, 0.0
  %7301 = vadd.xlane.f32.xlu0 %v7300
  %v7302 = vpop.xlane.xlu0 %7301
  %v7303 = vsel %vm2660, %v7291, 0.0
  %7304 = vadd.xlane.f32.xlu0 %v7303
  %v7305 = vpop.xlane.xlu0 %7304
  %v7306 = vsel %vm2660, %v7292, 0.0
  %7307 = vadd.xlane.f32.xlu0 %v7306
  %v7308 = vpop.xlane.xlu0 %7307
  %v7309 = vsel %vm2660, %v7293, 0.0
  %7310 = vadd.xlane.f32.xlu0 %v7309
  %v7311 = vpop.xlane.xlu0 %7310
  %v7312 = vsel %vm2660, %v7294, 0.0
  %7313 = vadd.xlane.f32.xlu0 %v7312
  %v7314 = vpop.xlane.xlu0 %7313
  %v7315 = vsel %vm2660, %v7295, 0.0
  %7316 = vadd.xlane.f32.xlu0 %v7315
  %v7317 = vpop.xlane.xlu0 %7316
  %v7318 = vsel %vm2660, %v7296, 0.0
  %7319 = vadd.xlane.f32.xlu0 %v7318
  %v7320 = vpop.xlane.xlu0 %7319
  %v7321 = vmul.f32 %v7267, 0.0625
  %v7322 = vmul.f32 %v7270, 0.0625
  %v7323 = vmul.f32 %v7273, 0.0625
  %v7324 = vmul.f32 %v7276, 0.0625
  %v7325 = vmul.f32 %v7279, 0.0625
  %v7326 = vmul.f32 %v7282, 0.0625
  %v7327 = vmul.f32 %v7285, 0.0625
  %v7328 = vmul.f32 %v7288, 0.0625
  %v7329 = vmul.f32 %v7299, 0.0625
  %v7330 = vmul.f32 %v7302, 0.0625
  %v7331 = vmul.f32 %v7305, 0.0625
  %v7332 = vmul.f32 %v7308, 0.0625
  %v7333 = vmul.f32 %v7311, 0.0625
  %v7334 = vmul.f32 %v7314, 0.0625
  %v7335 = vmul.f32 %v7317, 0.0625
  %v7336 = vmul.f32 %v7320, 0.0625
  %v7337 = vmul.f32 %v7321, %v7321
  %v7338 = vmul.f32 %v7322, %v7322
  %v7339 = vmul.f32 %v7323, %v7323
  %v7340 = vmul.f32 %v7324, %v7324
  %v7341 = vmul.f32 %v7325, %v7325
  %v7342 = vmul.f32 %v7326, %v7326
  %v7343 = vmul.f32 %v7327, %v7327
  %v7344 = vmul.f32 %v7328, %v7328
  %v7345 = vsub.f32 %v7329, %v7337
  %v7346 = vsub.f32 %v7330, %v7338
  %v7347 = vsub.f32 %v7331, %v7339
  %v7348 = vsub.f32 %v7332, %v7340
  %v7349 = vsub.f32 %v7333, %v7341
  %v7350 = vsub.f32 %v7334, %v7342
  %v7351 = vsub.f32 %v7335, %v7343
  %v7352 = vsub.f32 %v7336, %v7344
  %v7353 = vsub.f32 %v7257, %v7321
  %v7354 = vsub.f32 %v7258, %v7322
  %v7355 = vsub.f32 %v7259, %v7323
  %v7356 = vsub.f32 %v7260, %v7324
  %v7357 = vsub.f32 %v7261, %v7325
  %v7358 = vsub.f32 %v7262, %v7326
  %v7359 = vsub.f32 %v7263, %v7327
  %v7360 = vsub.f32 %v7264, %v7328
  %v7361 = vadd.f32 %v7345, 1e-05
  %v7362 = vadd.f32 %v7346, 1e-05
  %v7363 = vadd.f32 %v7347, 1e-05
  %v7364 = vadd.f32 %v7348, 1e-05
  %v7365 = vadd.f32 %v7349, 1e-05
  %v7366 = vadd.f32 %v7350, 1e-05
  %v7367 = vadd.f32 %v7351, 1e-05
  %v7368 = vadd.f32 %v7352, 1e-05
  %v7369 = vrsqrt.pop %v7361
  %v7370 = vrsqrt.pop %v7362
  %v7371 = vrsqrt.pop %v7363
  %v7372 = vrsqrt.pop %v7364
  %v7373 = vrsqrt.pop %v7365
  %v7374 = vrsqrt.pop %v7366
  %v7375 = vrsqrt.pop %v7367
  %v7376 = vrsqrt.pop %v7368
  %v7377 = vmul.f32 %v7369, %v6491
  %v7378 = vmul.f32 %v7370, %v6492
  %v7379 = vmul.f32 %v7371, %v6493
  %v7380 = vmul.f32 %v7372, %v6494
  %v7381 = vmul.f32 %v7373, %v6495
  %v7382 = vmul.f32 %v7374, %v6496
  %v7383 = vmul.f32 %v7375, %v6497
  %v7384 = vmul.f32 %v7376, %v6498
  %7386 = vset.pattern.permute.xlu0 0
  %7387 = vperm.xlu0 %7386, %v7377
  %v7388 = vpop.permute.xlu0 %7387
  %7391 = vset.pattern.permute.xlu0 0
  %7392 = vperm.xlu0 %7391, %v7378
  %v7393 = vpop.permute.xlu0 %7392
  %7396 = vset.pattern.permute.xlu0 0
  %7397 = vperm.xlu0 %7396, %v7379
  %v7398 = vpop.permute.xlu0 %7397
  %7401 = vset.pattern.permute.xlu0 0
  %7402 = vperm.xlu0 %7401, %v7380
  %v7403 = vpop.permute.xlu0 %7402
  %7406 = vset.pattern.permute.xlu0 0
  %7407 = vperm.xlu0 %7406, %v7381
  %v7408 = vpop.permute.xlu0 %7407
  %7411 = vset.pattern.permute.xlu0 0
  %7412 = vperm.xlu0 %7411, %v7382
  %v7413 = vpop.permute.xlu0 %7412
  %7416 = vset.pattern.permute.xlu0 0
  %7417 = vperm.xlu0 %7416, %v7383
  %v7418 = vpop.permute.xlu0 %7417
  %7421 = vset.pattern.permute.xlu0 0
  %7422 = vperm.xlu0 %7421, %v7384
  %v7423 = vpop.permute.xlu0 %7422
  %v7425 = vmul.f32 %v7353, %v7388
  %v7426 = vmul.f32 %v7354, %v7393
  %v7427 = vmul.f32 %v7355, %v7398
  %v7428 = vmul.f32 %v7356, %v7403
  %v7429 = vmul.f32 %v7357, %v7408
  %v7430 = vmul.f32 %v7358, %v7413
  %v7431 = vmul.f32 %v7359, %v7418
  %v7432 = vmul.f32 %v7360, %v7423
  %7434 = vset.pattern.permute.xlu0 0
  %7435 = vperm.xlu0 %7434, %v6499
  %v7436 = vpop.permute.xlu0 %7435
  %7439 = vset.pattern.permute.xlu0 0
  %7440 = vperm.xlu0 %7439, %v6500
  %v7441 = vpop.permute.xlu0 %7440
  %7444 = vset.pattern.permute.xlu0 0
  %7445 = vperm.xlu0 %7444, %v6501
  %v7446 = vpop.permute.xlu0 %7445
  %7449 = vset.pattern.permute.xlu0 0
  %7450 = vperm.xlu0 %7449, %v6502
  %v7451 = vpop.permute.xlu0 %7450
  %7454 = vset.pattern.permute.xlu0 0
  %7455 = vperm.xlu0 %7454, %v6503
  %v7456 = vpop.permute.xlu0 %7455
  %7459 = vset.pattern.permute.xlu0 0
  %7460 = vperm.xlu0 %7459, %v6504
  %v7461 = vpop.permute.xlu0 %7460
  %7464 = vset.pattern.permute.xlu0 0
  %7465 = vperm.xlu0 %7464, %v6505
  %v7466 = vpop.permute.xlu0 %7465
  %7469 = vset.pattern.permute.xlu0 0
  %7470 = vperm.xlu0 %7469, %v6506
  %v7471 = vpop.permute.xlu0 %7470
  %v7473 = vadd.f32 %v7425, %v7436
  %v7474 = vadd.f32 %v7426, %v7441
  %v7475 = vadd.f32 %v7427, %v7446
  %v7476 = vadd.f32 %v7428, %v7451
  %v7477 = vadd.f32 %v7429, %v7456
  %v7478 = vadd.f32 %v7430, %v7461
  %v7479 = vadd.f32 %v7431, %v7466
  %v7480 = vadd.f32 %v7432, %v7471
  %v7481 = vmax.f32 %v7473, 0.0
  %v7482 = vmax.f32 %v7474, 0.0
  %v7483 = vmax.f32 %v7475, 0.0
  %v7484 = vmax.f32 %v7476, 0.0
  %v7485 = vmax.f32 %v7477, 0.0
  %v7486 = vmax.f32 %v7478, 0.0
  %v7487 = vmax.f32 %v7479, 0.0
  %v7488 = vmax.f32 %v7480, 0.0
  %v7489 = vld [vmem:[%s123] sm:$0xff]
  %v7490 = vld [vmem:[%s123 + $0x8] sm:$0xff]
  %v7491 = vld [vmem:[%s123 + $0x10] sm:$0xff]
  %v7492 = vld [vmem:[%s123 + $0x18] sm:$0xff]
  %v7493 = vld [vmem:[%s125] sm:$0xff]
  %v7494 = vld [vmem:[%s125 + $0x8] sm:$0xff]
  %v7495 = vld [vmem:[%s125 + $0x10] sm:$0xff]
  %v7496 = vld [vmem:[%s125 + $0x18] sm:$0xff]
  %v7497 = vld [vmem:[%s127] sm:$0xff]
  %v7498 = vld [vmem:[%s127 + $0x8] sm:$0xff]
  %v7499 = vld [vmem:[%s127 + $0x10] sm:$0xff]
  %v7500 = vld [vmem:[%s127 + $0x18] sm:$0xff]
  %v7501 = vld [vmem:[%s129] sm:$0xff]
  %v7502 = vld [vmem:[%s129 + $0x8] sm:$0xff]
  %v7503 = vld [vmem:[%s129 + $0x10] sm:$0xff]
  %v7504 = vld [vmem:[%s129 + $0x18] sm:$0xff]
  %v7505 = vld [vmem:[%s131] sm:$0xff]
  %v7506 = vld [vmem:[%s131 + $0x8] sm:$0xff]
  %v7507 = vld [vmem:[%s133] sm:$0xff]
  %v7508 = vld [vmem:[%s133 + $0x8] sm:$0xff]
  %v7509 = vld [vmem:[%s135] sm:$0xff]
  %v7510 = vld [vmem:[%s135 + $0x8] sm:$0xff]
  %v7511 = vld [vmem:[%s137] sm:$0xff]
  %v7512 = vld [vmem:[%s137 + $0x8] sm:$0xff]
  %v7513 = vld [vmem:[%s137 + $0x10] sm:$0xff]
  %v7514 = vld [vmem:[%s137 + $0x18] sm:$0xff]
  %v7515 = vld [vmem:[%s139] sm:$0xff]
  %v7516 = vld [vmem:[%s139 + $0x8] sm:$0xff]
  %v7517 = vld [vmem:[%s139 + $0x10] sm:$0xff]
  %v7518 = vld [vmem:[%s139 + $0x18] sm:$0xff]
  %v7520 = vsel %vm467, %v7489, 0
  %v7523 = vsel %vm467, %v7490, 0
  %v7526 = vsel %vm467, %v7491, 0
  %v7529 = vsel %vm467, %v7492, 0
  %7531 = vmatprep.subr.mxu0 0.0
  %7532 = vmatpush1.msra.mxu0 %v7481
  %7533 = vmatprep.subr.mxu0 0.0
  %7534 = vmatpush1.msra.mxu0 %v7482
  %7535 = vmatprep.subr.mxu0 0.0
  %7536 = vmatpush1.msra.mxu0 %v7483
  %7537 = vmatprep.subr.mxu0 0.0
  %7538 = vmatpush1.msra.mxu0 %v7484
  %7539 = vmatprep.subr.mxu0 0.0
  %7540 = vmatpush1.msra.mxu0 %v7485
  %7541 = vmatprep.subr.mxu0 0.0
  %7542 = vmatpush1.msra.mxu0 %v7486
  %7543 = vmatprep.subr.mxu0 0.0
  %7544 = vmatpush1.msra.mxu0 %v7487
  %7545 = vmatprep.subr.mxu0 0.0
  %7546 = vmatpush1.msra.mxu0 %v7488
  %7547 = vmatprep.subr.mxu0 0.0
  %7548 = vmatpush1.msra.mxu0 0.0
  %7549 = vmatprep.subr.mxu0 0.0
  %7550 = vmatpush1.msra.mxu0 0.0
  %7551 = vmatprep.subr.mxu0 0.0
  %7552 = vmatpush1.msra.mxu0 0.0
  %7553 = vmatprep.subr.mxu0 0.0
  %7554 = vmatpush1.msra.mxu0 0.0
  %7555 = vmatprep.subr.mxu0 0.0
  %7556 = vmatpush1.msra.mxu0 0.0
  %7557 = vmatprep.subr.mxu0 0.0
  %7558 = vmatpush1.msra.mxu0 0.0
  %7559 = vmatprep.subr.mxu0 0.0
  %7560 = vmatpush1.msra.mxu0 0.0
  %7561 = vmatprep.subr.mxu0 0.0
  %7562 = vmatpush1.msra.mxu0 0.0
  %7563 = vmatprep.subr.mxu0 0.0
  %7564 = vmatpush1.msra.mxu0 0.0
  %7565 = vmatprep.subr.mxu0 0.0
  %7566 = vmatpush1.msra.mxu0 0.0
  %7567 = vmatprep.subr.mxu0 0.0
  %7568 = vmatpush1.msra.mxu0 0.0
  %7569 = vmatprep.subr.mxu0 0.0
  %7570 = vmatpush1.msra.mxu0 0.0
  %7571 = vmatprep.subr.mxu0 0.0
  %7572 = vmatpush1.msra.mxu0 0.0
  %7573 = vmatprep.subr.mxu0 0.0
  %7574 = vmatpush1.msra.mxu0 0.0
  %7575 = vmatprep.subr.mxu0 0.0
  %7576 = vmatpush1.msra.mxu0 0.0
  %7577 = vmatprep.subr.mxu0 0.0
  %7578 = vmatpush1.msra.mxu0 0.0
  %7579 = vmatprep.subr.mxu0 0.0
  %7580 = vmatpush1.msra.mxu0 0.0
  %7581 = vmatprep.subr.mxu0 0.0
  %7582 = vmatpush1.msra.mxu0 0.0
  %7583 = vmatprep.subr.mxu0 0.0
  %7584 = vmatpush1.msra.mxu0 0.0
  %7585 = vmatprep.subr.mxu0 0.0
  %7586 = vmatpush1.msra.mxu0 0.0
  %7587 = vmatprep.subr.mxu0 0.0
  %7588 = vmatpush1.msra.mxu0 0.0
  %7589 = vmatprep.subr.mxu0 0.0
  %7590 = vmatpush1.msra.mxu0 0.0
  %7591 = vmatprep.subr.mxu0 0.0
  %7592 = vmatpush1.msra.mxu0 0.0
  %7593 = vmatprep.subr.mxu0 0.0
  %7594 = vmatpush1.msra.mxu0 0.0
  %7595 = vmatprep.mubr.f32.mxu0 0.0
  %7596 = vmatmul.mubr.f32.gmra.mrb[0].mxu0 %v7520
  %v7597 = vpop.f32.mrb[0].mxu0
  %v7598 = vadd.f32 0.0, %v7597
  %v7599 = vpop.f32.mrb[0].mxu0
  %7600 = vmatprep.mubr.f32.mxu0 0.0
  %7601 = vmatmul.mubr.f32.gmra.mrb[0].mxu0 %v7523
  %v7602 = vpop.f32.mrb[0].mxu0
  %v7603 = vadd.f32 0.0, %v7602
  %v7604 = vpop.f32.mrb[0].mxu0
  %7605 = vmatprep.mubr.f32.mxu0 0.0
  %7606 = vmatmul.mubr.f32.gmra.mrb[0].mxu0 %v7526
  %v7607 = vpop.f32.mrb[0].mxu0
  %v7608 = vadd.f32 0.0, %v7607
  %v7609 = vpop.f32.mrb[0].mxu0
  %7610 = vmatprep.mubr.f32.mxu0 0.0
  %7611 = vmatmul.mubr.f32.gmra.mrb[0].mxu0 %v7529
  %v7612 = vpop.f32.mrb[0].mxu0
  %v7613 = vadd.f32 0.0, %v7612
  %v7614 = vpop.f32.mrb[0].mxu0
  %7615 = vdwg.mxu0
  %v7617 = vsel %vm467, %v7493, 0
  %v7620 = vsel %vm467, %v7494, 0
  %v7623 = vsel %vm467, %v7495, 0
  %v7626 = vsel %vm467, %v7496, 0
  %7628 = vmatprep.subr.mxu0 0.0
  %7629 = vmatpush1.msra.mxu0 %v7481
  %7630 = vmatprep.subr.mxu0 0.0
  %7631 = vmatpush1.msra.mxu0 %v7482
  %7632 = vmatprep.subr.mxu0 0.0
  %7633 = vmatpush1.msra.mxu0 %v7483
  %7634 = vmatprep.subr.mxu0 0.0
  %7635 = vmatpush1.msra.mxu0 %v7484
  %7636 = vmatprep.subr.mxu0 0.0
  %7637 = vmatpush1.msra.mxu0 %v7485
  %7638 = vmatprep.subr.mxu0 0.0
  %7639 = vmatpush1.msra.mxu0 %v7486
  %7640 = vmatprep.subr.mxu0 0.0
  %7641 = vmatpush1.msra.mxu0 %v7487
  %7642 = vmatprep.subr.mxu0 0.0
  %7643 = vmatpush1.msra.mxu0 %v7488
  %7644 = vmatprep.subr.mxu0 0.0
  %7645 = vmatpush1.msra.mxu0 0.0
  %7646 = vmatprep.subr.mxu0 0.0
  %7647 = vmatpush1.msra.mxu0 0.0
  %7648 = vmatprep.subr.mxu0 0.0
  %7649 = vmatpush1.msra.mxu0 0.0
  %7650 = vmatprep.subr.mxu0 0.0
  %7651 = vmatpush1.msra.mxu0 0.0
  %7652 = vmatprep.subr.mxu0 0.0
  %7653 = vmatpush1.msra.mxu0 0.0
  %7654 = vmatprep.subr.mxu0 0.0
  %7655 = vmatpush1.msra.mxu0 0.0
  %7656 = vmatprep.subr.mxu0 0.0
  %7657 = vmatpush1.msra.mxu0 0.0
  %7658 = vmatprep.subr.mxu0 0.0
  %7659 = vmatpush1.msra.mxu0 0.0
  %7660 = vmatprep.subr.mxu0 0.0
  %7661 = vmatpush1.msra.mxu0 0.0
  %7662 = vmatprep.subr.mxu0 0.0
  %7663 = vmatpush1.msra.mxu0 0.0
  %7664 = vmatprep.subr.mxu0 0.0
  %7665 = vmatpush1.msra.mxu0 0.0
  %7666 = vmatprep.subr.mxu0 0.0
  %7667 = vmatpush1.msra.mxu0 0.0
  %7668 = vmatprep.subr.mxu0 0.0
  %7669 = vmatpush1.msra.mxu0 0.0
  %7670 = vmatprep.subr.mxu0 0.0
  %7671 = vmatpush1.msra.mxu0 0.0
  %7672 = vmatprep.subr.mxu0 0.0
  %7673 = vmatpush1.msra.mxu0 0.0
  %7674 = vmatprep.subr.mxu0 0.0
  %7675 = vmatpush1.msra.mxu0 0.0
  %7676 = vmatprep.subr.mxu0 0.0
  %7677 = vmatpush1.msra.mxu0 0.0
  %7678 = vmatprep.subr.mxu0 0.0
  %7679 = vmatpush1.msra.mxu0 0.0
  %7680 = vmatprep.subr.mxu0 0.0
  %7681 = vmatpush1.msra.mxu0 0.0
  %7682 = vmatprep.subr.mxu0 0.0
  %7683 = vmatpush1.msra.mxu0 0.0
  %7684 = vmatprep.subr.mxu0 0.0
  %7685 = vmatpush1.msra.mxu0 0.0
  %7686 = vmatprep.subr.mxu0 0.0
  %7687 = vmatpush1.msra.mxu0 0.0
  %7688 = vmatprep.subr.mxu0 0.0
  %7689 = vmatpush1.msra.mxu0 0.0
  %7690 = vmatprep.subr.mxu0 0.0
  %7691 = vmatpush1.msra.mxu0 0.0
  %7692 = vmatprep.mubr.f32.mxu0 0.0
  %7693 = vmatmul.mubr.f32.gmra.mrb[0].mxu0 %v7617
  %v7694 = vpop.f32.mrb[0].mxu0
  %v7695 = vadd.f32 0.0, %v7694
  %v7696 = vpop.f32.mrb[0].mxu0
  %7697 = vmatprep.mubr.f32.mxu0 0.0
  %7698 = vmatmul.mubr.f32.gmra.mrb[0].mxu0 %v7620
  %v7699 = vpop.f32.mrb[0].mxu0
  %v7700 = vadd.f32 0.0, %v7699
  %v7701 = vpop.f32.mrb[0].mxu0
  %7702 = vmatprep.mubr.f32.mxu0 0.0
  %7703 = vmatmul.mubr.f32.gmra.mrb[0].mxu0 %v7623
  %v7704 = vpop.f32.mrb[0].mxu0
  %v7705 = vadd.f32 0.0, %v7704
  %v7706 = vpop.f32.mrb[0].mxu0
  %7707 = vmatprep.mubr.f32.mxu0 0.0
  %7708 = vmatmul.mubr.f32.gmra.mrb[0].mxu0 %v7626
  %v7709 = vpop.f32.mrb[0].mxu0
  %v7710 = vadd.f32 0.0, %v7709
  %v7711 = vpop.f32.mrb[0].mxu0
  %7712 = vdwg.mxu0
  %v7714 = vsel %vm2660, %v7695, 0
  %v7717 = vsel %vm2660, %v7700, 0
  %v7720 = vsel %vm2660, %v7705, 0
  %v7723 = vsel %vm2660, %v7710, 0
  %7725 = vmatprep.subr.mxu0 0.0
  %7726 = vmatpush1.msra.mxu0 %v7507
  %7727 = vmatprep.subr.mxu0 0.0
  %7728 = vmatpush1.msra.mxu0 %v7508
  %7729 = vmatprep.subr.mxu0 0.0
  %7730 = vmatpush1.msra.mxu0 0.0
  %7731 = vmatprep.subr.mxu0 0.0
  %7732 = vmatpush1.msra.mxu0 0.0
  %7733 = vmatprep.subr.mxu0 0.0
  %7734 = vmatpush1.msra.mxu0 0.0
  %7735 = vmatprep.subr.mxu0 0.0
  %7736 = vmatpush1.msra.mxu0 0.0
  %7737 = vmatprep.subr.mxu0 0.0
  %7738 = vmatpush1.msra.mxu0 0.0
  %7739 = vmatprep.subr.mxu0 0.0
  %7740 = vmatpush1.msra.mxu0 0.0
  %7741 = vmatprep.subr.mxu0 0.0
  %7742 = vmatpush1.msra.mxu0 0.0
  %7743 = vmatprep.subr.mxu0 0.0
  %7744 = vmatpush1.msra.mxu0 0.0
  %7745 = vmatprep.subr.mxu0 0.0
  %7746 = vmatpush1.msra.mxu0 0.0
  %7747 = vmatprep.subr.mxu0 0.0
  %7748 = vmatpush1.msra.mxu0 0.0
  %7749 = vmatprep.subr.mxu0 0.0
  %7750 = vmatpush1.msra.mxu0 0.0
  %7751 = vmatprep.subr.mxu0 0.0
  %7752 = vmatpush1.msra.mxu0 0.0
  %7753 = vmatprep.subr.mxu0 0.0
  %7754 = vmatpush1.msra.mxu0 0.0
  %7755 = vmatprep.subr.mxu0 0.0
  %7756 = vmatpush1.msra.mxu0 0.0
  %7757 = vmatprep.subr.mxu0 0.0
  %7758 = vmatpush1.msra.mxu0 0.0
  %7759 = vmatprep.subr.mxu0 0.0
  %7760 = vmatpush1.msra.mxu0 0.0
  %7761 = vmatprep.subr.mxu0 0.0
  %7762 = vmatpush1.msra.mxu0 0.0
  %7763 = vmatprep.subr.mxu0 0.0
  %7764 = vmatpush1.msra.mxu0 0.0
  %7765 = vmatprep.subr.mxu0 0.0
  %7766 = vmatpush1.msra.mxu0 0.0
  %7767 = vmatprep.subr.mxu0 0.0
  %7768 = vmatpush1.msra.mxu0 0.0
  %7769 = vmatprep.subr.mxu0 0.0
  %7770 = vmatpush1.msra.mxu0 0.0
  %7771 = vmatprep.subr.mxu0 0.0
  %7772 = vmatpush1.msra.mxu0 0.0
  %7773 = vmatprep.subr.mxu0 0.0
  %7774 = vmatpush1.msra.mxu0 0.0
  %7775 = vmatprep.subr.mxu0 0.0
  %7776 = vmatpush1.msra.mxu0 0.0
  %7777 = vmatprep.subr.mxu0 0.0
  %7778 = vmatpush1.msra.mxu0 0.0
  %7779 = vmatprep.subr.mxu0 0.0
  %7780 = vmatpush1.msra.mxu0 0.0
  %7781 = vmatprep.subr.mxu0 0.0
  %7782 = vmatpush1.msra.mxu0 0.0
  %7783 = vmatprep.subr.mxu0 0.0
  %7784 = vmatpush1.msra.mxu0 0.0
  %7785 = vmatprep.subr.mxu0 0.0
  %7786 = vmatpush1.msra.mxu0 0.0
  %7787 = vmatprep.subr.mxu0 0.0
  %7788 = vmatpush1.msra.mxu0 0.0
  %7789 = vmatprep.mubr.f32.mxu0 0.0
  %7790 = vmatmul.mubr.f32.gmra.mrb[0].mxu0 %v7714
  %v7791 = vpop.f32.mrb[0].mxu0
  %v7792 = vadd.f32 0.0, %v7791
  %v7793 = vpop.f32.mrb[0].mxu0
  %7794 = vmatprep.mubr.f32.mxu0 0.0
  %7795 = vmatmul.mubr.f32.gmra.mrb[0].mxu0 %v7717
  %v7796 = vpop.f32.mrb[0].mxu0
  %v7797 = vadd.f32 0.0, %v7796
  %v7798 = vpop.f32.mrb[0].mxu0
  %7799 = vmatprep.mubr.f32.mxu0 0.0
  %7800 = vmatmul.mubr.f32.gmra.mrb[0].mxu0 %v7720
  %v7801 = vpop.f32.mrb[0].mxu0
  %v7802 = vadd.f32 0.0, %v7801
  %v7803 = vpop.f32.mrb[0].mxu0
  %7804 = vmatprep.mubr.f32.mxu0 0.0
  %7805 = vmatmul.mubr.f32.gmra.mrb[0].mxu0 %v7723
  %v7806 = vpop.f32.mrb[0].mxu0
  %v7807 = vadd.f32 0.0, %v7806
  %v7808 = vpop.f32.mrb[0].mxu0
  %7809 = vdwg.mxu0
  %v7811 = vsel %vm2660, %v7598, 0
  %v7814 = vsel %vm2660, %v7603, 0
  %v7817 = vsel %vm2660, %v7608, 0
  %v7820 = vsel %vm2660, %v7613, 0
  %7822 = vmatprep.subr.mxu0 0.0
  %7823 = vmatpush1.msra.mxu0 %v7505
  %7824 = vmatprep.subr.mxu0 0.0
  %7825 = vmatpush1.msra.mxu0 %v7506
  %7826 = vmatprep.subr.mxu0 0.0
  %7827 = vmatpush1.msra.mxu0 0.0
  %7828 = vmatprep.subr.mxu0 0.0
  %7829 = vmatpush1.msra.mxu0 0.0
  %7830 = vmatprep.subr.mxu0 0.0
  %7831 = vmatpush1.msra.mxu0 0.0
  %7832 = vmatprep.subr.mxu0 0.0
  %7833 = vmatpush1.msra.mxu0 0.0
  %7834 = vmatprep.subr.mxu0 0.0
  %7835 = vmatpush1.msra.mxu0 0.0
  %7836 = vmatprep.subr.mxu0 0.0
  %7837 = vmatpush1.msra.mxu0 0.0
  %7838 = vmatprep.subr.mxu0 0.0
  %7839 = vmatpush1.msra.mxu0 0.0
  %7840 = vmatprep.subr.mxu0 0.0
  %7841 = vmatpush1.msra.mxu0 0.0
  %7842 = vmatprep.subr.mxu0 0.0
  %7843 = vmatpush1.msra.mxu0 0.0
  %7844 = vmatprep.subr.mxu0 0.0
  %7845 = vmatpush1.msra.mxu0 0.0
  %7846 = vmatprep.subr.mxu0 0.0
  %7847 = vmatpush1.msra.mxu0 0.0
  %7848 = vmatprep.subr.mxu0 0.0
  %7849 = vmatpush1.msra.mxu0 0.0
  %7850 = vmatprep.subr.mxu0 0.0
  %7851 = vmatpush1.msra.mxu0 0.0
  %7852 = vmatprep.subr.mxu0 0.0
  %7853 = vmatpush1.msra.mxu0 0.0
  %7854 = vmatprep.subr.mxu0 0.0
  %7855 = vmatpush1.msra.mxu0 0.0
  %7856 = vmatprep.subr.mxu0 0.0
  %7857 = vmatpush1.msra.mxu0 0.0
  %7858 = vmatprep.subr.mxu0 0.0
  %7859 = vmatpush1.msra.mxu0 0.0
  %7860 = vmatprep.subr.mxu0 0.0
  %7861 = vmatpush1.msra.mxu0 0.0
  %7862 = vmatprep.subr.mxu0 0.0
  %7863 = vmatpush1.msra.mxu0 0.0
  %7864 = vmatprep.subr.mxu0 0.0
  %7865 = vmatpush1.msra.mxu0 0.0
  %7866 = vmatprep.subr.mxu0 0.0
  %7867 = vmatpush1.msra.mxu0 0.0
  %7868 = vmatprep.subr.mxu0 0.0
  %7869 = vmatpush1.msra.mxu0 0.0
  %7870 = vmatprep.subr.mxu0 0.0
  %7871 = vmatpush1.msra.mxu0 0.0
  %7872 = vmatprep.subr.mxu0 0.0
  %7873 = vmatpush1.msra.mxu0 0.0
  %7874 = vmatprep.subr.mxu0 0.0
  %7875 = vmatpush1.msra.mxu0 0.0
  %7876 = vmatprep.subr.mxu0 0.0
  %7877 = vmatpush1.msra.mxu0 0.0
  %7878 = vmatprep.subr.mxu0 0.0
  %7879 = vmatpush1.msra.mxu0 0.0
  %7880 = vmatprep.subr.mxu0 0.0
  %7881 = vmatpush1.msra.mxu0 0.0
  %7882 = vmatprep.subr.mxu0 0.0
  %7883 = vmatpush1.msra.mxu0 0.0
  %7884 = vmatprep.subr.mxu0 0.0
  %7885 = vmatpush1.msra.mxu0 0.0
  %7886 = vmatprep.mubr.f32.mxu0 0.0
  %7887 = vmatmul.mubr.f32.gmra.mrb[0].mxu0 %v7811
  %v7888 = vpop.f32.mrb[0].mxu0
  %v7889 = vadd.f32 %v7792, %v7888
  %v7890 = vpop.f32.mrb[0].mxu0
  %7891 = vmatprep.mubr.f32.mxu0 0.0
  %7892 = vmatmul.mubr.f32.gmra.mrb[0].mxu0 %v7814
  %v7893 = vpop.f32.mrb[0].mxu0
  %v7894 = vadd.f32 %v7797, %v7893
  %v7895 = vpop.f32.mrb[0].mxu0
  %7896 = vmatprep.mubr.f32.mxu0 0.0
  %7897 = vmatmul.mubr.f32.gmra.mrb[0].mxu0 %v7817
  %v7898 = vpop.f32.mrb[0].mxu0
  %v7899 = vadd.f32 %v7802, %v7898
  %v7900 = vpop.f32.mrb[0].mxu0
  %7901 = vmatprep.mubr.f32.mxu0 0.0
  %7902 = vmatmul.mubr.f32.gmra.mrb[0].mxu0 %v7820
  %v7903 = vpop.f32.mrb[0].mxu0
  %v7904 = vadd.f32 %v7807, %v7903
  %v7905 = vpop.f32.mrb[0].mxu0
  %7906 = vdwg.mxu0
  %v7908 = vsel %vm467, %v7497, 0
  %v7911 = vsel %vm467, %v7498, 0
  %v7914 = vsel %vm467, %v7499, 0
  %v7917 = vsel %vm467, %v7500, 0
  %7919 = vmatprep.subr.mxu0 0.0
  %7920 = vmatpush1.msra.mxu0 %v7481
  %7921 = vmatprep.subr.mxu0 0.0
  %7922 = vmatpush1.msra.mxu0 %v7482
  %7923 = vmatprep.subr.mxu0 0.0
  %7924 = vmatpush1.msra.mxu0 %v7483
  %7925 = vmatprep.subr.mxu0 0.0
  %7926 = vmatpush1.msra.mxu0 %v7484
  %7927 = vmatprep.subr.mxu0 0.0
  %7928 = vmatpush1.msra.mxu0 %v7485
  %7929 = vmatprep.subr.mxu0 0.0
  %7930 = vmatpush1.msra.mxu0 %v7486
  %7931 = vmatprep.subr.mxu0 0.0
  %7932 = vmatpush1.msra.mxu0 %v7487
  %7933 = vmatprep.subr.mxu0 0.0
  %7934 = vmatpush1.msra.mxu0 %v7488
  %7935 = vmatprep.subr.mxu0 0.0
  %7936 = vmatpush1.msra.mxu0 0.0
  %7937 = vmatprep.subr.mxu0 0.0
  %7938 = vmatpush1.msra.mxu0 0.0
  %7939 = vmatprep.subr.mxu0 0.0
  %7940 = vmatpush1.msra.mxu0 0.0
  %7941 = vmatprep.subr.mxu0 0.0
  %7942 = vmatpush1.msra.mxu0 0.0
  %7943 = vmatprep.subr.mxu0 0.0
  %7944 = vmatpush1.msra.mxu0 0.0
  %7945 = vmatprep.subr.mxu0 0.0
  %7946 = vmatpush1.msra.mxu0 0.0
  %7947 = vmatprep.subr.mxu0 0.0
  %7948 = vmatpush1.msra.mxu0 0.0
  %7949 = vmatprep.subr.mxu0 0.0
  %7950 = vmatpush1.msra.mxu0 0.0
  %7951 = vmatprep.subr.mxu0 0.0
  %7952 = vmatpush1.msra.mxu0 0.0
  %7953 = vmatprep.subr.mxu0 0.0
  %7954 = vmatpush1.msra.mxu0 0.0
  %7955 = vmatprep.subr.mxu0 0.0
  %7956 = vmatpush1.msra.mxu0 0.0
  %7957 = vmatprep.subr.mxu0 0.0
  %7958 = vmatpush1.msra.mxu0 0.0
  %7959 = vmatprep.subr.mxu0 0.0
  %7960 = vmatpush1.msra.mxu0 0.0
  %7961 = vmatprep.subr.mxu0 0.0
  %7962 = vmatpush1.msra.mxu0 0.0
  %7963 = vmatprep.subr.mxu0 0.0
  %7964 = vmatpush1.msra.mxu0 0.0
  %7965 = vmatprep.subr.mxu0 0.0
  %7966 = vmatpush1.msra.mxu0 0.0
  %7967 = vmatprep.subr.mxu0 0.0
  %7968 = vmatpush1.msra.mxu0 0.0
  %7969 = vmatprep.subr.mxu0 0.0
  %7970 = vmatpush1.msra.mxu0 0.0
  %7971 = vmatprep.subr.mxu0 0.0
  %7972 = vmatpush1.msra.mxu0 0.0
  %7973 = vmatprep.subr.mxu0 0.0
  %7974 = vmatpush1.msra.mxu0 0.0
  %7975 = vmatprep.subr.mxu0 0.0
  %7976 = vmatpush1.msra.mxu0 0.0
  %7977 = vmatprep.subr.mxu0 0.0
  %7978 = vmatpush1.msra.mxu0 0.0
  %7979 = vmatprep.subr.mxu0 0.0
  %7980 = vmatpush1.msra.mxu0 0.0
  %7981 = vmatprep.subr.mxu0 0.0
  %7982 = vmatpush1.msra.mxu0 0.0
  %7983 = vmatprep.mubr.f32.mxu0 0.0
  %7984 = vmatmul.mubr.f32.gmra.mrb[0].mxu0 %v7908
  %v7985 = vpop.f32.mrb[0].mxu0
  %v7986 = vadd.f32 0.0, %v7985
  %v7987 = vpop.f32.mrb[0].mxu0
  %7988 = vmatprep.mubr.f32.mxu0 0.0
  %7989 = vmatmul.mubr.f32.gmra.mrb[0].mxu0 %v7911
  %v7990 = vpop.f32.mrb[0].mxu0
  %v7991 = vadd.f32 0.0, %v7990
  %v7992 = vpop.f32.mrb[0].mxu0
  %7993 = vmatprep.mubr.f32.mxu0 0.0
  %7994 = vmatmul.mubr.f32.gmra.mrb[0].mxu0 %v7914
  %v7995 = vpop.f32.mrb[0].mxu0
  %v7996 = vadd.f32 0.0, %v7995
  %v7997 = vpop.f32.mrb[0].mxu0
  %7998 = vmatprep.mubr.f32.mxu0 0.0
  %7999 = vmatmul.mubr.f32.gmra.mrb[0].mxu0 %v7917
  %v8000 = vpop.f32.mrb[0].mxu0
  %v8001 = vadd.f32 0.0, %v8000
  %v8002 = vpop.f32.mrb[0].mxu0
  %8003 = vdwg.mxu0
  %v8005 = vsel %vm2660, %v7986, 0
  %v8008 = vsel %vm2660, %v7991, 0
  %v8011 = vsel %vm2660, %v7996, 0
  %v8014 = vsel %vm2660, %v8001, 0
  %8016 = vmatprep.subr.mxu0 0.0
  %8017 = vmatpush1.msra.mxu0 %v7509
  %8018 = vmatprep.subr.mxu0 0.0
  %8019 = vmatpush1.msra.mxu0 %v7510
  %8020 = vmatprep.subr.mxu0 0.0
  %8021 = vmatpush1.msra.mxu0 0.0
  %8022 = vmatprep.subr.mxu0 0.0
  %8023 = vmatpush1.msra.mxu0 0.0
  %8024 = vmatprep.subr.mxu0 0.0
  %8025 = vmatpush1.msra.mxu0 0.0
  %8026 = vmatprep.subr.mxu0 0.0
  %8027 = vmatpush1.msra.mxu0 0.0
  %8028 = vmatprep.subr.mxu0 0.0
  %8029 = vmatpush1.msra.mxu0 0.0
  %8030 = vmatprep.subr.mxu0 0.0
  %8031 = vmatpush1.msra.mxu0 0.0
  %8032 = vmatprep.subr.mxu0 0.0
  %8033 = vmatpush1.msra.mxu0 0.0
  %8034 = vmatprep.subr.mxu0 0.0
  %8035 = vmatpush1.msra.mxu0 0.0
  %8036 = vmatprep.subr.mxu0 0.0
  %8037 = vmatpush1.msra.mxu0 0.0
  %8038 = vmatprep.subr.mxu0 0.0
  %8039 = vmatpush1.msra.mxu0 0.0
  %8040 = vmatprep.subr.mxu0 0.0
  %8041 = vmatpush1.msra.mxu0 0.0
  %8042 = vmatprep.subr.mxu0 0.0
  %8043 = vmatpush1.msra.mxu0 0.0
  %8044 = vmatprep.subr.mxu0 0.0
  %8045 = vmatpush1.msra.mxu0 0.0
  %8046 = vmatprep.subr.mxu0 0.0
  %8047 = vmatpush1.msra.mxu0 0.0
  %8048 = vmatprep.subr.mxu0 0.0
  %8049 = vmatpush1.msra.mxu0 0.0
  %8050 = vmatprep.subr.mxu0 0.0
  %8051 = vmatpush1.msra.mxu0 0.0
  %8052 = vmatprep.subr.mxu0 0.0
  %8053 = vmatpush1.msra.mxu0 0.0
  %8054 = vmatprep.subr.mxu0 0.0
  %8055 = vmatpush1.msra.mxu0 0.0
  %8056 = vmatprep.subr.mxu0 0.0
  %8057 = vmatpush1.msra.mxu0 0.0
  %8058 = vmatprep.subr.mxu0 0.0
  %8059 = vmatpush1.msra.mxu0 0.0
  %8060 = vmatprep.subr.mxu0 0.0
  %8061 = vmatpush1.msra.mxu0 0.0
  %8062 = vmatprep.subr.mxu0 0.0
  %8063 = vmatpush1.msra.mxu0 0.0
  %8064 = vmatprep.subr.mxu0 0.0
  %8065 = vmatpush1.msra.mxu0 0.0
  %8066 = vmatprep.subr.mxu0 0.0
  %8067 = vmatpush1.msra.mxu0 0.0
  %8068 = vmatprep.subr.mxu0 0.0
  %8069 = vmatpush1.msra.mxu0 0.0
  %8070 = vmatprep.subr.mxu0 0.0
  %8071 = vmatpush1.msra.mxu0 0.0
  %8072 = vmatprep.subr.mxu0 0.0
  %8073 = vmatpush1.msra.mxu0 0.0
  %8074 = vmatprep.subr.mxu0 0.0
  %8075 = vmatpush1.msra.mxu0 0.0
  %8076 = vmatprep.subr.mxu0 0.0
  %8077 = vmatpush1.msra.mxu0 0.0
  %8078 = vmatprep.subr.mxu0 0.0
  %8079 = vmatpush1.msra.mxu0 0.0
  %8080 = vmatprep.mubr.f32.mxu0 0.0
  %8081 = vmatmul.mubr.f32.gmra.mrb[0].mxu0 %v8005
  %v8082 = vpop.f32.mrb[0].mxu0
  %v8083 = vadd.f32 0.0, %v8082
  %v8084 = vpop.f32.mrb[0].mxu0
  %8085 = vmatprep.mubr.f32.mxu0 0.0
  %8086 = vmatmul.mubr.f32.gmra.mrb[0].mxu0 %v8008
  %v8087 = vpop.f32.mrb[0].mxu0
  %v8088 = vadd.f32 0.0, %v8087
  %v8089 = vpop.f32.mrb[0].mxu0
  %8090 = vmatprep.mubr.f32.mxu0 0.0
  %8091 = vmatmul.mubr.f32.gmra.mrb[0].mxu0 %v8011
  %v8092 = vpop.f32.mrb[0].mxu0
  %v8093 = vadd.f32 0.0, %v8092
  %v8094 = vpop.f32.mrb[0].mxu0
  %8095 = vmatprep.mubr.f32.mxu0 0.0
  %8096 = vmatmul.mubr.f32.gmra.mrb[0].mxu0 %v8014
  %v8097 = vpop.f32.mrb[0].mxu0
  %v8098 = vadd.f32 0.0, %v8097
  %v8099 = vpop.f32.mrb[0].mxu0
  %8100 = vdwg.mxu0
  %v8101 = vadd.f32 %v7889, %v8083
  %v8102 = vadd.f32 %v7894, %v8088
  %v8103 = vadd.f32 %v7899, %v8093
  %v8104 = vadd.f32 %v7904, %v8098
  %8106 = vset.pattern.permute.xlu0 0
  %8107 = vperm.xlu0 %8106, %v7501
  %v8108 = vpop.permute.xlu0 %8107
  %8111 = vset.pattern.permute.xlu0 0
  %8112 = vperm.xlu0 %8111, %v7502
  %v8113 = vpop.permute.xlu0 %8112
  %8116 = vset.pattern.permute.xlu0 0
  %8117 = vperm.xlu0 %8116, %v7503
  %v8118 = vpop.permute.xlu0 %8117
  %8121 = vset.pattern.permute.xlu0 0
  %8122 = vperm.xlu0 %8121, %v7504
  %v8123 = vpop.permute.xlu0 %8122
  %v8125 = vadd.f32 %v8101, %v8108
  %v8126 = vadd.f32 %v8102, %v8113
  %v8127 = vadd.f32 %v8103, %v8118
  %v8128 = vadd.f32 %v8104, %v8123
  %v8129 = vsel %vm1377, %v8125, 0.0
  %8130 = vadd.xlane.f32.xlu0 %v8129
  %v8131 = vpop.xlane.xlu0 %8130
  %v8132 = vsel %vm1377, %v8126, 0.0
  %8133 = vadd.xlane.f32.xlu0 %v8132
  %v8134 = vpop.xlane.xlu0 %8133
  %v8135 = vsel %vm1377, %v8127, 0.0
  %8136 = vadd.xlane.f32.xlu0 %v8135
  %v8137 = vpop.xlane.xlu0 %8136
  %v8138 = vsel %vm1377, %v8128, 0.0
  %8139 = vadd.xlane.f32.xlu0 %v8138
  %v8140 = vpop.xlane.xlu0 %8139
  %v8141 = vmul.f32 %v8125, %v8125
  %v8142 = vmul.f32 %v8126, %v8126
  %v8143 = vmul.f32 %v8127, %v8127
  %v8144 = vmul.f32 %v8128, %v8128
  %v8145 = vsel %vm1377, %v8141, 0.0
  %8146 = vadd.xlane.f32.xlu0 %v8145
  %v8147 = vpop.xlane.xlu0 %8146
  %v8148 = vsel %vm1377, %v8142, 0.0
  %8149 = vadd.xlane.f32.xlu0 %v8148
  %v8150 = vpop.xlane.xlu0 %8149
  %v8151 = vsel %vm1377, %v8143, 0.0
  %8152 = vadd.xlane.f32.xlu0 %v8151
  %v8153 = vpop.xlane.xlu0 %8152
  %v8154 = vsel %vm1377, %v8144, 0.0
  %8155 = vadd.xlane.f32.xlu0 %v8154
  %v8156 = vpop.xlane.xlu0 %8155
  %v8157 = vmul.f32 %v8131, 0.03125
  %v8158 = vmul.f32 %v8134, 0.03125
  %v8159 = vmul.f32 %v8137, 0.03125
  %v8160 = vmul.f32 %v8140, 0.03125
  %v8161 = vmul.f32 %v8147, 0.03125
  %v8162 = vmul.f32 %v8150, 0.03125
  %v8163 = vmul.f32 %v8153, 0.03125
  %v8164 = vmul.f32 %v8156, 0.03125
  %v8165 = vmul.f32 %v8157, %v8157
  %v8166 = vmul.f32 %v8158, %v8158
  %v8167 = vmul.f32 %v8159, %v8159
  %v8168 = vmul.f32 %v8160, %v8160
  %v8169 = vsub.f32 %v8161, %v8165
  %v8170 = vsub.f32 %v8162, %v8166
  %v8171 = vsub.f32 %v8163, %v8167
  %v8172 = vsub.f32 %v8164, %v8168
  %v8173 = vsub.f32 %v8125, %v8157
  %v8174 = vsub.f32 %v8126, %v8158
  %v8175 = vsub.f32 %v8127, %v8159
  %v8176 = vsub.f32 %v8128, %v8160
  %v8177 = vadd.f32 %v8169, 1e-05
  %v8178 = vadd.f32 %v8170, 1e-05
  %v8179 = vadd.f32 %v8171, 1e-05
  %v8180 = vadd.f32 %v8172, 1e-05
  %v8181 = vrsqrt.pop %v8177
  %v8182 = vrsqrt.pop %v8178
  %v8183 = vrsqrt.pop %v8179
  %v8184 = vrsqrt.pop %v8180
  %v8185 = vmul.f32 %v8181, %v7511
  %v8186 = vmul.f32 %v8182, %v7512
  %v8187 = vmul.f32 %v8183, %v7513
  %v8188 = vmul.f32 %v8184, %v7514
  %8190 = vset.pattern.permute.xlu0 0
  %8191 = vperm.xlu0 %8190, %v8185
  %v8192 = vpop.permute.xlu0 %8191
  %8195 = vset.pattern.permute.xlu0 0
  %8196 = vperm.xlu0 %8195, %v8186
  %v8197 = vpop.permute.xlu0 %8196
  %8200 = vset.pattern.permute.xlu0 0
  %8201 = vperm.xlu0 %8200, %v8187
  %v8202 = vpop.permute.xlu0 %8201
  %8205 = vset.pattern.permute.xlu0 0
  %8206 = vperm.xlu0 %8205, %v8188
  %v8207 = vpop.permute.xlu0 %8206
  %v8209 = vmul.f32 %v8173, %v8192
  %v8210 = vmul.f32 %v8174, %v8197
  %v8211 = vmul.f32 %v8175, %v8202
  %v8212 = vmul.f32 %v8176, %v8207
  %8214 = vset.pattern.permute.xlu0 0
  %8215 = vperm.xlu0 %8214, %v7515
  %v8216 = vpop.permute.xlu0 %8215
  %8219 = vset.pattern.permute.xlu0 0
  %8220 = vperm.xlu0 %8219, %v7516
  %v8221 = vpop.permute.xlu0 %8220
  %8224 = vset.pattern.permute.xlu0 0
  %8225 = vperm.xlu0 %8224, %v7517
  %v8226 = vpop.permute.xlu0 %8225
  %8229 = vset.pattern.permute.xlu0 0
  %8230 = vperm.xlu0 %8229, %v7518
  %v8231 = vpop.permute.xlu0 %8230
  %v8233 = vadd.f32 %v8209, %v8216
  %v8234 = vadd.f32 %v8210, %v8221
  %v8235 = vadd.f32 %v8211, %v8226
  %v8236 = vadd.f32 %v8212, %v8231
  %v8237 = vmax.f32 %v8233, 0.0
  %v8238 = vmax.f32 %v8234, 0.0
  %v8239 = vmax.f32 %v8235, 0.0
  %v8240 = vmax.f32 %v8236, 0.0
  %v8241 = vld [vmem:[%s141] sm:$0xf]
  %v8242 = vld [vmem:[%s143] sm:$0xf]
  %v8243 = vld [vmem:[%s145] sm:$0xf]
  %v8244 = vld [vmem:[%s147] sm:$0xf]
  %v8245 = vld [vmem:[%s149] sm:$0xff]
  %v8246 = vld [vmem:[%s149 + $0x8] sm:$0xff]
  %v8247 = vld [vmem:[%s149 + $0x10] sm:$0xff]
  %v8248 = vld [vmem:[%s149 + $0x18] sm:$0xff]
  %v8249 = vld [vmem:[%s151] sm:$0xff]
  %v8250 = vld [vmem:[%s151 + $0x8] sm:$0xff]
  %v8251 = vld [vmem:[%s151 + $0x10] sm:$0xff]
  %v8252 = vld [vmem:[%s151 + $0x18] sm:$0xff]
  %v8253 = vld [vmem:[%s153] sm:$0xff]
  %v8254 = vld [vmem:[%s153 + $0x8] sm:$0xff]
  %v8255 = vld [vmem:[%s153 + $0x10] sm:$0xff]
  %v8256 = vld [vmem:[%s153 + $0x18] sm:$0xff]
  %v8258 = vsel %vm1377, %v8241, 0
  %8260 = vmatprep.subr.mxu0 0.0
  %8261 = vmatpush1.msra.mxu0 %v8237
  %8262 = vmatprep.subr.mxu0 0.0
  %8263 = vmatpush1.msra.mxu0 %v8238
  %8264 = vmatprep.subr.mxu0 0.0
  %8265 = vmatpush1.msra.mxu0 %v8239
  %8266 = vmatprep.subr.mxu0 0.0
  %8267 = vmatpush1.msra.mxu0 %v8240
  %8268 = vmatprep.subr.mxu0 0.0
  %8269 = vmatpush1.msra.mxu0 0.0
  %8270 = vmatprep.subr.mxu0 0.0
  %8271 = vmatpush1.msra.mxu0 0.0
  %8272 = vmatprep.subr.mxu0 0.0
  %8273 = vmatpush1.msra.mxu0 0.0
  %8274 = vmatprep.subr.mxu0 0.0
  %8275 = vmatpush1.msra.mxu0 0.0
  %8276 = vmatprep.subr.mxu0 0.0
  %8277 = vmatpush1.msra.mxu0 0.0
  %8278 = vmatprep.subr.mxu0 0.0
  %8279 = vmatpush1.msra.mxu0 0.0
  %8280 = vmatprep.subr.mxu0 0.0
  %8281 = vmatpush1.msra.mxu0 0.0
  %8282 = vmatprep.subr.mxu0 0.0
  %8283 = vmatpush1.msra.mxu0 0.0
  %8284 = vmatprep.subr.mxu0 0.0
  %8285 = vmatpush1.msra.mxu0 0.0
  %8286 = vmatprep.subr.mxu0 0.0
  %8287 = vmatpush1.msra.mxu0 0.0
  %8288 = vmatprep.subr.mxu0 0.0
  %8289 = vmatpush1.msra.mxu0 0.0
  %8290 = vmatprep.subr.mxu0 0.0
  %8291 = vmatpush1.msra.mxu0 0.0
  %8292 = vmatprep.subr.mxu0 0.0
  %8293 = vmatpush1.msra.mxu0 0.0
  %8294 = vmatprep.subr.mxu0 0.0
  %8295 = vmatpush1.msra.mxu0 0.0
  %8296 = vmatprep.subr.mxu0 0.0
  %8297 = vmatpush1.msra.mxu0 0.0
  %8298 = vmatprep.subr.mxu0 0.0
  %8299 = vmatpush1.msra.mxu0 0.0
  %8300 = vmatprep.subr.mxu0 0.0
  %8301 = vmatpush1.msra.mxu0 0.0
  %8302 = vmatprep.subr.mxu0 0.0
  %8303 = vmatpush1.msra.mxu0 0.0
  %8304 = vmatprep.subr.mxu0 0.0
  %8305 = vmatpush1.msra.mxu0 0.0
  %8306 = vmatprep.subr.mxu0 0.0
  %8307 = vmatpush1.msra.mxu0 0.0
  %8308 = vmatprep.subr.mxu0 0.0
  %8309 = vmatpush1.msra.mxu0 0.0
  %8310 = vmatprep.subr.mxu0 0.0
  %8311 = vmatpush1.msra.mxu0 0.0
  %8312 = vmatprep.subr.mxu0 0.0
  %8313 = vmatpush1.msra.mxu0 0.0
  %8314 = vmatprep.subr.mxu0 0.0
  %8315 = vmatpush1.msra.mxu0 0.0
  %8316 = vmatprep.subr.mxu0 0.0
  %8317 = vmatpush1.msra.mxu0 0.0
  %8318 = vmatprep.subr.mxu0 0.0
  %8319 = vmatpush1.msra.mxu0 0.0
  %8320 = vmatprep.subr.mxu0 0.0
  %8321 = vmatpush1.msra.mxu0 0.0
  %8322 = vmatprep.subr.mxu0 0.0
  %8323 = vmatpush1.msra.mxu0 0.0
  %8324 = vmatprep.mubr.f32.mxu0 0.0
  %8325 = vmatmul.mubr.f32.gmra.mrb[0].mxu0 %v8258
  %v8326 = vpop.f32.mrb[0].mxu0
  %v8327 = vadd.f32 0.0, %v8326
  %v8328 = vpop.f32.mrb[0].mxu0
  %8329 = vdwg.mxu0
  %v8331 = vsel %vm1377, %v8242, 0
  %8333 = vmatprep.subr.mxu0 0.0
  %8334 = vmatpush1.msra.mxu0 %v8237
  %8335 = vmatprep.subr.mxu0 0.0
  %8336 = vmatpush1.msra.mxu0 %v8238
  %8337 = vmatprep.subr.mxu0 0.0
  %8338 = vmatpush1.msra.mxu0 %v8239
  %8339 = vmatprep.subr.mxu0 0.0
  %8340 = vmatpush1.msra.mxu0 %v8240
  %8341 = vmatprep.subr.mxu0 0.0
  %8342 = vmatpush1.msra.mxu0 0.0
  %8343 = vmatprep.subr.mxu0 0.0
  %8344 = vmatpush1.msra.mxu0 0.0
  %8345 = vmatprep.subr.mxu0 0.0
  %8346 = vmatpush1.msra.mxu0 0.0
  %8347 = vmatprep.subr.mxu0 0.0
  %8348 = vmatpush1.msra.mxu0 0.0
  %8349 = vmatprep.subr.mxu0 0.0
  %8350 = vmatpush1.msra.mxu0 0.0
  %8351 = vmatprep.subr.mxu0 0.0
  %8352 = vmatpush1.msra.mxu0 0.0
  %8353 = vmatprep.subr.mxu0 0.0
  %8354 = vmatpush1.msra.mxu0 0.0
  %8355 = vmatprep.subr.mxu0 0.0
  %8356 = vmatpush1.msra.mxu0 0.0
  %8357 = vmatprep.subr.mxu0 0.0
  %8358 = vmatpush1.msra.mxu0 0.0
  %8359 = vmatprep.subr.mxu0 0.0
  %8360 = vmatpush1.msra.mxu0 0.0
  %8361 = vmatprep.subr.mxu0 0.0
  %8362 = vmatpush1.msra.mxu0 0.0
  %8363 = vmatprep.subr.mxu0 0.0
  %8364 = vmatpush1.msra.mxu0 0.0
  %8365 = vmatprep.subr.mxu0 0.0
  %8366 = vmatpush1.msra.mxu0 0.0
  %8367 = vmatprep.subr.mxu0 0.0
  %8368 = vmatpush1.msra.mxu0 0.0
  %8369 = vmatprep.subr.mxu0 0.0
  %8370 = vmatpush1.msra.mxu0 0.0
  %8371 = vmatprep.subr.mxu0 0.0
  %8372 = vmatpush1.msra.mxu0 0.0
  %8373 = vmatprep.subr.mxu0 0.0
  %8374 = vmatpush1.msra.mxu0 0.0
  %8375 = vmatprep.subr.mxu0 0.0
  %8376 = vmatpush1.msra.mxu0 0.0
  %8377 = vmatprep.subr.mxu0 0.0
  %8378 = vmatpush1.msra.mxu0 0.0
  %8379 = vmatprep.subr.mxu0 0.0
  %8380 = vmatpush1.msra.mxu0 0.0
  %8381 = vmatprep.subr.mxu0 0.0
  %8382 = vmatpush1.msra.mxu0 0.0
  %8383 = vmatprep.subr.mxu0 0.0
  %8384 = vmatpush1.msra.mxu0 0.0
  %8385 = vmatprep.subr.mxu0 0.0
  %8386 = vmatpush1.msra.mxu0 0.0
  %8387 = vmatprep.subr.mxu0 0.0
  %8388 = vmatpush1.msra.mxu0 0.0
  %8389 = vmatprep.subr.mxu0 0.0
  %8390 = vmatpush1.msra.mxu0 0.0
  %8391 = vmatprep.subr.mxu0 0.0
  %8392 = vmatpush1.msra.mxu0 0.0
  %8393 = vmatprep.subr.mxu0 0.0
  %8394 = vmatpush1.msra.mxu0 0.0
  %8395 = vmatprep.subr.mxu0 0.0
  %8396 = vmatpush1.msra.mxu0 0.0
  %8397 = vmatprep.mubr.f32.mxu0 0.0
  %8398 = vmatmul.mubr.f32.gmra.mrb[0].mxu0 %v8331
  %v8399 = vpop.f32.mrb[0].mxu0
  %v8400 = vadd.f32 0.0, %v8399
  %v8401 = vpop.f32.mrb[0].mxu0
  %8402 = vdwg.mxu0
  %v8404 = vsel %vm1377, %v8400, 0
  %8406 = vmatprep.subr.mxu0 0.0
  %8407 = vmatpush1.msra.mxu0 %v8249
  %8408 = vmatprep.subr.mxu0 0.0
  %8409 = vmatpush1.msra.mxu0 %v8250
  %8410 = vmatprep.subr.mxu0 0.0
  %8411 = vmatpush1.msra.mxu0 %v8251
  %8412 = vmatprep.subr.mxu0 0.0
  %8413 = vmatpush1.msra.mxu0 %v8252
  %8414 = vmatprep.subr.mxu0 0.0
  %8415 = vmatpush1.msra.mxu0 0.0
  %8416 = vmatprep.subr.mxu0 0.0
  %8417 = vmatpush1.msra.mxu0 0.0
  %8418 = vmatprep.subr.mxu0 0.0
  %8419 = vmatpush1.msra.mxu0 0.0
  %8420 = vmatprep.subr.mxu0 0.0
  %8421 = vmatpush1.msra.mxu0 0.0
  %8422 = vmatprep.subr.mxu0 0.0
  %8423 = vmatpush1.msra.mxu0 0.0
  %8424 = vmatprep.subr.mxu0 0.0
  %8425 = vmatpush1.msra.mxu0 0.0
  %8426 = vmatprep.subr.mxu0 0.0
  %8427 = vmatpush1.msra.mxu0 0.0
  %8428 = vmatprep.subr.mxu0 0.0
  %8429 = vmatpush1.msra.mxu0 0.0
  %8430 = vmatprep.subr.mxu0 0.0
  %8431 = vmatpush1.msra.mxu0 0.0
  %8432 = vmatprep.subr.mxu0 0.0
  %8433 = vmatpush1.msra.mxu0 0.0
  %8434 = vmatprep.subr.mxu0 0.0
  %8435 = vmatpush1.msra.mxu0 0.0
  %8436 = vmatprep.subr.mxu0 0.0
  %8437 = vmatpush1.msra.mxu0 0.0
  %8438 = vmatprep.subr.mxu0 0.0
  %8439 = vmatpush1.msra.mxu0 0.0
  %8440 = vmatprep.subr.mxu0 0.0
  %8441 = vmatpush1.msra.mxu0 0.0
  %8442 = vmatprep.subr.mxu0 0.0
  %8443 = vmatpush1.msra.mxu0 0.0
  %8444 = vmatprep.subr.mxu0 0.0
  %8445 = vmatpush1.msra.mxu0 0.0
  %8446 = vmatprep.subr.mxu0 0.0
  %8447 = vmatpush1.msra.mxu0 0.0
  %8448 = vmatprep.subr.mxu0 0.0
  %8449 = vmatpush1.msra.mxu0 0.0
  %8450 = vmatprep.subr.mxu0 0.0
  %8451 = vmatpush1.msra.mxu0 0.0
  %8452 = vmatprep.subr.mxu0 0.0
  %8453 = vmatpush1.msra.mxu0 0.0
  %8454 = vmatprep.subr.mxu0 0.0
  %8455 = vmatpush1.msra.mxu0 0.0
  %8456 = vmatprep.subr.mxu0 0.0
  %8457 = vmatpush1.msra.mxu0 0.0
  %8458 = vmatprep.subr.mxu0 0.0
  %8459 = vmatpush1.msra.mxu0 0.0
  %8460 = vmatprep.subr.mxu0 0.0
  %8461 = vmatpush1.msra.mxu0 0.0
  %8462 = vmatprep.subr.mxu0 0.0
  %8463 = vmatpush1.msra.mxu0 0.0
  %8464 = vmatprep.subr.mxu0 0.0
  %8465 = vmatpush1.msra.mxu0 0.0
  %8466 = vmatprep.subr.mxu0 0.0
  %8467 = vmatpush1.msra.mxu0 0.0
  %8468 = vmatprep.subr.mxu0 0.0
  %8469 = vmatpush1.msra.mxu0 0.0
  %8470 = vmatprep.mubr.f32.mxu0 0.0
  %8471 = vmatmul.mubr.f32.gmra.mrb[0].mxu0 %v8404
  %v8472 = vpop.f32.mrb[0].mxu0
  %v8473 = vadd.f32 0.0, %v8472
  %v8474 = vpop.f32.mrb[0].mxu0
  %8475 = vdwg.mxu0
  %v8477 = vsel %vm1377, %v8327, 0
  %8479 = vmatprep.subr.mxu0 0.0
  %8480 = vmatpush1.msra.mxu0 %v8245
  %8481 = vmatprep.subr.mxu0 0.0
  %8482 = vmatpush1.msra.mxu0 %v8246
  %8483 = vmatprep.subr.mxu0 0.0
  %8484 = vmatpush1.msra.mxu0 %v8247
  %8485 = vmatprep.subr.mxu0 0.0
  %8486 = vmatpush1.msra.mxu0 %v8248
  %8487 = vmatprep.subr.mxu0 0.0
  %8488 = vmatpush1.msra.mxu0 0.0
  %8489 = vmatprep.subr.mxu0 0.0
  %8490 = vmatpush1.msra.mxu0 0.0
  %8491 = vmatprep.subr.mxu0 0.0
  %8492 = vmatpush1.msra.mxu0 0.0
  %8493 = vmatprep.subr.mxu0 0.0
  %8494 = vmatpush1.msra.mxu0 0.0
  %8495 = vmatprep.subr.mxu0 0.0
  %8496 = vmatpush1.msra.mxu0 0.0
  %8497 = vmatprep.subr.mxu0 0.0
  %8498 = vmatpush1.msra.mxu0 0.0
  %8499 = vmatprep.subr.mxu0 0.0
  %8500 = vmatpush1.msra.mxu0 0.0
  %8501 = vmatprep.subr.mxu0 0.0
  %8502 = vmatpush1.msra.mxu0 0.0
  %8503 = vmatprep.subr.mxu0 0.0
  %8504 = vmatpush1.msra.mxu0 0.0
  %8505 = vmatprep.subr.mxu0 0.0
  %8506 = vmatpush1.msra.mxu0 0.0
  %8507 = vmatprep.subr.mxu0 0.0
  %8508 = vmatpush1.msra.mxu0 0.0
  %8509 = vmatprep.subr.mxu0 0.0
  %8510 = vmatpush1.msra.mxu0 0.0
  %8511 = vmatprep.subr.mxu0 0.0
  %8512 = vmatpush1.msra.mxu0 0.0
  %8513 = vmatprep.subr.mxu0 0.0
  %8514 = vmatpush1.msra.mxu0 0.0
  %8515 = vmatprep.subr.mxu0 0.0
  %8516 = vmatpush1.msra.mxu0 0.0
  %8517 = vmatprep.subr.mxu0 0.0
  %8518 = vmatpush1.msra.mxu0 0.0
  %8519 = vmatprep.subr.mxu0 0.0
  %8520 = vmatpush1.msra.mxu0 0.0
  %8521 = vmatprep.subr.mxu0 0.0
  %8522 = vmatpush1.msra.mxu0 0.0
  %8523 = vmatprep.subr.mxu0 0.0
  %8524 = vmatpush1.msra.mxu0 0.0
  %8525 = vmatprep.subr.mxu0 0.0
  %8526 = vmatpush1.msra.mxu0 0.0
  %8527 = vmatprep.subr.mxu0 0.0
  %8528 = vmatpush1.msra.mxu0 0.0
  %8529 = vmatprep.subr.mxu0 0.0
  %8530 = vmatpush1.msra.mxu0 0.0
  %8531 = vmatprep.subr.mxu0 0.0
  %8532 = vmatpush1.msra.mxu0 0.0
  %8533 = vmatprep.subr.mxu0 0.0
  %8534 = vmatpush1.msra.mxu0 0.0
  %8535 = vmatprep.subr.mxu0 0.0
  %8536 = vmatpush1.msra.mxu0 0.0
  %8537 = vmatprep.subr.mxu0 0.0
  %8538 = vmatpush1.msra.mxu0 0.0
  %8539 = vmatprep.subr.mxu0 0.0
  %8540 = vmatpush1.msra.mxu0 0.0
  %8541 = vmatprep.subr.mxu0 0.0
  %8542 = vmatpush1.msra.mxu0 0.0
  %8543 = vmatprep.mubr.f32.mxu0 0.0
  %8544 = vmatmul.mubr.f32.gmra.mrb[0].mxu0 %v8477
  %v8545 = vpop.f32.mrb[0].mxu0
  %v8546 = vadd.f32 %v8473, %v8545
  %v8547 = vpop.f32.mrb[0].mxu0
  %8548 = vdwg.mxu0
  %v8550 = vsel %vm1377, %v8243, 0
  %8552 = vmatprep.subr.mxu0 0.0
  %8553 = vmatpush1.msra.mxu0 %v8237
  %8554 = vmatprep.subr.mxu0 0.0
  %8555 = vmatpush1.msra.mxu0 %v8238
  %8556 = vmatprep.subr.mxu0 0.0
  %8557 = vmatpush1.msra.mxu0 %v8239
  %8558 = vmatprep.subr.mxu0 0.0
  %8559 = vmatpush1.msra.mxu0 %v8240
  %8560 = vmatprep.subr.mxu0 0.0
  %8561 = vmatpush1.msra.mxu0 0.0
  %8562 = vmatprep.subr.mxu0 0.0
  %8563 = vmatpush1.msra.mxu0 0.0
  %8564 = vmatprep.subr.mxu0 0.0
  %8565 = vmatpush1.msra.mxu0 0.0
  %8566 = vmatprep.subr.mxu0 0.0
  %8567 = vmatpush1.msra.mxu0 0.0
  %8568 = vmatprep.subr.mxu0 0.0
  %8569 = vmatpush1.msra.mxu0 0.0
  %8570 = vmatprep.subr.mxu0 0.0
  %8571 = vmatpush1.msra.mxu0 0.0
  %8572 = vmatprep.subr.mxu0 0.0
  %8573 = vmatpush1.msra.mxu0 0.0
  %8574 = vmatprep.subr.mxu0 0.0
  %8575 = vmatpush1.msra.mxu0 0.0
  %8576 = vmatprep.subr.mxu0 0.0
  %8577 = vmatpush1.msra.mxu0 0.0
  %8578 = vmatprep.subr.mxu0 0.0
  %8579 = vmatpush1.msra.mxu0 0.0
  %8580 = vmatprep.subr.mxu0 0.0
  %8581 = vmatpush1.msra.mxu0 0.0
  %8582 = vmatprep.subr.mxu0 0.0
  %8583 = vmatpush1.msra.mxu0 0.0
  %8584 = vmatprep.subr.mxu0 0.0
  %8585 = vmatpush1.msra.mxu0 0.0
  %8586 = vmatprep.subr.mxu0 0.0
  %8587 = vmatpush1.msra.mxu0 0.0
  %8588 = vmatprep.subr.mxu0 0.0
  %8589 = vmatpush1.msra.mxu0 0.0
  %8590 = vmatprep.subr.mxu0 0.0
  %8591 = vmatpush1.msra.mxu0 0.0
  %8592 = vmatprep.subr.mxu0 0.0
  %8593 = vmatpush1.msra.mxu0 0.0
  %8594 = vmatprep.subr.mxu0 0.0
  %8595 = vmatpush1.msra.mxu0 0.0
  %8596 = vmatprep.subr.mxu0 0.0
  %8597 = vmatpush1.msra.mxu0 0.0
  %8598 = vmatprep.subr.mxu0 0.0
  %8599 = vmatpush1.msra.mxu0 0.0
  %8600 = vmatprep.subr.mxu0 0.0
  %8601 = vmatpush1.msra.mxu0 0.0
  %8602 = vmatprep.subr.mxu0 0.0
  %8603 = vmatpush1.msra.mxu0 0.0
  %8604 = vmatprep.subr.mxu0 0.0
  %8605 = vmatpush1.msra.mxu0 0.0
  %8606 = vmatprep.subr.mxu0 0.0
  %8607 = vmatpush1.msra.mxu0 0.0
  %8608 = vmatprep.subr.mxu0 0.0
  %8609 = vmatpush1.msra.mxu0 0.0
  %8610 = vmatprep.subr.mxu0 0.0
  %8611 = vmatpush1.msra.mxu0 0.0
  %8612 = vmatprep.subr.mxu0 0.0
  %8613 = vmatpush1.msra.mxu0 0.0
  %8614 = vmatprep.subr.mxu0 0.0
  %8615 = vmatpush1.msra.mxu0 0.0
  %8616 = vmatprep.mubr.f32.mxu0 0.0
  %8617 = vmatmul.mubr.f32.gmra.mrb[0].mxu0 %v8550
  %v8618 = vpop.f32.mrb[0].mxu0
  %v8619 = vadd.f32 0.0, %v8618
  %v8620 = vpop.f32.mrb[0].mxu0
  %8621 = vdwg.mxu0
  %v8623 = vsel %vm1377, %v8619, 0
  %8625 = vmatprep.subr.mxu0 0.0
  %8626 = vmatpush1.msra.mxu0 %v8253
  %8627 = vmatprep.subr.mxu0 0.0
  %8628 = vmatpush1.msra.mxu0 %v8254
  %8629 = vmatprep.subr.mxu0 0.0
  %8630 = vmatpush1.msra.mxu0 %v8255
  %8631 = vmatprep.subr.mxu0 0.0
  %8632 = vmatpush1.msra.mxu0 %v8256
  %8633 = vmatprep.subr.mxu0 0.0
  %8634 = vmatpush1.msra.mxu0 0.0
  %8635 = vmatprep.subr.mxu0 0.0
  %8636 = vmatpush1.msra.mxu0 0.0
  %8637 = vmatprep.subr.mxu0 0.0
  %8638 = vmatpush1.msra.mxu0 0.0
  %8639 = vmatprep.subr.mxu0 0.0
  %8640 = vmatpush1.msra.mxu0 0.0
  %8641 = vmatprep.subr.mxu0 0.0
  %8642 = vmatpush1.msra.mxu0 0.0
  %8643 = vmatprep.subr.mxu0 0.0
  %8644 = vmatpush1.msra.mxu0 0.0
  %8645 = vmatprep.subr.mxu0 0.0
  %8646 = vmatpush1.msra.mxu0 0.0
  %8647 = vmatprep.subr.mxu0 0.0
  %8648 = vmatpush1.msra.mxu0 0.0
  %8649 = vmatprep.subr.mxu0 0.0
  %8650 = vmatpush1.msra.mxu0 0.0
  %8651 = vmatprep.subr.mxu0 0.0
  %8652 = vmatpush1.msra.mxu0 0.0
  %8653 = vmatprep.subr.mxu0 0.0
  %8654 = vmatpush1.msra.mxu0 0.0
  %8655 = vmatprep.subr.mxu0 0.0
  %8656 = vmatpush1.msra.mxu0 0.0
  %8657 = vmatprep.subr.mxu0 0.0
  %8658 = vmatpush1.msra.mxu0 0.0
  %8659 = vmatprep.subr.mxu0 0.0
  %8660 = vmatpush1.msra.mxu0 0.0
  %8661 = vmatprep.subr.mxu0 0.0
  %8662 = vmatpush1.msra.mxu0 0.0
  %8663 = vmatprep.subr.mxu0 0.0
  %8664 = vmatpush1.msra.mxu0 0.0
  %8665 = vmatprep.subr.mxu0 0.0
  %8666 = vmatpush1.msra.mxu0 0.0
  %8667 = vmatprep.subr.mxu0 0.0
  %8668 = vmatpush1.msra.mxu0 0.0
  %8669 = vmatprep.subr.mxu0 0.0
  %8670 = vmatpush1.msra.mxu0 0.0
  %8671 = vmatprep.subr.mxu0 0.0
  %8672 = vmatpush1.msra.mxu0 0.0
  %8673 = vmatprep.subr.mxu0 0.0
  %8674 = vmatpush1.msra.mxu0 0.0
  %8675 = vmatprep.subr.mxu0 0.0
  %8676 = vmatpush1.msra.mxu0 0.0
  %8677 = vmatprep.subr.mxu0 0.0
  %8678 = vmatpush1.msra.mxu0 0.0
  %8679 = vmatprep.subr.mxu0 0.0
  %8680 = vmatpush1.msra.mxu0 0.0
  %8681 = vmatprep.subr.mxu0 0.0
  %8682 = vmatpush1.msra.mxu0 0.0
  %8683 = vmatprep.subr.mxu0 0.0
  %8684 = vmatpush1.msra.mxu0 0.0
  %8685 = vmatprep.subr.mxu0 0.0
  %8686 = vmatpush1.msra.mxu0 0.0
  %8687 = vmatprep.subr.mxu0 0.0
  %8688 = vmatpush1.msra.mxu0 0.0
  %8689 = vmatprep.mubr.f32.mxu0 0.0
  %8690 = vmatmul.mubr.f32.gmra.mrb[0].mxu0 %v8623
  %v8691 = vpop.f32.mrb[0].mxu0
  %v8692 = vadd.f32 0.0, %v8691
  %v8693 = vpop.f32.mrb[0].mxu0
  %8694 = vdwg.mxu0
  %v8695 = vadd.f32 %v8546, %v8692
  %8697 = vset.pattern.permute.xlu0 0
  %8698 = vperm.xlu0 %8697, %v8244
  %v8699 = vpop.permute.xlu0 %8698
  %v8701 = vadd.f32 %v8695, %v8699
  %vm8702 = vcmask 519168
  %8703 = vst.msk [vmem:[%s155] sm:$0xf] %vm8702, %v8701
  // Predicated region
  $region310: #{fwd.1} parent=0 // pred_check
    _
  $region311: #{fwd.1} parent=0 // pred_check_branch
    %8705 = sbr.rel (0) target = $region313
  $region312: #{fwd.1} parent=0 // pred_region
    _
  $region313: #{fwd.1} parent=0 // pred_fallthru
    _
  // Predicated region
  $region314: #{fwd.1} parent=0 // pred_check
    _
  $region315: #{fwd.1} parent=0 // pred_check_branch
    %8707 = sbr.rel (0) target = $region317
  $region316: #{fwd.1} parent=0 // pred_region
    _
  $region317: #{fwd.1} parent=0 // pred_fallthru
    _

</llo_original>
